<compile_context>
chip_gen: v7x
topology: tpu7x:2x2x1
jax: 0.10.0
libtpu: 0.0.40
codegen_flags: <defaults>
</compile_context>

<pallas_src>
import functools
import math

import jax
import jax.numpy as jnp
import numpy as np
from jax.experimental import pallas as pl
from jax.experimental.pallas import tpu as pltpu


def _dcnv2_kernel(H, W, kw, sh, sw, ph, pw, dh, dw, KK, TILE_P, HB,
                  geom_ref,   # (2, TILE_P)      f32  rows: [oy ; ox]
                  cols_ref,   # (KK*C, TILE_P)   f32  stage-1 im2col tile
                  xf_ref,     # (C, H*W)         bf16 whole image, channels-first
                  woff_ref,   # (3*KK, KK*C)     f32  conv_offset weight (rows: dy|dx|m)
                  boff_ref,   # (3*KK, 1)        f32  conv_offset bias
                  wm_ref,     # (OC, KK*C)       f32  main weight (tap-major)
                  bm_ref,     # (OC, 1)          f32  main bias
                  out_ref):   # (OC, TILE_P)
    f32 = jnp.float32
    bf16 = jnp.bfloat16

    # ---------- Stage 1: conv_offset = one lane-dense matmul --------------------
    # Kept in f32 / HIGHEST because the result feeds floor().
    offT = (jnp.dot(woff_ref[...], cols_ref[...],
                    preferred_element_type=f32,
                    precision=jax.lax.Precision.HIGHEST)
            + boff_ref[...])                                   # (3*KK, TILE_P)
    m_all = jax.nn.sigmoid(offT[2 * KK:3 * KK, :])             # (KK, TILE_P)

    oy = geom_ref[0:1, :]                                      # (1, TILE_P)
    ox = geom_ref[1:2, :]

    h_iota = jax.lax.broadcasted_iota(jnp.int32, (H, TILE_P), 0)
    w_iota = jax.lax.broadcasted_iota(jnp.int32, (W, TILE_P), 0)

    # ---------- Stage 2: modulated deformable bilinear sampling -----------------
    vals = []
    for k in range(KK):                      # static unroll over the 9 taps
        ki = k // kw
        kj = k % kw
        dy = offT[k:k + 1, :]
        dx = offT[KK + k:KK + k + 1, :]
        m = m_all[k:k + 1, :]

        y = (oy * float(sh) + float(ki * dh - ph)) + dy        # (1, TILE_P)
        xw = (ox * float(sw) + float(kj * dw - pw)) + dx
        valid = ((y > -1.0) & (y < float(H)) &
                 (xw > -1.0) & (xw < float(W))).astype(f32)

        y0f = jnp.floor(y)
        x0f = jnp.floor(xw)
        ly = y - y0f
        lx = xw - x0f
        hy = 1.0 - ly
        hx = 1.0 - lx
        y0 = y0f.astype(jnp.int32)
        x0 = x0f.astype(jnp.int32)

        # Separable bilinear factors: out-of-range corners drop out automatically
        # because the one-hot has no matching row / column.
        rowfac = ((jnp.where(h_iota == y0, hy, 0.0)
                   + jnp.where(h_iota == y0 + 1, ly, 0.0))
                  * (valid * m)).astype(bf16)                   # (H, TILE_P)
        colfac = (jnp.where(w_iota == x0, hx, 0.0)
                  + jnp.where(w_iota == x0 + 1, lx, 0.0)).astype(bf16)   # (W, TILE_P)

        # Banded contraction over image rows bounds the (band*W, TILE_P) temp.
        val_k = None
        for h0 in range(0, H, HB):
            hb = min(HB, H - h0)
            st = (rowfac[h0:h0 + hb, None, :] * colfac[None, :, :]
                  ).reshape(hb * W, TILE_P)                     # bf16 sampling matrix
            xband = xf_ref[:, h0 * W:(h0 + hb) * W]             # (C, hb*W) bf16
            part = jnp.dot(xband, st, preferred_element_type=f32)   # (C, TILE_P)
            val_k = part if val_k is None else val_k + part
        vals.append(val_k)

    cols2 = jnp.concatenate(vals, axis=0)                       # (KK*C, TILE_P) f32
    acc = jnp.dot(wm_ref[...], cols2, preferred_element_type=f32) + bm_ref[...]
    out_ref[...] = acc.astype(out_ref.dtype)                    # lane-dense store


def modulated_deform_conv2d_mlu(x, weight, bias, w_off, b_off,
                                stride=(1, 1), padding=(1, 1), dilation=(1, 1)):
    """Forward of ModulatedDeformConv2dPack_MLU (groups=1, deform_groups=1)."""
    N, C, H, W = x.shape
    OC, Cw, kh, kw = weight.shape
    OFFC = w_off.shape[0]
    sh, sw = stride
    ph, pw = padding
    dh, dw = dilation
    KK = kh * kw
    assert Cw == C, "groups > 1 not implemented"                 # TODO(synk): groups > 1
    assert OFFC == 3 * KK, "deform_groups > 1 not implemented"   # TODO(synk): deform_groups > 1
    assert sh == 1 and sw == 1, "stride > 1 not implemented"     # TODO(synk): strided windows

    Ho = (H + 2 * ph - dh * (kh - 1) - 1) // sh + 1
    Wo = (W + 2 * pw - dw * (kw - 1) - 1) // sw + 1
    HW = H * W

    # ---- output-pixel tile: lane-dense (multiple of 128), VMEM-capped, ragged-safe
    LANE = 128
    TILE_CAP = 512                                  # safe on v5e/v6e/v7x
    tr_unit = LANE // math.gcd(Wo, LANE)
    if tr_unit * Wo <= 4 * TILE_CAP:
        TR = tr_unit
        while (TR + tr_unit) * Wo <= TILE_CAP and TR < Ho:
            TR += tr_unit
    else:
        TR = Ho          # TODO(synk): tile within an output row for very wide Wo
    TILE_P = TR * Wo
    n_rt = -(-Ho // TR)                              # cdiv; ragged Ho handled by padding
    Ho_pad = n_rt * TR
    P_pad = Ho_pad * Wo

    # image-row band height for the stage-2 contraction (bounds (band*W, TILE_P) temps)
    HB = max(1, min(H, (1 << 20) // max(1, W * TILE_P)))
    hb_unit = LANE // math.gcd(W, LANE)
    if HB >= hb_unit:
        HB = (HB // hb_unit) * hb_unit               # keep band starts lane-aligned

    f32 = jnp.float32
    bf16 = jnp.bfloat16

    # Stage-1 im2col of the zero-padded input (host-side layout plumbing), rows k*C+c.
    extra_h = Ho_pad - Ho
    xpad = jnp.pad(x, ((0, 0), (0, 0), (ph, ph + extra_h), (pw, pw))).astype(f32)
    patches = []
    for ki in range(kh):
        for kj in range(kw):
            patches.append(xpad[:, :, ki * dh: ki * dh + Ho_pad, kj * dw: kj * dw + Wo])
    cols_all = jnp.concatenate(patches, axis=1).reshape(N, KK * C, P_pad)

    # whole image, channels-first flattened, bf16 (stage-2 gather-matmul operand)
    xf = x.reshape(N, C, HW).astype(bf16)

    # exact output-pixel coordinates, precomputed host-side: row 0 = oy, row 1 = ox
    oy = jnp.repeat(jnp.arange(Ho_pad, dtype=f32), Wo)
    ox = jnp.tile(jnp.arange(Wo, dtype=f32), Ho_pad)
    geom = jnp.stack([oy, ox], axis=0)                            # (2, P_pad)

    # conv_offset weight -> (OFFC, KK*C); rows permuted to [dy_0.. | dx_0.. | m_0..]
    perm = np.concatenate([np.arange(0, 2 * KK, 2),
                           np.arange(1, 2 * KK, 2),
                           np.arange(2 * KK, 3 * KK)])
    woffT = jnp.transpose(w_off.reshape(OFFC, C, KK), (0, 2, 1)).reshape(OFFC, KK * C)
    woffT = woffT[perm].astype(f32)
    boffT = b_off[perm].reshape(OFFC, 1).astype(f32)
    # main weight -> (OC, KK*C), tap-major (matches kernel's cols2 concat order)
    wmT = jnp.transpose(weight.reshape(OC, C, KK), (0, 2, 1)).reshape(OC, KK * C).astype(f32)
    bm = bias.reshape(OC, 1).astype(f32)

    kernel = functools.partial(_dcnv2_kernel, H, W, kw, sh, sw, ph, pw, dh, dw,
                               KK, TILE_P, HB)

    out_flat = pl.pallas_call(
        kernel,
        out_shape=jax.ShapeDtypeStruct((N, OC, P_pad), f32),
        grid=(N, n_rt),
        in_specs=[
            pl.BlockSpec((2, TILE_P),            lambda b, rt: (0, rt)),     # oy/ox
            pl.BlockSpec((None, KK * C, TILE_P), lambda b, rt: (b, 0, rt)),  # im2col tile
            pl.BlockSpec((None, C, HW),          lambda b, rt: (b, 0, 0)),   # image (bf16)
            pl.BlockSpec((OFFC, KK * C),         lambda b, rt: (0, 0)),      # conv_offset W
            pl.BlockSpec((OFFC, 1),              lambda b, rt: (0, 0)),      # conv_offset b
            pl.BlockSpec((OC, KK * C),           lambda b, rt: (0, 0)),      # main W
            pl.BlockSpec((OC, 1),                lambda b, rt: (0, 0)),      # main b
        ],
        out_specs=pl.BlockSpec((None, OC, TILE_P), lambda b, rt: (b, 0, rt)),
        compiler_params=pltpu.CompilerParams(
            dimension_semantics=("parallel", "parallel"),
            vmem_limit_bytes=48 * 1024 * 1024),
        # TODO(synk): single-buffer the batch-invariant image block (pl.Buffered(1))
        #             once stable across jax versions; frees a whole-image copy on v7x.
    )(geom, cols_all, xf, woffT, boffT, wmT, bm)

    # (N, OC, P_pad) -> NCHW: pure reshape + row slice, no transpose
    return out_flat.reshape(N, OC, Ho_pad, Wo)[:, :, :Ho, :]


# ---------------------------------------------------------------------------
# Pure-JAX reference (torchvision deform_conv2d semantics) for validation.
# ---------------------------------------------------------------------------
def reference_forward(x, weight, bias, w_off, b_off, stride, padding, dilation):
    N, C, H, W = x.shape
    OC, _, kh, kw = weight.shape
    sh, sw = stride
    ph, pw = padding
    dh, dw = dilation
    KK = kh * kw
    hi = jax.lax.Precision.HIGHEST

    off = jax.lax.conv_general_dilated(
        x, w_off, window_strides=(sh, sw), padding=[(ph, ph), (pw, pw)],
        rhs_dilation=(dh, dw), dimension_numbers=("NCHW", "OIHW", "NCHW"),
        precision=hi) + b_off[None, :, None, None]
    Ho, Wo = off.shape[2], off.shape[3]

    o1, o2, mraw = jnp.split(off, 3, axis=1)
    offset = jnp.concatenate([o1, o2], axis=1).reshape(N, KK, 2, Ho, Wo)
    mask = jax.nn.sigmoid(mraw)                                    # (N, KK, Ho, Wo)

    ks = jnp.arange(KK)
    ki = (ks // kw)[:, None, None]
    kj = (ks % kw)[:, None, None]
    base_y = (jnp.arange(Ho)[None, :, None] * sh - ph) + ki * dh   # (KK, Ho, 1)
    base_x = (jnp.arange(Wo)[None, None, :] * sw - pw) + kj * dw   # (KK, 1, Wo)

    y = base_y[None].astype(jnp.float32) + offset[:, :, 0]
    xx = base_x[None].astype(jnp.float32) + offset[:, :, 1]
    valid = (y > -1) & (y < H) & (xx > -1) & (xx < W)
    hl = jnp.floor(y); wl = jnp.floor(xx)
    lh = y - hl; lw = xx - wl
    hh = 1 - lh; hw_ = 1 - lw
    hl_i = hl.astype(jnp.int32); wl_i = wl.astype(jnp.int32)
    hh_i = hl_i + 1; wh_i = wl_i + 1
    ok1 = (hl_i >= 0) & (wl_i >= 0)
    ok2 = (hl_i >= 0) & (wh_i <= W - 1)
    ok3 = (hh_i <= H - 1) & (wl_i >= 0)
    ok4 = (hh_i <= H - 1) & (wh_i <= W - 1)
    w1 = hh * hw_ * ok1; w2 = hh * lw * ok2
    w3 = lh * hw_ * ok3; w4 = lh * lw * ok4
    cy = lambda a: jnp.clip(a, 0, H - 1)
    cx = lambda a: jnp.clip(a, 0, W - 1)
    i1 = cy(hl_i) * W + cx(wl_i); i2 = cy(hl_i) * W + cx(wh_i)
    i3 = cy(hh_i) * W + cx(wl_i); i4 = cy(hh_i) * W + cx(wh_i)

    xf = x.reshape(N, C, H * W)

    def gather(idx):
        return jax.vmap(
            lambda xi, ii: jnp.take(xi, ii.reshape(-1), axis=1).reshape(C, KK, Ho, Wo)
        )(xf, idx)

    v1 = gather(i1); v2 = gather(i2); v3 = gather(i3); v4 = gather(i4)
    interp = (w1[:, None] * v1 + w2[:, None] * v2 +
              w3[:, None] * v3 + w4[:, None] * v4)
    interp = jnp.where(valid[:, None], interp, 0.0) * mask[:, None]   # (N, C, KK, Ho, Wo)

    out = jnp.einsum('ock,nckp->nop',
                     weight.reshape(OC, C, KK),
                     interp.reshape(N, C, KK, Ho * Wo),
                     precision=hi)
    return out.reshape(N, OC, Ho, Wo) + bias[None, :, None, None]


if __name__ == "__main__":
    # ModulatedDeformConv2dPack_MLU(4, 8, kernel_size=3, stride=1, padding=1,
    #                               dilation=1, groups=1, deform_groups=1, bias=True)
    N, C_in, H, W = 2, 4, 16, 16
    OC, kh, kw = 8, 3, 3
    stride, padding, dilation = (1, 1), (1, 1), (1, 1)
    dg = 1
    OFFC = dg * 3 * kh * kw                     # 27

    key = jax.random.PRNGKey(0)
    k1, k2, k3, k4, k5 = jax.random.split(key, 5)

    # main weight: uniform(-stdv, stdv) (matches init_weights); bias is zero-init in
    # the module -- use a small random bias so the bias-add path is exercised.
    stdv = 1.0 / math.sqrt(C_in * kh * kw)
    weight = jax.random.uniform(k1, (OC, C_in, kh, kw), jnp.float32, -stdv, stdv)
    bias = 0.1 * jax.random.normal(k5, (OC,), jnp.float32)

    # NOTE: the PyTorch module zero-inits conv_offset (offsets=0, mask=sigmoid(0)=0.5).
    # Small random values are used instead so the deformable sampling path is actually
    # exercised; the forward semantics are identical.
    w_off = 0.05 * jax.random.normal(k2, (OFFC, C_in, kh, kw), jnp.float32)
    b_off = 0.05 * jax.random.normal(k3, (OFFC,), jnp.float32)

    x = jax.random.normal(k4, (N, C_in, H, W), jnp.float32)

    out = modulated_deform_conv2d_mlu(x, weight, bias, w_off, b_off,
                                      stride, padding, dilation)
    out = jax.block_until_ready(out)

    ref = reference_forward(x, weight, bias, w_off, b_off, stride, padding, dilation)
    ref = jax.block_until_ready(ref)

    Ho = (H + 2 * padding[0] - dilation[0] * (kh - 1) - 1) // stride[0] + 1
    Wo = (W + 2 * padding[1] - dilation[1] * (kw - 1) - 1) // stride[1] + 1

    out_np = np.asarray(out)
    ref_np = np.asarray(ref)
    assert out_np.shape == (N, OC, Ho, Wo), out_np.shape
    diff = np.abs(out_np - ref_np)
    # Kernel samples a bf16 image with bf16 sampling weights (MXU-native, f32 acc);
    # reference is f32/HIGHEST.  Offsets within float eps of an integer may also flip
    # floor(); allow a tiny outlier fraction.
    tol = 1e-2 + 1e-2 * np.abs(ref_np)
    mismatch_frac = float(np.mean(diff > tol))
    assert mismatch_frac < 0.01, f"mismatch fraction too high: {mismatch_frac}"

    print("KERNEL_OK")
</pallas_src>

<mosaic_0001>
module attributes {stable_mosaic.version = 11 : i64} {
  func.func @_dcnv2_kernel(%arg0: i32, %arg1: i32, %arg2: memref<2x256xf32, #tpu.memory_space<vmem>>, %arg3: memref<1x36x256xf32, #tpu.memory_space<vmem>>, %arg4: memref<1x4x256xbf16, #tpu.memory_space<vmem>>, %arg5: memref<27x36xf32, #tpu.memory_space<vmem>>, %arg6: memref<27x1xf32, #tpu.memory_space<vmem>>, %arg7: memref<8x36xf32, #tpu.memory_space<vmem>>, %arg8: memref<8x1xf32, #tpu.memory_space<vmem>>, %arg9: memref<1x8x256xf32, #tpu.memory_space<vmem>>) attributes {dimension_semantics = [#tpu.dimension_semantics<parallel>, #tpu.dimension_semantics<parallel>], iteration_bounds = array<i64: 2, 1>, scalar_prefetch = 0 : i64, scratch_operands = 0 : i64, tpu.core_type = #tpu.core_type<tc>, window_params = [{transform_indices = @transform_0, window_bounds = array<i64: 2, 256>}, {transform_indices = @transform_1, window_bounds = array<i64: 1, 36, 256>}, {transform_indices = @transform_2, window_bounds = array<i64: 1, 4, 256>}, {pipeline_mode = #tpu.pipeline_mode<synchronous>, transform_indices = @transform_3, window_bounds = array<i64: 27, 36>}, {pipeline_mode = #tpu.pipeline_mode<synchronous>, transform_indices = @transform_4, window_bounds = array<i64: 27, 1>}, {pipeline_mode = #tpu.pipeline_mode<synchronous>, transform_indices = @transform_5, window_bounds = array<i64: 8, 36>}, {pipeline_mode = #tpu.pipeline_mode<synchronous>, transform_indices = @transform_6, window_bounds = array<i64: 8, 1>}, {transform_indices = @transform_7, window_bounds = array<i64: 1, 8, 256>}]} {
    %c0 = arith.constant 0 : index
    %c0_0 = arith.constant 0 : index
    %0 = vector.load %arg5[%c0, %c0_0] : memref<27x36xf32, #tpu.memory_space<vmem>>, vector<27x36xf32>
    %c0_1 = arith.constant 0 : index
    %c0_2 = arith.constant 0 : index
    %c0_3 = arith.constant 0 : index
    %1 = vector.load %arg3[%c0_1, %c0_2, %c0_3] : memref<1x36x256xf32, #tpu.memory_space<vmem>>, vector<1x36x256xf32>
    %2 = vector.shape_cast %1 : vector<1x36x256xf32> to vector<36x256xf32>
    %cst = arith.constant dense<0.000000e+00> : vector<27x256xf32>
    %3 = tpu.matmul %0, %2, %cst {dimension_numbers = #tpu.dot_dimension_numbers<[1], [0], [0], [1], [0, 0, 1, 1], [], []>, precision = #tpu.contract_precision<fp32>} : vector<27x36xf32>, vector<36x256xf32>, vector<27x256xf32> -> vector<27x256xf32>
    %c0_4 = arith.constant 0 : index
    %c0_5 = arith.constant 0 : index
    %4 = vector.load %arg6[%c0_4, %c0_5] : memref<27x1xf32, #tpu.memory_space<vmem>>, vector<27x1xf32>
    %5 = vector.broadcast %4 : vector<27x1xf32> to vector<27x256xf32>
    %6 = arith.addf %3, %5 : vector<27x256xf32>
    %7 = vector.extract_strided_slice %6 {offsets = [18, 0], sizes = [9, 256], strides = [1, 1]} : vector<27x256xf32> to vector<9x256xf32>
    %8 = arith.negf %7 : vector<9x256xf32>
    %9 = math.exp %8 : vector<9x256xf32>
    %cst_6 = arith.constant 1.000000e+00 : f32
    %10 = vector.broadcast %cst_6 : f32 to vector<9x256xf32>
    %11 = arith.addf %10, %9 : vector<9x256xf32>
    %12 = arith.divf %10, %11 : vector<9x256xf32>
    %c0_7 = arith.constant 0 : index
    %c0_8 = arith.constant 0 : index
    %13 = vector.load %arg2[%c0_7, %c0_8] : memref<2x256xf32, #tpu.memory_space<vmem>>, vector<1x256xf32>
    %c1 = arith.constant 1 : index
    %c0_9 = arith.constant 0 : index
    %14 = vector.load %arg2[%c1, %c0_9] : memref<2x256xf32, #tpu.memory_space<vmem>>, vector<1x256xf32>
    %15 = tpu.iota {dimensions = array<i32: 0>} : vector<16x256xi32>
    %16 = tpu.iota {dimensions = array<i32: 0>} : vector<16x256xi32>
    %17 = vector.extract_strided_slice %6 {offsets = [0, 0], sizes = [1, 256], strides = [1, 1]} : vector<27x256xf32> to vector<1x256xf32>
    %18 = vector.extract_strided_slice %6 {offsets = [9, 0], sizes = [1, 256], strides = [1, 1]} : vector<27x256xf32> to vector<1x256xf32>
    %19 = vector.extract_strided_slice %12 {offsets = [0, 0], sizes = [1, 256], strides = [1, 1]} : vector<9x256xf32> to vector<1x256xf32>
    %cst_10 = arith.constant 1.000000e+00 : f32
    %20 = vector.broadcast %cst_10 : f32 to vector<1x256xf32>
    %21 = arith.mulf %13, %20 : vector<1x256xf32>
    %cst_11 = arith.constant -1.000000e+00 : f32
    %22 = vector.broadcast %cst_11 : f32 to vector<1x256xf32>
    %23 = arith.addf %21, %22 : vector<1x256xf32>
    %24 = arith.addf %23, %17 : vector<1x256xf32>
    %cst_12 = arith.constant 1.000000e+00 : f32
    %25 = vector.broadcast %cst_12 : f32 to vector<1x256xf32>
    %26 = arith.mulf %14, %25 : vector<1x256xf32>
    %cst_13 = arith.constant -1.000000e+00 : f32
    %27 = vector.broadcast %cst_13 : f32 to vector<1x256xf32>
    %28 = arith.addf %26, %27 : vector<1x256xf32>
    %29 = arith.addf %28, %18 : vector<1x256xf32>
    %cst_14 = arith.constant -1.000000e+00 : f32
    %30 = vector.broadcast %cst_14 : f32 to vector<1x256xf32>
    %31 = arith.cmpf ogt, %24, %30 : vector<1x256xf32>
    %cst_15 = arith.constant 1.600000e+01 : f32
    %32 = vector.broadcast %cst_15 : f32 to vector<1x256xf32>
    %33 = arith.cmpf olt, %24, %32 : vector<1x256xf32>
    %34 = arith.andi %31, %33 : vector<1x256xi1>
    %cst_16 = arith.constant -1.000000e+00 : f32
    %35 = vector.broadcast %cst_16 : f32 to vector<1x256xf32>
    %36 = arith.cmpf ogt, %29, %35 : vector<1x256xf32>
    %37 = arith.andi %34, %36 : vector<1x256xi1>
    %cst_17 = arith.constant 1.600000e+01 : f32
    %38 = vector.broadcast %cst_17 : f32 to vector<1x256xf32>
    %39 = arith.cmpf olt, %29, %38 : vector<1x256xf32>
    %40 = arith.andi %37, %39 : vector<1x256xi1>
    %41 = arith.extui %40 : vector<1x256xi1> to vector<1x256xi32>
    %42 = arith.sitofp %41 : vector<1x256xi32> to vector<1x256xf32>
    %43 = math.floor %24 : vector<1x256xf32>
    %44 = math.floor %29 : vector<1x256xf32>
    %45 = arith.subf %24, %43 : vector<1x256xf32>
    %46 = arith.subf %29, %44 : vector<1x256xf32>
    %cst_18 = arith.constant 1.000000e+00 : f32
    %47 = vector.broadcast %cst_18 : f32 to vector<1x256xf32>
    %48 = arith.subf %47, %45 : vector<1x256xf32>
    %cst_19 = arith.constant 1.000000e+00 : f32
    %49 = vector.broadcast %cst_19 : f32 to vector<1x256xf32>
    %50 = arith.subf %49, %46 : vector<1x256xf32>
    %51 = arith.fptosi %43 : vector<1x256xf32> to vector<1x256xi32>
    %52 = arith.fptosi %44 : vector<1x256xf32> to vector<1x256xi32>
    %53 = vector.broadcast %51 : vector<1x256xi32> to vector<16x256xi32>
    %54 = arith.cmpi eq, %15, %53 : vector<16x256xi32>
    %cst_20 = arith.constant 0.000000e+00 : f32
    %55 = vector.shape_cast %48 : vector<1x256xf32> to vector<1x256xf32>
    %56 = vector.broadcast %55 : vector<1x256xf32> to vector<16x256xf32>
    %57 = vector.broadcast %cst_20 : f32 to vector<16x256xf32>
    %58 = arith.select %54, %56, %57 : vector<16x256xi1>, vector<16x256xf32>
    %c1_i32 = arith.constant 1 : i32
    %59 = vector.broadcast %c1_i32 : i32 to vector<1x256xi32>
    %60 = arith.addi %51, %59 : vector<1x256xi32>
    %61 = vector.broadcast %60 : vector<1x256xi32> to vector<16x256xi32>
    %62 = arith.cmpi eq, %15, %61 : vector<16x256xi32>
    %cst_21 = arith.constant 0.000000e+00 : f32
    %63 = vector.shape_cast %45 : vector<1x256xf32> to vector<1x256xf32>
    %64 = vector.broadcast %63 : vector<1x256xf32> to vector<16x256xf32>
    %65 = vector.broadcast %cst_21 : f32 to vector<16x256xf32>
    %66 = arith.select %62, %64, %65 : vector<16x256xi1>, vector<16x256xf32>
    %67 = arith.addf %58, %66 : vector<16x256xf32>
    %68 = arith.mulf %42, %19 : vector<1x256xf32>
    %69 = vector.broadcast %68 : vector<1x256xf32> to vector<16x256xf32>
    %70 = arith.mulf %67, %69 : vector<16x256xf32>
    %71 = arith.truncf %70 : vector<16x256xf32> to vector<16x256xbf16>
    %72 = vector.broadcast %52 : vector<1x256xi32> to vector<16x256xi32>
    %73 = arith.cmpi eq, %16, %72 : vector<16x256xi32>
    %cst_22 = arith.constant 0.000000e+00 : f32
    %74 = vector.shape_cast %50 : vector<1x256xf32> to vector<1x256xf32>
    %75 = vector.broadcast %74 : vector<1x256xf32> to vector<16x256xf32>
    %76 = vector.broadcast %cst_22 : f32 to vector<16x256xf32>
    %77 = arith.select %73, %75, %76 : vector<16x256xi1>, vector<16x256xf32>
    %c1_i32_23 = arith.constant 1 : i32
    %78 = vector.broadcast %c1_i32_23 : i32 to vector<1x256xi32>
    %79 = arith.addi %52, %78 : vector<1x256xi32>
    %80 = vector.broadcast %79 : vector<1x256xi32> to vector<16x256xi32>
    %81 = arith.cmpi eq, %16, %80 : vector<16x256xi32>
    %cst_24 = arith.constant 0.000000e+00 : f32
    %82 = vector.shape_cast %46 : vector<1x256xf32> to vector<1x256xf32>
    %83 = vector.broadcast %82 : vector<1x256xf32> to vector<16x256xf32>
    %84 = vector.broadcast %cst_24 : f32 to vector<16x256xf32>
    %85 = arith.select %81, %83, %84 : vector<16x256xi1>, vector<16x256xf32>
    %86 = arith.addf %77, %85 : vector<16x256xf32>
    %87 = arith.truncf %86 : vector<16x256xf32> to vector<16x256xbf16>
    %88 = vector.shape_cast %71 : vector<16x256xbf16> to vector<16x1x256xbf16>
    %89 = vector.shape_cast %87 : vector<16x256xbf16> to vector<1x16x256xbf16>
    %90 = vector.broadcast %88 : vector<16x1x256xbf16> to vector<16x16x256xbf16>
    %91 = vector.broadcast %89 : vector<1x16x256xbf16> to vector<16x16x256xbf16>
    %92 = arith.mulf %90, %91 : vector<16x16x256xbf16>
    %93 = vector.shape_cast %92 : vector<16x16x256xbf16> to vector<256x256xbf16>
    %c0_25 = arith.constant 0 : index
    %c0_26 = arith.constant 0 : index
    %c0_27 = arith.constant 0 : index
    %94 = vector.load %arg4[%c0_25, %c0_26, %c0_27] : memref<1x4x256xbf16, #tpu.memory_space<vmem>>, vector<1x4x256xbf16>
    %95 = vector.shape_cast %94 : vector<1x4x256xbf16> to vector<4x256xbf16>
    %cst_28 = arith.constant dense<0.000000e+00> : vector<4x256xf32>
    %96 = tpu.matmul %95, %93, %cst_28 {dimension_numbers = #tpu.dot_dimension_numbers<[1], [0], [0], [1], [0, 0, 1, 1], [], []>} : vector<4x256xbf16>, vector<256x256xbf16>, vector<4x256xf32> -> vector<4x256xf32>
    %97 = vector.extract_strided_slice %6 {offsets = [1, 0], sizes = [1, 256], strides = [1, 1]} : vector<27x256xf32> to vector<1x256xf32>
    %98 = vector.extract_strided_slice %6 {offsets = [10, 0], sizes = [1, 256], strides = [1, 1]} : vector<27x256xf32> to vector<1x256xf32>
    %99 = vector.extract_strided_slice %12 {offsets = [1, 0], sizes = [1, 256], strides = [1, 1]} : vector<9x256xf32> to vector<1x256xf32>
    %cst_29 = arith.constant 1.000000e+00 : f32
    %100 = vector.broadcast %cst_29 : f32 to vector<1x256xf32>
    %101 = arith.mulf %13, %100 : vector<1x256xf32>
    %cst_30 = arith.constant -1.000000e+00 : f32
    %102 = vector.broadcast %cst_30 : f32 to vector<1x256xf32>
    %103 = arith.addf %101, %102 : vector<1x256xf32>
    %104 = arith.addf %103, %97 : vector<1x256xf32>
    %cst_31 = arith.constant 1.000000e+00 : f32
    %105 = vector.broadcast %cst_31 : f32 to vector<1x256xf32>
    %106 = arith.mulf %14, %105 : vector<1x256xf32>
    %cst_32 = arith.constant 0.000000e+00 : f32
    %107 = vector.broadcast %cst_32 : f32 to vector<1x256xf32>
    %108 = arith.addf %106, %107 : vector<1x256xf32>
    %109 = arith.addf %108, %98 : vector<1x256xf32>
    %cst_33 = arith.constant -1.000000e+00 : f32
    %110 = vector.broadcast %cst_33 : f32 to vector<1x256xf32>
    %111 = arith.cmpf ogt, %104, %110 : vector<1x256xf32>
    %cst_34 = arith.constant 1.600000e+01 : f32
    %112 = vector.broadcast %cst_34 : f32 to vector<1x256xf32>
    %113 = arith.cmpf olt, %104, %112 : vector<1x256xf32>
    %114 = arith.andi %111, %113 : vector<1x256xi1>
    %cst_35 = arith.constant -1.000000e+00 : f32
    %115 = vector.broadcast %cst_35 : f32 to vector<1x256xf32>
    %116 = arith.cmpf ogt, %109, %115 : vector<1x256xf32>
    %117 = arith.andi %114, %116 : vector<1x256xi1>
    %cst_36 = arith.constant 1.600000e+01 : f32
    %118 = vector.broadcast %cst_36 : f32 to vector<1x256xf32>
    %119 = arith.cmpf olt, %109, %118 : vector<1x256xf32>
    %120 = arith.andi %117, %119 : vector<1x256xi1>
    %121 = arith.extui %120 : vector<1x256xi1> to vector<1x256xi32>
    %122 = arith.sitofp %121 : vector<1x256xi32> to vector<1x256xf32>
    %123 = math.floor %104 : vector<1x256xf32>
    %124 = math.floor %109 : vector<1x256xf32>
    %125 = arith.subf %104, %123 : vector<1x256xf32>
    %126 = arith.subf %109, %124 : vector<1x256xf32>
    %cst_37 = arith.constant 1.000000e+00 : f32
    %127 = vector.broadcast %cst_37 : f32 to vector<1x256xf32>
    %128 = arith.subf %127, %125 : vector<1x256xf32>
    %cst_38 = arith.constant 1.000000e+00 : f32
    %129 = vector.broadcast %cst_38 : f32 to vector<1x256xf32>
    %130 = arith.subf %129, %126 : vector<1x256xf32>
    %131 = arith.fptosi %123 : vector<1x256xf32> to vector<1x256xi32>
    %132 = arith.fptosi %124 : vector<1x256xf32> to vector<1x256xi32>
    %133 = vector.broadcast %131 : vector<1x256xi32> to vector<16x256xi32>
    %134 = arith.cmpi eq, %15, %133 : vector<16x256xi32>
    %cst_39 = arith.constant 0.000000e+00 : f32
    %135 = vector.shape_cast %128 : vector<1x256xf32> to vector<1x256xf32>
    %136 = vector.broadcast %135 : vector<1x256xf32> to vector<16x256xf32>
    %137 = vector.broadcast %cst_39 : f32 to vector<16x256xf32>
    %138 = arith.select %134, %136, %137 : vector<16x256xi1>, vector<16x256xf32>
    %c1_i32_40 = arith.constant 1 : i32
    %139 = vector.broadcast %c1_i32_40 : i32 to vector<1x256xi32>
    %140 = arith.addi %131, %139 : vector<1x256xi32>
    %141 = vector.broadcast %140 : vector<1x256xi32> to vector<16x256xi32>
    %142 = arith.cmpi eq, %15, %141 : vector<16x256xi32>
    %cst_41 = arith.constant 0.000000e+00 : f32
    %143 = vector.shape_cast %125 : vector<1x256xf32> to vector<1x256xf32>
    %144 = vector.broadcast %143 : vector<1x256xf32> to vector<16x256xf32>
    %145 = vector.broadcast %cst_41 : f32 to vector<16x256xf32>
    %146 = arith.select %142, %144, %145 : vector<16x256xi1>, vector<16x256xf32>
    %147 = arith.addf %138, %146 : vector<16x256xf32>
    %148 = arith.mulf %122, %99 : vector<1x256xf32>
    %149 = vector.broadcast %148 : vector<1x256xf32> to vector<16x256xf32>
    %150 = arith.mulf %147, %149 : vector<16x256xf32>
    %151 = arith.truncf %150 : vector<16x256xf32> to vector<16x256xbf16>
    %152 = vector.broadcast %132 : vector<1x256xi32> to vector<16x256xi32>
    %153 = arith.cmpi eq, %16, %152 : vector<16x256xi32>
    %cst_42 = arith.constant 0.000000e+00 : f32
    %154 = vector.shape_cast %130 : vector<1x256xf32> to vector<1x256xf32>
    %155 = vector.broadcast %154 : vector<1x256xf32> to vector<16x256xf32>
    %156 = vector.broadcast %cst_42 : f32 to vector<16x256xf32>
    %157 = arith.select %153, %155, %156 : vector<16x256xi1>, vector<16x256xf32>
    %c1_i32_43 = arith.constant 1 : i32
    %158 = vector.broadcast %c1_i32_43 : i32 to vector<1x256xi32>
    %159 = arith.addi %132, %158 : vector<1x256xi32>
    %160 = vector.broadcast %159 : vector<1x256xi32> to vector<16x256xi32>
    %161 = arith.cmpi eq, %16, %160 : vector<16x256xi32>
    %cst_44 = arith.constant 0.000000e+00 : f32
    %162 = vector.shape_cast %126 : vector<1x256xf32> to vector<1x256xf32>
    %163 = vector.broadcast %162 : vector<1x256xf32> to vector<16x256xf32>
    %164 = vector.broadcast %cst_44 : f32 to vector<16x256xf32>
    %165 = arith.select %161, %163, %164 : vector<16x256xi1>, vector<16x256xf32>
    %166 = arith.addf %157, %165 : vector<16x256xf32>
    %167 = arith.truncf %166 : vector<16x256xf32> to vector<16x256xbf16>
    %168 = vector.shape_cast %151 : vector<16x256xbf16> to vector<16x1x256xbf16>
    %169 = vector.shape_cast %167 : vector<16x256xbf16> to vector<1x16x256xbf16>
    %170 = vector.broadcast %168 : vector<16x1x256xbf16> to vector<16x16x256xbf16>
    %171 = vector.broadcast %169 : vector<1x16x256xbf16> to vector<16x16x256xbf16>
    %172 = arith.mulf %170, %171 : vector<16x16x256xbf16>
    %173 = vector.shape_cast %172 : vector<16x16x256xbf16> to vector<256x256xbf16>
    %c0_45 = arith.constant 0 : index
    %c0_46 = arith.constant 0 : index
    %c0_47 = arith.constant 0 : index
    %174 = vector.load %arg4[%c0_45, %c0_46, %c0_47] : memref<1x4x256xbf16, #tpu.memory_space<vmem>>, vector<1x4x256xbf16>
    %175 = vector.shape_cast %174 : vector<1x4x256xbf16> to vector<4x256xbf16>
    %cst_48 = arith.constant dense<0.000000e+00> : vector<4x256xf32>
    %176 = tpu.matmul %175, %173, %cst_48 {dimension_numbers = #tpu.dot_dimension_numbers<[1], [0], [0], [1], [0, 0, 1, 1], [], []>} : vector<4x256xbf16>, vector<256x256xbf16>, vector<4x256xf32> -> vector<4x256xf32>
    %177 = vector.extract_strided_slice %6 {offsets = [2, 0], sizes = [1, 256], strides = [1, 1]} : vector<27x256xf32> to vector<1x256xf32>
    %178 = vector.extract_strided_slice %6 {offsets = [11, 0], sizes = [1, 256], strides = [1, 1]} : vector<27x256xf32> to vector<1x256xf32>
    %179 = vector.extract_strided_slice %12 {offsets = [2, 0], sizes = [1, 256], strides = [1, 1]} : vector<9x256xf32> to vector<1x256xf32>
    %cst_49 = arith.constant 1.000000e+00 : f32
    %180 = vector.broadcast %cst_49 : f32 to vector<1x256xf32>
    %181 = arith.mulf %13, %180 : vector<1x256xf32>
    %cst_50 = arith.constant -1.000000e+00 : f32
    %182 = vector.broadcast %cst_50 : f32 to vector<1x256xf32>
    %183 = arith.addf %181, %182 : vector<1x256xf32>
    %184 = arith.addf %183, %177 : vector<1x256xf32>
    %cst_51 = arith.constant 1.000000e+00 : f32
    %185 = vector.broadcast %cst_51 : f32 to vector<1x256xf32>
    %186 = arith.mulf %14, %185 : vector<1x256xf32>
    %cst_52 = arith.constant 1.000000e+00 : f32
    %187 = vector.broadcast %cst_52 : f32 to vector<1x256xf32>
    %188 = arith.addf %186, %187 : vector<1x256xf32>
    %189 = arith.addf %188, %178 : vector<1x256xf32>
    %cst_53 = arith.constant -1.000000e+00 : f32
    %190 = vector.broadcast %cst_53 : f32 to vector<1x256xf32>
    %191 = arith.cmpf ogt, %184, %190 : vector<1x256xf32>
    %cst_54 = arith.constant 1.600000e+01 : f32
    %192 = vector.broadcast %cst_54 : f32 to vector<1x256xf32>
    %193 = arith.cmpf olt, %184, %192 : vector<1x256xf32>
    %194 = arith.andi %191, %193 : vector<1x256xi1>
    %cst_55 = arith.constant -1.000000e+00 : f32
    %195 = vector.broadcast %cst_55 : f32 to vector<1x256xf32>
    %196 = arith.cmpf ogt, %189, %195 : vector<1x256xf32>
    %197 = arith.andi %194, %196 : vector<1x256xi1>
    %cst_56 = arith.constant 1.600000e+01 : f32
    %198 = vector.broadcast %cst_56 : f32 to vector<1x256xf32>
    %199 = arith.cmpf olt, %189, %198 : vector<1x256xf32>
    %200 = arith.andi %197, %199 : vector<1x256xi1>
    %201 = arith.extui %200 : vector<1x256xi1> to vector<1x256xi32>
    %202 = arith.sitofp %201 : vector<1x256xi32> to vector<1x256xf32>
    %203 = math.floor %184 : vector<1x256xf32>
    %204 = math.floor %189 : vector<1x256xf32>
    %205 = arith.subf %184, %203 : vector<1x256xf32>
    %206 = arith.subf %189, %204 : vector<1x256xf32>
    %cst_57 = arith.constant 1.000000e+00 : f32
    %207 = vector.broadcast %cst_57 : f32 to vector<1x256xf32>
    %208 = arith.subf %207, %205 : vector<1x256xf32>
    %cst_58 = arith.constant 1.000000e+00 : f32
    %209 = vector.broadcast %cst_58 : f32 to vector<1x256xf32>
    %210 = arith.subf %209, %206 : vector<1x256xf32>
    %211 = arith.fptosi %203 : vector<1x256xf32> to vector<1x256xi32>
    %212 = arith.fptosi %204 : vector<1x256xf32> to vector<1x256xi32>
    %213 = vector.broadcast %211 : vector<1x256xi32> to vector<16x256xi32>
    %214 = arith.cmpi eq, %15, %213 : vector<16x256xi32>
    %cst_59 = arith.constant 0.000000e+00 : f32
    %215 = vector.shape_cast %208 : vector<1x256xf32> to vector<1x256xf32>
    %216 = vector.broadcast %215 : vector<1x256xf32> to vector<16x256xf32>
    %217 = vector.broadcast %cst_59 : f32 to vector<16x256xf32>
    %218 = arith.select %214, %216, %217 : vector<16x256xi1>, vector<16x256xf32>
    %c1_i32_60 = arith.constant 1 : i32
    %219 = vector.broadcast %c1_i32_60 : i32 to vector<1x256xi32>
    %220 = arith.addi %211, %219 : vector<1x256xi32>
    %221 = vector.broadcast %220 : vector<1x256xi32> to vector<16x256xi32>
    %222 = arith.cmpi eq, %15, %221 : vector<16x256xi32>
    %cst_61 = arith.constant 0.000000e+00 : f32
    %223 = vector.shape_cast %205 : vector<1x256xf32> to vector<1x256xf32>
    %224 = vector.broadcast %223 : vector<1x256xf32> to vector<16x256xf32>
    %225 = vector.broadcast %cst_61 : f32 to vector<16x256xf32>
    %226 = arith.select %222, %224, %225 : vector<16x256xi1>, vector<16x256xf32>
    %227 = arith.addf %218, %226 : vector<16x256xf32>
    %228 = arith.mulf %202, %179 : vector<1x256xf32>
    %229 = vector.broadcast %228 : vector<1x256xf32> to vector<16x256xf32>
    %230 = arith.mulf %227, %229 : vector<16x256xf32>
    %231 = arith.truncf %230 : vector<16x256xf32> to vector<16x256xbf16>
    %232 = vector.broadcast %212 : vector<1x256xi32> to vector<16x256xi32>
    %233 = arith.cmpi eq, %16, %232 : vector<16x256xi32>
    %cst_62 = arith.constant 0.000000e+00 : f32
    %234 = vector.shape_cast %210 : vector<1x256xf32> to vector<1x256xf32>
    %235 = vector.broadcast %234 : vector<1x256xf32> to vector<16x256xf32>
    %236 = vector.broadcast %cst_62 : f32 to vector<16x256xf32>
    %237 = arith.select %233, %235, %236 : vector<16x256xi1>, vector<16x256xf32>
    %c1_i32_63 = arith.constant 1 : i32
    %238 = vector.broadcast %c1_i32_63 : i32 to vector<1x256xi32>
    %239 = arith.addi %212, %238 : vector<1x256xi32>
    %240 = vector.broadcast %239 : vector<1x256xi32> to vector<16x256xi32>
    %241 = arith.cmpi eq, %16, %240 : vector<16x256xi32>
    %cst_64 = arith.constant 0.000000e+00 : f32
    %242 = vector.shape_cast %206 : vector<1x256xf32> to vector<1x256xf32>
    %243 = vector.broadcast %242 : vector<1x256xf32> to vector<16x256xf32>
    %244 = vector.broadcast %cst_64 : f32 to vector<16x256xf32>
    %245 = arith.select %241, %243, %244 : vector<16x256xi1>, vector<16x256xf32>
    %246 = arith.addf %237, %245 : vector<16x256xf32>
    %247 = arith.truncf %246 : vector<16x256xf32> to vector<16x256xbf16>
    %248 = vector.shape_cast %231 : vector<16x256xbf16> to vector<16x1x256xbf16>
    %249 = vector.shape_cast %247 : vector<16x256xbf16> to vector<1x16x256xbf16>
    %250 = vector.broadcast %248 : vector<16x1x256xbf16> to vector<16x16x256xbf16>
    %251 = vector.broadcast %249 : vector<1x16x256xbf16> to vector<16x16x256xbf16>
    %252 = arith.mulf %250, %251 : vector<16x16x256xbf16>
    %253 = vector.shape_cast %252 : vector<16x16x256xbf16> to vector<256x256xbf16>
    %c0_65 = arith.constant 0 : index
    %c0_66 = arith.constant 0 : index
    %c0_67 = arith.constant 0 : index
    %254 = vector.load %arg4[%c0_65, %c0_66, %c0_67] : memref<1x4x256xbf16, #tpu.memory_space<vmem>>, vector<1x4x256xbf16>
    %255 = vector.shape_cast %254 : vector<1x4x256xbf16> to vector<4x256xbf16>
    %cst_68 = arith.constant dense<0.000000e+00> : vector<4x256xf32>
    %256 = tpu.matmul %255, %253, %cst_68 {dimension_numbers = #tpu.dot_dimension_numbers<[1], [0], [0], [1], [0, 0, 1, 1], [], []>} : vector<4x256xbf16>, vector<256x256xbf16>, vector<4x256xf32> -> vector<4x256xf32>
    %257 = vector.extract_strided_slice %6 {offsets = [3, 0], sizes = [1, 256], strides = [1, 1]} : vector<27x256xf32> to vector<1x256xf32>
    %258 = vector.extract_strided_slice %6 {offsets = [12, 0], sizes = [1, 256], strides = [1, 1]} : vector<27x256xf32> to vector<1x256xf32>
    %259 = vector.extract_strided_slice %12 {offsets = [3, 0], sizes = [1, 256], strides = [1, 1]} : vector<9x256xf32> to vector<1x256xf32>
    %cst_69 = arith.constant 1.000000e+00 : f32
    %260 = vector.broadcast %cst_69 : f32 to vector<1x256xf32>
    %261 = arith.mulf %13, %260 : vector<1x256xf32>
    %cst_70 = arith.constant 0.000000e+00 : f32
    %262 = vector.broadcast %cst_70 : f32 to vector<1x256xf32>
    %263 = arith.addf %261, %262 : vector<1x256xf32>
    %264 = arith.addf %263, %257 : vector<1x256xf32>
    %cst_71 = arith.constant 1.000000e+00 : f32
    %265 = vector.broadcast %cst_71 : f32 to vector<1x256xf32>
    %266 = arith.mulf %14, %265 : vector<1x256xf32>
    %cst_72 = arith.constant -1.000000e+00 : f32
    %267 = vector.broadcast %cst_72 : f32 to vector<1x256xf32>
    %268 = arith.addf %266, %267 : vector<1x256xf32>
    %269 = arith.addf %268, %258 : vector<1x256xf32>
    %cst_73 = arith.constant -1.000000e+00 : f32
    %270 = vector.broadcast %cst_73 : f32 to vector<1x256xf32>
    %271 = arith.cmpf ogt, %264, %270 : vector<1x256xf32>
    %cst_74 = arith.constant 1.600000e+01 : f32
    %272 = vector.broadcast %cst_74 : f32 to vector<1x256xf32>
    %273 = arith.cmpf olt, %264, %272 : vector<1x256xf32>
    %274 = arith.andi %271, %273 : vector<1x256xi1>
    %cst_75 = arith.constant -1.000000e+00 : f32
    %275 = vector.broadcast %cst_75 : f32 to vector<1x256xf32>
    %276 = arith.cmpf ogt, %269, %275 : vector<1x256xf32>
    %277 = arith.andi %274, %276 : vector<1x256xi1>
    %cst_76 = arith.constant 1.600000e+01 : f32
    %278 = vector.broadcast %cst_76 : f32 to vector<1x256xf32>
    %279 = arith.cmpf olt, %269, %278 : vector<1x256xf32>
    %280 = arith.andi %277, %279 : vector<1x256xi1>
    %281 = arith.extui %280 : vector<1x256xi1> to vector<1x256xi32>
    %282 = arith.sitofp %281 : vector<1x256xi32> to vector<1x256xf32>
    %283 = math.floor %264 : vector<1x256xf32>
    %284 = math.floor %269 : vector<1x256xf32>
    %285 = arith.subf %264, %283 : vector<1x256xf32>
    %286 = arith.subf %269, %284 : vector<1x256xf32>
    %cst_77 = arith.constant 1.000000e+00 : f32
    %287 = vector.broadcast %cst_77 : f32 to vector<1x256xf32>
    %288 = arith.subf %287, %285 : vector<1x256xf32>
    %cst_78 = arith.constant 1.000000e+00 : f32
    %289 = vector.broadcast %cst_78 : f32 to vector<1x256xf32>
    %290 = arith.subf %289, %286 : vector<1x256xf32>
    %291 = arith.fptosi %283 : vector<1x256xf32> to vector<1x256xi32>
    %292 = arith.fptosi %284 : vector<1x256xf32> to vector<1x256xi32>
    %293 = vector.broadcast %291 : vector<1x256xi32> to vector<16x256xi32>
    %294 = arith.cmpi eq, %15, %293 : vector<16x256xi32>
    %cst_79 = arith.constant 0.000000e+00 : f32
    %295 = vector.shape_cast %288 : vector<1x256xf32> to vector<1x256xf32>
    %296 = vector.broadcast %295 : vector<1x256xf32> to vector<16x256xf32>
    %297 = vector.broadcast %cst_79 : f32 to vector<16x256xf32>
    %298 = arith.select %294, %296, %297 : vector<16x256xi1>, vector<16x256xf32>
    %c1_i32_80 = arith.constant 1 : i32
    %299 = vector.broadcast %c1_i32_80 : i32 to vector<1x256xi32>
    %300 = arith.addi %291, %299 : vector<1x256xi32>
    %301 = vector.broadcast %300 : vector<1x256xi32> to vector<16x256xi32>
    %302 = arith.cmpi eq, %15, %301 : vector<16x256xi32>
    %cst_81 = arith.constant 0.000000e+00 : f32
    %303 = vector.shape_cast %285 : vector<1x256xf32> to vector<1x256xf32>
    %304 = vector.broadcast %303 : vector<1x256xf32> to vector<16x256xf32>
    %305 = vector.broadcast %cst_81 : f32 to vector<16x256xf32>
    %306 = arith.select %302, %304, %305 : vector<16x256xi1>, vector<16x256xf32>
    %307 = arith.addf %298, %306 : vector<16x256xf32>
    %308 = arith.mulf %282, %259 : vector<1x256xf32>
    %309 = vector.broadcast %308 : vector<1x256xf32> to vector<16x256xf32>
    %310 = arith.mulf %307, %309 : vector<16x256xf32>
    %311 = arith.truncf %310 : vector<16x256xf32> to vector<16x256xbf16>
    %312 = vector.broadcast %292 : vector<1x256xi32> to vector<16x256xi32>
    %313 = arith.cmpi eq, %16, %312 : vector<16x256xi32>
    %cst_82 = arith.constant 0.000000e+00 : f32
    %314 = vector.shape_cast %290 : vector<1x256xf32> to vector<1x256xf32>
    %315 = vector.broadcast %314 : vector<1x256xf32> to vector<16x256xf32>
    %316 = vector.broadcast %cst_82 : f32 to vector<16x256xf32>
    %317 = arith.select %313, %315, %316 : vector<16x256xi1>, vector<16x256xf32>
    %c1_i32_83 = arith.constant 1 : i32
    %318 = vector.broadcast %c1_i32_83 : i32 to vector<1x256xi32>
    %319 = arith.addi %292, %318 : vector<1x256xi32>
    %320 = vector.broadcast %319 : vector<1x256xi32> to vector<16x256xi32>
    %321 = arith.cmpi eq, %16, %320 : vector<16x256xi32>
    %cst_84 = arith.constant 0.000000e+00 : f32
    %322 = vector.shape_cast %286 : vector<1x256xf32> to vector<1x256xf32>
    %323 = vector.broadcast %322 : vector<1x256xf32> to vector<16x256xf32>
    %324 = vector.broadcast %cst_84 : f32 to vector<16x256xf32>
    %325 = arith.select %321, %323, %324 : vector<16x256xi1>, vector<16x256xf32>
    %326 = arith.addf %317, %325 : vector<16x256xf32>
    %327 = arith.truncf %326 : vector<16x256xf32> to vector<16x256xbf16>
    %328 = vector.shape_cast %311 : vector<16x256xbf16> to vector<16x1x256xbf16>
    %329 = vector.shape_cast %327 : vector<16x256xbf16> to vector<1x16x256xbf16>
    %330 = vector.broadcast %328 : vector<16x1x256xbf16> to vector<16x16x256xbf16>
    %331 = vector.broadcast %329 : vector<1x16x256xbf16> to vector<16x16x256xbf16>
    %332 = arith.mulf %330, %331 : vector<16x16x256xbf16>
    %333 = vector.shape_cast %332 : vector<16x16x256xbf16> to vector<256x256xbf16>
    %c0_85 = arith.constant 0 : index
    %c0_86 = arith.constant 0 : index
    %c0_87 = arith.constant 0 : index
    %334 = vector.load %arg4[%c0_85, %c0_86, %c0_87] : memref<1x4x256xbf16, #tpu.memory_space<vmem>>, vector<1x4x256xbf16>
    %335 = vector.shape_cast %334 : vector<1x4x256xbf16> to vector<4x256xbf16>
    %cst_88 = arith.constant dense<0.000000e+00> : vector<4x256xf32>
    %336 = tpu.matmul %335, %333, %cst_88 {dimension_numbers = #tpu.dot_dimension_numbers<[1], [0], [0], [1], [0, 0, 1, 1], [], []>} : vector<4x256xbf16>, vector<256x256xbf16>, vector<4x256xf32> -> vector<4x256xf32>
    %337 = vector.extract_strided_slice %6 {offsets = [4, 0], sizes = [1, 256], strides = [1, 1]} : vector<27x256xf32> to vector<1x256xf32>
    %338 = vector.extract_strided_slice %6 {offsets = [13, 0], sizes = [1, 256], strides = [1, 1]} : vector<27x256xf32> to vector<1x256xf32>
    %339 = vector.extract_strided_slice %12 {offsets = [4, 0], sizes = [1, 256], strides = [1, 1]} : vector<9x256xf32> to vector<1x256xf32>
    %cst_89 = arith.constant 1.000000e+00 : f32
    %340 = vector.broadcast %cst_89 : f32 to vector<1x256xf32>
    %341 = arith.mulf %13, %340 : vector<1x256xf32>
    %cst_90 = arith.constant 0.000000e+00 : f32
    %342 = vector.broadcast %cst_90 : f32 to vector<1x256xf32>
    %343 = arith.addf %341, %342 : vector<1x256xf32>
    %344 = arith.addf %343, %337 : vector<1x256xf32>
    %cst_91 = arith.constant 1.000000e+00 : f32
    %345 = vector.broadcast %cst_91 : f32 to vector<1x256xf32>
    %346 = arith.mulf %14, %345 : vector<1x256xf32>
    %cst_92 = arith.constant 0.000000e+00 : f32
    %347 = vector.broadcast %cst_92 : f32 to vector<1x256xf32>
    %348 = arith.addf %346, %347 : vector<1x256xf32>
    %349 = arith.addf %348, %338 : vector<1x256xf32>
    %cst_93 = arith.constant -1.000000e+00 : f32
    %350 = vector.broadcast %cst_93 : f32 to vector<1x256xf32>
    %351 = arith.cmpf ogt, %344, %350 : vector<1x256xf32>
    %cst_94 = arith.constant 1.600000e+01 : f32
    %352 = vector.broadcast %cst_94 : f32 to vector<1x256xf32>
    %353 = arith.cmpf olt, %344, %352 : vector<1x256xf32>
    %354 = arith.andi %351, %353 : vector<1x256xi1>
    %cst_95 = arith.constant -1.000000e+00 : f32
    %355 = vector.broadcast %cst_95 : f32 to vector<1x256xf32>
    %356 = arith.cmpf ogt, %349, %355 : vector<1x256xf32>
    %357 = arith.andi %354, %356 : vector<1x256xi1>
    %cst_96 = arith.constant 1.600000e+01 : f32
    %358 = vector.broadcast %cst_96 : f32 to vector<1x256xf32>
    %359 = arith.cmpf olt, %349, %358 : vector<1x256xf32>
    %360 = arith.andi %357, %359 : vector<1x256xi1>
    %361 = arith.extui %360 : vector<1x256xi1> to vector<1x256xi32>
    %362 = arith.sitofp %361 : vector<1x256xi32> to vector<1x256xf32>
    %363 = math.floor %344 : vector<1x256xf32>
    %364 = math.floor %349 : vector<1x256xf32>
    %365 = arith.subf %344, %363 : vector<1x256xf32>
    %366 = arith.subf %349, %364 : vector<1x256xf32>
    %cst_97 = arith.constant 1.000000e+00 : f32
    %367 = vector.broadcast %cst_97 : f32 to vector<1x256xf32>
    %368 = arith.subf %367, %365 : vector<1x256xf32>
    %cst_98 = arith.constant 1.000000e+00 : f32
    %369 = vector.broadcast %cst_98 : f32 to vector<1x256xf32>
    %370 = arith.subf %369, %366 : vector<1x256xf32>
    %371 = arith.fptosi %363 : vector<1x256xf32> to vector<1x256xi32>
    %372 = arith.fptosi %364 : vector<1x256xf32> to vector<1x256xi32>
    %373 = vector.broadcast %371 : vector<1x256xi32> to vector<16x256xi32>
    %374 = arith.cmpi eq, %15, %373 : vector<16x256xi32>
    %cst_99 = arith.constant 0.000000e+00 : f32
    %375 = vector.shape_cast %368 : vector<1x256xf32> to vector<1x256xf32>
    %376 = vector.broadcast %375 : vector<1x256xf32> to vector<16x256xf32>
    %377 = vector.broadcast %cst_99 : f32 to vector<16x256xf32>
    %378 = arith.select %374, %376, %377 : vector<16x256xi1>, vector<16x256xf32>
    %c1_i32_100 = arith.constant 1 : i32
    %379 = vector.broadcast %c1_i32_100 : i32 to vector<1x256xi32>
    %380 = arith.addi %371, %379 : vector<1x256xi32>
    %381 = vector.broadcast %380 : vector<1x256xi32> to vector<16x256xi32>
    %382 = arith.cmpi eq, %15, %381 : vector<16x256xi32>
    %cst_101 = arith.constant 0.000000e+00 : f32
    %383 = vector.shape_cast %365 : vector<1x256xf32> to vector<1x256xf32>
    %384 = vector.broadcast %383 : vector<1x256xf32> to vector<16x256xf32>
    %385 = vector.broadcast %cst_101 : f32 to vector<16x256xf32>
    %386 = arith.select %382, %384, %385 : vector<16x256xi1>, vector<16x256xf32>
    %387 = arith.addf %378, %386 : vector<16x256xf32>
    %388 = arith.mulf %362, %339 : vector<1x256xf32>
    %389 = vector.broadcast %388 : vector<1x256xf32> to vector<16x256xf32>
    %390 = arith.mulf %387, %389 : vector<16x256xf32>
    %391 = arith.truncf %390 : vector<16x256xf32> to vector<16x256xbf16>
    %392 = vector.broadcast %372 : vector<1x256xi32> to vector<16x256xi32>
    %393 = arith.cmpi eq, %16, %392 : vector<16x256xi32>
    %cst_102 = arith.constant 0.000000e+00 : f32
    %394 = vector.shape_cast %370 : vector<1x256xf32> to vector<1x256xf32>
    %395 = vector.broadcast %394 : vector<1x256xf32> to vector<16x256xf32>
    %396 = vector.broadcast %cst_102 : f32 to vector<16x256xf32>
    %397 = arith.select %393, %395, %396 : vector<16x256xi1>, vector<16x256xf32>
    %c1_i32_103 = arith.constant 1 : i32
    %398 = vector.broadcast %c1_i32_103 : i32 to vector<1x256xi32>
    %399 = arith.addi %372, %398 : vector<1x256xi32>
    %400 = vector.broadcast %399 : vector<1x256xi32> to vector<16x256xi32>
    %401 = arith.cmpi eq, %16, %400 : vector<16x256xi32>
    %cst_104 = arith.constant 0.000000e+00 : f32
    %402 = vector.shape_cast %366 : vector<1x256xf32> to vector<1x256xf32>
    %403 = vector.broadcast %402 : vector<1x256xf32> to vector<16x256xf32>
    %404 = vector.broadcast %cst_104 : f32 to vector<16x256xf32>
    %405 = arith.select %401, %403, %404 : vector<16x256xi1>, vector<16x256xf32>
    %406 = arith.addf %397, %405 : vector<16x256xf32>
    %407 = arith.truncf %406 : vector<16x256xf32> to vector<16x256xbf16>
    %408 = vector.shape_cast %391 : vector<16x256xbf16> to vector<16x1x256xbf16>
    %409 = vector.shape_cast %407 : vector<16x256xbf16> to vector<1x16x256xbf16>
    %410 = vector.broadcast %408 : vector<16x1x256xbf16> to vector<16x16x256xbf16>
    %411 = vector.broadcast %409 : vector<1x16x256xbf16> to vector<16x16x256xbf16>
    %412 = arith.mulf %410, %411 : vector<16x16x256xbf16>
    %413 = vector.shape_cast %412 : vector<16x16x256xbf16> to vector<256x256xbf16>
    %c0_105 = arith.constant 0 : index
    %c0_106 = arith.constant 0 : index
    %c0_107 = arith.constant 0 : index
    %414 = vector.load %arg4[%c0_105, %c0_106, %c0_107] : memref<1x4x256xbf16, #tpu.memory_space<vmem>>, vector<1x4x256xbf16>
    %415 = vector.shape_cast %414 : vector<1x4x256xbf16> to vector<4x256xbf16>
    %cst_108 = arith.constant dense<0.000000e+00> : vector<4x256xf32>
    %416 = tpu.matmul %415, %413, %cst_108 {dimension_numbers = #tpu.dot_dimension_numbers<[1], [0], [0], [1], [0, 0, 1, 1], [], []>} : vector<4x256xbf16>, vector<256x256xbf16>, vector<4x256xf32> -> vector<4x256xf32>
    %417 = vector.extract_strided_slice %6 {offsets = [5, 0], sizes = [1, 256], strides = [1, 1]} : vector<27x256xf32> to vector<1x256xf32>
    %418 = vector.extract_strided_slice %6 {offsets = [14, 0], sizes = [1, 256], strides = [1, 1]} : vector<27x256xf32> to vector<1x256xf32>
    %419 = vector.extract_strided_slice %12 {offsets = [5, 0], sizes = [1, 256], strides = [1, 1]} : vector<9x256xf32> to vector<1x256xf32>
    %cst_109 = arith.constant 1.000000e+00 : f32
    %420 = vector.broadcast %cst_109 : f32 to vector<1x256xf32>
    %421 = arith.mulf %13, %420 : vector<1x256xf32>
    %cst_110 = arith.constant 0.000000e+00 : f32
    %422 = vector.broadcast %cst_110 : f32 to vector<1x256xf32>
    %423 = arith.addf %421, %422 : vector<1x256xf32>
    %424 = arith.addf %423, %417 : vector<1x256xf32>
    %cst_111 = arith.constant 1.000000e+00 : f32
    %425 = vector.broadcast %cst_111 : f32 to vector<1x256xf32>
    %426 = arith.mulf %14, %425 : vector<1x256xf32>
    %cst_112 = arith.constant 1.000000e+00 : f32
    %427 = vector.broadcast %cst_112 : f32 to vector<1x256xf32>
    %428 = arith.addf %426, %427 : vector<1x256xf32>
    %429 = arith.addf %428, %418 : vector<1x256xf32>
    %cst_113 = arith.constant -1.000000e+00 : f32
    %430 = vector.broadcast %cst_113 : f32 to vector<1x256xf32>
    %431 = arith.cmpf ogt, %424, %430 : vector<1x256xf32>
    %cst_114 = arith.constant 1.600000e+01 : f32
    %432 = vector.broadcast %cst_114 : f32 to vector<1x256xf32>
    %433 = arith.cmpf olt, %424, %432 : vector<1x256xf32>
    %434 = arith.andi %431, %433 : vector<1x256xi1>
    %cst_115 = arith.constant -1.000000e+00 : f32
    %435 = vector.broadcast %cst_115 : f32 to vector<1x256xf32>
    %436 = arith.cmpf ogt, %429, %435 : vector<1x256xf32>
    %437 = arith.andi %434, %436 : vector<1x256xi1>
    %cst_116 = arith.constant 1.600000e+01 : f32
    %438 = vector.broadcast %cst_116 : f32 to vector<1x256xf32>
    %439 = arith.cmpf olt, %429, %438 : vector<1x256xf32>
    %440 = arith.andi %437, %439 : vector<1x256xi1>
    %441 = arith.extui %440 : vector<1x256xi1> to vector<1x256xi32>
    %442 = arith.sitofp %441 : vector<1x256xi32> to vector<1x256xf32>
    %443 = math.floor %424 : vector<1x256xf32>
    %444 = math.floor %429 : vector<1x256xf32>
    %445 = arith.subf %424, %443 : vector<1x256xf32>
    %446 = arith.subf %429, %444 : vector<1x256xf32>
    %cst_117 = arith.constant 1.000000e+00 : f32
    %447 = vector.broadcast %cst_117 : f32 to vector<1x256xf32>
    %448 = arith.subf %447, %445 : vector<1x256xf32>
    %cst_118 = arith.constant 1.000000e+00 : f32
    %449 = vector.broadcast %cst_118 : f32 to vector<1x256xf32>
    %450 = arith.subf %449, %446 : vector<1x256xf32>
    %451 = arith.fptosi %443 : vector<1x256xf32> to vector<1x256xi32>
    %452 = arith.fptosi %444 : vector<1x256xf32> to vector<1x256xi32>
    %453 = vector.broadcast %451 : vector<1x256xi32> to vector<16x256xi32>
    %454 = arith.cmpi eq, %15, %453 : vector<16x256xi32>
    %cst_119 = arith.constant 0.000000e+00 : f32
    %455 = vector.shape_cast %448 : vector<1x256xf32> to vector<1x256xf32>
    %456 = vector.broadcast %455 : vector<1x256xf32> to vector<16x256xf32>
    %457 = vector.broadcast %cst_119 : f32 to vector<16x256xf32>
    %458 = arith.select %454, %456, %457 : vector<16x256xi1>, vector<16x256xf32>
    %c1_i32_120 = arith.constant 1 : i32
    %459 = vector.broadcast %c1_i32_120 : i32 to vector<1x256xi32>
    %460 = arith.addi %451, %459 : vector<1x256xi32>
    %461 = vector.broadcast %460 : vector<1x256xi32> to vector<16x256xi32>
    %462 = arith.cmpi eq, %15, %461 : vector<16x256xi32>
    %cst_121 = arith.constant 0.000000e+00 : f32
    %463 = vector.shape_cast %445 : vector<1x256xf32> to vector<1x256xf32>
    %464 = vector.broadcast %463 : vector<1x256xf32> to vector<16x256xf32>
    %465 = vector.broadcast %cst_121 : f32 to vector<16x256xf32>
    %466 = arith.select %462, %464, %465 : vector<16x256xi1>, vector<16x256xf32>
    %467 = arith.addf %458, %466 : vector<16x256xf32>
    %468 = arith.mulf %442, %419 : vector<1x256xf32>
    %469 = vector.broadcast %468 : vector<1x256xf32> to vector<16x256xf32>
    %470 = arith.mulf %467, %469 : vector<16x256xf32>
    %471 = arith.truncf %470 : vector<16x256xf32> to vector<16x256xbf16>
    %472 = vector.broadcast %452 : vector<1x256xi32> to vector<16x256xi32>
    %473 = arith.cmpi eq, %16, %472 : vector<16x256xi32>
    %cst_122 = arith.constant 0.000000e+00 : f32
    %474 = vector.shape_cast %450 : vector<1x256xf32> to vector<1x256xf32>
    %475 = vector.broadcast %474 : vector<1x256xf32> to vector<16x256xf32>
    %476 = vector.broadcast %cst_122 : f32 to vector<16x256xf32>
    %477 = arith.select %473, %475, %476 : vector<16x256xi1>, vector<16x256xf32>
    %c1_i32_123 = arith.constant 1 : i32
    %478 = vector.broadcast %c1_i32_123 : i32 to vector<1x256xi32>
    %479 = arith.addi %452, %478 : vector<1x256xi32>
    %480 = vector.broadcast %479 : vector<1x256xi32> to vector<16x256xi32>
    %481 = arith.cmpi eq, %16, %480 : vector<16x256xi32>
    %cst_124 = arith.constant 0.000000e+00 : f32
    %482 = vector.shape_cast %446 : vector<1x256xf32> to vector<1x256xf32>
    %483 = vector.broadcast %482 : vector<1x256xf32> to vector<16x256xf32>
    %484 = vector.broadcast %cst_124 : f32 to vector<16x256xf32>
    %485 = arith.select %481, %483, %484 : vector<16x256xi1>, vector<16x256xf32>
    %486 = arith.addf %477, %485 : vector<16x256xf32>
    %487 = arith.truncf %486 : vector<16x256xf32> to vector<16x256xbf16>
    %488 = vector.shape_cast %471 : vector<16x256xbf16> to vector<16x1x256xbf16>
    %489 = vector.shape_cast %487 : vector<16x256xbf16> to vector<1x16x256xbf16>
    %490 = vector.broadcast %488 : vector<16x1x256xbf16> to vector<16x16x256xbf16>
    %491 = vector.broadcast %489 : vector<1x16x256xbf16> to vector<16x16x256xbf16>
    %492 = arith.mulf %490, %491 : vector<16x16x256xbf16>
    %493 = vector.shape_cast %492 : vector<16x16x256xbf16> to vector<256x256xbf16>
    %c0_125 = arith.constant 0 : index
    %c0_126 = arith.constant 0 : index
    %c0_127 = arith.constant 0 : index
    %494 = vector.load %arg4[%c0_125, %c0_126, %c0_127] : memref<1x4x256xbf16, #tpu.memory_space<vmem>>, vector<1x4x256xbf16>
    %495 = vector.shape_cast %494 : vector<1x4x256xbf16> to vector<4x256xbf16>
    %cst_128 = arith.constant dense<0.000000e+00> : vector<4x256xf32>
    %496 = tpu.matmul %495, %493, %cst_128 {dimension_numbers = #tpu.dot_dimension_numbers<[1], [0], [0], [1], [0, 0, 1, 1], [], []>} : vector<4x256xbf16>, vector<256x256xbf16>, vector<4x256xf32> -> vector<4x256xf32>
    %497 = vector.extract_strided_slice %6 {offsets = [6, 0], sizes = [1, 256], strides = [1, 1]} : vector<27x256xf32> to vector<1x256xf32>
    %498 = vector.extract_strided_slice %6 {offsets = [15, 0], sizes = [1, 256], strides = [1, 1]} : vector<27x256xf32> to vector<1x256xf32>
    %499 = vector.extract_strided_slice %12 {offsets = [6, 0], sizes = [1, 256], strides = [1, 1]} : vector<9x256xf32> to vector<1x256xf32>
    %cst_129 = arith.constant 1.000000e+00 : f32
    %500 = vector.broadcast %cst_129 : f32 to vector<1x256xf32>
    %501 = arith.mulf %13, %500 : vector<1x256xf32>
    %cst_130 = arith.constant 1.000000e+00 : f32
    %502 = vector.broadcast %cst_130 : f32 to vector<1x256xf32>
    %503 = arith.addf %501, %502 : vector<1x256xf32>
    %504 = arith.addf %503, %497 : vector<1x256xf32>
    %cst_131 = arith.constant 1.000000e+00 : f32
    %505 = vector.broadcast %cst_131 : f32 to vector<1x256xf32>
    %506 = arith.mulf %14, %505 : vector<1x256xf32>
    %cst_132 = arith.constant -1.000000e+00 : f32
    %507 = vector.broadcast %cst_132 : f32 to vector<1x256xf32>
    %508 = arith.addf %506, %507 : vector<1x256xf32>
    %509 = arith.addf %508, %498 : vector<1x256xf32>
    %cst_133 = arith.constant -1.000000e+00 : f32
    %510 = vector.broadcast %cst_133 : f32 to vector<1x256xf32>
    %511 = arith.cmpf ogt, %504, %510 : vector<1x256xf32>
    %cst_134 = arith.constant 1.600000e+01 : f32
    %512 = vector.broadcast %cst_134 : f32 to vector<1x256xf32>
    %513 = arith.cmpf olt, %504, %512 : vector<1x256xf32>
    %514 = arith.andi %511, %513 : vector<1x256xi1>
    %cst_135 = arith.constant -1.000000e+00 : f32
    %515 = vector.broadcast %cst_135 : f32 to vector<1x256xf32>
    %516 = arith.cmpf ogt, %509, %515 : vector<1x256xf32>
    %517 = arith.andi %514, %516 : vector<1x256xi1>
    %cst_136 = arith.constant 1.600000e+01 : f32
    %518 = vector.broadcast %cst_136 : f32 to vector<1x256xf32>
    %519 = arith.cmpf olt, %509, %518 : vector<1x256xf32>
    %520 = arith.andi %517, %519 : vector<1x256xi1>
    %521 = arith.extui %520 : vector<1x256xi1> to vector<1x256xi32>
    %522 = arith.sitofp %521 : vector<1x256xi32> to vector<1x256xf32>
    %523 = math.floor %504 : vector<1x256xf32>
    %524 = math.floor %509 : vector<1x256xf32>
    %525 = arith.subf %504, %523 : vector<1x256xf32>
    %526 = arith.subf %509, %524 : vector<1x256xf32>
    %cst_137 = arith.constant 1.000000e+00 : f32
    %527 = vector.broadcast %cst_137 : f32 to vector<1x256xf32>
    %528 = arith.subf %527, %525 : vector<1x256xf32>
    %cst_138 = arith.constant 1.000000e+00 : f32
    %529 = vector.broadcast %cst_138 : f32 to vector<1x256xf32>
    %530 = arith.subf %529, %526 : vector<1x256xf32>
    %531 = arith.fptosi %523 : vector<1x256xf32> to vector<1x256xi32>
    %532 = arith.fptosi %524 : vector<1x256xf32> to vector<1x256xi32>
    %533 = vector.broadcast %531 : vector<1x256xi32> to vector<16x256xi32>
    %534 = arith.cmpi eq, %15, %533 : vector<16x256xi32>
    %cst_139 = arith.constant 0.000000e+00 : f32
    %535 = vector.shape_cast %528 : vector<1x256xf32> to vector<1x256xf32>
    %536 = vector.broadcast %535 : vector<1x256xf32> to vector<16x256xf32>
    %537 = vector.broadcast %cst_139 : f32 to vector<16x256xf32>
    %538 = arith.select %534, %536, %537 : vector<16x256xi1>, vector<16x256xf32>
    %c1_i32_140 = arith.constant 1 : i32
    %539 = vector.broadcast %c1_i32_140 : i32 to vector<1x256xi32>
    %540 = arith.addi %531, %539 : vector<1x256xi32>
    %541 = vector.broadcast %540 : vector<1x256xi32> to vector<16x256xi32>
    %542 = arith.cmpi eq, %15, %541 : vector<16x256xi32>
    %cst_141 = arith.constant 0.000000e+00 : f32
    %543 = vector.shape_cast %525 : vector<1x256xf32> to vector<1x256xf32>
    %544 = vector.broadcast %543 : vector<1x256xf32> to vector<16x256xf32>
    %545 = vector.broadcast %cst_141 : f32 to vector<16x256xf32>
    %546 = arith.select %542, %544, %545 : vector<16x256xi1>, vector<16x256xf32>
    %547 = arith.addf %538, %546 : vector<16x256xf32>
    %548 = arith.mulf %522, %499 : vector<1x256xf32>
    %549 = vector.broadcast %548 : vector<1x256xf32> to vector<16x256xf32>
    %550 = arith.mulf %547, %549 : vector<16x256xf32>
    %551 = arith.truncf %550 : vector<16x256xf32> to vector<16x256xbf16>
    %552 = vector.broadcast %532 : vector<1x256xi32> to vector<16x256xi32>
    %553 = arith.cmpi eq, %16, %552 : vector<16x256xi32>
    %cst_142 = arith.constant 0.000000e+00 : f32
    %554 = vector.shape_cast %530 : vector<1x256xf32> to vector<1x256xf32>
    %555 = vector.broadcast %554 : vector<1x256xf32> to vector<16x256xf32>
    %556 = vector.broadcast %cst_142 : f32 to vector<16x256xf32>
    %557 = arith.select %553, %555, %556 : vector<16x256xi1>, vector<16x256xf32>
    %c1_i32_143 = arith.constant 1 : i32
    %558 = vector.broadcast %c1_i32_143 : i32 to vector<1x256xi32>
    %559 = arith.addi %532, %558 : vector<1x256xi32>
    %560 = vector.broadcast %559 : vector<1x256xi32> to vector<16x256xi32>
    %561 = arith.cmpi eq, %16, %560 : vector<16x256xi32>
    %cst_144 = arith.constant 0.000000e+00 : f32
    %562 = vector.shape_cast %526 : vector<1x256xf32> to vector<1x256xf32>
    %563 = vector.broadcast %562 : vector<1x256xf32> to vector<16x256xf32>
    %564 = vector.broadcast %cst_144 : f32 to vector<16x256xf32>
    %565 = arith.select %561, %563, %564 : vector<16x256xi1>, vector<16x256xf32>
    %566 = arith.addf %557, %565 : vector<16x256xf32>
    %567 = arith.truncf %566 : vector<16x256xf32> to vector<16x256xbf16>
    %568 = vector.shape_cast %551 : vector<16x256xbf16> to vector<16x1x256xbf16>
    %569 = vector.shape_cast %567 : vector<16x256xbf16> to vector<1x16x256xbf16>
    %570 = vector.broadcast %568 : vector<16x1x256xbf16> to vector<16x16x256xbf16>
    %571 = vector.broadcast %569 : vector<1x16x256xbf16> to vector<16x16x256xbf16>
    %572 = arith.mulf %570, %571 : vector<16x16x256xbf16>
    %573 = vector.shape_cast %572 : vector<16x16x256xbf16> to vector<256x256xbf16>
    %c0_145 = arith.constant 0 : index
    %c0_146 = arith.constant 0 : index
    %c0_147 = arith.constant 0 : index
    %574 = vector.load %arg4[%c0_145, %c0_146, %c0_147] : memref<1x4x256xbf16, #tpu.memory_space<vmem>>, vector<1x4x256xbf16>
    %575 = vector.shape_cast %574 : vector<1x4x256xbf16> to vector<4x256xbf16>
    %cst_148 = arith.constant dense<0.000000e+00> : vector<4x256xf32>
    %576 = tpu.matmul %575, %573, %cst_148 {dimension_numbers = #tpu.dot_dimension_numbers<[1], [0], [0], [1], [0, 0, 1, 1], [], []>} : vector<4x256xbf16>, vector<256x256xbf16>, vector<4x256xf32> -> vector<4x256xf32>
    %577 = vector.extract_strided_slice %6 {offsets = [7, 0], sizes = [1, 256], strides = [1, 1]} : vector<27x256xf32> to vector<1x256xf32>
    %578 = vector.extract_strided_slice %6 {offsets = [16, 0], sizes = [1, 256], strides = [1, 1]} : vector<27x256xf32> to vector<1x256xf32>
    %579 = vector.extract_strided_slice %12 {offsets = [7, 0], sizes = [1, 256], strides = [1, 1]} : vector<9x256xf32> to vector<1x256xf32>
    %cst_149 = arith.constant 1.000000e+00 : f32
    %580 = vector.broadcast %cst_149 : f32 to vector<1x256xf32>
    %581 = arith.mulf %13, %580 : vector<1x256xf32>
    %cst_150 = arith.constant 1.000000e+00 : f32
    %582 = vector.broadcast %cst_150 : f32 to vector<1x256xf32>
    %583 = arith.addf %581, %582 : vector<1x256xf32>
    %584 = arith.addf %583, %577 : vector<1x256xf32>
    %cst_151 = arith.constant 1.000000e+00 : f32
    %585 = vector.broadcast %cst_151 : f32 to vector<1x256xf32>
    %586 = arith.mulf %14, %585 : vector<1x256xf32>
    %cst_152 = arith.constant 0.000000e+00 : f32
    %587 = vector.broadcast %cst_152 : f32 to vector<1x256xf32>
    %588 = arith.addf %586, %587 : vector<1x256xf32>
    %589 = arith.addf %588, %578 : vector<1x256xf32>
    %cst_153 = arith.constant -1.000000e+00 : f32
    %590 = vector.broadcast %cst_153 : f32 to vector<1x256xf32>
    %591 = arith.cmpf ogt, %584, %590 : vector<1x256xf32>
    %cst_154 = arith.constant 1.600000e+01 : f32
    %592 = vector.broadcast %cst_154 : f32 to vector<1x256xf32>
    %593 = arith.cmpf olt, %584, %592 : vector<1x256xf32>
    %594 = arith.andi %591, %593 : vector<1x256xi1>
    %cst_155 = arith.constant -1.000000e+00 : f32
    %595 = vector.broadcast %cst_155 : f32 to vector<1x256xf32>
    %596 = arith.cmpf ogt, %589, %595 : vector<1x256xf32>
    %597 = arith.andi %594, %596 : vector<1x256xi1>
    %cst_156 = arith.constant 1.600000e+01 : f32
    %598 = vector.broadcast %cst_156 : f32 to vector<1x256xf32>
    %599 = arith.cmpf olt, %589, %598 : vector<1x256xf32>
    %600 = arith.andi %597, %599 : vector<1x256xi1>
    %601 = arith.extui %600 : vector<1x256xi1> to vector<1x256xi32>
    %602 = arith.sitofp %601 : vector<1x256xi32> to vector<1x256xf32>
    %603 = math.floor %584 : vector<1x256xf32>
    %604 = math.floor %589 : vector<1x256xf32>
    %605 = arith.subf %584, %603 : vector<1x256xf32>
    %606 = arith.subf %589, %604 : vector<1x256xf32>
    %cst_157 = arith.constant 1.000000e+00 : f32
    %607 = vector.broadcast %cst_157 : f32 to vector<1x256xf32>
    %608 = arith.subf %607, %605 : vector<1x256xf32>
    %cst_158 = arith.constant 1.000000e+00 : f32
    %609 = vector.broadcast %cst_158 : f32 to vector<1x256xf32>
    %610 = arith.subf %609, %606 : vector<1x256xf32>
    %611 = arith.fptosi %603 : vector<1x256xf32> to vector<1x256xi32>
    %612 = arith.fptosi %604 : vector<1x256xf32> to vector<1x256xi32>
    %613 = vector.broadcast %611 : vector<1x256xi32> to vector<16x256xi32>
    %614 = arith.cmpi eq, %15, %613 : vector<16x256xi32>
    %cst_159 = arith.constant 0.000000e+00 : f32
    %615 = vector.shape_cast %608 : vector<1x256xf32> to vector<1x256xf32>
    %616 = vector.broadcast %615 : vector<1x256xf32> to vector<16x256xf32>
    %617 = vector.broadcast %cst_159 : f32 to vector<16x256xf32>
    %618 = arith.select %614, %616, %617 : vector<16x256xi1>, vector<16x256xf32>
    %c1_i32_160 = arith.constant 1 : i32
    %619 = vector.broadcast %c1_i32_160 : i32 to vector<1x256xi32>
    %620 = arith.addi %611, %619 : vector<1x256xi32>
    %621 = vector.broadcast %620 : vector<1x256xi32> to vector<16x256xi32>
    %622 = arith.cmpi eq, %15, %621 : vector<16x256xi32>
    %cst_161 = arith.constant 0.000000e+00 : f32
    %623 = vector.shape_cast %605 : vector<1x256xf32> to vector<1x256xf32>
    %624 = vector.broadcast %623 : vector<1x256xf32> to vector<16x256xf32>
    %625 = vector.broadcast %cst_161 : f32 to vector<16x256xf32>
    %626 = arith.select %622, %624, %625 : vector<16x256xi1>, vector<16x256xf32>
    %627 = arith.addf %618, %626 : vector<16x256xf32>
    %628 = arith.mulf %602, %579 : vector<1x256xf32>
    %629 = vector.broadcast %628 : vector<1x256xf32> to vector<16x256xf32>
    %630 = arith.mulf %627, %629 : vector<16x256xf32>
    %631 = arith.truncf %630 : vector<16x256xf32> to vector<16x256xbf16>
    %632 = vector.broadcast %612 : vector<1x256xi32> to vector<16x256xi32>
    %633 = arith.cmpi eq, %16, %632 : vector<16x256xi32>
    %cst_162 = arith.constant 0.000000e+00 : f32
    %634 = vector.shape_cast %610 : vector<1x256xf32> to vector<1x256xf32>
    %635 = vector.broadcast %634 : vector<1x256xf32> to vector<16x256xf32>
    %636 = vector.broadcast %cst_162 : f32 to vector<16x256xf32>
    %637 = arith.select %633, %635, %636 : vector<16x256xi1>, vector<16x256xf32>
    %c1_i32_163 = arith.constant 1 : i32
    %638 = vector.broadcast %c1_i32_163 : i32 to vector<1x256xi32>
    %639 = arith.addi %612, %638 : vector<1x256xi32>
    %640 = vector.broadcast %639 : vector<1x256xi32> to vector<16x256xi32>
    %641 = arith.cmpi eq, %16, %640 : vector<16x256xi32>
    %cst_164 = arith.constant 0.000000e+00 : f32
    %642 = vector.shape_cast %606 : vector<1x256xf32> to vector<1x256xf32>
    %643 = vector.broadcast %642 : vector<1x256xf32> to vector<16x256xf32>
    %644 = vector.broadcast %cst_164 : f32 to vector<16x256xf32>
    %645 = arith.select %641, %643, %644 : vector<16x256xi1>, vector<16x256xf32>
    %646 = arith.addf %637, %645 : vector<16x256xf32>
    %647 = arith.truncf %646 : vector<16x256xf32> to vector<16x256xbf16>
    %648 = vector.shape_cast %631 : vector<16x256xbf16> to vector<16x1x256xbf16>
    %649 = vector.shape_cast %647 : vector<16x256xbf16> to vector<1x16x256xbf16>
    %650 = vector.broadcast %648 : vector<16x1x256xbf16> to vector<16x16x256xbf16>
    %651 = vector.broadcast %649 : vector<1x16x256xbf16> to vector<16x16x256xbf16>
    %652 = arith.mulf %650, %651 : vector<16x16x256xbf16>
    %653 = vector.shape_cast %652 : vector<16x16x256xbf16> to vector<256x256xbf16>
    %c0_165 = arith.constant 0 : index
    %c0_166 = arith.constant 0 : index
    %c0_167 = arith.constant 0 : index
    %654 = vector.load %arg4[%c0_165, %c0_166, %c0_167] : memref<1x4x256xbf16, #tpu.memory_space<vmem>>, vector<1x4x256xbf16>
    %655 = vector.shape_cast %654 : vector<1x4x256xbf16> to vector<4x256xbf16>
    %cst_168 = arith.constant dense<0.000000e+00> : vector<4x256xf32>
    %656 = tpu.matmul %655, %653, %cst_168 {dimension_numbers = #tpu.dot_dimension_numbers<[1], [0], [0], [1], [0, 0, 1, 1], [], []>} : vector<4x256xbf16>, vector<256x256xbf16>, vector<4x256xf32> -> vector<4x256xf32>
    %657 = vector.extract_strided_slice %6 {offsets = [8, 0], sizes = [1, 256], strides = [1, 1]} : vector<27x256xf32> to vector<1x256xf32>
    %658 = vector.extract_strided_slice %6 {offsets = [17, 0], sizes = [1, 256], strides = [1, 1]} : vector<27x256xf32> to vector<1x256xf32>
    %659 = vector.extract_strided_slice %12 {offsets = [8, 0], sizes = [1, 256], strides = [1, 1]} : vector<9x256xf32> to vector<1x256xf32>
    %cst_169 = arith.constant 1.000000e+00 : f32
    %660 = vector.broadcast %cst_169 : f32 to vector<1x256xf32>
    %661 = arith.mulf %13, %660 : vector<1x256xf32>
    %cst_170 = arith.constant 1.000000e+00 : f32
    %662 = vector.broadcast %cst_170 : f32 to vector<1x256xf32>
    %663 = arith.addf %661, %662 : vector<1x256xf32>
    %664 = arith.addf %663, %657 : vector<1x256xf32>
    %cst_171 = arith.constant 1.000000e+00 : f32
    %665 = vector.broadcast %cst_171 : f32 to vector<1x256xf32>
    %666 = arith.mulf %14, %665 : vector<1x256xf32>
    %cst_172 = arith.constant 1.000000e+00 : f32
    %667 = vector.broadcast %cst_172 : f32 to vector<1x256xf32>
    %668 = arith.addf %666, %667 : vector<1x256xf32>
    %669 = arith.addf %668, %658 : vector<1x256xf32>
    %cst_173 = arith.constant -1.000000e+00 : f32
    %670 = vector.broadcast %cst_173 : f32 to vector<1x256xf32>
    %671 = arith.cmpf ogt, %664, %670 : vector<1x256xf32>
    %cst_174 = arith.constant 1.600000e+01 : f32
    %672 = vector.broadcast %cst_174 : f32 to vector<1x256xf32>
    %673 = arith.cmpf olt, %664, %672 : vector<1x256xf32>
    %674 = arith.andi %671, %673 : vector<1x256xi1>
    %cst_175 = arith.constant -1.000000e+00 : f32
    %675 = vector.broadcast %cst_175 : f32 to vector<1x256xf32>
    %676 = arith.cmpf ogt, %669, %675 : vector<1x256xf32>
    %677 = arith.andi %674, %676 : vector<1x256xi1>
    %cst_176 = arith.constant 1.600000e+01 : f32
    %678 = vector.broadcast %cst_176 : f32 to vector<1x256xf32>
    %679 = arith.cmpf olt, %669, %678 : vector<1x256xf32>
    %680 = arith.andi %677, %679 : vector<1x256xi1>
    %681 = arith.extui %680 : vector<1x256xi1> to vector<1x256xi32>
    %682 = arith.sitofp %681 : vector<1x256xi32> to vector<1x256xf32>
    %683 = math.floor %664 : vector<1x256xf32>
    %684 = math.floor %669 : vector<1x256xf32>
    %685 = arith.subf %664, %683 : vector<1x256xf32>
    %686 = arith.subf %669, %684 : vector<1x256xf32>
    %cst_177 = arith.constant 1.000000e+00 : f32
    %687 = vector.broadcast %cst_177 : f32 to vector<1x256xf32>
    %688 = arith.subf %687, %685 : vector<1x256xf32>
    %cst_178 = arith.constant 1.000000e+00 : f32
    %689 = vector.broadcast %cst_178 : f32 to vector<1x256xf32>
    %690 = arith.subf %689, %686 : vector<1x256xf32>
    %691 = arith.fptosi %683 : vector<1x256xf32> to vector<1x256xi32>
    %692 = arith.fptosi %684 : vector<1x256xf32> to vector<1x256xi32>
    %693 = vector.broadcast %691 : vector<1x256xi32> to vector<16x256xi32>
    %694 = arith.cmpi eq, %15, %693 : vector<16x256xi32>
    %cst_179 = arith.constant 0.000000e+00 : f32
    %695 = vector.shape_cast %688 : vector<1x256xf32> to vector<1x256xf32>
    %696 = vector.broadcast %695 : vector<1x256xf32> to vector<16x256xf32>
    %697 = vector.broadcast %cst_179 : f32 to vector<16x256xf32>
    %698 = arith.select %694, %696, %697 : vector<16x256xi1>, vector<16x256xf32>
    %c1_i32_180 = arith.constant 1 : i32
    %699 = vector.broadcast %c1_i32_180 : i32 to vector<1x256xi32>
    %700 = arith.addi %691, %699 : vector<1x256xi32>
    %701 = vector.broadcast %700 : vector<1x256xi32> to vector<16x256xi32>
    %702 = arith.cmpi eq, %15, %701 : vector<16x256xi32>
    %cst_181 = arith.constant 0.000000e+00 : f32
    %703 = vector.shape_cast %685 : vector<1x256xf32> to vector<1x256xf32>
    %704 = vector.broadcast %703 : vector<1x256xf32> to vector<16x256xf32>
    %705 = vector.broadcast %cst_181 : f32 to vector<16x256xf32>
    %706 = arith.select %702, %704, %705 : vector<16x256xi1>, vector<16x256xf32>
    %707 = arith.addf %698, %706 : vector<16x256xf32>
    %708 = arith.mulf %682, %659 : vector<1x256xf32>
    %709 = vector.broadcast %708 : vector<1x256xf32> to vector<16x256xf32>
    %710 = arith.mulf %707, %709 : vector<16x256xf32>
    %711 = arith.truncf %710 : vector<16x256xf32> to vector<16x256xbf16>
    %712 = vector.broadcast %692 : vector<1x256xi32> to vector<16x256xi32>
    %713 = arith.cmpi eq, %16, %712 : vector<16x256xi32>
    %cst_182 = arith.constant 0.000000e+00 : f32
    %714 = vector.shape_cast %690 : vector<1x256xf32> to vector<1x256xf32>
    %715 = vector.broadcast %714 : vector<1x256xf32> to vector<16x256xf32>
    %716 = vector.broadcast %cst_182 : f32 to vector<16x256xf32>
    %717 = arith.select %713, %715, %716 : vector<16x256xi1>, vector<16x256xf32>
    %c1_i32_183 = arith.constant 1 : i32
    %718 = vector.broadcast %c1_i32_183 : i32 to vector<1x256xi32>
    %719 = arith.addi %692, %718 : vector<1x256xi32>
    %720 = vector.broadcast %719 : vector<1x256xi32> to vector<16x256xi32>
    %721 = arith.cmpi eq, %16, %720 : vector<16x256xi32>
    %cst_184 = arith.constant 0.000000e+00 : f32
    %722 = vector.shape_cast %686 : vector<1x256xf32> to vector<1x256xf32>
    %723 = vector.broadcast %722 : vector<1x256xf32> to vector<16x256xf32>
    %724 = vector.broadcast %cst_184 : f32 to vector<16x256xf32>
    %725 = arith.select %721, %723, %724 : vector<16x256xi1>, vector<16x256xf32>
    %726 = arith.addf %717, %725 : vector<16x256xf32>
    %727 = arith.truncf %726 : vector<16x256xf32> to vector<16x256xbf16>
    %728 = vector.shape_cast %711 : vector<16x256xbf16> to vector<16x1x256xbf16>
    %729 = vector.shape_cast %727 : vector<16x256xbf16> to vector<1x16x256xbf16>
    %730 = vector.broadcast %728 : vector<16x1x256xbf16> to vector<16x16x256xbf16>
    %731 = vector.broadcast %729 : vector<1x16x256xbf16> to vector<16x16x256xbf16>
    %732 = arith.mulf %730, %731 : vector<16x16x256xbf16>
    %733 = vector.shape_cast %732 : vector<16x16x256xbf16> to vector<256x256xbf16>
    %c0_185 = arith.constant 0 : index
    %c0_186 = arith.constant 0 : index
    %c0_187 = arith.constant 0 : index
    %734 = vector.load %arg4[%c0_185, %c0_186, %c0_187] : memref<1x4x256xbf16, #tpu.memory_space<vmem>>, vector<1x4x256xbf16>
    %735 = vector.shape_cast %734 : vector<1x4x256xbf16> to vector<4x256xbf16>
    %cst_188 = arith.constant dense<0.000000e+00> : vector<4x256xf32>
    %736 = tpu.matmul %735, %733, %cst_188 {dimension_numbers = #tpu.dot_dimension_numbers<[1], [0], [0], [1], [0, 0, 1, 1], [], []>} : vector<4x256xbf16>, vector<256x256xbf16>, vector<4x256xf32> -> vector<4x256xf32>
    %737 = tpu.concatenate %96, %176, %256, %336, %416, %496, %576, %656, %736 in 0 : vector<4x256xf32>, vector<4x256xf32>, vector<4x256xf32>, vector<4x256xf32>, vector<4x256xf32>, vector<4x256xf32>, vector<4x256xf32>, vector<4x256xf32>, vector<4x256xf32> -> vector<36x256xf32>
    %c0_189 = arith.constant 0 : index
    %c0_190 = arith.constant 0 : index
    %738 = vector.load %arg7[%c0_189, %c0_190] : memref<8x36xf32, #tpu.memory_space<vmem>>, vector<8x36xf32>
    %cst_191 = arith.constant dense<0.000000e+00> : vector<8x256xf32>
    %739 = tpu.matmul %738, %737, %cst_191 {dimension_numbers = #tpu.dot_dimension_numbers<[1], [0], [0], [1], [0, 0, 1, 1], [], []>} : vector<8x36xf32>, vector<36x256xf32>, vector<8x256xf32> -> vector<8x256xf32>
    %c0_192 = arith.constant 0 : index
    %c0_193 = arith.constant 0 : index
    %740 = vector.load %arg8[%c0_192, %c0_193] : memref<8x1xf32, #tpu.memory_space<vmem>>, vector<8x1xf32>
    %741 = vector.broadcast %740 : vector<8x1xf32> to vector<8x256xf32>
    %742 = arith.addf %739, %741 : vector<8x256xf32>
    %c0_194 = arith.constant 0 : index
    %c0_195 = arith.constant 0 : index
    %c0_196 = arith.constant 0 : index
    %743 = vector.load %arg9[%c0_194, %c0_195, %c0_196] : memref<1x8x256xf32, #tpu.memory_space<vmem>>, vector<1x8x256xf32>
    %744 = vector.shape_cast %743 : vector<1x8x256xf32> to vector<8x256xf32>
    %745 = vector.shape_cast %742 : vector<8x256xf32> to vector<1x8x256xf32>
    tpu.vector_store %arg9[%c0_194, %c0_195, %c0_196], %745 {strides = array<i32>} : memref<1x8x256xf32, #tpu.memory_space<vmem>>, vector<1x8x256xf32>,
    return
  }
  func.func @transform_0(%arg0: i32, %arg1: i32) -> (i32, i32) {
    %c0_i32 = arith.constant 0 : i32
    %c0_i32_0 = arith.constant 0 : i32
    return %c0_i32, %arg1 : i32, i32
  }
  func.func @transform_1(%arg0: i32, %arg1: i32) -> (i32, i32, i32) {
    %c0_i32 = arith.constant 0 : i32
    %c0_i32_0 = arith.constant 0 : i32
    return %arg0, %c0_i32, %arg1 : i32, i32, i32
  }
  func.func @transform_2(%arg0: i32, %arg1: i32) -> (i32, i32, i32) {
    %c0_i32 = arith.constant 0 : i32
    %c0_i32_0 = arith.constant 0 : i32
    %c0_i32_1 = arith.constant 0 : i32
    return %arg0, %c0_i32, %c0_i32_0 : i32, i32, i32
  }
  func.func @transform_3(%arg0: i32, %arg1: i32) -> (i32, i32) {
    %c0_i32 = arith.constant 0 : i32
    %c0_i32_0 = arith.constant 0 : i32
    %c0_i32_1 = arith.constant 0 : i32
    return %c0_i32, %c0_i32_0 : i32, i32
  }
  func.func @transform_4(%arg0: i32, %arg1: i32) -> (i32, i32) {
    %c0_i32 = arith.constant 0 : i32
    %c0_i32_0 = arith.constant 0 : i32
    %c0_i32_1 = arith.constant 0 : i32
    return %c0_i32, %c0_i32_0 : i32, i32
  }
  func.func @transform_5(%arg0: i32, %arg1: i32) -> (i32, i32) {
    %c0_i32 = arith.constant 0 : i32
    %c0_i32_0 = arith.constant 0 : i32
    %c0_i32_1 = arith.constant 0 : i32
    return %c0_i32, %c0_i32_0 : i32, i32
  }
  func.func @transform_6(%arg0: i32, %arg1: i32) -> (i32, i32) {
    %c0_i32 = arith.constant 0 : i32
    %c0_i32_0 = arith.constant 0 : i32
    %c0_i32_1 = arith.constant 0 : i32
    return %c0_i32, %c0_i32_0 : i32, i32
  }
  func.func @transform_7(%arg0: i32, %arg1: i32) -> (i32, i32, i32) {
    %c0_i32 = arith.constant 0 : i32
    %c0_i32_0 = arith.constant 0 : i32
    return %arg0, %c0_i32, %arg1 : i32, i32, i32
  }
}

</mosaic_0001>

<llo_original>
// kernel: tpu_custom_call.1
$region0: #{tpu_custom_call.1}
  #allocation0 [shape = 'u32[]', space=smem, size = 0x4, offset = 0x4, fixed_abs, tag = 'smem constant byte address 0x4 - core index']
  #allocation1 [shape = 'u32[144,128]{1,0:T(1,128)}', space=vmem, size = 0x12000, scoped, tag = 'internal scratch']
  %s0 = inlined_call_operand.vmem [shape: f32[2,256], index: 0, kind: input, shape index: {}]
  %s1 = inlined_call_operand.vmem [shape: f32[2,36,256], index: 1, kind: input, shape index: {}]
  %s2 = inlined_call_operand.vmem [shape: bf16[2,4,256], index: 2, kind: input, shape index: {}]
  %s3 = inlined_call_operand.vmem [shape: f32[27,36], index: 3, kind: input, shape index: {}]
  %s4 = inlined_call_operand.vmem [shape: f32[27,1], index: 4, kind: input, shape index: {}]
  %s5 = inlined_call_operand.vmem [shape: f32[8,36], index: 5, kind: input, shape index: {}]
  %s6 = inlined_call_operand.vmem [shape: f32[8,1], index: 6, kind: input, shape index: {}]
  %s7 = inlined_call_operand.hbm [shape: f32[2,8,256], index: 7, kind: output, shape index: {}]
  %s8 = sld [smem:[#allocation0]]
  $region61: #{tpu_custom_call.1} parent=0
    _
  %s10 = ssub.s32 1, %s8
  %s11 = scalar_select 0, %s10, %s8
  $region1: #{tpu_custom_call.1} parent=0
    #allocation2 [shape = 'u8[16384]{0}', space=vmem, size = 0x4000, scoped, tag = 'output window, operand 0']
    #allocation3 [shape = 's32[2]{0}', space=sflag, size = 0x8, scoped, tag = 'scoped memory for tpu_custom_call.1']
    %12 = vsyncpa [#allocation3], 0
    %s13 = scalar_lea.sflag [#allocation3], 1
    %14 = vsyncpa %s13, 0
    loop: start=0, step=1, limit=4
    $region2: #{tpu_custom_call.1} parent=1 // loop_pre_header
      _
    $region3: #{tpu_custom_call.1} parent=1 // loop_header
      %s16 = sphi 0, %s20
      %p17 = scmp.ge.s32.totalorder %s16, 4
      %s23 = sphi 0, %s35
      %s24 = sphi 0, %s31
      %s25 = sphi 0, %s23
      %s26 = sphi 0, %s24
      %s27 = sphi 0, %s25
      %s28 = sphi 0, %s26
      %s38 = sphi 0, %s40
      %s41 = sphi 0, %s38
      %s42 = sphi 0, %s41
      %s58 = sphi 0, %s42
      %s66 = sphi 0, %s68
      %s69 = sphi 0, %s66
      %s70 = sphi 0, %s69
      %s86 = sphi 0, %s70
      %s92 = sphi 0, %s94
      %s95 = sphi 0, %s92
      %s96 = sphi 0, %s95
      %s112 = sphi 0, %s96
      %s116 = sphi 0, %s116
      %s118 = sphi 0, %s116
      %s119 = sphi 0, %s118
      %s133 = sphi 0, %s119
      %s137 = sphi 0, %s137
      %s139 = sphi 0, %s137
      %s140 = sphi 0, %s139
      %s154 = sphi 0, %s140
      %s158 = sphi 0, %s158
      %s160 = sphi 0, %s158
      %s161 = sphi 0, %s160
      %s175 = sphi 0, %s161
      %s179 = sphi 0, %s179
      %s181 = sphi 0, %s179
      %s182 = sphi 0, %s181
      %s196 = sphi 0, %s182
      %s204 = sphi 0, %s206
      %s207 = sphi 0, %s204
      %s208 = sphi 0, %s207
      %s224 = sphi 0, %s208
    $region4: #{tpu_custom_call.1} parent=1 // loop_header_branch
      %19 = sbr.rel (%p17) target = $region8
    $region5: #{tpu_custom_call.1} parent=1 // loop_body
      %s21 = ssub.s32 %s16, 1
      %s22 = ssub.s32 %s16, 2
      %s29 = sadd.s32 1, %s24
      %p30 = scmp.ge.s32.totalorder %s29, 1
      %s31 = scalar_select %p30, 0, %s29
      %s32 = sadd.s32 1, %s23
      %s33 = scalar_select %p30, %s32, %s23
      %p34 = scmp.ge.s32.totalorder %s33, 2
      %s35 = scalar_select %p34, 0, %s33
      %s36 = ssub.s32 %s24, %s31
      %p37 = scmp.eq.s32.totalorder %s36, 0
      %s39 = sadd.s32 %s38, 1
      %s40 = scalar_select %p37, %s38, %s39
      %p43 = pneg %p37
      %p44 = scmp.eq.s32.totalorder %s16, 1
      %p45 = por %p43, %p44
      %p46 = scmp.ne.s32.totalorder %s38, %s41
      %p47 = scmp.eq.s32.totalorder %s16, 0
      %p48 = por %p46, %p47
      %p49 = scmp.ne.s32.totalorder %s38, %s41
      %p50 = scmp.eq.s32.totalorder %s21, 1
      %p51 = por %p49, %p50
      %p52 = scmp.ne.s32.totalorder %s41, %s42
      %p53 = scmp.eq.s32.totalorder %s21, 0
      %p54 = por %p52, %p53
      %p55 = scmp.ne.s32.totalorder %s41, %s42
      %p56 = scmp.eq.s32.totalorder %s22, 1
      %p57 = por %p55, %p56
      %p59 = scmp.ne.s32.totalorder %s42, %s58
      %p60 = scmp.eq.s32.totalorder %s22, 0
      %p61 = por %p59, %p60
      %s62 = ssub.s32 %s23, %s35
      %s63 = ssub.s32 %s24, %s31
      %s64 = sor.u32 %s62, %s63
      %p65 = scmp.eq.s32.totalorder %s64, 0
      %s67 = sadd.s32 %s66, 1
      %s68 = scalar_select %p65, %s66, %s67
      %p71 = pneg %p65
      %p72 = scmp.eq.s32.totalorder %s16, 1
      %p73 = por %p71, %p72
      %p74 = scmp.ne.s32.totalorder %s66, %s69
      %p75 = scmp.eq.s32.totalorder %s16, 0
      %p76 = por %p74, %p75
      %p77 = scmp.ne.s32.totalorder %s66, %s69
      %p78 = scmp.eq.s32.totalorder %s21, 1
      %p79 = por %p77, %p78
      %p80 = scmp.ne.s32.totalorder %s69, %s70
      %p81 = scmp.eq.s32.totalorder %s21, 0
      %p82 = por %p80, %p81
      %p83 = scmp.ne.s32.totalorder %s69, %s70
      %p84 = scmp.eq.s32.totalorder %s22, 1
      %p85 = por %p83, %p84
      %p87 = scmp.ne.s32.totalorder %s70, %s86
      %p88 = scmp.eq.s32.totalorder %s22, 0
      %p89 = por %p87, %p88
      %s90 = ssub.s32 %s23, %s35
      %p91 = scmp.eq.s32.totalorder %s90, 0
      %s93 = sadd.s32 %s92, 1
      %s94 = scalar_select %p91, %s92, %s93
      %p97 = pneg %p91
      %p98 = scmp.eq.s32.totalorder %s16, 1
      %p99 = por %p97, %p98
      %p100 = scmp.ne.s32.totalorder %s92, %s95
      %p101 = scmp.eq.s32.totalorder %s16, 0
      %p102 = por %p100, %p101
      %p103 = scmp.ne.s32.totalorder %s92, %s95
      %p104 = scmp.eq.s32.totalorder %s21, 1
      %p105 = por %p103, %p104
      %p106 = scmp.ne.s32.totalorder %s95, %s96
      %p107 = scmp.eq.s32.totalorder %s21, 0
      %p108 = por %p106, %p107
      %p109 = scmp.ne.s32.totalorder %s95, %s96
      %p110 = scmp.eq.s32.totalorder %s22, 1
      %p111 = por %p109, %p110
      %p113 = scmp.ne.s32.totalorder %s96, %s112
      %p114 = scmp.eq.s32.totalorder %s22, 0
      %p115 = por %p113, %p114
      %s117 = sadd.s32 %s116, 1
      %p120 = scmp.eq.s32.totalorder %s16, 1
      %p121 = scmp.ne.s32.totalorder %s116, %s118
      %p122 = scmp.eq.s32.totalorder %s16, 0
      %p123 = por %p121, %p122
      %p124 = scmp.ne.s32.totalorder %s116, %s118
      %p125 = scmp.eq.s32.totalorder %s21, 1
      %p126 = por %p124, %p125
      %p127 = scmp.ne.s32.totalorder %s118, %s119
      %p128 = scmp.eq.s32.totalorder %s21, 0
      %p129 = por %p127, %p128
      %p130 = scmp.ne.s32.totalorder %s118, %s119
      %p131 = scmp.eq.s32.totalorder %s22, 1
      %p132 = por %p130, %p131
      %p134 = scmp.ne.s32.totalorder %s119, %s133
      %p135 = scmp.eq.s32.totalorder %s22, 0
      %p136 = por %p134, %p135
      %s138 = sadd.s32 %s137, 1
      %p141 = scmp.eq.s32.totalorder %s16, 1
      %p142 = scmp.ne.s32.totalorder %s137, %s139
      %p143 = scmp.eq.s32.totalorder %s16, 0
      %p144 = por %p142, %p143
      %p145 = scmp.ne.s32.totalorder %s137, %s139
      %p146 = scmp.eq.s32.totalorder %s21, 1
      %p147 = por %p145, %p146
      %p148 = scmp.ne.s32.totalorder %s139, %s140
      %p149 = scmp.eq.s32.totalorder %s21, 0
      %p150 = por %p148, %p149
      %p151 = scmp.ne.s32.totalorder %s139, %s140
      %p152 = scmp.eq.s32.totalorder %s22, 1
      %p153 = por %p151, %p152
      %p155 = scmp.ne.s32.totalorder %s140, %s154
      %p156 = scmp.eq.s32.totalorder %s22, 0
      %p157 = por %p155, %p156
      %s159 = sadd.s32 %s158, 1
      %p162 = scmp.eq.s32.totalorder %s16, 1
      %p163 = scmp.ne.s32.totalorder %s158, %s160
      %p164 = scmp.eq.s32.totalorder %s16, 0
      %p165 = por %p163, %p164
      %p166 = scmp.ne.s32.totalorder %s158, %s160
      %p167 = scmp.eq.s32.totalorder %s21, 1
      %p168 = por %p166, %p167
      %p169 = scmp.ne.s32.totalorder %s160, %s161
      %p170 = scmp.eq.s32.totalorder %s21, 0
      %p171 = por %p169, %p170
      %p172 = scmp.ne.s32.totalorder %s160, %s161
      %p173 = scmp.eq.s32.totalorder %s22, 1
      %p174 = por %p172, %p173
      %p176 = scmp.ne.s32.totalorder %s161, %s175
      %p177 = scmp.eq.s32.totalorder %s22, 0
      %p178 = por %p176, %p177
      %s180 = sadd.s32 %s179, 1
      %p183 = scmp.eq.s32.totalorder %s16, 1
      %p184 = scmp.ne.s32.totalorder %s179, %s181
      %p185 = scmp.eq.s32.totalorder %s16, 0
      %p186 = por %p184, %p185
      %p187 = scmp.ne.s32.totalorder %s179, %s181
      %p188 = scmp.eq.s32.totalorder %s21, 1
      %p189 = por %p187, %p188
      %p190 = scmp.ne.s32.totalorder %s181, %s182
      %p191 = scmp.eq.s32.totalorder %s21, 0
      %p192 = por %p190, %p191
      %p193 = scmp.ne.s32.totalorder %s181, %s182
      %p194 = scmp.eq.s32.totalorder %s22, 1
      %p195 = por %p193, %p194
      %p197 = scmp.ne.s32.totalorder %s182, %s196
      %p198 = scmp.eq.s32.totalorder %s22, 0
      %p199 = por %p197, %p198
      %s200 = ssub.s32 %s23, %s35
      %s201 = ssub.s32 %s24, %s31
      %s202 = sor.u32 %s200, %s201
      %p203 = scmp.eq.s32.totalorder %s202, 0
      %s205 = sadd.s32 %s204, 1
      %s206 = scalar_select %p203, %s204, %s205
      %p209 = pneg %p203
      %p210 = scmp.eq.s32.totalorder %s16, 1
      %p211 = por %p209, %p210
      %p212 = scmp.ne.s32.totalorder %s204, %s207
      %p213 = scmp.eq.s32.totalorder %s16, 0
      %p214 = por %p212, %p213
      %p215 = scmp.ne.s32.totalorder %s204, %s207
      %p216 = scmp.eq.s32.totalorder %s21, 1
      %p217 = por %p215, %p216
      %p218 = scmp.ne.s32.totalorder %s207, %s208
      %p219 = scmp.eq.s32.totalorder %s21, 0
      %p220 = por %p218, %p219
      %p221 = scmp.ne.s32.totalorder %s207, %s208
      %p222 = scmp.eq.s32.totalorder %s22, 1
      %p223 = por %p221, %p222
      %p225 = scmp.ne.s32.totalorder %s208, %s224
      %p226 = scmp.eq.s32.totalorder %s22, 0
      %p227 = por %p225, %p226
      %p228 = scmp.le.s32.totalorder 1, %s16
      %p229 = scmp.lt.s32.totalorder %s16, 3
      %p230 = pnand %p228, %p229
      %p231 = pneg %p230
      // Predicated region
      $region9: #{tpu_custom_call.1} parent=5 // pred_check
        _
      $region10: #{tpu_custom_call.1} parent=5 // pred_check_branch
        %233 = sbr.rel (%p230) target = $region12
      $region11: #{tpu_custom_call.1} parent=5 // pred_region
        %s234 = ssub.s32 %s16, 1
        // Predicated region
        $region13: #{tpu_custom_call.1} parent=11 // pred_check
          %p235 = pneg %p54
        $region14: #{tpu_custom_call.1} parent=11 // pred_check_branch
          %237 = sbr.rel (%p235) target = $region16
        $region15: #{tpu_custom_call.1} parent=11 // pred_region
          %s238 = smul.u32 2, %s26
          %p239 = scmp.lt.s32.totalorder %s238, 1
          %s240 = scalar_select %p239, %s238, 1
          %s241 = smul.addr %s240, 2
          %s242 = scalar_lea.vmem %s0, %s241
          %s243 = smul.u32 2, %s26
        $region16: #{tpu_custom_call.1} parent=11 // pred_fallthru
          _
        // Predicated region
        $region17: #{tpu_custom_call.1} parent=11 // pred_check
          %p244 = pneg %p129
        $region18: #{tpu_custom_call.1} parent=11 // pred_check_branch
          %246 = sbr.rel (%p244) target = $region20
        $region19: #{tpu_custom_call.1} parent=11 // pred_region
          _
        $region20: #{tpu_custom_call.1} parent=11 // pred_fallthru
          _
        // Predicated region
        $region21: #{tpu_custom_call.1} parent=11 // pred_check
          %p247 = pneg %p150
        $region22: #{tpu_custom_call.1} parent=11 // pred_check_branch
          %249 = sbr.rel (%p247) target = $region24
        $region23: #{tpu_custom_call.1} parent=11 // pred_region
          _
        $region24: #{tpu_custom_call.1} parent=11 // pred_fallthru
          _
        // Predicated region
        $region25: #{tpu_custom_call.1} parent=11 // pred_check
          %p250 = pneg %p171
        $region26: #{tpu_custom_call.1} parent=11 // pred_check_branch
          %252 = sbr.rel (%p250) target = $region28
        $region27: #{tpu_custom_call.1} parent=11 // pred_region
          _
        $region28: #{tpu_custom_call.1} parent=11 // pred_fallthru
          _
        // Predicated region
        $region29: #{tpu_custom_call.1} parent=11 // pred_check
          %p253 = pneg %p192
        $region30: #{tpu_custom_call.1} parent=11 // pred_check_branch
          %255 = sbr.rel (%p253) target = $region32
        $region31: #{tpu_custom_call.1} parent=11 // pred_region
          _
        $region32: #{tpu_custom_call.1} parent=11 // pred_fallthru
          _
      $region12: #{tpu_custom_call.1} parent=5 // pred_fallthru
        _
      %p256 = scmp.lt.s32.totalorder %s16, 2
      // Predicated region
      $region33: #{tpu_custom_call.1} parent=5 // pred_check
        %p257 = pneg %p256
      $region34: #{tpu_custom_call.1} parent=5 // pred_check_branch
        %259 = sbr.rel (%p257) target = $region36
      $region35: #{tpu_custom_call.1} parent=5 // pred_region
        // Predicated region
        $region37: #{tpu_custom_call.1} parent=35 // pred_check
          %p260 = pneg %p76
        $region38: #{tpu_custom_call.1} parent=35 // pred_check_branch
          %262 = sbr.rel (%p260) target = $region40
        $region39: #{tpu_custom_call.1} parent=35 // pred_region
          %s263 = smul.u32 2, %s24
          %p264 = scmp.lt.s32.totalorder %s23, 1
          %s265 = scalar_select %p264, %s23, 1
          %p266 = scmp.lt.s32.totalorder %s263, 1
          %s267 = scalar_select %p266, %s263, 1
          %s268 = smul.addr %s265, 10
          %s269 = sadd.s32 %s267, %s268
          %s270 = smul.addr %s269, 8
          %s271 = scalar_lea.vmem %s1, %s270
          %s272 = smul.u32 2, %s24
        $region40: #{tpu_custom_call.1} parent=35 // pred_fallthru
          _
        // Predicated region
        $region41: #{tpu_custom_call.1} parent=35 // pred_check
          %p273 = pneg %p102
        $region42: #{tpu_custom_call.1} parent=35 // pred_check_branch
          %275 = sbr.rel (%p273) target = $region44
        $region43: #{tpu_custom_call.1} parent=35 // pred_region
          %p276 = scmp.lt.s32.totalorder %s23, 1
          %s277 = scalar_select %p276, %s23, 1
          %s278 = smul.addr %s277, 2
          %s279 = smul.addr %s278, 2
          %s280 = scalar_lea.vmem %s2, %s279
        $region44: #{tpu_custom_call.1} parent=35 // pred_fallthru
          _
      $region36: #{tpu_custom_call.1} parent=5 // pred_fallthru
        _
      %p281 = scmp.le.s32.totalorder 1, %s16
      %p282 = scmp.lt.s32.totalorder %s16, 3
      %p283 = pnand %p281, %p282
      %p284 = pneg %p283
      // Predicated region
      $region45: #{tpu_custom_call.1} parent=5 // pred_check
        _
      $region46: #{tpu_custom_call.1} parent=5 // pred_check_branch
        %286 = sbr.rel (%p283) target = $region48
      $region47: #{tpu_custom_call.1} parent=5 // pred_region
        %s287 = ssub.s32 %s16, 1
        %s288 = smul.u32 2, %s26
        %p289 = scmp.lt.s32.totalorder %s288, 1
        %s290 = scalar_select %p289, %s288, 1
        %s291 = smul.addr %s290, 2
        %s292 = scalar_lea.vmem %s0, %s291
        %p293 = pneg %p54
        %p294 = pneg %p51
        %s295 = smul.u32 2, %s26
        %p296 = scmp.lt.s32.totalorder %s25, 1
        %s297 = scalar_select %p296, %s25, 1
        %p298 = scmp.lt.s32.totalorder %s295, 1
        %s299 = scalar_select %p298, %s295, 1
        %s300 = smul.addr %s297, 10
        %s301 = sadd.s32 %s299, %s300
        %s302 = smul.addr %s301, 8
        %s303 = scalar_lea.vmem %s1, %s302
        %p304 = pneg %p82
        %p305 = pneg %p79
        %p306 = scmp.lt.s32.totalorder %s25, 1
        %s307 = scalar_select %p306, %s25, 1
        %s308 = smul.addr %s307, 2
        %s309 = smul.addr %s308, 2
        %s310 = scalar_lea.vmem %s2, %s309
        %p311 = pneg %p108
        %p312 = pneg %p105
        %p313 = pneg %p129
        %p314 = pneg %p126
        %p315 = pneg %p150
        %p316 = pneg %p147
        %p317 = pneg %p171
        %p318 = pneg %p168
        %p319 = pneg %p192
        %p320 = pneg %p189
        %p321 = pneg %p220
        %p322 = pneg %p217
        %s323 = sand.u32 %s207, 1
        %s324 = scalar_lea.sflag [#allocation3], %s323
        %s325 = sand.u32 %s207, 1
        %s326 = smul.addr %s325, 16
        %s327 = scalar_lea.vmem [#allocation2], %s326
        %s328 = smul.u32 2, %s26
        %p329 = scmp.lt.s32.totalorder %s328, 1
        %s330 = scalar_select %p329, %s328, 1
        %s331 = smul.addr %s330, 2
        %s332 = scalar_lea.vmem %s0, %s331
        %s333 = smul.u32 2, %s26
        %s334 = smul.u32 2, %s26
        %p335 = scmp.lt.s32.totalorder %s25, 1
        %s336 = scalar_select %p335, %s25, 1
        %p337 = scmp.lt.s32.totalorder %s334, 1
        %s338 = scalar_select %p337, %s334, 1
        %s339 = smul.addr %s336, 10
        %s340 = sadd.s32 %s338, %s339
        %s341 = smul.addr %s340, 8
        %s342 = scalar_lea.vmem %s1, %s341
        %s343 = smul.u32 2, %s26
        %p344 = scmp.lt.s32.totalorder %s25, 1
        %s345 = scalar_select %p344, %s25, 1
        %s346 = smul.addr %s345, 2
        %s347 = smul.addr %s346, 2
        %s348 = scalar_lea.vmem %s2, %s347
        %s349 = smul.u32 2, %s26
        %v350 = vld [vmem:[%s3] sm:$0xff]
        %v351 = vld [vmem:[%s3 + $0x8] sm:$0xff]
        %v352 = vld [vmem:[%s3 + $0x10] sm:$0xff]
        %v353 = vld [vmem:[%s3 + $0x18] sm:$0x7]
        %v354 = vld [vmem:[%s342] sm:$0xff]
        %v355 = vld [vmem:[%s342 + $0x8] sm:$0xff]
        %v356 = vld [vmem:[%s342 + $0x10] sm:$0xff]
        %v357 = vld [vmem:[%s342 + $0x18] sm:$0xff]
        %v358 = vld [vmem:[%s342 + $0x20] sm:$0xff]
        %v359 = vld [vmem:[%s342 + $0x28] sm:$0xff]
        %v360 = vld [vmem:[%s342 + $0x30] sm:$0xff]
        %v361 = vld [vmem:[%s342 + $0x38] sm:$0xff]
        %v362 = vld [vmem:[%s342 + $0x40] sm:$0xf]
        %v363 = vld [vmem:[%s342 + $0x48] sm:$0xf]
        %v364 = vld [vmem:[%s4] sm:$0xff]
        %v365 = vld [vmem:[%s4 + $0x8] sm:$0xff]
        %v366 = vld [vmem:[%s4 + $0x10] sm:$0xff]
        %v367 = vld [vmem:[%s4 + $0x18] sm:$0x7]
        %369 = vset.pattern.permute.xlu0 0
        %370 = vperm.xlu0 %369, %v364
        %v371 = vpop.permute.xlu0 %370
        %374 = vset.pattern.permute.xlu0 0
        %375 = vperm.xlu0 %374, %v365
        %v376 = vpop.permute.xlu0 %375
        %379 = vset.pattern.permute.xlu0 0
        %380 = vperm.xlu0 %379, %v366
        %v381 = vpop.permute.xlu0 %380
        %384 = vset.pattern.permute.xlu0 0
        %385 = vperm.xlu0 %384, %v367
        %v386 = vpop.permute.xlu0 %385
        %vm388 = vcmask 293888
        %v390 = vsel %vm388, %v350, 0
        %v393 = vsel %vm388, %v351, 0
        %v396 = vsel %vm388, %v352, 0
        %v399 = vsel %vm388, %v353, 0
        %vm401 = vcmask 1043456
        %v403 = vsel %vm401, %v362, 0
        %v406 = vsel %vm401, %v363, 0
        %v408 = vand.u32 %v355, 4294901760
        %409 = vmatprep.subr.mxu0 %v408
        %v410 = vand.u32 %v354, 4294901760
        %411 = vmatpush1.msra.mxu0 %v410
        %v412 = vand.u32 %v357, 4294901760
        %413 = vmatprep.subr.mxu0 %v412
        %v414 = vand.u32 %v356, 4294901760
        %415 = vmatpush1.msra.mxu0 %v414
        %v416 = vand.u32 %v359, 4294901760
        %417 = vmatprep.subr.mxu0 %v416
        %v418 = vand.u32 %v358, 4294901760
        %419 = vmatpush1.msra.mxu0 %v418
        %v420 = vand.u32 %v361, 4294901760
        %421 = vmatprep.subr.mxu0 %v420
        %v422 = vand.u32 %v360, 4294901760
        %423 = vmatpush1.msra.mxu0 %v422
        %v424 = vand.u32 %v406, 4294901760
        %425 = vmatprep.subr.mxu0 %v424
        %v426 = vand.u32 %v403, 4294901760
        %427 = vmatpush1.msra.mxu0 %v426
        %428 = vmatprep.subr.mxu0 0.0
        %429 = vmatpush1.msra.mxu0 0.0
        %430 = vmatprep.subr.mxu0 0.0
        %431 = vmatpush1.msra.mxu0 0.0
        %432 = vmatprep.subr.mxu0 0.0
        %433 = vmatpush1.msra.mxu0 0.0
        %434 = vmatprep.subr.mxu0 0.0
        %435 = vmatpush1.msra.mxu0 0.0
        %436 = vmatprep.subr.mxu0 0.0
        %437 = vmatpush1.msra.mxu0 0.0
        %438 = vmatprep.subr.mxu0 0.0
        %439 = vmatpush1.msra.mxu0 0.0
        %440 = vmatprep.subr.mxu0 0.0
        %441 = vmatpush1.msra.mxu0 0.0
        %442 = vmatprep.subr.mxu0 0.0
        %443 = vmatpush1.msra.mxu0 0.0
        %444 = vmatprep.subr.mxu0 0.0
        %445 = vmatpush1.msra.mxu0 0.0
        %446 = vmatprep.subr.mxu0 0.0
        %447 = vmatpush1.msra.mxu0 0.0
        %448 = vmatprep.subr.mxu0 0.0
        %449 = vmatpush1.msra.mxu0 0.0
        %450 = vmatprep.subr.mxu0 0.0
        %451 = vmatpush1.msra.mxu0 0.0
        %452 = vmatprep.subr.mxu0 0.0
        %453 = vmatpush1.msra.mxu0 0.0
        %454 = vmatprep.subr.mxu0 0.0
        %455 = vmatpush1.msra.mxu0 0.0
        %456 = vmatprep.subr.mxu0 0.0
        %457 = vmatpush1.msra.mxu0 0.0
        %458 = vmatprep.subr.mxu0 0.0
        %459 = vmatpush1.msra.mxu0 0.0
        %460 = vmatprep.subr.mxu0 0.0
        %461 = vmatpush1.msra.mxu0 0.0
        %462 = vmatprep.subr.mxu0 0.0
        %463 = vmatpush1.msra.mxu0 0.0
        %464 = vmatprep.subr.mxu0 0.0
        %465 = vmatpush1.msra.mxu0 0.0
        %466 = vmatprep.subr.mxu0 0.0
        %467 = vmatpush1.msra.mxu0 0.0
        %468 = vmatprep.subr.mxu0 0.0
        %469 = vmatpush1.msra.mxu0 0.0
        %470 = vmatprep.subr.mxu0 0.0
        %471 = vmatpush1.msra.mxu0 0.0
        %472 = vmatprep.subr.mxu0 0.0
        %473 = vmatpush1.msra.mxu0 0.0
        %474 = vmatprep.subr.mxu0 0.0
        %475 = vmatpush1.msra.mxu0 0.0
        %476 = vmatprep.subr.mxu0 0.0
        %477 = vmatpush1.msra.mxu0 0.0
        %478 = vmatprep.subr.mxu0 0.0
        %479 = vmatpush1.msra.mxu0 0.0
        %480 = vmatprep.subr.mxu0 0.0
        %481 = vmatpush1.msra.mxu0 0.0
        %482 = vmatprep.mubr.f32.mxu0 0.0
        %v483 = vand.u32 %v390, 4294901760
        %v484 = vsub.f32 %v390, %v483
        %v485 = vand.u32 %v484, 4294901760
        %v486 = vsub.f32 %v484, %v485
        %v487 = vand.u32 %v486, 4294901760
        %488 = vmatmul.mubr.f32.gmra.mrb[0].mxu0 %v487
        %v489 = vpop.f32.mrb[0].mxu0
        %v490 = vadd.f32 %v371, %v489
        %v491 = vpop.f32.mrb[0].mxu0
        %v492 = vadd.f32 %v371, %v491
        %493 = vmatprep.mubr.f32.mxu0 0.0
        %v494 = vand.u32 %v393, 4294901760
        %v495 = vsub.f32 %v393, %v494
        %v496 = vand.u32 %v495, 4294901760
        %v497 = vsub.f32 %v495, %v496
        %v498 = vand.u32 %v497, 4294901760
        %499 = vmatmul.mubr.f32.gmra.mrb[0].mxu0 %v498
        %v500 = vpop.f32.mrb[0].mxu0
        %v501 = vadd.f32 %v376, %v500
        %v502 = vpop.f32.mrb[0].mxu0
        %v503 = vadd.f32 %v376, %v502
        %504 = vmatprep.mubr.f32.mxu0 0.0
        %v505 = vand.u32 %v396, 4294901760
        %v506 = vsub.f32 %v396, %v505
        %v507 = vand.u32 %v506, 4294901760
        %v508 = vsub.f32 %v506, %v507
        %v509 = vand.u32 %v508, 4294901760
        %510 = vmatmul.mubr.f32.gmra.mrb[0].mxu0 %v509
        %v511 = vpop.f32.mrb[0].mxu0
        %v512 = vadd.f32 %v381, %v511
        %v513 = vpop.f32.mrb[0].mxu0
        %v514 = vadd.f32 %v381, %v513
        %515 = vmatprep.mubr.f32.mxu0 0.0
        %v516 = vand.u32 %v399, 4294901760
        %v517 = vsub.f32 %v399, %v516
        %v518 = vand.u32 %v517, 4294901760
        %v519 = vsub.f32 %v517, %v518
        %v520 = vand.u32 %v519, 4294901760
        %521 = vmatmul.mubr.f32.gmra.mrb[0].mxu0 %v520
        %v522 = vpop.f32.mrb[0].mxu0
        %v523 = vadd.f32 %v386, %v522
        %v524 = vpop.f32.mrb[0].mxu0
        %v525 = vadd.f32 %v386, %v524
        %526 = vdwg.mxu0
        %v527 = vand.u32 %v355, 4294901760
        %v528 = vsub.f32 %v355, %v527
        %v529 = vand.u32 %v528, 4294901760
        %v530 = vsub.f32 %v528, %v529
        %v531 = vand.u32 %v530, 4294901760
        %532 = vmatprep.subr.mxu0 %v531
        %v533 = vand.u32 %v354, 4294901760
        %v534 = vsub.f32 %v354, %v533
        %v535 = vand.u32 %v534, 4294901760
        %v536 = vsub.f32 %v534, %v535
        %v537 = vand.u32 %v536, 4294901760
        %538 = vmatpush1.msra.mxu0 %v537
        %v539 = vand.u32 %v357, 4294901760
        %v540 = vsub.f32 %v357, %v539
        %v541 = vand.u32 %v540, 4294901760
        %v542 = vsub.f32 %v540, %v541
        %v543 = vand.u32 %v542, 4294901760
        %544 = vmatprep.subr.mxu0 %v543
        %v545 = vand.u32 %v356, 4294901760
        %v546 = vsub.f32 %v356, %v545
        %v547 = vand.u32 %v546, 4294901760
        %v548 = vsub.f32 %v546, %v547
        %v549 = vand.u32 %v548, 4294901760
        %550 = vmatpush1.msra.mxu0 %v549
        %v551 = vand.u32 %v359, 4294901760
        %v552 = vsub.f32 %v359, %v551
        %v553 = vand.u32 %v552, 4294901760
        %v554 = vsub.f32 %v552, %v553
        %v555 = vand.u32 %v554, 4294901760
        %556 = vmatprep.subr.mxu0 %v555
        %v557 = vand.u32 %v358, 4294901760
        %v558 = vsub.f32 %v358, %v557
        %v559 = vand.u32 %v558, 4294901760
        %v560 = vsub.f32 %v558, %v559
        %v561 = vand.u32 %v560, 4294901760
        %562 = vmatpush1.msra.mxu0 %v561
        %v563 = vand.u32 %v361, 4294901760
        %v564 = vsub.f32 %v361, %v563
        %v565 = vand.u32 %v564, 4294901760
        %v566 = vsub.f32 %v564, %v565
        %v567 = vand.u32 %v566, 4294901760
        %568 = vmatprep.subr.mxu0 %v567
        %v569 = vand.u32 %v360, 4294901760
        %v570 = vsub.f32 %v360, %v569
        %v571 = vand.u32 %v570, 4294901760
        %v572 = vsub.f32 %v570, %v571
        %v573 = vand.u32 %v572, 4294901760
        %574 = vmatpush1.msra.mxu0 %v573
        %v575 = vand.u32 %v406, 4294901760
        %v576 = vsub.f32 %v406, %v575
        %v577 = vand.u32 %v576, 4294901760
        %v578 = vsub.f32 %v576, %v577
        %v579 = vand.u32 %v578, 4294901760
        %580 = vmatprep.subr.mxu0 %v579
        %v581 = vand.u32 %v403, 4294901760
        %v582 = vsub.f32 %v403, %v581
        %v583 = vand.u32 %v582, 4294901760
        %v584 = vsub.f32 %v582, %v583
        %v585 = vand.u32 %v584, 4294901760
        %586 = vmatpush1.msra.mxu0 %v585
        %587 = vmatprep.subr.mxu0 0.0
        %588 = vmatpush1.msra.mxu0 0.0
        %589 = vmatprep.subr.mxu0 0.0
        %590 = vmatpush1.msra.mxu0 0.0
        %591 = vmatprep.subr.mxu0 0.0
        %592 = vmatpush1.msra.mxu0 0.0
        %593 = vmatprep.subr.mxu0 0.0
        %594 = vmatpush1.msra.mxu0 0.0
        %595 = vmatprep.subr.mxu0 0.0
        %596 = vmatpush1.msra.mxu0 0.0
        %597 = vmatprep.subr.mxu0 0.0
        %598 = vmatpush1.msra.mxu0 0.0
        %599 = vmatprep.subr.mxu0 0.0
        %600 = vmatpush1.msra.mxu0 0.0
        %601 = vmatprep.subr.mxu0 0.0
        %602 = vmatpush1.msra.mxu0 0.0
        %603 = vmatprep.subr.mxu0 0.0
        %604 = vmatpush1.msra.mxu0 0.0
        %605 = vmatprep.subr.mxu0 0.0
        %606 = vmatpush1.msra.mxu0 0.0
        %607 = vmatprep.subr.mxu0 0.0
        %608 = vmatpush1.msra.mxu0 0.0
        %609 = vmatprep.subr.mxu0 0.0
        %610 = vmatpush1.msra.mxu0 0.0
        %611 = vmatprep.subr.mxu0 0.0
        %612 = vmatpush1.msra.mxu0 0.0
        %613 = vmatprep.subr.mxu0 0.0
        %614 = vmatpush1.msra.mxu0 0.0
        %615 = vmatprep.subr.mxu0 0.0
        %616 = vmatpush1.msra.mxu0 0.0
        %617 = vmatprep.subr.mxu0 0.0
        %618 = vmatpush1.msra.mxu0 0.0
        %619 = vmatprep.subr.mxu0 0.0
        %620 = vmatpush1.msra.mxu0 0.0
        %621 = vmatprep.subr.mxu0 0.0
        %622 = vmatpush1.msra.mxu0 0.0
        %623 = vmatprep.subr.mxu0 0.0
        %624 = vmatpush1.msra.mxu0 0.0
        %625 = vmatprep.subr.mxu0 0.0
        %626 = vmatpush1.msra.mxu0 0.0
        %627 = vmatprep.subr.mxu0 0.0
        %628 = vmatpush1.msra.mxu0 0.0
        %629 = vmatprep.subr.mxu0 0.0
        %630 = vmatpush1.msra.mxu0 0.0
        %631 = vmatprep.subr.mxu0 0.0
        %632 = vmatpush1.msra.mxu0 0.0
        %633 = vmatprep.subr.mxu0 0.0
        %634 = vmatpush1.msra.mxu0 0.0
        %635 = vmatprep.subr.mxu0 0.0
        %636 = vmatpush1.msra.mxu0 0.0
        %637 = vmatprep.subr.mxu0 0.0
        %638 = vmatpush1.msra.mxu0 0.0
        %639 = vmatprep.subr.mxu0 0.0
        %640 = vmatpush1.msra.mxu0 0.0
        %641 = vmatprep.mubr.f32.mxu0 0.0
        %v642 = vand.u32 %v390, 4294901760
        %643 = vmatmul.mubr.f32.gmra.mrb[0].mxu0 %v642
        %v644 = vpop.f32.mrb[0].mxu0
        %v645 = vadd.f32 %v490, %v644
        %v646 = vpop.f32.mrb[0].mxu0
        %v647 = vadd.f32 %v492, %v646
        %648 = vmatprep.mubr.f32.mxu0 0.0
        %v649 = vand.u32 %v393, 4294901760
        %650 = vmatmul.mubr.f32.gmra.mrb[0].mxu0 %v649
        %v651 = vpop.f32.mrb[0].mxu0
        %v652 = vadd.f32 %v501, %v651
        %v653 = vpop.f32.mrb[0].mxu0
        %v654 = vadd.f32 %v503, %v653
        %655 = vmatprep.mubr.f32.mxu0 0.0
        %v656 = vand.u32 %v396, 4294901760
        %657 = vmatmul.mubr.f32.gmra.mrb[0].mxu0 %v656
        %v658 = vpop.f32.mrb[0].mxu0
        %v659 = vadd.f32 %v512, %v658
        %v660 = vpop.f32.mrb[0].mxu0
        %v661 = vadd.f32 %v514, %v660
        %662 = vmatprep.mubr.f32.mxu0 0.0
        %v663 = vand.u32 %v399, 4294901760
        %664 = vmatmul.mubr.f32.gmra.mrb[0].mxu0 %v663
        %v665 = vpop.f32.mrb[0].mxu0
        %v666 = vadd.f32 %v523, %v665
        %v667 = vpop.f32.mrb[0].mxu0
        %v668 = vadd.f32 %v525, %v667
        %669 = vdwg.mxu0
        %v670 = vand.u32 %v355, 4294901760
        %v671 = vsub.f32 %v355, %v670
        %672 = vmatprep.subr.mxu0 %v671
        %v673 = vand.u32 %v354, 4294901760
        %v674 = vsub.f32 %v354, %v673
        %675 = vmatpush1.msra.mxu0 %v674
        %v676 = vand.u32 %v357, 4294901760
        %v677 = vsub.f32 %v357, %v676
        %678 = vmatprep.subr.mxu0 %v677
        %v679 = vand.u32 %v356, 4294901760
        %v680 = vsub.f32 %v356, %v679
        %681 = vmatpush1.msra.mxu0 %v680
        %v682 = vand.u32 %v359, 4294901760
        %v683 = vsub.f32 %v359, %v682
        %684 = vmatprep.subr.mxu0 %v683
        %v685 = vand.u32 %v358, 4294901760
        %v686 = vsub.f32 %v358, %v685
        %687 = vmatpush1.msra.mxu0 %v686
        %v688 = vand.u32 %v361, 4294901760
        %v689 = vsub.f32 %v361, %v688
        %690 = vmatprep.subr.mxu0 %v689
        %v691 = vand.u32 %v360, 4294901760
        %v692 = vsub.f32 %v360, %v691
        %693 = vmatpush1.msra.mxu0 %v692
        %v694 = vand.u32 %v406, 4294901760
        %v695 = vsub.f32 %v406, %v694
        %696 = vmatprep.subr.mxu0 %v695
        %v697 = vand.u32 %v403, 4294901760
        %v698 = vsub.f32 %v403, %v697
        %699 = vmatpush1.msra.mxu0 %v698
        %700 = vmatprep.subr.mxu0 0.0
        %701 = vmatpush1.msra.mxu0 0.0
        %702 = vmatprep.subr.mxu0 0.0
        %703 = vmatpush1.msra.mxu0 0.0
        %704 = vmatprep.subr.mxu0 0.0
        %705 = vmatpush1.msra.mxu0 0.0
        %706 = vmatprep.subr.mxu0 0.0
        %707 = vmatpush1.msra.mxu0 0.0
        %708 = vmatprep.subr.mxu0 0.0
        %709 = vmatpush1.msra.mxu0 0.0
        %710 = vmatprep.subr.mxu0 0.0
        %711 = vmatpush1.msra.mxu0 0.0
        %712 = vmatprep.subr.mxu0 0.0
        %713 = vmatpush1.msra.mxu0 0.0
        %714 = vmatprep.subr.mxu0 0.0
        %715 = vmatpush1.msra.mxu0 0.0
        %716 = vmatprep.subr.mxu0 0.0
        %717 = vmatpush1.msra.mxu0 0.0
        %718 = vmatprep.subr.mxu0 0.0
        %719 = vmatpush1.msra.mxu0 0.0
        %720 = vmatprep.subr.mxu0 0.0
        %721 = vmatpush1.msra.mxu0 0.0
        %722 = vmatprep.subr.mxu0 0.0
        %723 = vmatpush1.msra.mxu0 0.0
        %724 = vmatprep.subr.mxu0 0.0
        %725 = vmatpush1.msra.mxu0 0.0
        %726 = vmatprep.subr.mxu0 0.0
        %727 = vmatpush1.msra.mxu0 0.0
        %728 = vmatprep.subr.mxu0 0.0
        %729 = vmatpush1.msra.mxu0 0.0
        %730 = vmatprep.subr.mxu0 0.0
        %731 = vmatpush1.msra.mxu0 0.0
        %732 = vmatprep.subr.mxu0 0.0
        %733 = vmatpush1.msra.mxu0 0.0
        %734 = vmatprep.subr.mxu0 0.0
        %735 = vmatpush1.msra.mxu0 0.0
        %736 = vmatprep.subr.mxu0 0.0
        %737 = vmatpush1.msra.mxu0 0.0
        %738 = vmatprep.subr.mxu0 0.0
        %739 = vmatpush1.msra.mxu0 0.0
        %740 = vmatprep.subr.mxu0 0.0
        %741 = vmatpush1.msra.mxu0 0.0
        %742 = vmatprep.subr.mxu0 0.0
        %743 = vmatpush1.msra.mxu0 0.0
        %744 = vmatprep.subr.mxu0 0.0
        %745 = vmatpush1.msra.mxu0 0.0
        %746 = vmatprep.subr.mxu0 0.0
        %747 = vmatpush1.msra.mxu0 0.0
        %748 = vmatprep.subr.mxu0 0.0
        %749 = vmatpush1.msra.mxu0 0.0
        %750 = vmatprep.subr.mxu0 0.0
        %751 = vmatpush1.msra.mxu0 0.0
        %752 = vmatprep.subr.mxu0 0.0
        %753 = vmatpush1.msra.mxu0 0.0
        %754 = vmatprep.mubr.f32.mxu0 0.0
        %v755 = vand.u32 %v390, 4294901760
        %v756 = vsub.f32 %v390, %v755
        %757 = vmatmul.mubr.f32.gmra.mrb[0].mxu0 %v756
        %v758 = vpop.f32.mrb[0].mxu0
        %v759 = vadd.f32 %v645, %v758
        %v760 = vpop.f32.mrb[0].mxu0
        %v761 = vadd.f32 %v647, %v760
        %762 = vmatprep.mubr.f32.mxu0 0.0
        %v763 = vand.u32 %v393, 4294901760
        %v764 = vsub.f32 %v393, %v763
        %765 = vmatmul.mubr.f32.gmra.mrb[0].mxu0 %v764
        %v766 = vpop.f32.mrb[0].mxu0
        %v767 = vadd.f32 %v652, %v766
        %v768 = vpop.f32.mrb[0].mxu0
        %v769 = vadd.f32 %v654, %v768
        %770 = vmatprep.mubr.f32.mxu0 0.0
        %v771 = vand.u32 %v396, 4294901760
        %v772 = vsub.f32 %v396, %v771
        %773 = vmatmul.mubr.f32.gmra.mrb[0].mxu0 %v772
        %v774 = vpop.f32.mrb[0].mxu0
        %v775 = vadd.f32 %v659, %v774
        %v776 = vpop.f32.mrb[0].mxu0
        %v777 = vadd.f32 %v661, %v776
        %778 = vmatprep.mubr.f32.mxu0 0.0
        %v779 = vand.u32 %v399, 4294901760
        %v780 = vsub.f32 %v399, %v779
        %781 = vmatmul.mubr.f32.gmra.mrb[0].mxu0 %v780
        %v782 = vpop.f32.mrb[0].mxu0
        %v783 = vadd.f32 %v666, %v782
        %v784 = vpop.f32.mrb[0].mxu0
        %v785 = vadd.f32 %v668, %v784
        %786 = vdwg.mxu0
        %v787 = vand.u32 %v355, 4294901760
        %788 = vmatprep.subr.mxu0 %v787
        %v789 = vand.u32 %v354, 4294901760
        %790 = vmatpush1.msra.mxu0 %v789
        %v791 = vand.u32 %v357, 4294901760
        %792 = vmatprep.subr.mxu0 %v791
        %v793 = vand.u32 %v356, 4294901760
        %794 = vmatpush1.msra.mxu0 %v793
        %v795 = vand.u32 %v359, 4294901760
        %796 = vmatprep.subr.mxu0 %v795
        %v797 = vand.u32 %v358, 4294901760
        %798 = vmatpush1.msra.mxu0 %v797
        %v799 = vand.u32 %v361, 4294901760
        %800 = vmatprep.subr.mxu0 %v799
        %v801 = vand.u32 %v360, 4294901760
        %802 = vmatpush1.msra.mxu0 %v801
        %v803 = vand.u32 %v406, 4294901760
        %804 = vmatprep.subr.mxu0 %v803
        %v805 = vand.u32 %v403, 4294901760
        %806 = vmatpush1.msra.mxu0 %v805
        %807 = vmatprep.subr.mxu0 0.0
        %808 = vmatpush1.msra.mxu0 0.0
        %809 = vmatprep.subr.mxu0 0.0
        %810 = vmatpush1.msra.mxu0 0.0
        %811 = vmatprep.subr.mxu0 0.0
        %812 = vmatpush1.msra.mxu0 0.0
        %813 = vmatprep.subr.mxu0 0.0
        %814 = vmatpush1.msra.mxu0 0.0
        %815 = vmatprep.subr.mxu0 0.0
        %816 = vmatpush1.msra.mxu0 0.0
        %817 = vmatprep.subr.mxu0 0.0
        %818 = vmatpush1.msra.mxu0 0.0
        %819 = vmatprep.subr.mxu0 0.0
        %820 = vmatpush1.msra.mxu0 0.0
        %821 = vmatprep.subr.mxu0 0.0
        %822 = vmatpush1.msra.mxu0 0.0
        %823 = vmatprep.subr.mxu0 0.0
        %824 = vmatpush1.msra.mxu0 0.0
        %825 = vmatprep.subr.mxu0 0.0
        %826 = vmatpush1.msra.mxu0 0.0
        %827 = vmatprep.subr.mxu0 0.0
        %828 = vmatpush1.msra.mxu0 0.0
        %829 = vmatprep.subr.mxu0 0.0
        %830 = vmatpush1.msra.mxu0 0.0
        %831 = vmatprep.subr.mxu0 0.0
        %832 = vmatpush1.msra.mxu0 0.0
        %833 = vmatprep.subr.mxu0 0.0
        %834 = vmatpush1.msra.mxu0 0.0
        %835 = vmatprep.subr.mxu0 0.0
        %836 = vmatpush1.msra.mxu0 0.0
        %837 = vmatprep.subr.mxu0 0.0
        %838 = vmatpush1.msra.mxu0 0.0
        %839 = vmatprep.subr.mxu0 0.0
        %840 = vmatpush1.msra.mxu0 0.0
        %841 = vmatprep.subr.mxu0 0.0
        %842 = vmatpush1.msra.mxu0 0.0
        %843 = vmatprep.subr.mxu0 0.0
        %844 = vmatpush1.msra.mxu0 0.0
        %845 = vmatprep.subr.mxu0 0.0
        %846 = vmatpush1.msra.mxu0 0.0
        %847 = vmatprep.subr.mxu0 0.0
        %848 = vmatpush1.msra.mxu0 0.0
        %849 = vmatprep.subr.mxu0 0.0
        %850 = vmatpush1.msra.mxu0 0.0
        %851 = vmatprep.subr.mxu0 0.0
        %852 = vmatpush1.msra.mxu0 0.0
        %853 = vmatprep.subr.mxu0 0.0
        %854 = vmatpush1.msra.mxu0 0.0
        %855 = vmatprep.subr.mxu0 0.0
        %856 = vmatpush1.msra.mxu0 0.0
        %857 = vmatprep.subr.mxu0 0.0
        %858 = vmatpush1.msra.mxu0 0.0
        %859 = vmatprep.subr.mxu0 0.0
        %860 = vmatpush1.msra.mxu0 0.0
        %861 = vmatprep.mubr.f32.mxu0 0.0
        %v862 = vand.u32 %v390, 4294901760
        %v863 = vsub.f32 %v390, %v862
        %v864 = vand.u32 %v863, 4294901760
        %865 = vmatmul.mubr.f32.gmra.mrb[0].mxu0 %v864
        %v866 = vpop.f32.mrb[0].mxu0
        %v867 = vadd.f32 %v759, %v866
        %v868 = vpop.f32.mrb[0].mxu0
        %v869 = vadd.f32 %v761, %v868
        %870 = vmatprep.mubr.f32.mxu0 0.0
        %v871 = vand.u32 %v393, 4294901760
        %v872 = vsub.f32 %v393, %v871
        %v873 = vand.u32 %v872, 4294901760
        %874 = vmatmul.mubr.f32.gmra.mrb[0].mxu0 %v873
        %v875 = vpop.f32.mrb[0].mxu0
        %v876 = vadd.f32 %v767, %v875
        %v877 = vpop.f32.mrb[0].mxu0
        %v878 = vadd.f32 %v769, %v877
        %879 = vmatprep.mubr.f32.mxu0 0.0
        %v880 = vand.u32 %v396, 4294901760
        %v881 = vsub.f32 %v396, %v880
        %v882 = vand.u32 %v881, 4294901760
        %883 = vmatmul.mubr.f32.gmra.mrb[0].mxu0 %v882
        %v884 = vpop.f32.mrb[0].mxu0
        %v885 = vadd.f32 %v775, %v884
        %v886 = vpop.f32.mrb[0].mxu0
        %v887 = vadd.f32 %v777, %v886
        %888 = vmatprep.mubr.f32.mxu0 0.0
        %v889 = vand.u32 %v399, 4294901760
        %v890 = vsub.f32 %v399, %v889
        %v891 = vand.u32 %v890, 4294901760
        %892 = vmatmul.mubr.f32.gmra.mrb[0].mxu0 %v891
        %v893 = vpop.f32.mrb[0].mxu0
        %v894 = vadd.f32 %v783, %v893
        %v895 = vpop.f32.mrb[0].mxu0
        %v896 = vadd.f32 %v785, %v895
        %897 = vdwg.mxu0
        %v898 = vand.u32 %v355, 4294901760
        %v899 = vsub.f32 %v355, %v898
        %v900 = vand.u32 %v899, 4294901760
        %901 = vmatprep.subr.mxu0 %v900
        %v902 = vand.u32 %v354, 4294901760
        %v903 = vsub.f32 %v354, %v902
        %v904 = vand.u32 %v903, 4294901760
        %905 = vmatpush1.msra.mxu0 %v904
        %v906 = vand.u32 %v357, 4294901760
        %v907 = vsub.f32 %v357, %v906
        %v908 = vand.u32 %v907, 4294901760
        %909 = vmatprep.subr.mxu0 %v908
        %v910 = vand.u32 %v356, 4294901760
        %v911 = vsub.f32 %v356, %v910
        %v912 = vand.u32 %v911, 4294901760
        %913 = vmatpush1.msra.mxu0 %v912
        %v914 = vand.u32 %v359, 4294901760
        %v915 = vsub.f32 %v359, %v914
        %v916 = vand.u32 %v915, 4294901760
        %917 = vmatprep.subr.mxu0 %v916
        %v918 = vand.u32 %v358, 4294901760
        %v919 = vsub.f32 %v358, %v918
        %v920 = vand.u32 %v919, 4294901760
        %921 = vmatpush1.msra.mxu0 %v920
        %v922 = vand.u32 %v361, 4294901760
        %v923 = vsub.f32 %v361, %v922
        %v924 = vand.u32 %v923, 4294901760
        %925 = vmatprep.subr.mxu0 %v924
        %v926 = vand.u32 %v360, 4294901760
        %v927 = vsub.f32 %v360, %v926
        %v928 = vand.u32 %v927, 4294901760
        %929 = vmatpush1.msra.mxu0 %v928
        %v930 = vand.u32 %v406, 4294901760
        %v931 = vsub.f32 %v406, %v930
        %v932 = vand.u32 %v931, 4294901760
        %933 = vmatprep.subr.mxu0 %v932
        %v934 = vand.u32 %v403, 4294901760
        %v935 = vsub.f32 %v403, %v934
        %v936 = vand.u32 %v935, 4294901760
        %937 = vmatpush1.msra.mxu0 %v936
        %938 = vmatprep.subr.mxu0 0.0
        %939 = vmatpush1.msra.mxu0 0.0
        %940 = vmatprep.subr.mxu0 0.0
        %941 = vmatpush1.msra.mxu0 0.0
        %942 = vmatprep.subr.mxu0 0.0
        %943 = vmatpush1.msra.mxu0 0.0
        %944 = vmatprep.subr.mxu0 0.0
        %945 = vmatpush1.msra.mxu0 0.0
        %946 = vmatprep.subr.mxu0 0.0
        %947 = vmatpush1.msra.mxu0 0.0
        %948 = vmatprep.subr.mxu0 0.0
        %949 = vmatpush1.msra.mxu0 0.0
        %950 = vmatprep.subr.mxu0 0.0
        %951 = vmatpush1.msra.mxu0 0.0
        %952 = vmatprep.subr.mxu0 0.0
        %953 = vmatpush1.msra.mxu0 0.0
        %954 = vmatprep.subr.mxu0 0.0
        %955 = vmatpush1.msra.mxu0 0.0
        %956 = vmatprep.subr.mxu0 0.0
        %957 = vmatpush1.msra.mxu0 0.0
        %958 = vmatprep.subr.mxu0 0.0
        %959 = vmatpush1.msra.mxu0 0.0
        %960 = vmatprep.subr.mxu0 0.0
        %961 = vmatpush1.msra.mxu0 0.0
        %962 = vmatprep.subr.mxu0 0.0
        %963 = vmatpush1.msra.mxu0 0.0
        %964 = vmatprep.subr.mxu0 0.0
        %965 = vmatpush1.msra.mxu0 0.0
        %966 = vmatprep.subr.mxu0 0.0
        %967 = vmatpush1.msra.mxu0 0.0
        %968 = vmatprep.subr.mxu0 0.0
        %969 = vmatpush1.msra.mxu0 0.0
        %970 = vmatprep.subr.mxu0 0.0
        %971 = vmatpush1.msra.mxu0 0.0
        %972 = vmatprep.subr.mxu0 0.0
        %973 = vmatpush1.msra.mxu0 0.0
        %974 = vmatprep.subr.mxu0 0.0
        %975 = vmatpush1.msra.mxu0 0.0
        %976 = vmatprep.subr.mxu0 0.0
        %977 = vmatpush1.msra.mxu0 0.0
        %978 = vmatprep.subr.mxu0 0.0
        %979 = vmatpush1.msra.mxu0 0.0
        %980 = vmatprep.subr.mxu0 0.0
        %981 = vmatpush1.msra.mxu0 0.0
        %982 = vmatprep.subr.mxu0 0.0
        %983 = vmatpush1.msra.mxu0 0.0
        %984 = vmatprep.subr.mxu0 0.0
        %985 = vmatpush1.msra.mxu0 0.0
        %986 = vmatprep.subr.mxu0 0.0
        %987 = vmatpush1.msra.mxu0 0.0
        %988 = vmatprep.subr.mxu0 0.0
        %989 = vmatpush1.msra.mxu0 0.0
        %990 = vmatprep.subr.mxu0 0.0
        %991 = vmatpush1.msra.mxu0 0.0
        %992 = vmatprep.mubr.f32.mxu0 0.0
        %v993 = vand.u32 %v390, 4294901760
        %994 = vmatmul.mubr.f32.gmra.mrb[0].mxu0 %v993
        %v995 = vpop.f32.mrb[0].mxu0
        %v996 = vadd.f32 %v867, %v995
        %v997 = vpop.f32.mrb[0].mxu0
        %v998 = vadd.f32 %v869, %v997
        %999 = vmatprep.mubr.f32.mxu0 0.0
        %v1000 = vand.u32 %v393, 4294901760
        %1001 = vmatmul.mubr.f32.gmra.mrb[0].mxu0 %v1000
        %v1002 = vpop.f32.mrb[0].mxu0
        %v1003 = vadd.f32 %v876, %v1002
        %v1004 = vpop.f32.mrb[0].mxu0
        %v1005 = vadd.f32 %v878, %v1004
        %1006 = vmatprep.mubr.f32.mxu0 0.0
        %v1007 = vand.u32 %v396, 4294901760
        %1008 = vmatmul.mubr.f32.gmra.mrb[0].mxu0 %v1007
        %v1009 = vpop.f32.mrb[0].mxu0
        %v1010 = vadd.f32 %v885, %v1009
        %v1011 = vpop.f32.mrb[0].mxu0
        %v1012 = vadd.f32 %v887, %v1011
        %1013 = vmatprep.mubr.f32.mxu0 0.0
        %v1014 = vand.u32 %v399, 4294901760
        %1015 = vmatmul.mubr.f32.gmra.mrb[0].mxu0 %v1014
        %v1016 = vpop.f32.mrb[0].mxu0
        %v1017 = vadd.f32 %v894, %v1016
        %v1018 = vpop.f32.mrb[0].mxu0
        %v1019 = vadd.f32 %v896, %v1018
        %1020 = vdwg.mxu0
        %v1021 = vand.u32 %v355, 4294901760
        %1022 = vmatprep.subr.mxu0 %v1021
        %v1023 = vand.u32 %v354, 4294901760
        %1024 = vmatpush1.msra.mxu0 %v1023
        %v1025 = vand.u32 %v357, 4294901760
        %1026 = vmatprep.subr.mxu0 %v1025
        %v1027 = vand.u32 %v356, 4294901760
        %1028 = vmatpush1.msra.mxu0 %v1027
        %v1029 = vand.u32 %v359, 4294901760
        %1030 = vmatprep.subr.mxu0 %v1029
        %v1031 = vand.u32 %v358, 4294901760
        %1032 = vmatpush1.msra.mxu0 %v1031
        %v1033 = vand.u32 %v361, 4294901760
        %1034 = vmatprep.subr.mxu0 %v1033
        %v1035 = vand.u32 %v360, 4294901760
        %1036 = vmatpush1.msra.mxu0 %v1035
        %v1037 = vand.u32 %v406, 4294901760
        %1038 = vmatprep.subr.mxu0 %v1037
        %v1039 = vand.u32 %v403, 4294901760
        %1040 = vmatpush1.msra.mxu0 %v1039
        %1041 = vmatprep.subr.mxu0 0.0
        %1042 = vmatpush1.msra.mxu0 0.0
        %1043 = vmatprep.subr.mxu0 0.0
        %1044 = vmatpush1.msra.mxu0 0.0
        %1045 = vmatprep.subr.mxu0 0.0
        %1046 = vmatpush1.msra.mxu0 0.0
        %1047 = vmatprep.subr.mxu0 0.0
        %1048 = vmatpush1.msra.mxu0 0.0
        %1049 = vmatprep.subr.mxu0 0.0
        %1050 = vmatpush1.msra.mxu0 0.0
        %1051 = vmatprep.subr.mxu0 0.0
        %1052 = vmatpush1.msra.mxu0 0.0
        %1053 = vmatprep.subr.mxu0 0.0
        %1054 = vmatpush1.msra.mxu0 0.0
        %1055 = vmatprep.subr.mxu0 0.0
        %1056 = vmatpush1.msra.mxu0 0.0
        %1057 = vmatprep.subr.mxu0 0.0
        %1058 = vmatpush1.msra.mxu0 0.0
        %1059 = vmatprep.subr.mxu0 0.0
        %1060 = vmatpush1.msra.mxu0 0.0
        %1061 = vmatprep.subr.mxu0 0.0
        %1062 = vmatpush1.msra.mxu0 0.0
        %1063 = vmatprep.subr.mxu0 0.0
        %1064 = vmatpush1.msra.mxu0 0.0
        %1065 = vmatprep.subr.mxu0 0.0
        %1066 = vmatpush1.msra.mxu0 0.0
        %1067 = vmatprep.subr.mxu0 0.0
        %1068 = vmatpush1.msra.mxu0 0.0
        %1069 = vmatprep.subr.mxu0 0.0
        %1070 = vmatpush1.msra.mxu0 0.0
        %1071 = vmatprep.subr.mxu0 0.0
        %1072 = vmatpush1.msra.mxu0 0.0
        %1073 = vmatprep.subr.mxu0 0.0
        %1074 = vmatpush1.msra.mxu0 0.0
        %1075 = vmatprep.subr.mxu0 0.0
        %1076 = vmatpush1.msra.mxu0 0.0
        %1077 = vmatprep.subr.mxu0 0.0
        %1078 = vmatpush1.msra.mxu0 0.0
        %1079 = vmatprep.subr.mxu0 0.0
        %1080 = vmatpush1.msra.mxu0 0.0
        %1081 = vmatprep.subr.mxu0 0.0
        %1082 = vmatpush1.msra.mxu0 0.0
        %1083 = vmatprep.subr.mxu0 0.0
        %1084 = vmatpush1.msra.mxu0 0.0
        %1085 = vmatprep.subr.mxu0 0.0
        %1086 = vmatpush1.msra.mxu0 0.0
        %1087 = vmatprep.subr.mxu0 0.0
        %1088 = vmatpush1.msra.mxu0 0.0
        %1089 = vmatprep.subr.mxu0 0.0
        %1090 = vmatpush1.msra.mxu0 0.0
        %1091 = vmatprep.subr.mxu0 0.0
        %1092 = vmatpush1.msra.mxu0 0.0
        %1093 = vmatprep.subr.mxu0 0.0
        %1094 = vmatpush1.msra.mxu0 0.0
        %1095 = vmatprep.mubr.f32.mxu0 0.0
        %v1096 = vand.u32 %v390, 4294901760
        %1097 = vmatmul.mubr.f32.gmra.mrb[0].mxu0 %v1096
        %v1098 = vpop.f32.mrb[0].mxu0
        %v1099 = vadd.f32 %v996, %v1098
        %v1100 = vpop.f32.mrb[0].mxu0
        %v1101 = vadd.f32 %v998, %v1100
        %1102 = vmatprep.mubr.f32.mxu0 0.0
        %v1103 = vand.u32 %v393, 4294901760
        %1104 = vmatmul.mubr.f32.gmra.mrb[0].mxu0 %v1103
        %v1105 = vpop.f32.mrb[0].mxu0
        %v1106 = vadd.f32 %v1003, %v1105
        %v1107 = vpop.f32.mrb[0].mxu0
        %v1108 = vadd.f32 %v1005, %v1107
        %1109 = vmatprep.mubr.f32.mxu0 0.0
        %v1110 = vand.u32 %v396, 4294901760
        %1111 = vmatmul.mubr.f32.gmra.mrb[0].mxu0 %v1110
        %v1112 = vpop.f32.mrb[0].mxu0
        %v1113 = vadd.f32 %v1010, %v1112
        %v1114 = vpop.f32.mrb[0].mxu0
        %v1115 = vadd.f32 %v1012, %v1114
        %1116 = vmatprep.mubr.f32.mxu0 0.0
        %v1117 = vand.u32 %v399, 4294901760
        %1118 = vmatmul.mubr.f32.gmra.mrb[0].mxu0 %v1117
        %v1119 = vpop.f32.mrb[0].mxu0
        %v1120 = vadd.f32 %v1017, %v1119
        %v1121 = vpop.f32.mrb[0].mxu0
        %v1122 = vadd.f32 %v1019, %v1121
        %1123 = vdwg.mxu0
        %v1124 = vxor.u32 %v1113, 2147483648
        %v1125 = vxor.u32 %v1115, 2147483648
        %v1126 = vxor.u32 %v1120, 2147483648
        %v1127 = vxor.u32 %v1122, 2147483648
        %v1128 = vmul.f32 %v1124, 1.442695
        %v1129 = vpow.pop %v1128
        %v1130 = vmul.f32 %v1125, 1.442695
        %v1131 = vpow.pop %v1130
        %v1132 = vmul.f32 %v1126, 1.442695
        %v1133 = vpow.pop %v1132
        %v1134 = vmul.f32 %v1127, 1.442695
        %v1135 = vpow.pop %v1134
        %v1136 = vadd.f32 %v1129, 1.0
        %v1137 = vadd.f32 %v1131, 1.0
        %v1138 = vadd.f32 %v1133, 1.0
        %v1139 = vadd.f32 %v1135, 1.0
        %v1140 = vrcp.pop %v1136
        %v1141 = vmul.f32 1.0, %v1140
        %v1142 = vrcp.pop %v1137
        %v1143 = vmul.f32 1.0, %v1142
        %v1144 = vrcp.pop %v1138
        %v1145 = vmul.f32 1.0, %v1144
        %v1146 = vrcp.pop %v1139
        %v1147 = vmul.f32 1.0, %v1146
        %v1148 = vld [vmem:[%s332] ss:$2 sm:$0x3]
        %s1149 = scalar_lea.vmem %s332, 1
        %v1150 = vld [vmem:[%s1149] ss:$2 sm:$0x3]
        %v1151 = vlaneseq
        %v1152 = vshrl.u32 %v1151, 7
        %v1153 = vadd.s32 %v1152, 8
        %v1154 = vadd.f32 %v1148, -1.0
        %v1157 = vcombine.low %v1099, %v1101
        %v1159 = vunpack.c.l.s4 1966171168
        %v1160 = vunpack.c.0.s8 %v1159
        %v1161 = vlaneseq
        %v1162 = vshrl.u32 %v1161, 7
        %v1163 = vsub.s32 %v1160, %v1162
        %v1164 = vrot.slane %v1157, %v1163
        %v1166 = vunpack.c.l.s4 1966171168
        %v1167 = vunpack.c.0.s8 %v1166
        %v1168 = vlaneseq
        %v1169 = vshrl.u32 %v1168, 7
        %v1170 = vsub.s32 %v1167, %v1169
        %v1171 = vrot.slane %v1164, %v1170
        %v1173 = vadd.f32 %v1154, %v1171
        %v1174 = vadd.f32 %v1150, -1.0
        %v1177 = vcombine.low %v1106, %v1108
        %v1179 = vunpack.c.l.s4 1966171168
        %v1180 = vunpack.c.0.s8 %v1179
        %v1181 = vlaneseq
        %v1182 = vshrl.u32 %v1181, 7
        %v1183 = vsub.s32 %v1180, %v1182
        %v1184 = vrot.slane %v1177, %v1183
        %v1185 = vcombine.high %v1184, %v1184
        %v1187 = vunpack.c.l.s4 1966171168
        %v1188 = vunpack.c.0.s8 %v1187
        %v1189 = vlaneseq
        %v1190 = vshrl.u32 %v1189, 7
        %v1191 = vsub.s32 %v1188, %v1190
        %v1192 = vrot.slane %v1185, %v1191
        %v1194 = vadd.f32 %v1174, %v1192
        %vm1195 = vcmp.gt.f32.partialorder %v1173, -1.0
        %vm1196 = vcmp.lt.f32.partialorder %v1173, 16.0
        %vm1197 = vmand %vm1195, %vm1196
        %vm1198 = vcmp.gt.f32.partialorder %v1194, -1.0
        %vm1199 = vmand %vm1197, %vm1198
        %vm1200 = vcmp.lt.f32.partialorder %v1194, 16.0
        %vm1201 = vmand %vm1199, %vm1200
        %v1202 = vsel %vm1201, 1, 0
        %v1203 = vcvt.s32.f32 %v1202
        %v1204 = vfloor.f32 %v1173
        %v1205 = vfloor.f32 %v1194
        %v1206 = vsub.f32 %v1173, %v1204
        %v1207 = vsub.f32 %v1194, %v1205
        %v1208 = vsub.f32 1.0, %v1206
        %v1209 = vsub.f32 1.0, %v1207
        %v1210 = vcvt.f32.s32.to.zero.pseudo %v1204
        %v1211 = vcvt.f32.s32.to.zero.pseudo %v1205
        %v1212 = vlaneseq
        %v1213 = vshrl.u32 %v1212, 7
        %v1214 = vsub.s32 0, %v1213
        %v1215 = vrot.slane %v1210, %v1214
        %v1216 = vlaneseq
        %v1217 = vshrl.u32 %v1216, 7
        %v1218 = vsub.s32 1, %v1217
        %v1219 = vrot.slane %v1210, %v1218
        %vm1220 = vcmp.eq.s32.totalorder %v1152, %v1215
        %vm1221 = vcmp.eq.s32.totalorder %v1152, %v1219
        %vm1222 = vcmp.eq.s32.totalorder %v1153, %v1215
        %vm1223 = vcmp.eq.s32.totalorder %v1153, %v1219
        %v1225 = vlaneseq
        %v1226 = vshrl.u32 %v1225, 7
        %v1227 = vsub.s32 0, %v1226
        %v1228 = vrot.slane %v1208, %v1227
        %v1229 = vlaneseq
        %v1230 = vshrl.u32 %v1229, 7
        %v1231 = vsub.s32 1, %v1230
        %v1232 = vrot.slane %v1208, %v1231
        %v1235 = vsel %vm1220, %v1228, 0.0
        %v1236 = vsel %vm1221, %v1232, 0.0
        %v1237 = vsel %vm1222, %v1228, 0.0
        %v1238 = vsel %vm1223, %v1232, 0.0
        %v1239 = vadd.s32 %v1210, 1
        %v1240 = vlaneseq
        %v1241 = vshrl.u32 %v1240, 7
        %v1242 = vsub.s32 0, %v1241
        %v1243 = vrot.slane %v1239, %v1242
        %v1244 = vlaneseq
        %v1245 = vshrl.u32 %v1244, 7
        %v1246 = vsub.s32 1, %v1245
        %v1247 = vrot.slane %v1239, %v1246
        %vm1248 = vcmp.eq.s32.totalorder %v1152, %v1243
        %vm1249 = vcmp.eq.s32.totalorder %v1152, %v1247
        %vm1250 = vcmp.eq.s32.totalorder %v1153, %v1243
        %vm1251 = vcmp.eq.s32.totalorder %v1153, %v1247
        %v1253 = vlaneseq
        %v1254 = vshrl.u32 %v1253, 7
        %v1255 = vsub.s32 0, %v1254
        %v1256 = vrot.slane %v1206, %v1255
        %v1257 = vlaneseq
        %v1258 = vshrl.u32 %v1257, 7
        %v1259 = vsub.s32 1, %v1258
        %v1260 = vrot.slane %v1206, %v1259
        %v1263 = vsel %vm1248, %v1256, 0.0
        %v1264 = vsel %vm1249, %v1260, 0.0
        %v1265 = vsel %vm1250, %v1256, 0.0
        %v1266 = vsel %vm1251, %v1260, 0.0
        %v1267 = vadd.f32 %v1235, %v1263
        %v1268 = vadd.f32 %v1236, %v1264
        %v1269 = vadd.f32 %v1237, %v1265
        %v1270 = vadd.f32 %v1238, %v1266
        %v1273 = vcombine.low %v1141, %v1143
        %v1275 = vunpack.c.l.s4 1966171168
        %v1276 = vunpack.c.0.s8 %v1275
        %v1277 = vlaneseq
        %v1278 = vshrl.u32 %v1277, 7
        %v1279 = vsub.s32 %v1276, %v1278
        %v1280 = vrot.slane %v1273, %v1279
        %v1282 = vunpack.c.l.s4 1966171168
        %v1283 = vunpack.c.0.s8 %v1282
        %v1284 = vlaneseq
        %v1285 = vshrl.u32 %v1284, 7
        %v1286 = vsub.s32 %v1283, %v1285
        %v1287 = vrot.slane %v1280, %v1286
        %v1288 = vcombine.high %v1287, %v1287
        %v1290 = vmul.f32 %v1203, %v1288
        %v1292 = vlaneseq
        %v1293 = vshrl.u32 %v1292, 7
        %v1294 = vsub.s32 0, %v1293
        %v1295 = vrot.slane %v1290, %v1294
        %v1296 = vlaneseq
        %v1297 = vshrl.u32 %v1296, 7
        %v1298 = vsub.s32 1, %v1297
        %v1299 = vrot.slane %v1290, %v1298
        %v1302 = vmul.f32 %v1267, %v1295
        %v1303 = vmul.f32 %v1268, %v1299
        %v1304 = vmul.f32 %v1269, %v1295
        %v1305 = vmul.f32 %v1270, %v1299
        %v1306 = vpack.c.bf16 %v1304, %v1302
        %v1307 = vpack.c.bf16 %v1305, %v1303
        %v1308 = vlaneseq
        %v1309 = vshrl.u32 %v1308, 7
        %v1310 = vsub.s32 0, %v1309
        %v1311 = vrot.slane %v1211, %v1310
        %v1312 = vlaneseq
        %v1313 = vshrl.u32 %v1312, 7
        %v1314 = vsub.s32 1, %v1313
        %v1315 = vrot.slane %v1211, %v1314
        %vm1316 = vcmp.eq.s32.totalorder %v1152, %v1311
        %vm1317 = vcmp.eq.s32.totalorder %v1152, %v1315
        %vm1318 = vcmp.eq.s32.totalorder %v1153, %v1311
        %vm1319 = vcmp.eq.s32.totalorder %v1153, %v1315
        %v1321 = vlaneseq
        %v1322 = vshrl.u32 %v1321, 7
        %v1323 = vsub.s32 0, %v1322
        %v1324 = vrot.slane %v1209, %v1323
        %v1325 = vlaneseq
        %v1326 = vshrl.u32 %v1325, 7
        %v1327 = vsub.s32 1, %v1326
        %v1328 = vrot.slane %v1209, %v1327
        %v1331 = vsel %vm1316, %v1324, 0.0
        %v1332 = vsel %vm1317, %v1328, 0.0
        %v1333 = vsel %vm1318, %v1324, 0.0
        %v1334 = vsel %vm1319, %v1328, 0.0
        %v1335 = vadd.s32 %v1211, 1
        %v1336 = vlaneseq
        %v1337 = vshrl.u32 %v1336, 7
        %v1338 = vsub.s32 0, %v1337
        %v1339 = vrot.slane %v1335, %v1338
        %v1340 = vlaneseq
        %v1341 = vshrl.u32 %v1340, 7
        %v1342 = vsub.s32 1, %v1341
        %v1343 = vrot.slane %v1335, %v1342
        %vm1344 = vcmp.eq.s32.totalorder %v1152, %v1339
        %vm1345 = vcmp.eq.s32.totalorder %v1152, %v1343
        %vm1346 = vcmp.eq.s32.totalorder %v1153, %v1339
        %vm1347 = vcmp.eq.s32.totalorder %v1153, %v1343
        %v1349 = vlaneseq
        %v1350 = vshrl.u32 %v1349, 7
        %v1351 = vsub.s32 0, %v1350
        %v1352 = vrot.slane %v1207, %v1351
        %v1353 = vlaneseq
        %v1354 = vshrl.u32 %v1353, 7
        %v1355 = vsub.s32 1, %v1354
        %v1356 = vrot.slane %v1207, %v1355
        %v1359 = vsel %vm1344, %v1352, 0.0
        %v1360 = vsel %vm1345, %v1356, 0.0
        %v1361 = vsel %vm1346, %v1352, 0.0
        %v1362 = vsel %vm1347, %v1356, 0.0
        %v1363 = vadd.f32 %v1331, %v1359
        %v1364 = vadd.f32 %v1332, %v1360
        %v1365 = vadd.f32 %v1333, %v1361
        %v1366 = vadd.f32 %v1334, %v1362
        %v1367 = vpack.c.bf16 %v1365, %v1363
        %v1368 = vpack.c.bf16 %v1366, %v1364
        %v1371 = vcombine.low %v1306, %v1307
        %v1372 = vcombine.high %v1306, %v1307
        %v1374 = vunpack.c.l.s4 1966171168
        %v1375 = vunpack.c.0.s8 %v1374
        %v1376 = vlaneseq
        %v1377 = vshrl.u32 %v1376, 7
        %v1378 = vsub.s32 %v1375, %v1377
        %v1379 = vrot.slane %v1371, %v1378
        %v1381 = vunpack.c.l.s4 1966171168
        %v1382 = vunpack.c.0.s8 %v1381
        %v1383 = vlaneseq
        %v1384 = vshrl.u32 %v1383, 7
        %v1385 = vsub.s32 %v1382, %v1384
        %v1386 = vrot.slane %v1372, %v1385
        %v1387 = vcombine.high %v1379, %v1379
        %v1388 = vcombine.high %v1386, %v1386
        %v1390 = vunpack.c.l.s4 1966171168
        %v1391 = vunpack.c.0.s8 %v1390
        %v1392 = vlaneseq
        %v1393 = vshrl.u32 %v1392, 7
        %v1394 = vsub.s32 %v1391, %v1393
        %v1395 = vrot.slane %v1379, %v1394
        %v1397 = vunpack.c.l.s4 1966171168
        %v1398 = vunpack.c.0.s8 %v1397
        %v1399 = vlaneseq
        %v1400 = vshrl.u32 %v1399, 7
        %v1401 = vsub.s32 %v1398, %v1400
        %v1402 = vrot.slane %v1386, %v1401
        %v1404 = vunpack.c.l.s4 1966171168
        %v1405 = vunpack.c.0.s8 %v1404
        %v1406 = vlaneseq
        %v1407 = vshrl.u32 %v1406, 7
        %v1408 = vsub.s32 %v1405, %v1407
        %v1409 = vrot.slane %v1387, %v1408
        %v1411 = vunpack.c.l.s4 1966171168
        %v1412 = vunpack.c.0.s8 %v1411
        %v1413 = vlaneseq
        %v1414 = vshrl.u32 %v1413, 7
        %v1415 = vsub.s32 %v1412, %v1414
        %v1416 = vrot.slane %v1388, %v1415
        %v1417 = vcombine.high %v1395, %v1395
        %v1418 = vcombine.high %v1402, %v1402
        %v1419 = vcombine.high %v1409, %v1409
        %v1420 = vcombine.high %v1416, %v1416
        %v1421 = vunpack.i.l.s16 %v1395
        %v1422 = vunpack.i.h.s16 %v1395
        %v1423 = vunpack.i.l.s16 %v1409
        %v1424 = vunpack.i.h.s16 %v1409
        %v1425 = vunpack.i.l.s16 %v1417
        %v1426 = vunpack.i.h.s16 %v1417
        %v1427 = vunpack.i.l.s16 %v1419
        %v1428 = vunpack.i.h.s16 %v1419
        %v1429 = vunpack.i.l.s16 %v1402
        %v1430 = vunpack.i.h.s16 %v1402
        %v1431 = vunpack.i.l.s16 %v1416
        %v1432 = vunpack.i.h.s16 %v1416
        %v1433 = vunpack.i.l.s16 %v1418
        %v1434 = vunpack.i.h.s16 %v1418
        %v1435 = vunpack.i.l.s16 %v1420
        %v1436 = vunpack.i.h.s16 %v1420
        %v1437 = vpack.i.b16 %v1421, %v1421
        %v1438 = vpack.i.b16 %v1422, %v1422
        %v1439 = vpack.i.b16 %v1423, %v1423
        %v1440 = vpack.i.b16 %v1424, %v1424
        %v1441 = vpack.i.b16 %v1425, %v1425
        %v1442 = vpack.i.b16 %v1426, %v1426
        %v1443 = vpack.i.b16 %v1427, %v1427
        %v1444 = vpack.i.b16 %v1428, %v1428
        %v1445 = vpack.i.b16 %v1429, %v1429
        %v1446 = vpack.i.b16 %v1430, %v1430
        %v1447 = vpack.i.b16 %v1431, %v1431
        %v1448 = vpack.i.b16 %v1432, %v1432
        %v1449 = vpack.i.b16 %v1433, %v1433
        %v1450 = vpack.i.b16 %v1434, %v1434
        %v1451 = vpack.i.b16 %v1435, %v1435
        %v1452 = vpack.i.b16 %v1436, %v1436
        %v1453 = vlaneseq
        %v1454 = vshrl.u32 %v1453, 7
        %v1455 = vsub.s32 0, %v1454
        %v1456 = vrot.slane %v1437, %v1455
        %v1457 = vlaneseq
        %v1458 = vshrl.u32 %v1457, 7
        %v1459 = vsub.s32 1, %v1458
        %v1460 = vrot.slane %v1437, %v1459
        %v1461 = vlaneseq
        %v1462 = vshrl.u32 %v1461, 7
        %v1463 = vsub.s32 0, %v1462
        %v1464 = vrot.slane %v1438, %v1463
        %v1465 = vlaneseq
        %v1466 = vshrl.u32 %v1465, 7
        %v1467 = vsub.s32 1, %v1466
        %v1468 = vrot.slane %v1438, %v1467
        %v1469 = vlaneseq
        %v1470 = vshrl.u32 %v1469, 7
        %v1471 = vsub.s32 0, %v1470
        %v1472 = vrot.slane %v1439, %v1471
        %v1473 = vlaneseq
        %v1474 = vshrl.u32 %v1473, 7
        %v1475 = vsub.s32 1, %v1474
        %v1476 = vrot.slane %v1439, %v1475
        %v1477 = vlaneseq
        %v1478 = vshrl.u32 %v1477, 7
        %v1479 = vsub.s32 0, %v1478
        %v1480 = vrot.slane %v1440, %v1479
        %v1481 = vlaneseq
        %v1482 = vshrl.u32 %v1481, 7
        %v1483 = vsub.s32 1, %v1482
        %v1484 = vrot.slane %v1440, %v1483
        %v1485 = vlaneseq
        %v1486 = vshrl.u32 %v1485, 7
        %v1487 = vsub.s32 0, %v1486
        %v1488 = vrot.slane %v1441, %v1487
        %v1489 = vlaneseq
        %v1490 = vshrl.u32 %v1489, 7
        %v1491 = vsub.s32 1, %v1490
        %v1492 = vrot.slane %v1441, %v1491
        %v1493 = vlaneseq
        %v1494 = vshrl.u32 %v1493, 7
        %v1495 = vsub.s32 0, %v1494
        %v1496 = vrot.slane %v1442, %v1495
        %v1497 = vlaneseq
        %v1498 = vshrl.u32 %v1497, 7
        %v1499 = vsub.s32 1, %v1498
        %v1500 = vrot.slane %v1442, %v1499
        %v1501 = vlaneseq
        %v1502 = vshrl.u32 %v1501, 7
        %v1503 = vsub.s32 0, %v1502
        %v1504 = vrot.slane %v1443, %v1503
        %v1505 = vlaneseq
        %v1506 = vshrl.u32 %v1505, 7
        %v1507 = vsub.s32 1, %v1506
        %v1508 = vrot.slane %v1443, %v1507
        %v1509 = vlaneseq
        %v1510 = vshrl.u32 %v1509, 7
        %v1511 = vsub.s32 0, %v1510
        %v1512 = vrot.slane %v1444, %v1511
        %v1513 = vlaneseq
        %v1514 = vshrl.u32 %v1513, 7
        %v1515 = vsub.s32 1, %v1514
        %v1516 = vrot.slane %v1444, %v1515
        %v1517 = vlaneseq
        %v1518 = vshrl.u32 %v1517, 7
        %v1519 = vsub.s32 0, %v1518
        %v1520 = vrot.slane %v1445, %v1519
        %v1521 = vlaneseq
        %v1522 = vshrl.u32 %v1521, 7
        %v1523 = vsub.s32 1, %v1522
        %v1524 = vrot.slane %v1445, %v1523
        %v1525 = vlaneseq
        %v1526 = vshrl.u32 %v1525, 7
        %v1527 = vsub.s32 0, %v1526
        %v1528 = vrot.slane %v1446, %v1527
        %v1529 = vlaneseq
        %v1530 = vshrl.u32 %v1529, 7
        %v1531 = vsub.s32 1, %v1530
        %v1532 = vrot.slane %v1446, %v1531
        %v1533 = vlaneseq
        %v1534 = vshrl.u32 %v1533, 7
        %v1535 = vsub.s32 0, %v1534
        %v1536 = vrot.slane %v1447, %v1535
        %v1537 = vlaneseq
        %v1538 = vshrl.u32 %v1537, 7
        %v1539 = vsub.s32 1, %v1538
        %v1540 = vrot.slane %v1447, %v1539
        %v1541 = vlaneseq
        %v1542 = vshrl.u32 %v1541, 7
        %v1543 = vsub.s32 0, %v1542
        %v1544 = vrot.slane %v1448, %v1543
        %v1545 = vlaneseq
        %v1546 = vshrl.u32 %v1545, 7
        %v1547 = vsub.s32 1, %v1546
        %v1548 = vrot.slane %v1448, %v1547
        %v1549 = vlaneseq
        %v1550 = vshrl.u32 %v1549, 7
        %v1551 = vsub.s32 0, %v1550
        %v1552 = vrot.slane %v1449, %v1551
        %v1553 = vlaneseq
        %v1554 = vshrl.u32 %v1553, 7
        %v1555 = vsub.s32 1, %v1554
        %v1556 = vrot.slane %v1449, %v1555
        %v1557 = vlaneseq
        %v1558 = vshrl.u32 %v1557, 7
        %v1559 = vsub.s32 0, %v1558
        %v1560 = vrot.slane %v1450, %v1559
        %v1561 = vlaneseq
        %v1562 = vshrl.u32 %v1561, 7
        %v1563 = vsub.s32 1, %v1562
        %v1564 = vrot.slane %v1450, %v1563
        %v1565 = vlaneseq
        %v1566 = vshrl.u32 %v1565, 7
        %v1567 = vsub.s32 0, %v1566
        %v1568 = vrot.slane %v1451, %v1567
        %v1569 = vlaneseq
        %v1570 = vshrl.u32 %v1569, 7
        %v1571 = vsub.s32 1, %v1570
        %v1572 = vrot.slane %v1451, %v1571
        %v1573 = vlaneseq
        %v1574 = vshrl.u32 %v1573, 7
        %v1575 = vsub.s32 0, %v1574
        %v1576 = vrot.slane %v1452, %v1575
        %v1577 = vlaneseq
        %v1578 = vshrl.u32 %v1577, 7
        %v1579 = vsub.s32 1, %v1578
        %v1580 = vrot.slane %v1452, %v1579
        %v1582 = vpack.i.b16 %v1456, %v1456
        %v1584 = vlaneseq
        %v1585 = vshrl.u32 %v1584, 7
        %v1586 = vsub.s32 0, %v1585
        %v1587 = vrot.slane %v1582, %v1586
        %v1589 = vpack.i.b16 %v1460, %v1460
        %v1591 = vlaneseq
        %v1592 = vshrl.u32 %v1591, 7
        %v1593 = vsub.s32 0, %v1592
        %v1594 = vrot.slane %v1589, %v1593
        %v1596 = vpack.i.b16 %v1464, %v1464
        %v1598 = vlaneseq
        %v1599 = vshrl.u32 %v1598, 7
        %v1600 = vsub.s32 0, %v1599
        %v1601 = vrot.slane %v1596, %v1600
        %v1603 = vpack.i.b16 %v1468, %v1468
        %v1605 = vlaneseq
        %v1606 = vshrl.u32 %v1605, 7
        %v1607 = vsub.s32 0, %v1606
        %v1608 = vrot.slane %v1603, %v1607
        %v1610 = vpack.i.b16 %v1472, %v1472
        %v1612 = vlaneseq
        %v1613 = vshrl.u32 %v1612, 7
        %v1614 = vsub.s32 0, %v1613
        %v1615 = vrot.slane %v1610, %v1614
        %v1617 = vpack.i.b16 %v1476, %v1476
        %v1619 = vlaneseq
        %v1620 = vshrl.u32 %v1619, 7
        %v1621 = vsub.s32 0, %v1620
        %v1622 = vrot.slane %v1617, %v1621
        %v1624 = vpack.i.b16 %v1480, %v1480
        %v1626 = vlaneseq
        %v1627 = vshrl.u32 %v1626, 7
        %v1628 = vsub.s32 0, %v1627
        %v1629 = vrot.slane %v1624, %v1628
        %v1631 = vpack.i.b16 %v1484, %v1484
        %v1633 = vlaneseq
        %v1634 = vshrl.u32 %v1633, 7
        %v1635 = vsub.s32 0, %v1634
        %v1636 = vrot.slane %v1631, %v1635
        %v1638 = vpack.i.b16 %v1488, %v1488
        %v1640 = vlaneseq
        %v1641 = vshrl.u32 %v1640, 7
        %v1642 = vsub.s32 0, %v1641
        %v1643 = vrot.slane %v1638, %v1642
        %v1645 = vpack.i.b16 %v1492, %v1492
        %v1647 = vlaneseq
        %v1648 = vshrl.u32 %v1647, 7
        %v1649 = vsub.s32 0, %v1648
        %v1650 = vrot.slane %v1645, %v1649
        %v1652 = vpack.i.b16 %v1496, %v1496
        %v1654 = vlaneseq
        %v1655 = vshrl.u32 %v1654, 7
        %v1656 = vsub.s32 0, %v1655
        %v1657 = vrot.slane %v1652, %v1656
        %v1659 = vpack.i.b16 %v1500, %v1500
        %v1661 = vlaneseq
        %v1662 = vshrl.u32 %v1661, 7
        %v1663 = vsub.s32 0, %v1662
        %v1664 = vrot.slane %v1659, %v1663
        %v1666 = vpack.i.b16 %v1504, %v1504
        %v1668 = vlaneseq
        %v1669 = vshrl.u32 %v1668, 7
        %v1670 = vsub.s32 0, %v1669
        %v1671 = vrot.slane %v1666, %v1670
        %v1673 = vpack.i.b16 %v1508, %v1508
        %v1675 = vlaneseq
        %v1676 = vshrl.u32 %v1675, 7
        %v1677 = vsub.s32 0, %v1676
        %v1678 = vrot.slane %v1673, %v1677
        %v1680 = vpack.i.b16 %v1512, %v1512
        %v1682 = vlaneseq
        %v1683 = vshrl.u32 %v1682, 7
        %v1684 = vsub.s32 0, %v1683
        %v1685 = vrot.slane %v1680, %v1684
        %v1687 = vpack.i.b16 %v1516, %v1516
        %v1689 = vlaneseq
        %v1690 = vshrl.u32 %v1689, 7
        %v1691 = vsub.s32 0, %v1690
        %v1692 = vrot.slane %v1687, %v1691
        %v1694 = vpack.i.b16 %v1520, %v1520
        %v1696 = vlaneseq
        %v1697 = vshrl.u32 %v1696, 7
        %v1698 = vsub.s32 0, %v1697
        %v1699 = vrot.slane %v1694, %v1698
        %v1701 = vpack.i.b16 %v1524, %v1524
        %v1703 = vlaneseq
        %v1704 = vshrl.u32 %v1703, 7
        %v1705 = vsub.s32 0, %v1704
        %v1706 = vrot.slane %v1701, %v1705
        %v1708 = vpack.i.b16 %v1528, %v1528
        %v1710 = vlaneseq
        %v1711 = vshrl.u32 %v1710, 7
        %v1712 = vsub.s32 0, %v1711
        %v1713 = vrot.slane %v1708, %v1712
        %v1715 = vpack.i.b16 %v1532, %v1532
        %v1717 = vlaneseq
        %v1718 = vshrl.u32 %v1717, 7
        %v1719 = vsub.s32 0, %v1718
        %v1720 = vrot.slane %v1715, %v1719
        %v1722 = vpack.i.b16 %v1536, %v1536
        %v1724 = vlaneseq
        %v1725 = vshrl.u32 %v1724, 7
        %v1726 = vsub.s32 0, %v1725
        %v1727 = vrot.slane %v1722, %v1726
        %v1729 = vpack.i.b16 %v1540, %v1540
        %v1731 = vlaneseq
        %v1732 = vshrl.u32 %v1731, 7
        %v1733 = vsub.s32 0, %v1732
        %v1734 = vrot.slane %v1729, %v1733
        %v1736 = vpack.i.b16 %v1544, %v1544
        %v1738 = vlaneseq
        %v1739 = vshrl.u32 %v1738, 7
        %v1740 = vsub.s32 0, %v1739
        %v1741 = vrot.slane %v1736, %v1740
        %v1743 = vpack.i.b16 %v1548, %v1548
        %v1745 = vlaneseq
        %v1746 = vshrl.u32 %v1745, 7
        %v1747 = vsub.s32 0, %v1746
        %v1748 = vrot.slane %v1743, %v1747
        %v1750 = vpack.i.b16 %v1552, %v1552
        %v1752 = vlaneseq
        %v1753 = vshrl.u32 %v1752, 7
        %v1754 = vsub.s32 0, %v1753
        %v1755 = vrot.slane %v1750, %v1754
        %v1757 = vpack.i.b16 %v1556, %v1556
        %v1759 = vlaneseq
        %v1760 = vshrl.u32 %v1759, 7
        %v1761 = vsub.s32 0, %v1760
        %v1762 = vrot.slane %v1757, %v1761
        %v1764 = vpack.i.b16 %v1560, %v1560
        %v1766 = vlaneseq
        %v1767 = vshrl.u32 %v1766, 7
        %v1768 = vsub.s32 0, %v1767
        %v1769 = vrot.slane %v1764, %v1768
        %v1771 = vpack.i.b16 %v1564, %v1564
        %v1773 = vlaneseq
        %v1774 = vshrl.u32 %v1773, 7
        %v1775 = vsub.s32 0, %v1774
        %v1776 = vrot.slane %v1771, %v1775
        %v1778 = vpack.i.b16 %v1568, %v1568
        %v1780 = vlaneseq
        %v1781 = vshrl.u32 %v1780, 7
        %v1782 = vsub.s32 0, %v1781
        %v1783 = vrot.slane %v1778, %v1782
        %v1785 = vpack.i.b16 %v1572, %v1572
        %v1787 = vlaneseq
        %v1788 = vshrl.u32 %v1787, 7
        %v1789 = vsub.s32 0, %v1788
        %v1790 = vrot.slane %v1785, %v1789
        %v1792 = vpack.i.b16 %v1576, %v1576
        %v1794 = vlaneseq
        %v1795 = vshrl.u32 %v1794, 7
        %v1796 = vsub.s32 0, %v1795
        %v1797 = vrot.slane %v1792, %v1796
        %v1799 = vpack.i.b16 %v1580, %v1580
        %v1801 = vlaneseq
        %v1802 = vshrl.u32 %v1801, 7
        %v1803 = vsub.s32 0, %v1802
        %v1804 = vrot.slane %v1799, %v1803
        %v1805 = vmul.bf16 %v1587, %v1367
        %v1806 = vmul.bf16 %v1594, %v1368
        %v1807 = vmul.bf16 %v1601, %v1367
        %v1808 = vmul.bf16 %v1608, %v1368
        %v1809 = vmul.bf16 %v1615, %v1367
        %v1810 = vmul.bf16 %v1622, %v1368
        %v1811 = vmul.bf16 %v1629, %v1367
        %v1812 = vmul.bf16 %v1636, %v1368
        %v1813 = vmul.bf16 %v1643, %v1367
        %v1814 = vmul.bf16 %v1650, %v1368
        %v1815 = vmul.bf16 %v1657, %v1367
        %v1816 = vmul.bf16 %v1664, %v1368
        %v1817 = vmul.bf16 %v1671, %v1367
        %v1818 = vmul.bf16 %v1678, %v1368
        %v1819 = vmul.bf16 %v1685, %v1367
        %v1820 = vmul.bf16 %v1692, %v1368
        %v1821 = vmul.bf16 %v1699, %v1367
        %v1822 = vmul.bf16 %v1706, %v1368
        %v1823 = vmul.bf16 %v1713, %v1367
        %v1824 = vmul.bf16 %v1720, %v1368
        %v1825 = vmul.bf16 %v1727, %v1367
        %v1826 = vmul.bf16 %v1734, %v1368
        %v1827 = vmul.bf16 %v1741, %v1367
        %v1828 = vmul.bf16 %v1748, %v1368
        %v1829 = vmul.bf16 %v1755, %v1367
        %v1830 = vmul.bf16 %v1762, %v1368
        %v1831 = vmul.bf16 %v1769, %v1367
        %v1832 = vmul.bf16 %v1776, %v1368
        %v1833 = vmul.bf16 %v1783, %v1367
        %v1834 = vmul.bf16 %v1790, %v1368
        %v1835 = vmul.bf16 %v1797, %v1367
        %v1836 = vmul.bf16 %v1804, %v1368
        %v1837 = vld [vmem:[%s348] sm:$0xf]
        %v1840 = vunpack.c.l.s4 1983009808
        %v1841 = vunpack.c.0.s8 %v1840
        %v1842 = vlaneseq
        %v1843 = vshrl.u32 %v1842, 7
        %v1844 = vsub.s32 %v1841, %v1843
        %v1845 = vrot.slane %v1837, %v1844
        %v1846 = vcombine.high %v1845, %v1845
        %1849 = vmatprep.subr.bf16.mxu0 %v1806
        %1850 = vmatpush1.bf16.msra.mxu0 %v1805
        %1851 = vmatprep.subr.bf16.mxu0 %v1808
        %1852 = vmatpush1.bf16.msra.mxu0 %v1807
        %1853 = vmatprep.subr.bf16.mxu0 %v1810
        %1854 = vmatpush1.bf16.msra.mxu0 %v1809
        %1855 = vmatprep.subr.bf16.mxu0 %v1812
        %1856 = vmatpush1.bf16.msra.mxu0 %v1811
        %1857 = vmatprep.subr.bf16.mxu0 %v1814
        %1858 = vmatpush1.bf16.msra.mxu0 %v1813
        %1859 = vmatprep.subr.bf16.mxu0 %v1816
        %1860 = vmatpush1.bf16.msra.mxu0 %v1815
        %1861 = vmatprep.subr.bf16.mxu0 %v1818
        %1862 = vmatpush1.bf16.msra.mxu0 %v1817
        %1863 = vmatprep.subr.bf16.mxu0 %v1820
        %1864 = vmatpush1.bf16.msra.mxu0 %v1819
        %1865 = vmatprep.subr.bf16.mxu0 %v1822
        %1866 = vmatpush1.bf16.msra.mxu0 %v1821
        %1867 = vmatprep.subr.bf16.mxu0 %v1824
        %1868 = vmatpush1.bf16.msra.mxu0 %v1823
        %1869 = vmatprep.subr.bf16.mxu0 %v1826
        %1870 = vmatpush1.bf16.msra.mxu0 %v1825
        %1871 = vmatprep.subr.bf16.mxu0 %v1828
        %1872 = vmatpush1.bf16.msra.mxu0 %v1827
        %1873 = vmatprep.subr.bf16.mxu0 %v1830
        %1874 = vmatpush1.bf16.msra.mxu0 %v1829
        %1875 = vmatprep.subr.bf16.mxu0 %v1832
        %1876 = vmatpush1.bf16.msra.mxu0 %v1831
        %1877 = vmatprep.subr.bf16.mxu0 %v1834
        %1878 = vmatpush1.bf16.msra.mxu0 %v1833
        %1879 = vmatprep.subr.bf16.mxu0 %v1836
        %1880 = vmatpush1.bf16.msra.mxu0 %v1835
        %1881 = vmatprep.mubr.bf16.mxu0 %v1846
        %1882 = vmatmul.mubr.bf16.gmra.mrb[0].mxu0 %v1845
        %v1883 = vpop.f32.mrb[0].mxu0
        %v1884 = vadd.f32 0.0, %v1883
        %v1885 = vpop.f32.mrb[0].mxu0
        %v1886 = vadd.f32 0.0, %v1885
        %v1887 = vpop.f32.mrb[0].mxu0
        %v1888 = vpop.f32.mrb[0].mxu0
        %1889 = vdwg.mxu0
        %v1890 = vcombine.high %v1164, %v1164
        %v1892 = vunpack.c.l.s4 1966171168
        %v1893 = vunpack.c.0.s8 %v1892
        %v1894 = vlaneseq
        %v1895 = vshrl.u32 %v1894, 7
        %v1896 = vsub.s32 %v1893, %v1895
        %v1897 = vrot.slane %v1890, %v1896
        %v1899 = vadd.f32 %v1154, %v1897
        %v1900 = vadd.f32 %v1150, 0.0
        %v1902 = vunpack.c.l.s4 1966171168
        %v1903 = vunpack.c.0.s8 %v1902
        %v1904 = vlaneseq
        %v1905 = vshrl.u32 %v1904, 7
        %v1906 = vsub.s32 %v1903, %v1905
        %v1907 = vrot.slane %v1184, %v1906
        %v1908 = vcombine.high %v1907, %v1907
        %v1910 = vadd.f32 %v1900, %v1908
        %vm1911 = vcmp.gt.f32.partialorder %v1899, -1.0
        %vm1912 = vcmp.lt.f32.partialorder %v1899, 16.0
        %vm1913 = vmand %vm1911, %vm1912
        %vm1914 = vcmp.gt.f32.partialorder %v1910, -1.0
        %vm1915 = vmand %vm1913, %vm1914
        %vm1916 = vcmp.lt.f32.partialorder %v1910, 16.0
        %vm1917 = vmand %vm1915, %vm1916
        %v1918 = vsel %vm1917, 1, 0
        %v1919 = vcvt.s32.f32 %v1918
        %v1920 = vfloor.f32 %v1899
        %v1921 = vfloor.f32 %v1910
        %v1922 = vsub.f32 %v1899, %v1920
        %v1923 = vsub.f32 %v1910, %v1921
        %v1924 = vsub.f32 1.0, %v1922
        %v1925 = vsub.f32 1.0, %v1923
        %v1926 = vcvt.f32.s32.to.zero.pseudo %v1920
        %v1927 = vcvt.f32.s32.to.zero.pseudo %v1921
        %v1928 = vlaneseq
        %v1929 = vshrl.u32 %v1928, 7
        %v1930 = vsub.s32 0, %v1929
        %v1931 = vrot.slane %v1926, %v1930
        %v1932 = vlaneseq
        %v1933 = vshrl.u32 %v1932, 7
        %v1934 = vsub.s32 1, %v1933
        %v1935 = vrot.slane %v1926, %v1934
        %vm1936 = vcmp.eq.s32.totalorder %v1152, %v1931
        %vm1937 = vcmp.eq.s32.totalorder %v1152, %v1935
        %vm1938 = vcmp.eq.s32.totalorder %v1153, %v1931
        %vm1939 = vcmp.eq.s32.totalorder %v1153, %v1935
        %v1941 = vlaneseq
        %v1942 = vshrl.u32 %v1941, 7
        %v1943 = vsub.s32 0, %v1942
        %v1944 = vrot.slane %v1924, %v1943
        %v1945 = vlaneseq
        %v1946 = vshrl.u32 %v1945, 7
        %v1947 = vsub.s32 1, %v1946
        %v1948 = vrot.slane %v1924, %v1947
        %v1951 = vsel %vm1936, %v1944, 0.0
        %v1952 = vsel %vm1937, %v1948, 0.0
        %v1953 = vsel %vm1938, %v1944, 0.0
        %v1954 = vsel %vm1939, %v1948, 0.0
        %v1955 = vadd.s32 %v1926, 1
        %v1956 = vlaneseq
        %v1957 = vshrl.u32 %v1956, 7
        %v1958 = vsub.s32 0, %v1957
        %v1959 = vrot.slane %v1955, %v1958
        %v1960 = vlaneseq
        %v1961 = vshrl.u32 %v1960, 7
        %v1962 = vsub.s32 1, %v1961
        %v1963 = vrot.slane %v1955, %v1962
        %vm1964 = vcmp.eq.s32.totalorder %v1152, %v1959
        %vm1965 = vcmp.eq.s32.totalorder %v1152, %v1963
        %vm1966 = vcmp.eq.s32.totalorder %v1153, %v1959
        %vm1967 = vcmp.eq.s32.totalorder %v1153, %v1963
        %v1969 = vlaneseq
        %v1970 = vshrl.u32 %v1969, 7
        %v1971 = vsub.s32 0, %v1970
        %v1972 = vrot.slane %v1922, %v1971
        %v1973 = vlaneseq
        %v1974 = vshrl.u32 %v1973, 7
        %v1975 = vsub.s32 1, %v1974
        %v1976 = vrot.slane %v1922, %v1975
        %v1979 = vsel %vm1964, %v1972, 0.0
        %v1980 = vsel %vm1965, %v1976, 0.0
        %v1981 = vsel %vm1966, %v1972, 0.0
        %v1982 = vsel %vm1967, %v1976, 0.0
        %v1983 = vadd.f32 %v1951, %v1979
        %v1984 = vadd.f32 %v1952, %v1980
        %v1985 = vadd.f32 %v1953, %v1981
        %v1986 = vadd.f32 %v1954, %v1982
        %v1987 = vcombine.high %v1280, %v1280
        %v1989 = vunpack.c.l.s4 1966171168
        %v1990 = vunpack.c.0.s8 %v1989
        %v1991 = vlaneseq
        %v1992 = vshrl.u32 %v1991, 7
        %v1993 = vsub.s32 %v1990, %v1992
        %v1994 = vrot.slane %v1987, %v1993
        %v1995 = vcombine.high %v1994, %v1994
        %v1997 = vmul.f32 %v1919, %v1995
        %v1999 = vlaneseq
        %v2000 = vshrl.u32 %v1999, 7
        %v2001 = vsub.s32 0, %v2000
        %v2002 = vrot.slane %v1997, %v2001
        %v2003 = vlaneseq
        %v2004 = vshrl.u32 %v2003, 7
        %v2005 = vsub.s32 1, %v2004
        %v2006 = vrot.slane %v1997, %v2005
        %v2009 = vmul.f32 %v1983, %v2002
        %v2010 = vmul.f32 %v1984, %v2006
        %v2011 = vmul.f32 %v1985, %v2002
        %v2012 = vmul.f32 %v1986, %v2006
        %v2013 = vpack.c.bf16 %v2011, %v2009
        %v2014 = vpack.c.bf16 %v2012, %v2010
        %v2015 = vlaneseq
        %v2016 = vshrl.u32 %v2015, 7
        %v2017 = vsub.s32 0, %v2016
        %v2018 = vrot.slane %v1927, %v2017
        %v2019 = vlaneseq
        %v2020 = vshrl.u32 %v2019, 7
        %v2021 = vsub.s32 1, %v2020
        %v2022 = vrot.slane %v1927, %v2021
        %vm2023 = vcmp.eq.s32.totalorder %v1152, %v2018
        %vm2024 = vcmp.eq.s32.totalorder %v1152, %v2022
        %vm2025 = vcmp.eq.s32.totalorder %v1153, %v2018
        %vm2026 = vcmp.eq.s32.totalorder %v1153, %v2022
        %v2028 = vlaneseq
        %v2029 = vshrl.u32 %v2028, 7
        %v2030 = vsub.s32 0, %v2029
        %v2031 = vrot.slane %v1925, %v2030
        %v2032 = vlaneseq
        %v2033 = vshrl.u32 %v2032, 7
        %v2034 = vsub.s32 1, %v2033
        %v2035 = vrot.slane %v1925, %v2034
        %v2038 = vsel %vm2023, %v2031, 0.0
        %v2039 = vsel %vm2024, %v2035, 0.0
        %v2040 = vsel %vm2025, %v2031, 0.0
        %v2041 = vsel %vm2026, %v2035, 0.0
        %v2042 = vadd.s32 %v1927, 1
        %v2043 = vlaneseq
        %v2044 = vshrl.u32 %v2043, 7
        %v2045 = vsub.s32 0, %v2044
        %v2046 = vrot.slane %v2042, %v2045
        %v2047 = vlaneseq
        %v2048 = vshrl.u32 %v2047, 7
        %v2049 = vsub.s32 1, %v2048
        %v2050 = vrot.slane %v2042, %v2049
        %vm2051 = vcmp.eq.s32.totalorder %v1152, %v2046
        %vm2052 = vcmp.eq.s32.totalorder %v1152, %v2050
        %vm2053 = vcmp.eq.s32.totalorder %v1153, %v2046
        %vm2054 = vcmp.eq.s32.totalorder %v1153, %v2050
        %v2056 = vlaneseq
        %v2057 = vshrl.u32 %v2056, 7
        %v2058 = vsub.s32 0, %v2057
        %v2059 = vrot.slane %v1923, %v2058
        %v2060 = vlaneseq
        %v2061 = vshrl.u32 %v2060, 7
        %v2062 = vsub.s32 1, %v2061
        %v2063 = vrot.slane %v1923, %v2062
        %v2066 = vsel %vm2051, %v2059, 0.0
        %v2067 = vsel %vm2052, %v2063, 0.0
        %v2068 = vsel %vm2053, %v2059, 0.0
        %v2069 = vsel %vm2054, %v2063, 0.0
        %v2070 = vadd.f32 %v2038, %v2066
        %v2071 = vadd.f32 %v2039, %v2067
        %v2072 = vadd.f32 %v2040, %v2068
        %v2073 = vadd.f32 %v2041, %v2069
        %v2074 = vpack.c.bf16 %v2072, %v2070
        %v2075 = vpack.c.bf16 %v2073, %v2071
        %v2078 = vcombine.low %v2013, %v2014
        %v2079 = vcombine.high %v2013, %v2014
        %v2081 = vunpack.c.l.s4 1966171168
        %v2082 = vunpack.c.0.s8 %v2081
        %v2083 = vlaneseq
        %v2084 = vshrl.u32 %v2083, 7
        %v2085 = vsub.s32 %v2082, %v2084
        %v2086 = vrot.slane %v2078, %v2085
        %v2088 = vunpack.c.l.s4 1966171168
        %v2089 = vunpack.c.0.s8 %v2088
        %v2090 = vlaneseq
        %v2091 = vshrl.u32 %v2090, 7
        %v2092 = vsub.s32 %v2089, %v2091
        %v2093 = vrot.slane %v2079, %v2092
        %v2094 = vcombine.high %v2086, %v2086
        %v2095 = vcombine.high %v2093, %v2093
        %v2097 = vunpack.c.l.s4 1966171168
        %v2098 = vunpack.c.0.s8 %v2097
        %v2099 = vlaneseq
        %v2100 = vshrl.u32 %v2099, 7
        %v2101 = vsub.s32 %v2098, %v2100
        %v2102 = vrot.slane %v2086, %v2101
        %v2104 = vunpack.c.l.s4 1966171168
        %v2105 = vunpack.c.0.s8 %v2104
        %v2106 = vlaneseq
        %v2107 = vshrl.u32 %v2106, 7
        %v2108 = vsub.s32 %v2105, %v2107
        %v2109 = vrot.slane %v2093, %v2108
        %v2111 = vunpack.c.l.s4 1966171168
        %v2112 = vunpack.c.0.s8 %v2111
        %v2113 = vlaneseq
        %v2114 = vshrl.u32 %v2113, 7
        %v2115 = vsub.s32 %v2112, %v2114
        %v2116 = vrot.slane %v2094, %v2115
        %v2118 = vunpack.c.l.s4 1966171168
        %v2119 = vunpack.c.0.s8 %v2118
        %v2120 = vlaneseq
        %v2121 = vshrl.u32 %v2120, 7
        %v2122 = vsub.s32 %v2119, %v2121
        %v2123 = vrot.slane %v2095, %v2122
        %v2124 = vcombine.high %v2102, %v2102
        %v2125 = vcombine.high %v2109, %v2109
        %v2126 = vcombine.high %v2116, %v2116
        %v2127 = vcombine.high %v2123, %v2123
        %v2128 = vunpack.i.l.s16 %v2102
        %v2129 = vunpack.i.h.s16 %v2102
        %v2130 = vunpack.i.l.s16 %v2116
        %v2131 = vunpack.i.h.s16 %v2116
        %v2132 = vunpack.i.l.s16 %v2124
        %v2133 = vunpack.i.h.s16 %v2124
        %v2134 = vunpack.i.l.s16 %v2126
        %v2135 = vunpack.i.h.s16 %v2126
        %v2136 = vunpack.i.l.s16 %v2109
        %v2137 = vunpack.i.h.s16 %v2109
        %v2138 = vunpack.i.l.s16 %v2123
        %v2139 = vunpack.i.h.s16 %v2123
        %v2140 = vunpack.i.l.s16 %v2125
        %v2141 = vunpack.i.h.s16 %v2125
        %v2142 = vunpack.i.l.s16 %v2127
        %v2143 = vunpack.i.h.s16 %v2127
        %v2144 = vpack.i.b16 %v2128, %v2128
        %v2145 = vpack.i.b16 %v2129, %v2129
        %v2146 = vpack.i.b16 %v2130, %v2130
        %v2147 = vpack.i.b16 %v2131, %v2131
        %v2148 = vpack.i.b16 %v2132, %v2132
        %v2149 = vpack.i.b16 %v2133, %v2133
        %v2150 = vpack.i.b16 %v2134, %v2134
        %v2151 = vpack.i.b16 %v2135, %v2135
        %v2152 = vpack.i.b16 %v2136, %v2136
        %v2153 = vpack.i.b16 %v2137, %v2137
        %v2154 = vpack.i.b16 %v2138, %v2138
        %v2155 = vpack.i.b16 %v2139, %v2139
        %v2156 = vpack.i.b16 %v2140, %v2140
        %v2157 = vpack.i.b16 %v2141, %v2141
        %v2158 = vpack.i.b16 %v2142, %v2142
        %v2159 = vpack.i.b16 %v2143, %v2143
        %v2160 = vlaneseq
        %v2161 = vshrl.u32 %v2160, 7
        %v2162 = vsub.s32 0, %v2161
        %v2163 = vrot.slane %v2144, %v2162
        %v2164 = vlaneseq
        %v2165 = vshrl.u32 %v2164, 7
        %v2166 = vsub.s32 1, %v2165
        %v2167 = vrot.slane %v2144, %v2166
        %v2168 = vlaneseq
        %v2169 = vshrl.u32 %v2168, 7
        %v2170 = vsub.s32 0, %v2169
        %v2171 = vrot.slane %v2145, %v2170
        %v2172 = vlaneseq
        %v2173 = vshrl.u32 %v2172, 7
        %v2174 = vsub.s32 1, %v2173
        %v2175 = vrot.slane %v2145, %v2174
        %v2176 = vlaneseq
        %v2177 = vshrl.u32 %v2176, 7
        %v2178 = vsub.s32 0, %v2177
        %v2179 = vrot.slane %v2146, %v2178
        %v2180 = vlaneseq
        %v2181 = vshrl.u32 %v2180, 7
        %v2182 = vsub.s32 1, %v2181
        %v2183 = vrot.slane %v2146, %v2182
        %v2184 = vlaneseq
        %v2185 = vshrl.u32 %v2184, 7
        %v2186 = vsub.s32 0, %v2185
        %v2187 = vrot.slane %v2147, %v2186
        %v2188 = vlaneseq
        %v2189 = vshrl.u32 %v2188, 7
        %v2190 = vsub.s32 1, %v2189
        %v2191 = vrot.slane %v2147, %v2190
        %v2192 = vlaneseq
        %v2193 = vshrl.u32 %v2192, 7
        %v2194 = vsub.s32 0, %v2193
        %v2195 = vrot.slane %v2148, %v2194
        %v2196 = vlaneseq
        %v2197 = vshrl.u32 %v2196, 7
        %v2198 = vsub.s32 1, %v2197
        %v2199 = vrot.slane %v2148, %v2198
        %v2200 = vlaneseq
        %v2201 = vshrl.u32 %v2200, 7
        %v2202 = vsub.s32 0, %v2201
        %v2203 = vrot.slane %v2149, %v2202
        %v2204 = vlaneseq
        %v2205 = vshrl.u32 %v2204, 7
        %v2206 = vsub.s32 1, %v2205
        %v2207 = vrot.slane %v2149, %v2206
        %v2208 = vlaneseq
        %v2209 = vshrl.u32 %v2208, 7
        %v2210 = vsub.s32 0, %v2209
        %v2211 = vrot.slane %v2150, %v2210
        %v2212 = vlaneseq
        %v2213 = vshrl.u32 %v2212, 7
        %v2214 = vsub.s32 1, %v2213
        %v2215 = vrot.slane %v2150, %v2214
        %v2216 = vlaneseq
        %v2217 = vshrl.u32 %v2216, 7
        %v2218 = vsub.s32 0, %v2217
        %v2219 = vrot.slane %v2151, %v2218
        %v2220 = vlaneseq
        %v2221 = vshrl.u32 %v2220, 7
        %v2222 = vsub.s32 1, %v2221
        %v2223 = vrot.slane %v2151, %v2222
        %v2224 = vlaneseq
        %v2225 = vshrl.u32 %v2224, 7
        %v2226 = vsub.s32 0, %v2225
        %v2227 = vrot.slane %v2152, %v2226
        %v2228 = vlaneseq
        %v2229 = vshrl.u32 %v2228, 7
        %v2230 = vsub.s32 1, %v2229
        %v2231 = vrot.slane %v2152, %v2230
        %v2232 = vlaneseq
        %v2233 = vshrl.u32 %v2232, 7
        %v2234 = vsub.s32 0, %v2233
        %v2235 = vrot.slane %v2153, %v2234
        %v2236 = vlaneseq
        %v2237 = vshrl.u32 %v2236, 7
        %v2238 = vsub.s32 1, %v2237
        %v2239 = vrot.slane %v2153, %v2238
        %v2240 = vlaneseq
        %v2241 = vshrl.u32 %v2240, 7
        %v2242 = vsub.s32 0, %v2241
        %v2243 = vrot.slane %v2154, %v2242
        %v2244 = vlaneseq
        %v2245 = vshrl.u32 %v2244, 7
        %v2246 = vsub.s32 1, %v2245
        %v2247 = vrot.slane %v2154, %v2246
        %v2248 = vlaneseq
        %v2249 = vshrl.u32 %v2248, 7
        %v2250 = vsub.s32 0, %v2249
        %v2251 = vrot.slane %v2155, %v2250
        %v2252 = vlaneseq
        %v2253 = vshrl.u32 %v2252, 7
        %v2254 = vsub.s32 1, %v2253
        %v2255 = vrot.slane %v2155, %v2254
        %v2256 = vlaneseq
        %v2257 = vshrl.u32 %v2256, 7
        %v2258 = vsub.s32 0, %v2257
        %v2259 = vrot.slane %v2156, %v2258
        %v2260 = vlaneseq
        %v2261 = vshrl.u32 %v2260, 7
        %v2262 = vsub.s32 1, %v2261
        %v2263 = vrot.slane %v2156, %v2262
        %v2264 = vlaneseq
        %v2265 = vshrl.u32 %v2264, 7
        %v2266 = vsub.s32 0, %v2265
        %v2267 = vrot.slane %v2157, %v2266
        %v2268 = vlaneseq
        %v2269 = vshrl.u32 %v2268, 7
        %v2270 = vsub.s32 1, %v2269
        %v2271 = vrot.slane %v2157, %v2270
        %v2272 = vlaneseq
        %v2273 = vshrl.u32 %v2272, 7
        %v2274 = vsub.s32 0, %v2273
        %v2275 = vrot.slane %v2158, %v2274
        %v2276 = vlaneseq
        %v2277 = vshrl.u32 %v2276, 7
        %v2278 = vsub.s32 1, %v2277
        %v2279 = vrot.slane %v2158, %v2278
        %v2280 = vlaneseq
        %v2281 = vshrl.u32 %v2280, 7
        %v2282 = vsub.s32 0, %v2281
        %v2283 = vrot.slane %v2159, %v2282
        %v2284 = vlaneseq
        %v2285 = vshrl.u32 %v2284, 7
        %v2286 = vsub.s32 1, %v2285
        %v2287 = vrot.slane %v2159, %v2286
        %v2289 = vpack.i.b16 %v2163, %v2163
        %v2291 = vlaneseq
        %v2292 = vshrl.u32 %v2291, 7
        %v2293 = vsub.s32 0, %v2292
        %v2294 = vrot.slane %v2289, %v2293
        %v2296 = vpack.i.b16 %v2167, %v2167
        %v2298 = vlaneseq
        %v2299 = vshrl.u32 %v2298, 7
        %v2300 = vsub.s32 0, %v2299
        %v2301 = vrot.slane %v2296, %v2300
        %v2303 = vpack.i.b16 %v2171, %v2171
        %v2305 = vlaneseq
        %v2306 = vshrl.u32 %v2305, 7
        %v2307 = vsub.s32 0, %v2306
        %v2308 = vrot.slane %v2303, %v2307
        %v2310 = vpack.i.b16 %v2175, %v2175
        %v2312 = vlaneseq
        %v2313 = vshrl.u32 %v2312, 7
        %v2314 = vsub.s32 0, %v2313
        %v2315 = vrot.slane %v2310, %v2314
        %v2317 = vpack.i.b16 %v2179, %v2179
        %v2319 = vlaneseq
        %v2320 = vshrl.u32 %v2319, 7
        %v2321 = vsub.s32 0, %v2320
        %v2322 = vrot.slane %v2317, %v2321
        %v2324 = vpack.i.b16 %v2183, %v2183
        %v2326 = vlaneseq
        %v2327 = vshrl.u32 %v2326, 7
        %v2328 = vsub.s32 0, %v2327
        %v2329 = vrot.slane %v2324, %v2328
        %v2331 = vpack.i.b16 %v2187, %v2187
        %v2333 = vlaneseq
        %v2334 = vshrl.u32 %v2333, 7
        %v2335 = vsub.s32 0, %v2334
        %v2336 = vrot.slane %v2331, %v2335
        %v2338 = vpack.i.b16 %v2191, %v2191
        %v2340 = vlaneseq
        %v2341 = vshrl.u32 %v2340, 7
        %v2342 = vsub.s32 0, %v2341
        %v2343 = vrot.slane %v2338, %v2342
        %v2345 = vpack.i.b16 %v2195, %v2195
        %v2347 = vlaneseq
        %v2348 = vshrl.u32 %v2347, 7
        %v2349 = vsub.s32 0, %v2348
        %v2350 = vrot.slane %v2345, %v2349
        %v2352 = vpack.i.b16 %v2199, %v2199
        %v2354 = vlaneseq
        %v2355 = vshrl.u32 %v2354, 7
        %v2356 = vsub.s32 0, %v2355
        %v2357 = vrot.slane %v2352, %v2356
        %v2359 = vpack.i.b16 %v2203, %v2203
        %v2361 = vlaneseq
        %v2362 = vshrl.u32 %v2361, 7
        %v2363 = vsub.s32 0, %v2362
        %v2364 = vrot.slane %v2359, %v2363
        %v2366 = vpack.i.b16 %v2207, %v2207
        %v2368 = vlaneseq
        %v2369 = vshrl.u32 %v2368, 7
        %v2370 = vsub.s32 0, %v2369
        %v2371 = vrot.slane %v2366, %v2370
        %v2373 = vpack.i.b16 %v2211, %v2211
        %v2375 = vlaneseq
        %v2376 = vshrl.u32 %v2375, 7
        %v2377 = vsub.s32 0, %v2376
        %v2378 = vrot.slane %v2373, %v2377
        %v2380 = vpack.i.b16 %v2215, %v2215
        %v2382 = vlaneseq
        %v2383 = vshrl.u32 %v2382, 7
        %v2384 = vsub.s32 0, %v2383
        %v2385 = vrot.slane %v2380, %v2384
        %v2387 = vpack.i.b16 %v2219, %v2219
        %v2389 = vlaneseq
        %v2390 = vshrl.u32 %v2389, 7
        %v2391 = vsub.s32 0, %v2390
        %v2392 = vrot.slane %v2387, %v2391
        %v2394 = vpack.i.b16 %v2223, %v2223
        %v2396 = vlaneseq
        %v2397 = vshrl.u32 %v2396, 7
        %v2398 = vsub.s32 0, %v2397
        %v2399 = vrot.slane %v2394, %v2398
        %v2401 = vpack.i.b16 %v2227, %v2227
        %v2403 = vlaneseq
        %v2404 = vshrl.u32 %v2403, 7
        %v2405 = vsub.s32 0, %v2404
        %v2406 = vrot.slane %v2401, %v2405
        %v2408 = vpack.i.b16 %v2231, %v2231
        %v2410 = vlaneseq
        %v2411 = vshrl.u32 %v2410, 7
        %v2412 = vsub.s32 0, %v2411
        %v2413 = vrot.slane %v2408, %v2412
        %v2415 = vpack.i.b16 %v2235, %v2235
        %v2417 = vlaneseq
        %v2418 = vshrl.u32 %v2417, 7
        %v2419 = vsub.s32 0, %v2418
        %v2420 = vrot.slane %v2415, %v2419
        %v2422 = vpack.i.b16 %v2239, %v2239
        %v2424 = vlaneseq
        %v2425 = vshrl.u32 %v2424, 7
        %v2426 = vsub.s32 0, %v2425
        %v2427 = vrot.slane %v2422, %v2426
        %v2429 = vpack.i.b16 %v2243, %v2243
        %v2431 = vlaneseq
        %v2432 = vshrl.u32 %v2431, 7
        %v2433 = vsub.s32 0, %v2432
        %v2434 = vrot.slane %v2429, %v2433
        %v2436 = vpack.i.b16 %v2247, %v2247
        %v2438 = vlaneseq
        %v2439 = vshrl.u32 %v2438, 7
        %v2440 = vsub.s32 0, %v2439
        %v2441 = vrot.slane %v2436, %v2440
        %v2443 = vpack.i.b16 %v2251, %v2251
        %v2445 = vlaneseq
        %v2446 = vshrl.u32 %v2445, 7
        %v2447 = vsub.s32 0, %v2446
        %v2448 = vrot.slane %v2443, %v2447
        %v2450 = vpack.i.b16 %v2255, %v2255
        %v2452 = vlaneseq
        %v2453 = vshrl.u32 %v2452, 7
        %v2454 = vsub.s32 0, %v2453
        %v2455 = vrot.slane %v2450, %v2454
        %v2457 = vpack.i.b16 %v2259, %v2259
        %v2459 = vlaneseq
        %v2460 = vshrl.u32 %v2459, 7
        %v2461 = vsub.s32 0, %v2460
        %v2462 = vrot.slane %v2457, %v2461
        %v2464 = vpack.i.b16 %v2263, %v2263
        %v2466 = vlaneseq
        %v2467 = vshrl.u32 %v2466, 7
        %v2468 = vsub.s32 0, %v2467
        %v2469 = vrot.slane %v2464, %v2468
        %v2471 = vpack.i.b16 %v2267, %v2267
        %v2473 = vlaneseq
        %v2474 = vshrl.u32 %v2473, 7
        %v2475 = vsub.s32 0, %v2474
        %v2476 = vrot.slane %v2471, %v2475
        %v2478 = vpack.i.b16 %v2271, %v2271
        %v2480 = vlaneseq
        %v2481 = vshrl.u32 %v2480, 7
        %v2482 = vsub.s32 0, %v2481
        %v2483 = vrot.slane %v2478, %v2482
        %v2485 = vpack.i.b16 %v2275, %v2275
        %v2487 = vlaneseq
        %v2488 = vshrl.u32 %v2487, 7
        %v2489 = vsub.s32 0, %v2488
        %v2490 = vrot.slane %v2485, %v2489
        %v2492 = vpack.i.b16 %v2279, %v2279
        %v2494 = vlaneseq
        %v2495 = vshrl.u32 %v2494, 7
        %v2496 = vsub.s32 0, %v2495
        %v2497 = vrot.slane %v2492, %v2496
        %v2499 = vpack.i.b16 %v2283, %v2283
        %v2501 = vlaneseq
        %v2502 = vshrl.u32 %v2501, 7
        %v2503 = vsub.s32 0, %v2502
        %v2504 = vrot.slane %v2499, %v2503
        %v2506 = vpack.i.b16 %v2287, %v2287
        %v2508 = vlaneseq
        %v2509 = vshrl.u32 %v2508, 7
        %v2510 = vsub.s32 0, %v2509
        %v2511 = vrot.slane %v2506, %v2510
        %v2512 = vmul.bf16 %v2294, %v2074
        %v2513 = vmul.bf16 %v2301, %v2075
        %v2514 = vmul.bf16 %v2308, %v2074
        %v2515 = vmul.bf16 %v2315, %v2075
        %v2516 = vmul.bf16 %v2322, %v2074
        %v2517 = vmul.bf16 %v2329, %v2075
        %v2518 = vmul.bf16 %v2336, %v2074
        %v2519 = vmul.bf16 %v2343, %v2075
        %v2520 = vmul.bf16 %v2350, %v2074
        %v2521 = vmul.bf16 %v2357, %v2075
        %v2522 = vmul.bf16 %v2364, %v2074
        %v2523 = vmul.bf16 %v2371, %v2075
        %v2524 = vmul.bf16 %v2378, %v2074
        %v2525 = vmul.bf16 %v2385, %v2075
        %v2526 = vmul.bf16 %v2392, %v2074
        %v2527 = vmul.bf16 %v2399, %v2075
        %v2528 = vmul.bf16 %v2406, %v2074
        %v2529 = vmul.bf16 %v2413, %v2075
        %v2530 = vmul.bf16 %v2420, %v2074
        %v2531 = vmul.bf16 %v2427, %v2075
        %v2532 = vmul.bf16 %v2434, %v2074
        %v2533 = vmul.bf16 %v2441, %v2075
        %v2534 = vmul.bf16 %v2448, %v2074
        %v2535 = vmul.bf16 %v2455, %v2075
        %v2536 = vmul.bf16 %v2462, %v2074
        %v2537 = vmul.bf16 %v2469, %v2075
        %v2538 = vmul.bf16 %v2476, %v2074
        %v2539 = vmul.bf16 %v2483, %v2075
        %v2540 = vmul.bf16 %v2490, %v2074
        %v2541 = vmul.bf16 %v2497, %v2075
        %v2542 = vmul.bf16 %v2504, %v2074
        %v2543 = vmul.bf16 %v2511, %v2075
        %2544 = vmatprep.subr.bf16.mxu0 %v2513
        %2545 = vmatpush1.bf16.msra.mxu0 %v2512
        %2546 = vmatprep.subr.bf16.mxu0 %v2515
        %2547 = vmatpush1.bf16.msra.mxu0 %v2514
        %2548 = vmatprep.subr.bf16.mxu0 %v2517
        %2549 = vmatpush1.bf16.msra.mxu0 %v2516
        %2550 = vmatprep.subr.bf16.mxu0 %v2519
        %2551 = vmatpush1.bf16.msra.mxu0 %v2518
        %2552 = vmatprep.subr.bf16.mxu0 %v2521
        %2553 = vmatpush1.bf16.msra.mxu0 %v2520
        %2554 = vmatprep.subr.bf16.mxu0 %v2523
        %2555 = vmatpush1.bf16.msra.mxu0 %v2522
        %2556 = vmatprep.subr.bf16.mxu0 %v2525
        %2557 = vmatpush1.bf16.msra.mxu0 %v2524
        %2558 = vmatprep.subr.bf16.mxu0 %v2527
        %2559 = vmatpush1.bf16.msra.mxu0 %v2526
        %2560 = vmatprep.subr.bf16.mxu0 %v2529
        %2561 = vmatpush1.bf16.msra.mxu0 %v2528
        %2562 = vmatprep.subr.bf16.mxu0 %v2531
        %2563 = vmatpush1.bf16.msra.mxu0 %v2530
        %2564 = vmatprep.subr.bf16.mxu0 %v2533
        %2565 = vmatpush1.bf16.msra.mxu0 %v2532
        %2566 = vmatprep.subr.bf16.mxu0 %v2535
        %2567 = vmatpush1.bf16.msra.mxu0 %v2534
        %2568 = vmatprep.subr.bf16.mxu0 %v2537
        %2569 = vmatpush1.bf16.msra.mxu0 %v2536
        %2570 = vmatprep.subr.bf16.mxu0 %v2539
        %2571 = vmatpush1.bf16.msra.mxu0 %v2538
        %2572 = vmatprep.subr.bf16.mxu0 %v2541
        %2573 = vmatpush1.bf16.msra.mxu0 %v2540
        %2574 = vmatprep.subr.bf16.mxu0 %v2543
        %2575 = vmatpush1.bf16.msra.mxu0 %v2542
        %2576 = vmatprep.mubr.bf16.mxu0 %v1846
        %2577 = vmatmul.mubr.bf16.gmra.mrb[0].mxu0 %v1845
        %v2578 = vpop.f32.mrb[0].mxu0
        %v2579 = vadd.f32 0.0, %v2578
        %v2580 = vpop.f32.mrb[0].mxu0
        %v2581 = vadd.f32 0.0, %v2580
        %v2582 = vpop.f32.mrb[0].mxu0
        %v2583 = vpop.f32.mrb[0].mxu0
        %2584 = vdwg.mxu0
        %v2585 = vcombine.high %v1171, %v1171
        %v2587 = vadd.f32 %v1154, %v2585
        %v2588 = vadd.f32 %v1150, 1.0
        %v2589 = vcombine.high %v1192, %v1192
        %v2591 = vadd.f32 %v2588, %v2589
        %vm2592 = vcmp.gt.f32.partialorder %v2587, -1.0
        %vm2593 = vcmp.lt.f32.partialorder %v2587, 16.0
        %vm2594 = vmand %vm2592, %vm2593
        %vm2595 = vcmp.gt.f32.partialorder %v2591, -1.0
        %vm2596 = vmand %vm2594, %vm2595
        %vm2597 = vcmp.lt.f32.partialorder %v2591, 16.0
        %vm2598 = vmand %vm2596, %vm2597
        %v2599 = vsel %vm2598, 1, 0
        %v2600 = vcvt.s32.f32 %v2599
        %v2601 = vfloor.f32 %v2587
        %v2602 = vfloor.f32 %v2591
        %v2603 = vsub.f32 %v2587, %v2601
        %v2604 = vsub.f32 %v2591, %v2602
        %v2605 = vsub.f32 1.0, %v2603
        %v2606 = vsub.f32 1.0, %v2604
        %v2607 = vcvt.f32.s32.to.zero.pseudo %v2601
        %v2608 = vcvt.f32.s32.to.zero.pseudo %v2602
        %v2609 = vlaneseq
        %v2610 = vshrl.u32 %v2609, 7
        %v2611 = vsub.s32 0, %v2610
        %v2612 = vrot.slane %v2607, %v2611
        %v2613 = vlaneseq
        %v2614 = vshrl.u32 %v2613, 7
        %v2615 = vsub.s32 1, %v2614
        %v2616 = vrot.slane %v2607, %v2615
        %vm2617 = vcmp.eq.s32.totalorder %v1152, %v2612
        %vm2618 = vcmp.eq.s32.totalorder %v1152, %v2616
        %vm2619 = vcmp.eq.s32.totalorder %v1153, %v2612
        %vm2620 = vcmp.eq.s32.totalorder %v1153, %v2616
        %v2622 = vlaneseq
        %v2623 = vshrl.u32 %v2622, 7
        %v2624 = vsub.s32 0, %v2623
        %v2625 = vrot.slane %v2605, %v2624
        %v2626 = vlaneseq
        %v2627 = vshrl.u32 %v2626, 7
        %v2628 = vsub.s32 1, %v2627
        %v2629 = vrot.slane %v2605, %v2628
        %v2632 = vsel %vm2617, %v2625, 0.0
        %v2633 = vsel %vm2618, %v2629, 0.0
        %v2634 = vsel %vm2619, %v2625, 0.0
        %v2635 = vsel %vm2620, %v2629, 0.0
        %v2636 = vadd.s32 %v2607, 1
        %v2637 = vlaneseq
        %v2638 = vshrl.u32 %v2637, 7
        %v2639 = vsub.s32 0, %v2638
        %v2640 = vrot.slane %v2636, %v2639
        %v2641 = vlaneseq
        %v2642 = vshrl.u32 %v2641, 7
        %v2643 = vsub.s32 1, %v2642
        %v2644 = vrot.slane %v2636, %v2643
        %vm2645 = vcmp.eq.s32.totalorder %v1152, %v2640
        %vm2646 = vcmp.eq.s32.totalorder %v1152, %v2644
        %vm2647 = vcmp.eq.s32.totalorder %v1153, %v2640
        %vm2648 = vcmp.eq.s32.totalorder %v1153, %v2644
        %v2650 = vlaneseq
        %v2651 = vshrl.u32 %v2650, 7
        %v2652 = vsub.s32 0, %v2651
        %v2653 = vrot.slane %v2603, %v2652
        %v2654 = vlaneseq
        %v2655 = vshrl.u32 %v2654, 7
        %v2656 = vsub.s32 1, %v2655
        %v2657 = vrot.slane %v2603, %v2656
        %v2660 = vsel %vm2645, %v2653, 0.0
        %v2661 = vsel %vm2646, %v2657, 0.0
        %v2662 = vsel %vm2647, %v2653, 0.0
        %v2663 = vsel %vm2648, %v2657, 0.0
        %v2664 = vadd.f32 %v2632, %v2660
        %v2665 = vadd.f32 %v2633, %v2661
        %v2666 = vadd.f32 %v2634, %v2662
        %v2667 = vadd.f32 %v2635, %v2663
        %v2668 = vcombine.high %v1141, %v1143
        %v2670 = vunpack.c.l.s4 1966171168
        %v2671 = vunpack.c.0.s8 %v2670
        %v2672 = vlaneseq
        %v2673 = vshrl.u32 %v2672, 7
        %v2674 = vsub.s32 %v2671, %v2673
        %v2675 = vrot.slane %v2668, %v2674
        %v2677 = vunpack.c.l.s4 1966171168
        %v2678 = vunpack.c.0.s8 %v2677
        %v2679 = vlaneseq
        %v2680 = vshrl.u32 %v2679, 7
        %v2681 = vsub.s32 %v2678, %v2680
        %v2682 = vrot.slane %v2675, %v2681
        %v2684 = vmul.f32 %v2600, %v2682
        %v2686 = vlaneseq
        %v2687 = vshrl.u32 %v2686, 7
        %v2688 = vsub.s32 0, %v2687
        %v2689 = vrot.slane %v2684, %v2688
        %v2690 = vlaneseq
        %v2691 = vshrl.u32 %v2690, 7
        %v2692 = vsub.s32 1, %v2691
        %v2693 = vrot.slane %v2684, %v2692
        %v2696 = vmul.f32 %v2664, %v2689
        %v2697 = vmul.f32 %v2665, %v2693
        %v2698 = vmul.f32 %v2666, %v2689
        %v2699 = vmul.f32 %v2667, %v2693
        %v2700 = vpack.c.bf16 %v2698, %v2696
        %v2701 = vpack.c.bf16 %v2699, %v2697
        %v2702 = vlaneseq
        %v2703 = vshrl.u32 %v2702, 7
        %v2704 = vsub.s32 0, %v2703
        %v2705 = vrot.slane %v2608, %v2704
        %v2706 = vlaneseq
        %v2707 = vshrl.u32 %v2706, 7
        %v2708 = vsub.s32 1, %v2707
        %v2709 = vrot.slane %v2608, %v2708
        %vm2710 = vcmp.eq.s32.totalorder %v1152, %v2705
        %vm2711 = vcmp.eq.s32.totalorder %v1152, %v2709
        %vm2712 = vcmp.eq.s32.totalorder %v1153, %v2705
        %vm2713 = vcmp.eq.s32.totalorder %v1153, %v2709
        %v2715 = vlaneseq
        %v2716 = vshrl.u32 %v2715, 7
        %v2717 = vsub.s32 0, %v2716
        %v2718 = vrot.slane %v2606, %v2717
        %v2719 = vlaneseq
        %v2720 = vshrl.u32 %v2719, 7
        %v2721 = vsub.s32 1, %v2720
        %v2722 = vrot.slane %v2606, %v2721
        %v2725 = vsel %vm2710, %v2718, 0.0
        %v2726 = vsel %vm2711, %v2722, 0.0
        %v2727 = vsel %vm2712, %v2718, 0.0
        %v2728 = vsel %vm2713, %v2722, 0.0
        %v2729 = vadd.s32 %v2608, 1
        %v2730 = vlaneseq
        %v2731 = vshrl.u32 %v2730, 7
        %v2732 = vsub.s32 0, %v2731
        %v2733 = vrot.slane %v2729, %v2732
        %v2734 = vlaneseq
        %v2735 = vshrl.u32 %v2734, 7
        %v2736 = vsub.s32 1, %v2735
        %v2737 = vrot.slane %v2729, %v2736
        %vm2738 = vcmp.eq.s32.totalorder %v1152, %v2733
        %vm2739 = vcmp.eq.s32.totalorder %v1152, %v2737
        %vm2740 = vcmp.eq.s32.totalorder %v1153, %v2733
        %vm2741 = vcmp.eq.s32.totalorder %v1153, %v2737
        %v2743 = vlaneseq
        %v2744 = vshrl.u32 %v2743, 7
        %v2745 = vsub.s32 0, %v2744
        %v2746 = vrot.slane %v2604, %v2745
        %v2747 = vlaneseq
        %v2748 = vshrl.u32 %v2747, 7
        %v2749 = vsub.s32 1, %v2748
        %v2750 = vrot.slane %v2604, %v2749
        %v2753 = vsel %vm2738, %v2746, 0.0
        %v2754 = vsel %vm2739, %v2750, 0.0
        %v2755 = vsel %vm2740, %v2746, 0.0
        %v2756 = vsel %vm2741, %v2750, 0.0
        %v2757 = vadd.f32 %v2725, %v2753
        %v2758 = vadd.f32 %v2726, %v2754
        %v2759 = vadd.f32 %v2727, %v2755
        %v2760 = vadd.f32 %v2728, %v2756
        %v2761 = vpack.c.bf16 %v2759, %v2757
        %v2762 = vpack.c.bf16 %v2760, %v2758
        %v2765 = vcombine.low %v2700, %v2701
        %v2766 = vcombine.high %v2700, %v2701
        %v2768 = vunpack.c.l.s4 1966171168
        %v2769 = vunpack.c.0.s8 %v2768
        %v2770 = vlaneseq
        %v2771 = vshrl.u32 %v2770, 7
        %v2772 = vsub.s32 %v2769, %v2771
        %v2773 = vrot.slane %v2765, %v2772
        %v2775 = vunpack.c.l.s4 1966171168
        %v2776 = vunpack.c.0.s8 %v2775
        %v2777 = vlaneseq
        %v2778 = vshrl.u32 %v2777, 7
        %v2779 = vsub.s32 %v2776, %v2778
        %v2780 = vrot.slane %v2766, %v2779
        %v2781 = vcombine.high %v2773, %v2773
        %v2782 = vcombine.high %v2780, %v2780
        %v2784 = vunpack.c.l.s4 1966171168
        %v2785 = vunpack.c.0.s8 %v2784
        %v2786 = vlaneseq
        %v2787 = vshrl.u32 %v2786, 7
        %v2788 = vsub.s32 %v2785, %v2787
        %v2789 = vrot.slane %v2773, %v2788
        %v2791 = vunpack.c.l.s4 1966171168
        %v2792 = vunpack.c.0.s8 %v2791
        %v2793 = vlaneseq
        %v2794 = vshrl.u32 %v2793, 7
        %v2795 = vsub.s32 %v2792, %v2794
        %v2796 = vrot.slane %v2780, %v2795
        %v2798 = vunpack.c.l.s4 1966171168
        %v2799 = vunpack.c.0.s8 %v2798
        %v2800 = vlaneseq
        %v2801 = vshrl.u32 %v2800, 7
        %v2802 = vsub.s32 %v2799, %v2801
        %v2803 = vrot.slane %v2781, %v2802
        %v2805 = vunpack.c.l.s4 1966171168
        %v2806 = vunpack.c.0.s8 %v2805
        %v2807 = vlaneseq
        %v2808 = vshrl.u32 %v2807, 7
        %v2809 = vsub.s32 %v2806, %v2808
        %v2810 = vrot.slane %v2782, %v2809
        %v2811 = vcombine.high %v2789, %v2789
        %v2812 = vcombine.high %v2796, %v2796
        %v2813 = vcombine.high %v2803, %v2803
        %v2814 = vcombine.high %v2810, %v2810
        %v2815 = vunpack.i.l.s16 %v2789
        %v2816 = vunpack.i.h.s16 %v2789
        %v2817 = vunpack.i.l.s16 %v2803
        %v2818 = vunpack.i.h.s16 %v2803
        %v2819 = vunpack.i.l.s16 %v2811
        %v2820 = vunpack.i.h.s16 %v2811
        %v2821 = vunpack.i.l.s16 %v2813
        %v2822 = vunpack.i.h.s16 %v2813
        %v2823 = vunpack.i.l.s16 %v2796
        %v2824 = vunpack.i.h.s16 %v2796
        %v2825 = vunpack.i.l.s16 %v2810
        %v2826 = vunpack.i.h.s16 %v2810
        %v2827 = vunpack.i.l.s16 %v2812
        %v2828 = vunpack.i.h.s16 %v2812
        %v2829 = vunpack.i.l.s16 %v2814
        %v2830 = vunpack.i.h.s16 %v2814
        %v2831 = vpack.i.b16 %v2815, %v2815
        %v2832 = vpack.i.b16 %v2816, %v2816
        %v2833 = vpack.i.b16 %v2817, %v2817
        %v2834 = vpack.i.b16 %v2818, %v2818
        %v2835 = vpack.i.b16 %v2819, %v2819
        %v2836 = vpack.i.b16 %v2820, %v2820
        %v2837 = vpack.i.b16 %v2821, %v2821
        %v2838 = vpack.i.b16 %v2822, %v2822
        %v2839 = vpack.i.b16 %v2823, %v2823
        %v2840 = vpack.i.b16 %v2824, %v2824
        %v2841 = vpack.i.b16 %v2825, %v2825
        %v2842 = vpack.i.b16 %v2826, %v2826
        %v2843 = vpack.i.b16 %v2827, %v2827
        %v2844 = vpack.i.b16 %v2828, %v2828
        %v2845 = vpack.i.b16 %v2829, %v2829
        %v2846 = vpack.i.b16 %v2830, %v2830
        %v2847 = vlaneseq
        %v2848 = vshrl.u32 %v2847, 7
        %v2849 = vsub.s32 0, %v2848
        %v2850 = vrot.slane %v2831, %v2849
        %v2851 = vlaneseq
        %v2852 = vshrl.u32 %v2851, 7
        %v2853 = vsub.s32 1, %v2852
        %v2854 = vrot.slane %v2831, %v2853
        %v2855 = vlaneseq
        %v2856 = vshrl.u32 %v2855, 7
        %v2857 = vsub.s32 0, %v2856
        %v2858 = vrot.slane %v2832, %v2857
        %v2859 = vlaneseq
        %v2860 = vshrl.u32 %v2859, 7
        %v2861 = vsub.s32 1, %v2860
        %v2862 = vrot.slane %v2832, %v2861
        %v2863 = vlaneseq
        %v2864 = vshrl.u32 %v2863, 7
        %v2865 = vsub.s32 0, %v2864
        %v2866 = vrot.slane %v2833, %v2865
        %v2867 = vlaneseq
        %v2868 = vshrl.u32 %v2867, 7
        %v2869 = vsub.s32 1, %v2868
        %v2870 = vrot.slane %v2833, %v2869
        %v2871 = vlaneseq
        %v2872 = vshrl.u32 %v2871, 7
        %v2873 = vsub.s32 0, %v2872
        %v2874 = vrot.slane %v2834, %v2873
        %v2875 = vlaneseq
        %v2876 = vshrl.u32 %v2875, 7
        %v2877 = vsub.s32 1, %v2876
        %v2878 = vrot.slane %v2834, %v2877
        %v2879 = vlaneseq
        %v2880 = vshrl.u32 %v2879, 7
        %v2881 = vsub.s32 0, %v2880
        %v2882 = vrot.slane %v2835, %v2881
        %v2883 = vlaneseq
        %v2884 = vshrl.u32 %v2883, 7
        %v2885 = vsub.s32 1, %v2884
        %v2886 = vrot.slane %v2835, %v2885
        %v2887 = vlaneseq
        %v2888 = vshrl.u32 %v2887, 7
        %v2889 = vsub.s32 0, %v2888
        %v2890 = vrot.slane %v2836, %v2889
        %v2891 = vlaneseq
        %v2892 = vshrl.u32 %v2891, 7
        %v2893 = vsub.s32 1, %v2892
        %v2894 = vrot.slane %v2836, %v2893
        %v2895 = vlaneseq
        %v2896 = vshrl.u32 %v2895, 7
        %v2897 = vsub.s32 0, %v2896
        %v2898 = vrot.slane %v2837, %v2897
        %v2899 = vlaneseq
        %v2900 = vshrl.u32 %v2899, 7
        %v2901 = vsub.s32 1, %v2900
        %v2902 = vrot.slane %v2837, %v2901
        %v2903 = vlaneseq
        %v2904 = vshrl.u32 %v2903, 7
        %v2905 = vsub.s32 0, %v2904
        %v2906 = vrot.slane %v2838, %v2905
        %v2907 = vlaneseq
        %v2908 = vshrl.u32 %v2907, 7
        %v2909 = vsub.s32 1, %v2908
        %v2910 = vrot.slane %v2838, %v2909
        %v2911 = vlaneseq
        %v2912 = vshrl.u32 %v2911, 7
        %v2913 = vsub.s32 0, %v2912
        %v2914 = vrot.slane %v2839, %v2913
        %v2915 = vlaneseq
        %v2916 = vshrl.u32 %v2915, 7
        %v2917 = vsub.s32 1, %v2916
        %v2918 = vrot.slane %v2839, %v2917
        %v2919 = vlaneseq
        %v2920 = vshrl.u32 %v2919, 7
        %v2921 = vsub.s32 0, %v2920
        %v2922 = vrot.slane %v2840, %v2921
        %v2923 = vlaneseq
        %v2924 = vshrl.u32 %v2923, 7
        %v2925 = vsub.s32 1, %v2924
        %v2926 = vrot.slane %v2840, %v2925
        %v2927 = vlaneseq
        %v2928 = vshrl.u32 %v2927, 7
        %v2929 = vsub.s32 0, %v2928
        %v2930 = vrot.slane %v2841, %v2929
        %v2931 = vlaneseq
        %v2932 = vshrl.u32 %v2931, 7
        %v2933 = vsub.s32 1, %v2932
        %v2934 = vrot.slane %v2841, %v2933
        %v2935 = vlaneseq
        %v2936 = vshrl.u32 %v2935, 7
        %v2937 = vsub.s32 0, %v2936
        %v2938 = vrot.slane %v2842, %v2937
        %v2939 = vlaneseq
        %v2940 = vshrl.u32 %v2939, 7
        %v2941 = vsub.s32 1, %v2940
        %v2942 = vrot.slane %v2842, %v2941
        %v2943 = vlaneseq
        %v2944 = vshrl.u32 %v2943, 7
        %v2945 = vsub.s32 0, %v2944
        %v2946 = vrot.slane %v2843, %v2945
        %v2947 = vlaneseq
        %v2948 = vshrl.u32 %v2947, 7
        %v2949 = vsub.s32 1, %v2948
        %v2950 = vrot.slane %v2843, %v2949
        %v2951 = vlaneseq
        %v2952 = vshrl.u32 %v2951, 7
        %v2953 = vsub.s32 0, %v2952
        %v2954 = vrot.slane %v2844, %v2953
        %v2955 = vlaneseq
        %v2956 = vshrl.u32 %v2955, 7
        %v2957 = vsub.s32 1, %v2956
        %v2958 = vrot.slane %v2844, %v2957
        %v2959 = vlaneseq
        %v2960 = vshrl.u32 %v2959, 7
        %v2961 = vsub.s32 0, %v2960
        %v2962 = vrot.slane %v2845, %v2961
        %v2963 = vlaneseq
        %v2964 = vshrl.u32 %v2963, 7
        %v2965 = vsub.s32 1, %v2964
        %v2966 = vrot.slane %v2845, %v2965
        %v2967 = vlaneseq
        %v2968 = vshrl.u32 %v2967, 7
        %v2969 = vsub.s32 0, %v2968
        %v2970 = vrot.slane %v2846, %v2969
        %v2971 = vlaneseq
        %v2972 = vshrl.u32 %v2971, 7
        %v2973 = vsub.s32 1, %v2972
        %v2974 = vrot.slane %v2846, %v2973
        %v2976 = vpack.i.b16 %v2850, %v2850
        %v2978 = vlaneseq
        %v2979 = vshrl.u32 %v2978, 7
        %v2980 = vsub.s32 0, %v2979
        %v2981 = vrot.slane %v2976, %v2980
        %v2983 = vpack.i.b16 %v2854, %v2854
        %v2985 = vlaneseq
        %v2986 = vshrl.u32 %v2985, 7
        %v2987 = vsub.s32 0, %v2986
        %v2988 = vrot.slane %v2983, %v2987
        %v2990 = vpack.i.b16 %v2858, %v2858
        %v2992 = vlaneseq
        %v2993 = vshrl.u32 %v2992, 7
        %v2994 = vsub.s32 0, %v2993
        %v2995 = vrot.slane %v2990, %v2994
        %v2997 = vpack.i.b16 %v2862, %v2862
        %v2999 = vlaneseq
        %v3000 = vshrl.u32 %v2999, 7
        %v3001 = vsub.s32 0, %v3000
        %v3002 = vrot.slane %v2997, %v3001
        %v3004 = vpack.i.b16 %v2866, %v2866
        %v3006 = vlaneseq
        %v3007 = vshrl.u32 %v3006, 7
        %v3008 = vsub.s32 0, %v3007
        %v3009 = vrot.slane %v3004, %v3008
        %v3011 = vpack.i.b16 %v2870, %v2870
        %v3013 = vlaneseq
        %v3014 = vshrl.u32 %v3013, 7
        %v3015 = vsub.s32 0, %v3014
        %v3016 = vrot.slane %v3011, %v3015
        %v3018 = vpack.i.b16 %v2874, %v2874
        %v3020 = vlaneseq
        %v3021 = vshrl.u32 %v3020, 7
        %v3022 = vsub.s32 0, %v3021
        %v3023 = vrot.slane %v3018, %v3022
        %v3025 = vpack.i.b16 %v2878, %v2878
        %v3027 = vlaneseq
        %v3028 = vshrl.u32 %v3027, 7
        %v3029 = vsub.s32 0, %v3028
        %v3030 = vrot.slane %v3025, %v3029
        %v3032 = vpack.i.b16 %v2882, %v2882
        %v3034 = vlaneseq
        %v3035 = vshrl.u32 %v3034, 7
        %v3036 = vsub.s32 0, %v3035
        %v3037 = vrot.slane %v3032, %v3036
        %v3039 = vpack.i.b16 %v2886, %v2886
        %v3041 = vlaneseq
        %v3042 = vshrl.u32 %v3041, 7
        %v3043 = vsub.s32 0, %v3042
        %v3044 = vrot.slane %v3039, %v3043
        %v3046 = vpack.i.b16 %v2890, %v2890
        %v3048 = vlaneseq
        %v3049 = vshrl.u32 %v3048, 7
        %v3050 = vsub.s32 0, %v3049
        %v3051 = vrot.slane %v3046, %v3050
        %v3053 = vpack.i.b16 %v2894, %v2894
        %v3055 = vlaneseq
        %v3056 = vshrl.u32 %v3055, 7
        %v3057 = vsub.s32 0, %v3056
        %v3058 = vrot.slane %v3053, %v3057
        %v3060 = vpack.i.b16 %v2898, %v2898
        %v3062 = vlaneseq
        %v3063 = vshrl.u32 %v3062, 7
        %v3064 = vsub.s32 0, %v3063
        %v3065 = vrot.slane %v3060, %v3064
        %v3067 = vpack.i.b16 %v2902, %v2902
        %v3069 = vlaneseq
        %v3070 = vshrl.u32 %v3069, 7
        %v3071 = vsub.s32 0, %v3070
        %v3072 = vrot.slane %v3067, %v3071
        %v3074 = vpack.i.b16 %v2906, %v2906
        %v3076 = vlaneseq
        %v3077 = vshrl.u32 %v3076, 7
        %v3078 = vsub.s32 0, %v3077
        %v3079 = vrot.slane %v3074, %v3078
        %v3081 = vpack.i.b16 %v2910, %v2910
        %v3083 = vlaneseq
        %v3084 = vshrl.u32 %v3083, 7
        %v3085 = vsub.s32 0, %v3084
        %v3086 = vrot.slane %v3081, %v3085
        %v3088 = vpack.i.b16 %v2914, %v2914
        %v3090 = vlaneseq
        %v3091 = vshrl.u32 %v3090, 7
        %v3092 = vsub.s32 0, %v3091
        %v3093 = vrot.slane %v3088, %v3092
        %v3095 = vpack.i.b16 %v2918, %v2918
        %v3097 = vlaneseq
        %v3098 = vshrl.u32 %v3097, 7
        %v3099 = vsub.s32 0, %v3098
        %v3100 = vrot.slane %v3095, %v3099
        %v3102 = vpack.i.b16 %v2922, %v2922
        %v3104 = vlaneseq
        %v3105 = vshrl.u32 %v3104, 7
        %v3106 = vsub.s32 0, %v3105
        %v3107 = vrot.slane %v3102, %v3106
        %v3109 = vpack.i.b16 %v2926, %v2926
        %v3111 = vlaneseq
        %v3112 = vshrl.u32 %v3111, 7
        %v3113 = vsub.s32 0, %v3112
        %v3114 = vrot.slane %v3109, %v3113
        %v3116 = vpack.i.b16 %v2930, %v2930
        %v3118 = vlaneseq
        %v3119 = vshrl.u32 %v3118, 7
        %v3120 = vsub.s32 0, %v3119
        %v3121 = vrot.slane %v3116, %v3120
        %v3123 = vpack.i.b16 %v2934, %v2934
        %v3125 = vlaneseq
        %v3126 = vshrl.u32 %v3125, 7
        %v3127 = vsub.s32 0, %v3126
        %v3128 = vrot.slane %v3123, %v3127
        %v3130 = vpack.i.b16 %v2938, %v2938
        %v3132 = vlaneseq
        %v3133 = vshrl.u32 %v3132, 7
        %v3134 = vsub.s32 0, %v3133
        %v3135 = vrot.slane %v3130, %v3134
        %v3137 = vpack.i.b16 %v2942, %v2942
        %v3139 = vlaneseq
        %v3140 = vshrl.u32 %v3139, 7
        %v3141 = vsub.s32 0, %v3140
        %v3142 = vrot.slane %v3137, %v3141
        %v3144 = vpack.i.b16 %v2946, %v2946
        %v3146 = vlaneseq
        %v3147 = vshrl.u32 %v3146, 7
        %v3148 = vsub.s32 0, %v3147
        %v3149 = vrot.slane %v3144, %v3148
        %v3151 = vpack.i.b16 %v2950, %v2950
        %v3153 = vlaneseq
        %v3154 = vshrl.u32 %v3153, 7
        %v3155 = vsub.s32 0, %v3154
        %v3156 = vrot.slane %v3151, %v3155
        %v3158 = vpack.i.b16 %v2954, %v2954
        %v3160 = vlaneseq
        %v3161 = vshrl.u32 %v3160, 7
        %v3162 = vsub.s32 0, %v3161
        %v3163 = vrot.slane %v3158, %v3162
        %v3165 = vpack.i.b16 %v2958, %v2958
        %v3167 = vlaneseq
        %v3168 = vshrl.u32 %v3167, 7
        %v3169 = vsub.s32 0, %v3168
        %v3170 = vrot.slane %v3165, %v3169
        %v3172 = vpack.i.b16 %v2962, %v2962
        %v3174 = vlaneseq
        %v3175 = vshrl.u32 %v3174, 7
        %v3176 = vsub.s32 0, %v3175
        %v3177 = vrot.slane %v3172, %v3176
        %v3179 = vpack.i.b16 %v2966, %v2966
        %v3181 = vlaneseq
        %v3182 = vshrl.u32 %v3181, 7
        %v3183 = vsub.s32 0, %v3182
        %v3184 = vrot.slane %v3179, %v3183
        %v3186 = vpack.i.b16 %v2970, %v2970
        %v3188 = vlaneseq
        %v3189 = vshrl.u32 %v3188, 7
        %v3190 = vsub.s32 0, %v3189
        %v3191 = vrot.slane %v3186, %v3190
        %v3193 = vpack.i.b16 %v2974, %v2974
        %v3195 = vlaneseq
        %v3196 = vshrl.u32 %v3195, 7
        %v3197 = vsub.s32 0, %v3196
        %v3198 = vrot.slane %v3193, %v3197
        %v3199 = vmul.bf16 %v2981, %v2761
        %v3200 = vmul.bf16 %v2988, %v2762
        %v3201 = vmul.bf16 %v2995, %v2761
        %v3202 = vmul.bf16 %v3002, %v2762
        %v3203 = vmul.bf16 %v3009, %v2761
        %v3204 = vmul.bf16 %v3016, %v2762
        %v3205 = vmul.bf16 %v3023, %v2761
        %v3206 = vmul.bf16 %v3030, %v2762
        %v3207 = vmul.bf16 %v3037, %v2761
        %v3208 = vmul.bf16 %v3044, %v2762
        %v3209 = vmul.bf16 %v3051, %v2761
        %v3210 = vmul.bf16 %v3058, %v2762
        %v3211 = vmul.bf16 %v3065, %v2761
        %v3212 = vmul.bf16 %v3072, %v2762
        %v3213 = vmul.bf16 %v3079, %v2761
        %v3214 = vmul.bf16 %v3086, %v2762
        %v3215 = vmul.bf16 %v3093, %v2761
        %v3216 = vmul.bf16 %v3100, %v2762
        %v3217 = vmul.bf16 %v3107, %v2761
        %v3218 = vmul.bf16 %v3114, %v2762
        %v3219 = vmul.bf16 %v3121, %v2761
        %v3220 = vmul.bf16 %v3128, %v2762
        %v3221 = vmul.bf16 %v3135, %v2761
        %v3222 = vmul.bf16 %v3142, %v2762
        %v3223 = vmul.bf16 %v3149, %v2761
        %v3224 = vmul.bf16 %v3156, %v2762
        %v3225 = vmul.bf16 %v3163, %v2761
        %v3226 = vmul.bf16 %v3170, %v2762
        %v3227 = vmul.bf16 %v3177, %v2761
        %v3228 = vmul.bf16 %v3184, %v2762
        %v3229 = vmul.bf16 %v3191, %v2761
        %v3230 = vmul.bf16 %v3198, %v2762
        %3231 = vmatprep.subr.bf16.mxu0 %v3200
        %3232 = vmatpush1.bf16.msra.mxu0 %v3199
        %3233 = vmatprep.subr.bf16.mxu0 %v3202
        %3234 = vmatpush1.bf16.msra.mxu0 %v3201
        %3235 = vmatprep.subr.bf16.mxu0 %v3204
        %3236 = vmatpush1.bf16.msra.mxu0 %v3203
        %3237 = vmatprep.subr.bf16.mxu0 %v3206
        %3238 = vmatpush1.bf16.msra.mxu0 %v3205
        %3239 = vmatprep.subr.bf16.mxu0 %v3208
        %3240 = vmatpush1.bf16.msra.mxu0 %v3207
        %3241 = vmatprep.subr.bf16.mxu0 %v3210
        %3242 = vmatpush1.bf16.msra.mxu0 %v3209
        %3243 = vmatprep.subr.bf16.mxu0 %v3212
        %3244 = vmatpush1.bf16.msra.mxu0 %v3211
        %3245 = vmatprep.subr.bf16.mxu0 %v3214
        %3246 = vmatpush1.bf16.msra.mxu0 %v3213
        %3247 = vmatprep.subr.bf16.mxu0 %v3216
        %3248 = vmatpush1.bf16.msra.mxu0 %v3215
        %3249 = vmatprep.subr.bf16.mxu0 %v3218
        %3250 = vmatpush1.bf16.msra.mxu0 %v3217
        %3251 = vmatprep.subr.bf16.mxu0 %v3220
        %3252 = vmatpush1.bf16.msra.mxu0 %v3219
        %3253 = vmatprep.subr.bf16.mxu0 %v3222
        %3254 = vmatpush1.bf16.msra.mxu0 %v3221
        %3255 = vmatprep.subr.bf16.mxu0 %v3224
        %3256 = vmatpush1.bf16.msra.mxu0 %v3223
        %3257 = vmatprep.subr.bf16.mxu0 %v3226
        %3258 = vmatpush1.bf16.msra.mxu0 %v3225
        %3259 = vmatprep.subr.bf16.mxu0 %v3228
        %3260 = vmatpush1.bf16.msra.mxu0 %v3227
        %3261 = vmatprep.subr.bf16.mxu0 %v3230
        %3262 = vmatpush1.bf16.msra.mxu0 %v3229
        %3263 = vmatprep.mubr.bf16.mxu0 %v1846
        %3264 = vmatmul.mubr.bf16.gmra.mrb[0].mxu0 %v1845
        %v3265 = vpop.f32.mrb[0].mxu0
        %v3266 = vadd.f32 0.0, %v3265
        %v3267 = vpop.f32.mrb[0].mxu0
        %v3268 = vadd.f32 0.0, %v3267
        %v3269 = vpop.f32.mrb[0].mxu0
        %v3270 = vpop.f32.mrb[0].mxu0
        %3271 = vdwg.mxu0
        %v3272 = vadd.f32 %v1148, 0.0
        %v3273 = vcombine.high %v1897, %v1897
        %v3275 = vadd.f32 %v3272, %v3273
        %v3276 = vcombine.high %v1106, %v1108
        %v3278 = vunpack.c.l.s4 1966171168
        %v3279 = vunpack.c.0.s8 %v3278
        %v3280 = vlaneseq
        %v3281 = vshrl.u32 %v3280, 7
        %v3282 = vsub.s32 %v3279, %v3281
        %v3283 = vrot.slane %v3276, %v3282
        %v3285 = vunpack.c.l.s4 1966171168
        %v3286 = vunpack.c.0.s8 %v3285
        %v3287 = vlaneseq
        %v3288 = vshrl.u32 %v3287, 7
        %v3289 = vsub.s32 %v3286, %v3288
        %v3290 = vrot.slane %v3283, %v3289
        %v3292 = vadd.f32 %v1174, %v3290
        %vm3293 = vcmp.gt.f32.partialorder %v3275, -1.0
        %vm3294 = vcmp.lt.f32.partialorder %v3275, 16.0
        %vm3295 = vmand %vm3293, %vm3294
        %vm3296 = vcmp.gt.f32.partialorder %v3292, -1.0
        %vm3297 = vmand %vm3295, %vm3296
        %vm3298 = vcmp.lt.f32.partialorder %v3292, 16.0
        %vm3299 = vmand %vm3297, %vm3298
        %v3300 = vsel %vm3299, 1, 0
        %v3301 = vcvt.s32.f32 %v3300
        %v3302 = vfloor.f32 %v3275
        %v3303 = vfloor.f32 %v3292
        %v3304 = vsub.f32 %v3275, %v3302
        %v3305 = vsub.f32 %v3292, %v3303
        %v3306 = vsub.f32 1.0, %v3304
        %v3307 = vsub.f32 1.0, %v3305
        %v3308 = vcvt.f32.s32.to.zero.pseudo %v3302
        %v3309 = vcvt.f32.s32.to.zero.pseudo %v3303
        %v3310 = vlaneseq
        %v3311 = vshrl.u32 %v3310, 7
        %v3312 = vsub.s32 0, %v3311
        %v3313 = vrot.slane %v3308, %v3312
        %v3314 = vlaneseq
        %v3315 = vshrl.u32 %v3314, 7
        %v3316 = vsub.s32 1, %v3315
        %v3317 = vrot.slane %v3308, %v3316
        %vm3318 = vcmp.eq.s32.totalorder %v1152, %v3313
        %vm3319 = vcmp.eq.s32.totalorder %v1152, %v3317
        %vm3320 = vcmp.eq.s32.totalorder %v1153, %v3313
        %vm3321 = vcmp.eq.s32.totalorder %v1153, %v3317
        %v3323 = vlaneseq
        %v3324 = vshrl.u32 %v3323, 7
        %v3325 = vsub.s32 0, %v3324
        %v3326 = vrot.slane %v3306, %v3325
        %v3327 = vlaneseq
        %v3328 = vshrl.u32 %v3327, 7
        %v3329 = vsub.s32 1, %v3328
        %v3330 = vrot.slane %v3306, %v3329
        %v3333 = vsel %vm3318, %v3326, 0.0
        %v3334 = vsel %vm3319, %v3330, 0.0
        %v3335 = vsel %vm3320, %v3326, 0.0
        %v3336 = vsel %vm3321, %v3330, 0.0
        %v3337 = vadd.s32 %v3308, 1
        %v3338 = vlaneseq
        %v3339 = vshrl.u32 %v3338, 7
        %v3340 = vsub.s32 0, %v3339
        %v3341 = vrot.slane %v3337, %v3340
        %v3342 = vlaneseq
        %v3343 = vshrl.u32 %v3342, 7
        %v3344 = vsub.s32 1, %v3343
        %v3345 = vrot.slane %v3337, %v3344
        %vm3346 = vcmp.eq.s32.totalorder %v1152, %v3341
        %vm3347 = vcmp.eq.s32.totalorder %v1152, %v3345
        %vm3348 = vcmp.eq.s32.totalorder %v1153, %v3341
        %vm3349 = vcmp.eq.s32.totalorder %v1153, %v3345
        %v3351 = vlaneseq
        %v3352 = vshrl.u32 %v3351, 7
        %v3353 = vsub.s32 0, %v3352
        %v3354 = vrot.slane %v3304, %v3353
        %v3355 = vlaneseq
        %v3356 = vshrl.u32 %v3355, 7
        %v3357 = vsub.s32 1, %v3356
        %v3358 = vrot.slane %v3304, %v3357
        %v3361 = vsel %vm3346, %v3354, 0.0
        %v3362 = vsel %vm3347, %v3358, 0.0
        %v3363 = vsel %vm3348, %v3354, 0.0
        %v3364 = vsel %vm3349, %v3358, 0.0
        %v3365 = vadd.f32 %v3333, %v3361
        %v3366 = vadd.f32 %v3334, %v3362
        %v3367 = vadd.f32 %v3335, %v3363
        %v3368 = vadd.f32 %v3336, %v3364
        %v3369 = vcombine.high %v2675, %v2675
        %v3371 = vunpack.c.l.s4 1966171168
        %v3372 = vunpack.c.0.s8 %v3371
        %v3373 = vlaneseq
        %v3374 = vshrl.u32 %v3373, 7
        %v3375 = vsub.s32 %v3372, %v3374
        %v3376 = vrot.slane %v3369, %v3375
        %v3378 = vmul.f32 %v3301, %v3376
        %v3380 = vlaneseq
        %v3381 = vshrl.u32 %v3380, 7
        %v3382 = vsub.s32 0, %v3381
        %v3383 = vrot.slane %v3378, %v3382
        %v3384 = vlaneseq
        %v3385 = vshrl.u32 %v3384, 7
        %v3386 = vsub.s32 1, %v3385
        %v3387 = vrot.slane %v3378, %v3386
        %v3390 = vmul.f32 %v3365, %v3383
        %v3391 = vmul.f32 %v3366, %v3387
        %v3392 = vmul.f32 %v3367, %v3383
        %v3393 = vmul.f32 %v3368, %v3387
        %v3394 = vpack.c.bf16 %v3392, %v3390
        %v3395 = vpack.c.bf16 %v3393, %v3391
        %v3396 = vlaneseq
        %v3397 = vshrl.u32 %v3396, 7
        %v3398 = vsub.s32 0, %v3397
        %v3399 = vrot.slane %v3309, %v3398
        %v3400 = vlaneseq
        %v3401 = vshrl.u32 %v3400, 7
        %v3402 = vsub.s32 1, %v3401
        %v3403 = vrot.slane %v3309, %v3402
        %vm3404 = vcmp.eq.s32.totalorder %v1152, %v3399
        %vm3405 = vcmp.eq.s32.totalorder %v1152, %v3403
        %vm3406 = vcmp.eq.s32.totalorder %v1153, %v3399
        %vm3407 = vcmp.eq.s32.totalorder %v1153, %v3403
        %v3409 = vlaneseq
        %v3410 = vshrl.u32 %v3409, 7
        %v3411 = vsub.s32 0, %v3410
        %v3412 = vrot.slane %v3307, %v3411
        %v3413 = vlaneseq
        %v3414 = vshrl.u32 %v3413, 7
        %v3415 = vsub.s32 1, %v3414
        %v3416 = vrot.slane %v3307, %v3415
        %v3419 = vsel %vm3404, %v3412, 0.0
        %v3420 = vsel %vm3405, %v3416, 0.0
        %v3421 = vsel %vm3406, %v3412, 0.0
        %v3422 = vsel %vm3407, %v3416, 0.0
        %v3423 = vadd.s32 %v3309, 1
        %v3424 = vlaneseq
        %v3425 = vshrl.u32 %v3424, 7
        %v3426 = vsub.s32 0, %v3425
        %v3427 = vrot.slane %v3423, %v3426
        %v3428 = vlaneseq
        %v3429 = vshrl.u32 %v3428, 7
        %v3430 = vsub.s32 1, %v3429
        %v3431 = vrot.slane %v3423, %v3430
        %vm3432 = vcmp.eq.s32.totalorder %v1152, %v3427
        %vm3433 = vcmp.eq.s32.totalorder %v1152, %v3431
        %vm3434 = vcmp.eq.s32.totalorder %v1153, %v3427
        %vm3435 = vcmp.eq.s32.totalorder %v1153, %v3431
        %v3437 = vlaneseq
        %v3438 = vshrl.u32 %v3437, 7
        %v3439 = vsub.s32 0, %v3438
        %v3440 = vrot.slane %v3305, %v3439
        %v3441 = vlaneseq
        %v3442 = vshrl.u32 %v3441, 7
        %v3443 = vsub.s32 1, %v3442
        %v3444 = vrot.slane %v3305, %v3443
        %v3447 = vsel %vm3432, %v3440, 0.0
        %v3448 = vsel %vm3433, %v3444, 0.0
        %v3449 = vsel %vm3434, %v3440, 0.0
        %v3450 = vsel %vm3435, %v3444, 0.0
        %v3451 = vadd.f32 %v3419, %v3447
        %v3452 = vadd.f32 %v3420, %v3448
        %v3453 = vadd.f32 %v3421, %v3449
        %v3454 = vadd.f32 %v3422, %v3450
        %v3455 = vpack.c.bf16 %v3453, %v3451
        %v3456 = vpack.c.bf16 %v3454, %v3452
        %v3459 = vcombine.low %v3394, %v3395
        %v3460 = vcombine.high %v3394, %v3395
        %v3462 = vunpack.c.l.s4 1966171168
        %v3463 = vunpack.c.0.s8 %v3462
        %v3464 = vlaneseq
        %v3465 = vshrl.u32 %v3464, 7
        %v3466 = vsub.s32 %v3463, %v3465
        %v3467 = vrot.slane %v3459, %v3466
        %v3469 = vunpack.c.l.s4 1966171168
        %v3470 = vunpack.c.0.s8 %v3469
        %v3471 = vlaneseq
        %v3472 = vshrl.u32 %v3471, 7
        %v3473 = vsub.s32 %v3470, %v3472
        %v3474 = vrot.slane %v3460, %v3473
        %v3475 = vcombine.high %v3467, %v3467
        %v3476 = vcombine.high %v3474, %v3474
        %v3478 = vunpack.c.l.s4 1966171168
        %v3479 = vunpack.c.0.s8 %v3478
        %v3480 = vlaneseq
        %v3481 = vshrl.u32 %v3480, 7
        %v3482 = vsub.s32 %v3479, %v3481
        %v3483 = vrot.slane %v3467, %v3482
        %v3485 = vunpack.c.l.s4 1966171168
        %v3486 = vunpack.c.0.s8 %v3485
        %v3487 = vlaneseq
        %v3488 = vshrl.u32 %v3487, 7
        %v3489 = vsub.s32 %v3486, %v3488
        %v3490 = vrot.slane %v3474, %v3489
        %v3492 = vunpack.c.l.s4 1966171168
        %v3493 = vunpack.c.0.s8 %v3492
        %v3494 = vlaneseq
        %v3495 = vshrl.u32 %v3494, 7
        %v3496 = vsub.s32 %v3493, %v3495
        %v3497 = vrot.slane %v3475, %v3496
        %v3499 = vunpack.c.l.s4 1966171168
        %v3500 = vunpack.c.0.s8 %v3499
        %v3501 = vlaneseq
        %v3502 = vshrl.u32 %v3501, 7
        %v3503 = vsub.s32 %v3500, %v3502
        %v3504 = vrot.slane %v3476, %v3503
        %v3505 = vcombine.high %v3483, %v3483
        %v3506 = vcombine.high %v3490, %v3490
        %v3507 = vcombine.high %v3497, %v3497
        %v3508 = vcombine.high %v3504, %v3504
        %v3509 = vunpack.i.l.s16 %v3483
        %v3510 = vunpack.i.h.s16 %v3483
        %v3511 = vunpack.i.l.s16 %v3497
        %v3512 = vunpack.i.h.s16 %v3497
        %v3513 = vunpack.i.l.s16 %v3505
        %v3514 = vunpack.i.h.s16 %v3505
        %v3515 = vunpack.i.l.s16 %v3507
        %v3516 = vunpack.i.h.s16 %v3507
        %v3517 = vunpack.i.l.s16 %v3490
        %v3518 = vunpack.i.h.s16 %v3490
        %v3519 = vunpack.i.l.s16 %v3504
        %v3520 = vunpack.i.h.s16 %v3504
        %v3521 = vunpack.i.l.s16 %v3506
        %v3522 = vunpack.i.h.s16 %v3506
        %v3523 = vunpack.i.l.s16 %v3508
        %v3524 = vunpack.i.h.s16 %v3508
        %v3525 = vpack.i.b16 %v3509, %v3509
        %v3526 = vpack.i.b16 %v3510, %v3510
        %v3527 = vpack.i.b16 %v3511, %v3511
        %v3528 = vpack.i.b16 %v3512, %v3512
        %v3529 = vpack.i.b16 %v3513, %v3513
        %v3530 = vpack.i.b16 %v3514, %v3514
        %v3531 = vpack.i.b16 %v3515, %v3515
        %v3532 = vpack.i.b16 %v3516, %v3516
        %v3533 = vpack.i.b16 %v3517, %v3517
        %v3534 = vpack.i.b16 %v3518, %v3518
        %v3535 = vpack.i.b16 %v3519, %v3519
        %v3536 = vpack.i.b16 %v3520, %v3520
        %v3537 = vpack.i.b16 %v3521, %v3521
        %v3538 = vpack.i.b16 %v3522, %v3522
        %v3539 = vpack.i.b16 %v3523, %v3523
        %v3540 = vpack.i.b16 %v3524, %v3524
        %v3541 = vlaneseq
        %v3542 = vshrl.u32 %v3541, 7
        %v3543 = vsub.s32 0, %v3542
        %v3544 = vrot.slane %v3525, %v3543
        %v3545 = vlaneseq
        %v3546 = vshrl.u32 %v3545, 7
        %v3547 = vsub.s32 1, %v3546
        %v3548 = vrot.slane %v3525, %v3547
        %v3549 = vlaneseq
        %v3550 = vshrl.u32 %v3549, 7
        %v3551 = vsub.s32 0, %v3550
        %v3552 = vrot.slane %v3526, %v3551
        %v3553 = vlaneseq
        %v3554 = vshrl.u32 %v3553, 7
        %v3555 = vsub.s32 1, %v3554
        %v3556 = vrot.slane %v3526, %v3555
        %v3557 = vlaneseq
        %v3558 = vshrl.u32 %v3557, 7
        %v3559 = vsub.s32 0, %v3558
        %v3560 = vrot.slane %v3527, %v3559
        %v3561 = vlaneseq
        %v3562 = vshrl.u32 %v3561, 7
        %v3563 = vsub.s32 1, %v3562
        %v3564 = vrot.slane %v3527, %v3563
        %v3565 = vlaneseq
        %v3566 = vshrl.u32 %v3565, 7
        %v3567 = vsub.s32 0, %v3566
        %v3568 = vrot.slane %v3528, %v3567
        %v3569 = vlaneseq
        %v3570 = vshrl.u32 %v3569, 7
        %v3571 = vsub.s32 1, %v3570
        %v3572 = vrot.slane %v3528, %v3571
        %v3573 = vlaneseq
        %v3574 = vshrl.u32 %v3573, 7
        %v3575 = vsub.s32 0, %v3574
        %v3576 = vrot.slane %v3529, %v3575
        %v3577 = vlaneseq
        %v3578 = vshrl.u32 %v3577, 7
        %v3579 = vsub.s32 1, %v3578
        %v3580 = vrot.slane %v3529, %v3579
        %v3581 = vlaneseq
        %v3582 = vshrl.u32 %v3581, 7
        %v3583 = vsub.s32 0, %v3582
        %v3584 = vrot.slane %v3530, %v3583
        %v3585 = vlaneseq
        %v3586 = vshrl.u32 %v3585, 7
        %v3587 = vsub.s32 1, %v3586
        %v3588 = vrot.slane %v3530, %v3587
        %v3589 = vlaneseq
        %v3590 = vshrl.u32 %v3589, 7
        %v3591 = vsub.s32 0, %v3590
        %v3592 = vrot.slane %v3531, %v3591
        %v3593 = vlaneseq
        %v3594 = vshrl.u32 %v3593, 7
        %v3595 = vsub.s32 1, %v3594
        %v3596 = vrot.slane %v3531, %v3595
        %v3597 = vlaneseq
        %v3598 = vshrl.u32 %v3597, 7
        %v3599 = vsub.s32 0, %v3598
        %v3600 = vrot.slane %v3532, %v3599
        %v3601 = vlaneseq
        %v3602 = vshrl.u32 %v3601, 7
        %v3603 = vsub.s32 1, %v3602
        %v3604 = vrot.slane %v3532, %v3603
        %v3605 = vlaneseq
        %v3606 = vshrl.u32 %v3605, 7
        %v3607 = vsub.s32 0, %v3606
        %v3608 = vrot.slane %v3533, %v3607
        %v3609 = vlaneseq
        %v3610 = vshrl.u32 %v3609, 7
        %v3611 = vsub.s32 1, %v3610
        %v3612 = vrot.slane %v3533, %v3611
        %v3613 = vlaneseq
        %v3614 = vshrl.u32 %v3613, 7
        %v3615 = vsub.s32 0, %v3614
        %v3616 = vrot.slane %v3534, %v3615
        %v3617 = vlaneseq
        %v3618 = vshrl.u32 %v3617, 7
        %v3619 = vsub.s32 1, %v3618
        %v3620 = vrot.slane %v3534, %v3619
        %v3621 = vlaneseq
        %v3622 = vshrl.u32 %v3621, 7
        %v3623 = vsub.s32 0, %v3622
        %v3624 = vrot.slane %v3535, %v3623
        %v3625 = vlaneseq
        %v3626 = vshrl.u32 %v3625, 7
        %v3627 = vsub.s32 1, %v3626
        %v3628 = vrot.slane %v3535, %v3627
        %v3629 = vlaneseq
        %v3630 = vshrl.u32 %v3629, 7
        %v3631 = vsub.s32 0, %v3630
        %v3632 = vrot.slane %v3536, %v3631
        %v3633 = vlaneseq
        %v3634 = vshrl.u32 %v3633, 7
        %v3635 = vsub.s32 1, %v3634
        %v3636 = vrot.slane %v3536, %v3635
        %v3637 = vlaneseq
        %v3638 = vshrl.u32 %v3637, 7
        %v3639 = vsub.s32 0, %v3638
        %v3640 = vrot.slane %v3537, %v3639
        %v3641 = vlaneseq
        %v3642 = vshrl.u32 %v3641, 7
        %v3643 = vsub.s32 1, %v3642
        %v3644 = vrot.slane %v3537, %v3643
        %v3645 = vlaneseq
        %v3646 = vshrl.u32 %v3645, 7
        %v3647 = vsub.s32 0, %v3646
        %v3648 = vrot.slane %v3538, %v3647
        %v3649 = vlaneseq
        %v3650 = vshrl.u32 %v3649, 7
        %v3651 = vsub.s32 1, %v3650
        %v3652 = vrot.slane %v3538, %v3651
        %v3653 = vlaneseq
        %v3654 = vshrl.u32 %v3653, 7
        %v3655 = vsub.s32 0, %v3654
        %v3656 = vrot.slane %v3539, %v3655
        %v3657 = vlaneseq
        %v3658 = vshrl.u32 %v3657, 7
        %v3659 = vsub.s32 1, %v3658
        %v3660 = vrot.slane %v3539, %v3659
        %v3661 = vlaneseq
        %v3662 = vshrl.u32 %v3661, 7
        %v3663 = vsub.s32 0, %v3662
        %v3664 = vrot.slane %v3540, %v3663
        %v3665 = vlaneseq
        %v3666 = vshrl.u32 %v3665, 7
        %v3667 = vsub.s32 1, %v3666
        %v3668 = vrot.slane %v3540, %v3667
        %v3670 = vpack.i.b16 %v3544, %v3544
        %v3672 = vlaneseq
        %v3673 = vshrl.u32 %v3672, 7
        %v3674 = vsub.s32 0, %v3673
        %v3675 = vrot.slane %v3670, %v3674
        %v3677 = vpack.i.b16 %v3548, %v3548
        %v3679 = vlaneseq
        %v3680 = vshrl.u32 %v3679, 7
        %v3681 = vsub.s32 0, %v3680
        %v3682 = vrot.slane %v3677, %v3681
        %v3684 = vpack.i.b16 %v3552, %v3552
        %v3686 = vlaneseq
        %v3687 = vshrl.u32 %v3686, 7
        %v3688 = vsub.s32 0, %v3687
        %v3689 = vrot.slane %v3684, %v3688
        %v3691 = vpack.i.b16 %v3556, %v3556
        %v3693 = vlaneseq
        %v3694 = vshrl.u32 %v3693, 7
        %v3695 = vsub.s32 0, %v3694
        %v3696 = vrot.slane %v3691, %v3695
        %v3698 = vpack.i.b16 %v3560, %v3560
        %v3700 = vlaneseq
        %v3701 = vshrl.u32 %v3700, 7
        %v3702 = vsub.s32 0, %v3701
        %v3703 = vrot.slane %v3698, %v3702
        %v3705 = vpack.i.b16 %v3564, %v3564
        %v3707 = vlaneseq
        %v3708 = vshrl.u32 %v3707, 7
        %v3709 = vsub.s32 0, %v3708
        %v3710 = vrot.slane %v3705, %v3709
        %v3712 = vpack.i.b16 %v3568, %v3568
        %v3714 = vlaneseq
        %v3715 = vshrl.u32 %v3714, 7
        %v3716 = vsub.s32 0, %v3715
        %v3717 = vrot.slane %v3712, %v3716
        %v3719 = vpack.i.b16 %v3572, %v3572
        %v3721 = vlaneseq
        %v3722 = vshrl.u32 %v3721, 7
        %v3723 = vsub.s32 0, %v3722
        %v3724 = vrot.slane %v3719, %v3723
        %v3726 = vpack.i.b16 %v3576, %v3576
        %v3728 = vlaneseq
        %v3729 = vshrl.u32 %v3728, 7
        %v3730 = vsub.s32 0, %v3729
        %v3731 = vrot.slane %v3726, %v3730
        %v3733 = vpack.i.b16 %v3580, %v3580
        %v3735 = vlaneseq
        %v3736 = vshrl.u32 %v3735, 7
        %v3737 = vsub.s32 0, %v3736
        %v3738 = vrot.slane %v3733, %v3737
        %v3740 = vpack.i.b16 %v3584, %v3584
        %v3742 = vlaneseq
        %v3743 = vshrl.u32 %v3742, 7
        %v3744 = vsub.s32 0, %v3743
        %v3745 = vrot.slane %v3740, %v3744
        %v3747 = vpack.i.b16 %v3588, %v3588
        %v3749 = vlaneseq
        %v3750 = vshrl.u32 %v3749, 7
        %v3751 = vsub.s32 0, %v3750
        %v3752 = vrot.slane %v3747, %v3751
        %v3754 = vpack.i.b16 %v3592, %v3592
        %v3756 = vlaneseq
        %v3757 = vshrl.u32 %v3756, 7
        %v3758 = vsub.s32 0, %v3757
        %v3759 = vrot.slane %v3754, %v3758
        %v3761 = vpack.i.b16 %v3596, %v3596
        %v3763 = vlaneseq
        %v3764 = vshrl.u32 %v3763, 7
        %v3765 = vsub.s32 0, %v3764
        %v3766 = vrot.slane %v3761, %v3765
        %v3768 = vpack.i.b16 %v3600, %v3600
        %v3770 = vlaneseq
        %v3771 = vshrl.u32 %v3770, 7
        %v3772 = vsub.s32 0, %v3771
        %v3773 = vrot.slane %v3768, %v3772
        %v3775 = vpack.i.b16 %v3604, %v3604
        %v3777 = vlaneseq
        %v3778 = vshrl.u32 %v3777, 7
        %v3779 = vsub.s32 0, %v3778
        %v3780 = vrot.slane %v3775, %v3779
        %v3782 = vpack.i.b16 %v3608, %v3608
        %v3784 = vlaneseq
        %v3785 = vshrl.u32 %v3784, 7
        %v3786 = vsub.s32 0, %v3785
        %v3787 = vrot.slane %v3782, %v3786
        %v3789 = vpack.i.b16 %v3612, %v3612
        %v3791 = vlaneseq
        %v3792 = vshrl.u32 %v3791, 7
        %v3793 = vsub.s32 0, %v3792
        %v3794 = vrot.slane %v3789, %v3793
        %v3796 = vpack.i.b16 %v3616, %v3616
        %v3798 = vlaneseq
        %v3799 = vshrl.u32 %v3798, 7
        %v3800 = vsub.s32 0, %v3799
        %v3801 = vrot.slane %v3796, %v3800
        %v3803 = vpack.i.b16 %v3620, %v3620
        %v3805 = vlaneseq
        %v3806 = vshrl.u32 %v3805, 7
        %v3807 = vsub.s32 0, %v3806
        %v3808 = vrot.slane %v3803, %v3807
        %v3810 = vpack.i.b16 %v3624, %v3624
        %v3812 = vlaneseq
        %v3813 = vshrl.u32 %v3812, 7
        %v3814 = vsub.s32 0, %v3813
        %v3815 = vrot.slane %v3810, %v3814
        %v3817 = vpack.i.b16 %v3628, %v3628
        %v3819 = vlaneseq
        %v3820 = vshrl.u32 %v3819, 7
        %v3821 = vsub.s32 0, %v3820
        %v3822 = vrot.slane %v3817, %v3821
        %v3824 = vpack.i.b16 %v3632, %v3632
        %v3826 = vlaneseq
        %v3827 = vshrl.u32 %v3826, 7
        %v3828 = vsub.s32 0, %v3827
        %v3829 = vrot.slane %v3824, %v3828
        %v3831 = vpack.i.b16 %v3636, %v3636
        %v3833 = vlaneseq
        %v3834 = vshrl.u32 %v3833, 7
        %v3835 = vsub.s32 0, %v3834
        %v3836 = vrot.slane %v3831, %v3835
        %v3838 = vpack.i.b16 %v3640, %v3640
        %v3840 = vlaneseq
        %v3841 = vshrl.u32 %v3840, 7
        %v3842 = vsub.s32 0, %v3841
        %v3843 = vrot.slane %v3838, %v3842
        %v3845 = vpack.i.b16 %v3644, %v3644
        %v3847 = vlaneseq
        %v3848 = vshrl.u32 %v3847, 7
        %v3849 = vsub.s32 0, %v3848
        %v3850 = vrot.slane %v3845, %v3849
        %v3852 = vpack.i.b16 %v3648, %v3648
        %v3854 = vlaneseq
        %v3855 = vshrl.u32 %v3854, 7
        %v3856 = vsub.s32 0, %v3855
        %v3857 = vrot.slane %v3852, %v3856
        %v3859 = vpack.i.b16 %v3652, %v3652
        %v3861 = vlaneseq
        %v3862 = vshrl.u32 %v3861, 7
        %v3863 = vsub.s32 0, %v3862
        %v3864 = vrot.slane %v3859, %v3863
        %v3866 = vpack.i.b16 %v3656, %v3656
        %v3868 = vlaneseq
        %v3869 = vshrl.u32 %v3868, 7
        %v3870 = vsub.s32 0, %v3869
        %v3871 = vrot.slane %v3866, %v3870
        %v3873 = vpack.i.b16 %v3660, %v3660
        %v3875 = vlaneseq
        %v3876 = vshrl.u32 %v3875, 7
        %v3877 = vsub.s32 0, %v3876
        %v3878 = vrot.slane %v3873, %v3877
        %v3880 = vpack.i.b16 %v3664, %v3664
        %v3882 = vlaneseq
        %v3883 = vshrl.u32 %v3882, 7
        %v3884 = vsub.s32 0, %v3883
        %v3885 = vrot.slane %v3880, %v3884
        %v3887 = vpack.i.b16 %v3668, %v3668
        %v3889 = vlaneseq
        %v3890 = vshrl.u32 %v3889, 7
        %v3891 = vsub.s32 0, %v3890
        %v3892 = vrot.slane %v3887, %v3891
        %v3893 = vmul.bf16 %v3675, %v3455
        %v3894 = vmul.bf16 %v3682, %v3456
        %v3895 = vmul.bf16 %v3689, %v3455
        %v3896 = vmul.bf16 %v3696, %v3456
        %v3897 = vmul.bf16 %v3703, %v3455
        %v3898 = vmul.bf16 %v3710, %v3456
        %v3899 = vmul.bf16 %v3717, %v3455
        %v3900 = vmul.bf16 %v3724, %v3456
        %v3901 = vmul.bf16 %v3731, %v3455
        %v3902 = vmul.bf16 %v3738, %v3456
        %v3903 = vmul.bf16 %v3745, %v3455
        %v3904 = vmul.bf16 %v3752, %v3456
        %v3905 = vmul.bf16 %v3759, %v3455
        %v3906 = vmul.bf16 %v3766, %v3456
        %v3907 = vmul.bf16 %v3773, %v3455
        %v3908 = vmul.bf16 %v3780, %v3456
        %v3909 = vmul.bf16 %v3787, %v3455
        %v3910 = vmul.bf16 %v3794, %v3456
        %v3911 = vmul.bf16 %v3801, %v3455
        %v3912 = vmul.bf16 %v3808, %v3456
        %v3913 = vmul.bf16 %v3815, %v3455
        %v3914 = vmul.bf16 %v3822, %v3456
        %v3915 = vmul.bf16 %v3829, %v3455
        %v3916 = vmul.bf16 %v3836, %v3456
        %v3917 = vmul.bf16 %v3843, %v3455
        %v3918 = vmul.bf16 %v3850, %v3456
        %v3919 = vmul.bf16 %v3857, %v3455
        %v3920 = vmul.bf16 %v3864, %v3456
        %v3921 = vmul.bf16 %v3871, %v3455
        %v3922 = vmul.bf16 %v3878, %v3456
        %v3923 = vmul.bf16 %v3885, %v3455
        %v3924 = vmul.bf16 %v3892, %v3456
        %3925 = vmatprep.subr.bf16.mxu0 %v3894
        %3926 = vmatpush1.bf16.msra.mxu0 %v3893
        %3927 = vmatprep.subr.bf16.mxu0 %v3896
        %3928 = vmatpush1.bf16.msra.mxu0 %v3895
        %3929 = vmatprep.subr.bf16.mxu0 %v3898
        %3930 = vmatpush1.bf16.msra.mxu0 %v3897
        %3931 = vmatprep.subr.bf16.mxu0 %v3900
        %3932 = vmatpush1.bf16.msra.mxu0 %v3899
        %3933 = vmatprep.subr.bf16.mxu0 %v3902
        %3934 = vmatpush1.bf16.msra.mxu0 %v3901
        %3935 = vmatprep.subr.bf16.mxu0 %v3904
        %3936 = vmatpush1.bf16.msra.mxu0 %v3903
        %3937 = vmatprep.subr.bf16.mxu0 %v3906
        %3938 = vmatpush1.bf16.msra.mxu0 %v3905
        %3939 = vmatprep.subr.bf16.mxu0 %v3908
        %3940 = vmatpush1.bf16.msra.mxu0 %v3907
        %3941 = vmatprep.subr.bf16.mxu0 %v3910
        %3942 = vmatpush1.bf16.msra.mxu0 %v3909
        %3943 = vmatprep.subr.bf16.mxu0 %v3912
        %3944 = vmatpush1.bf16.msra.mxu0 %v3911
        %3945 = vmatprep.subr.bf16.mxu0 %v3914
        %3946 = vmatpush1.bf16.msra.mxu0 %v3913
        %3947 = vmatprep.subr.bf16.mxu0 %v3916
        %3948 = vmatpush1.bf16.msra.mxu0 %v3915
        %3949 = vmatprep.subr.bf16.mxu0 %v3918
        %3950 = vmatpush1.bf16.msra.mxu0 %v3917
        %3951 = vmatprep.subr.bf16.mxu0 %v3920
        %3952 = vmatpush1.bf16.msra.mxu0 %v3919
        %3953 = vmatprep.subr.bf16.mxu0 %v3922
        %3954 = vmatpush1.bf16.msra.mxu0 %v3921
        %3955 = vmatprep.subr.bf16.mxu0 %v3924
        %3956 = vmatpush1.bf16.msra.mxu0 %v3923
        %3957 = vmatprep.mubr.bf16.mxu0 %v1846
        %3958 = vmatmul.mubr.bf16.gmra.mrb[0].mxu0 %v1845
        %v3959 = vpop.f32.mrb[0].mxu0
        %v3960 = vadd.f32 0.0, %v3959
        %v3961 = vpop.f32.mrb[0].mxu0
        %v3962 = vadd.f32 0.0, %v3961
        %v3963 = vpop.f32.mrb[0].mxu0
        %v3964 = vpop.f32.mrb[0].mxu0
        %3965 = vdwg.mxu0
        %v3966 = vcombine.high %v1099, %v1101
        %v3968 = vunpack.c.l.s4 1966171168
        %v3969 = vunpack.c.0.s8 %v3968
        %v3970 = vlaneseq
        %v3971 = vshrl.u32 %v3970, 7
        %v3972 = vsub.s32 %v3969, %v3971
        %v3973 = vrot.slane %v3966, %v3972
        %v3975 = vunpack.c.l.s4 1966171168
        %v3976 = vunpack.c.0.s8 %v3975
        %v3977 = vlaneseq
        %v3978 = vshrl.u32 %v3977, 7
        %v3979 = vsub.s32 %v3976, %v3978
        %v3980 = vrot.slane %v3973, %v3979
        %v3982 = vadd.f32 %v3272, %v3980
        %v3983 = vcombine.high %v3283, %v3283
        %v3985 = vunpack.c.l.s4 1966171168
        %v3986 = vunpack.c.0.s8 %v3985
        %v3987 = vlaneseq
        %v3988 = vshrl.u32 %v3987, 7
        %v3989 = vsub.s32 %v3986, %v3988
        %v3990 = vrot.slane %v3983, %v3989
        %v3992 = vadd.f32 %v1900, %v3990
        %vm3993 = vcmp.gt.f32.partialorder %v3982, -1.0
        %vm3994 = vcmp.lt.f32.partialorder %v3982, 16.0
        %vm3995 = vmand %vm3993, %vm3994
        %vm3996 = vcmp.gt.f32.partialorder %v3992, -1.0
        %vm3997 = vmand %vm3995, %vm3996
        %vm3998 = vcmp.lt.f32.partialorder %v3992, 16.0
        %vm3999 = vmand %vm3997, %vm3998
        %v4000 = vsel %vm3999, 1, 0
        %v4001 = vcvt.s32.f32 %v4000
        %v4002 = vfloor.f32 %v3982
        %v4003 = vfloor.f32 %v3992
        %v4004 = vsub.f32 %v3982, %v4002
        %v4005 = vsub.f32 %v3992, %v4003
        %v4006 = vsub.f32 1.0, %v4004
        %v4007 = vsub.f32 1.0, %v4005
        %v4008 = vcvt.f32.s32.to.zero.pseudo %v4002
        %v4009 = vcvt.f32.s32.to.zero.pseudo %v4003
        %v4010 = vlaneseq
        %v4011 = vshrl.u32 %v4010, 7
        %v4012 = vsub.s32 0, %v4011
        %v4013 = vrot.slane %v4008, %v4012
        %v4014 = vlaneseq
        %v4015 = vshrl.u32 %v4014, 7
        %v4016 = vsub.s32 1, %v4015
        %v4017 = vrot.slane %v4008, %v4016
        %vm4018 = vcmp.eq.s32.totalorder %v1152, %v4013
        %vm4019 = vcmp.eq.s32.totalorder %v1152, %v4017
        %vm4020 = vcmp.eq.s32.totalorder %v1153, %v4013
        %vm4021 = vcmp.eq.s32.totalorder %v1153, %v4017
        %v4023 = vlaneseq
        %v4024 = vshrl.u32 %v4023, 7
        %v4025 = vsub.s32 0, %v4024
        %v4026 = vrot.slane %v4006, %v4025
        %v4027 = vlaneseq
        %v4028 = vshrl.u32 %v4027, 7
        %v4029 = vsub.s32 1, %v4028
        %v4030 = vrot.slane %v4006, %v4029
        %v4033 = vsel %vm4018, %v4026, 0.0
        %v4034 = vsel %vm4019, %v4030, 0.0
        %v4035 = vsel %vm4020, %v4026, 0.0
        %v4036 = vsel %vm4021, %v4030, 0.0
        %v4037 = vadd.s32 %v4008, 1
        %v4038 = vlaneseq
        %v4039 = vshrl.u32 %v4038, 7
        %v4040 = vsub.s32 0, %v4039
        %v4041 = vrot.slane %v4037, %v4040
        %v4042 = vlaneseq
        %v4043 = vshrl.u32 %v4042, 7
        %v4044 = vsub.s32 1, %v4043
        %v4045 = vrot.slane %v4037, %v4044
        %vm4046 = vcmp.eq.s32.totalorder %v1152, %v4041
        %vm4047 = vcmp.eq.s32.totalorder %v1152, %v4045
        %vm4048 = vcmp.eq.s32.totalorder %v1153, %v4041
        %vm4049 = vcmp.eq.s32.totalorder %v1153, %v4045
        %v4051 = vlaneseq
        %v4052 = vshrl.u32 %v4051, 7
        %v4053 = vsub.s32 0, %v4052
        %v4054 = vrot.slane %v4004, %v4053
        %v4055 = vlaneseq
        %v4056 = vshrl.u32 %v4055, 7
        %v4057 = vsub.s32 1, %v4056
        %v4058 = vrot.slane %v4004, %v4057
        %v4061 = vsel %vm4046, %v4054, 0.0
        %v4062 = vsel %vm4047, %v4058, 0.0
        %v4063 = vsel %vm4048, %v4054, 0.0
        %v4064 = vsel %vm4049, %v4058, 0.0
        %v4065 = vadd.f32 %v4033, %v4061
        %v4066 = vadd.f32 %v4034, %v4062
        %v4067 = vadd.f32 %v4035, %v4063
        %v4068 = vadd.f32 %v4036, %v4064
        %v4069 = vcombine.high %v2682, %v2682
        %v4071 = vmul.f32 %v4001, %v4069
        %v4073 = vlaneseq
        %v4074 = vshrl.u32 %v4073, 7
        %v4075 = vsub.s32 0, %v4074
        %v4076 = vrot.slane %v4071, %v4075
        %v4077 = vlaneseq
        %v4078 = vshrl.u32 %v4077, 7
        %v4079 = vsub.s32 1, %v4078
        %v4080 = vrot.slane %v4071, %v4079
        %v4083 = vmul.f32 %v4065, %v4076
        %v4084 = vmul.f32 %v4066, %v4080
        %v4085 = vmul.f32 %v4067, %v4076
        %v4086 = vmul.f32 %v4068, %v4080
        %v4087 = vpack.c.bf16 %v4085, %v4083
        %v4088 = vpack.c.bf16 %v4086, %v4084
        %v4089 = vlaneseq
        %v4090 = vshrl.u32 %v4089, 7
        %v4091 = vsub.s32 0, %v4090
        %v4092 = vrot.slane %v4009, %v4091
        %v4093 = vlaneseq
        %v4094 = vshrl.u32 %v4093, 7
        %v4095 = vsub.s32 1, %v4094
        %v4096 = vrot.slane %v4009, %v4095
        %vm4097 = vcmp.eq.s32.totalorder %v1152, %v4092
        %vm4098 = vcmp.eq.s32.totalorder %v1152, %v4096
        %vm4099 = vcmp.eq.s32.totalorder %v1153, %v4092
        %vm4100 = vcmp.eq.s32.totalorder %v1153, %v4096
        %v4102 = vlaneseq
        %v4103 = vshrl.u32 %v4102, 7
        %v4104 = vsub.s32 0, %v4103
        %v4105 = vrot.slane %v4007, %v4104
        %v4106 = vlaneseq
        %v4107 = vshrl.u32 %v4106, 7
        %v4108 = vsub.s32 1, %v4107
        %v4109 = vrot.slane %v4007, %v4108
        %v4112 = vsel %vm4097, %v4105, 0.0
        %v4113 = vsel %vm4098, %v4109, 0.0
        %v4114 = vsel %vm4099, %v4105, 0.0
        %v4115 = vsel %vm4100, %v4109, 0.0
        %v4116 = vadd.s32 %v4009, 1
        %v4117 = vlaneseq
        %v4118 = vshrl.u32 %v4117, 7
        %v4119 = vsub.s32 0, %v4118
        %v4120 = vrot.slane %v4116, %v4119
        %v4121 = vlaneseq
        %v4122 = vshrl.u32 %v4121, 7
        %v4123 = vsub.s32 1, %v4122
        %v4124 = vrot.slane %v4116, %v4123
        %vm4125 = vcmp.eq.s32.totalorder %v1152, %v4120
        %vm4126 = vcmp.eq.s32.totalorder %v1152, %v4124
        %vm4127 = vcmp.eq.s32.totalorder %v1153, %v4120
        %vm4128 = vcmp.eq.s32.totalorder %v1153, %v4124
        %v4130 = vlaneseq
        %v4131 = vshrl.u32 %v4130, 7
        %v4132 = vsub.s32 0, %v4131
        %v4133 = vrot.slane %v4005, %v4132
        %v4134 = vlaneseq
        %v4135 = vshrl.u32 %v4134, 7
        %v4136 = vsub.s32 1, %v4135
        %v4137 = vrot.slane %v4005, %v4136
        %v4140 = vsel %vm4125, %v4133, 0.0
        %v4141 = vsel %vm4126, %v4137, 0.0
        %v4142 = vsel %vm4127, %v4133, 0.0
        %v4143 = vsel %vm4128, %v4137, 0.0
        %v4144 = vadd.f32 %v4112, %v4140
        %v4145 = vadd.f32 %v4113, %v4141
        %v4146 = vadd.f32 %v4114, %v4142
        %v4147 = vadd.f32 %v4115, %v4143
        %v4148 = vpack.c.bf16 %v4146, %v4144
        %v4149 = vpack.c.bf16 %v4147, %v4145
        %v4152 = vcombine.low %v4087, %v4088
        %v4153 = vcombine.high %v4087, %v4088
        %v4155 = vunpack.c.l.s4 1966171168
        %v4156 = vunpack.c.0.s8 %v4155
        %v4157 = vlaneseq
        %v4158 = vshrl.u32 %v4157, 7
        %v4159 = vsub.s32 %v4156, %v4158
        %v4160 = vrot.slane %v4152, %v4159
        %v4162 = vunpack.c.l.s4 1966171168
        %v4163 = vunpack.c.0.s8 %v4162
        %v4164 = vlaneseq
        %v4165 = vshrl.u32 %v4164, 7
        %v4166 = vsub.s32 %v4163, %v4165
        %v4167 = vrot.slane %v4153, %v4166
        %v4168 = vcombine.high %v4160, %v4160
        %v4169 = vcombine.high %v4167, %v4167
        %v4171 = vunpack.c.l.s4 1966171168
        %v4172 = vunpack.c.0.s8 %v4171
        %v4173 = vlaneseq
        %v4174 = vshrl.u32 %v4173, 7
        %v4175 = vsub.s32 %v4172, %v4174
        %v4176 = vrot.slane %v4160, %v4175
        %v4178 = vunpack.c.l.s4 1966171168
        %v4179 = vunpack.c.0.s8 %v4178
        %v4180 = vlaneseq
        %v4181 = vshrl.u32 %v4180, 7
        %v4182 = vsub.s32 %v4179, %v4181
        %v4183 = vrot.slane %v4167, %v4182
        %v4185 = vunpack.c.l.s4 1966171168
        %v4186 = vunpack.c.0.s8 %v4185
        %v4187 = vlaneseq
        %v4188 = vshrl.u32 %v4187, 7
        %v4189 = vsub.s32 %v4186, %v4188
        %v4190 = vrot.slane %v4168, %v4189
        %v4192 = vunpack.c.l.s4 1966171168
        %v4193 = vunpack.c.0.s8 %v4192
        %v4194 = vlaneseq
        %v4195 = vshrl.u32 %v4194, 7
        %v4196 = vsub.s32 %v4193, %v4195
        %v4197 = vrot.slane %v4169, %v4196
        %v4198 = vcombine.high %v4176, %v4176
        %v4199 = vcombine.high %v4183, %v4183
        %v4200 = vcombine.high %v4190, %v4190
        %v4201 = vcombine.high %v4197, %v4197
        %v4202 = vunpack.i.l.s16 %v4176
        %v4203 = vunpack.i.h.s16 %v4176
        %v4204 = vunpack.i.l.s16 %v4190
        %v4205 = vunpack.i.h.s16 %v4190
        %v4206 = vunpack.i.l.s16 %v4198
        %v4207 = vunpack.i.h.s16 %v4198
        %v4208 = vunpack.i.l.s16 %v4200
        %v4209 = vunpack.i.h.s16 %v4200
        %v4210 = vunpack.i.l.s16 %v4183
        %v4211 = vunpack.i.h.s16 %v4183
        %v4212 = vunpack.i.l.s16 %v4197
        %v4213 = vunpack.i.h.s16 %v4197
        %v4214 = vunpack.i.l.s16 %v4199
        %v4215 = vunpack.i.h.s16 %v4199
        %v4216 = vunpack.i.l.s16 %v4201
        %v4217 = vunpack.i.h.s16 %v4201
        %v4218 = vpack.i.b16 %v4202, %v4202
        %v4219 = vpack.i.b16 %v4203, %v4203
        %v4220 = vpack.i.b16 %v4204, %v4204
        %v4221 = vpack.i.b16 %v4205, %v4205
        %v4222 = vpack.i.b16 %v4206, %v4206
        %v4223 = vpack.i.b16 %v4207, %v4207
        %v4224 = vpack.i.b16 %v4208, %v4208
        %v4225 = vpack.i.b16 %v4209, %v4209
        %v4226 = vpack.i.b16 %v4210, %v4210
        %v4227 = vpack.i.b16 %v4211, %v4211
        %v4228 = vpack.i.b16 %v4212, %v4212
        %v4229 = vpack.i.b16 %v4213, %v4213
        %v4230 = vpack.i.b16 %v4214, %v4214
        %v4231 = vpack.i.b16 %v4215, %v4215
        %v4232 = vpack.i.b16 %v4216, %v4216
        %v4233 = vpack.i.b16 %v4217, %v4217
        %v4234 = vlaneseq
        %v4235 = vshrl.u32 %v4234, 7
        %v4236 = vsub.s32 0, %v4235
        %v4237 = vrot.slane %v4218, %v4236
        %v4238 = vlaneseq
        %v4239 = vshrl.u32 %v4238, 7
        %v4240 = vsub.s32 1, %v4239
        %v4241 = vrot.slane %v4218, %v4240
        %v4242 = vlaneseq
        %v4243 = vshrl.u32 %v4242, 7
        %v4244 = vsub.s32 0, %v4243
        %v4245 = vrot.slane %v4219, %v4244
        %v4246 = vlaneseq
        %v4247 = vshrl.u32 %v4246, 7
        %v4248 = vsub.s32 1, %v4247
        %v4249 = vrot.slane %v4219, %v4248
        %v4250 = vlaneseq
        %v4251 = vshrl.u32 %v4250, 7
        %v4252 = vsub.s32 0, %v4251
        %v4253 = vrot.slane %v4220, %v4252
        %v4254 = vlaneseq
        %v4255 = vshrl.u32 %v4254, 7
        %v4256 = vsub.s32 1, %v4255
        %v4257 = vrot.slane %v4220, %v4256
        %v4258 = vlaneseq
        %v4259 = vshrl.u32 %v4258, 7
        %v4260 = vsub.s32 0, %v4259
        %v4261 = vrot.slane %v4221, %v4260
        %v4262 = vlaneseq
        %v4263 = vshrl.u32 %v4262, 7
        %v4264 = vsub.s32 1, %v4263
        %v4265 = vrot.slane %v4221, %v4264
        %v4266 = vlaneseq
        %v4267 = vshrl.u32 %v4266, 7
        %v4268 = vsub.s32 0, %v4267
        %v4269 = vrot.slane %v4222, %v4268
        %v4270 = vlaneseq
        %v4271 = vshrl.u32 %v4270, 7
        %v4272 = vsub.s32 1, %v4271
        %v4273 = vrot.slane %v4222, %v4272
        %v4274 = vlaneseq
        %v4275 = vshrl.u32 %v4274, 7
        %v4276 = vsub.s32 0, %v4275
        %v4277 = vrot.slane %v4223, %v4276
        %v4278 = vlaneseq
        %v4279 = vshrl.u32 %v4278, 7
        %v4280 = vsub.s32 1, %v4279
        %v4281 = vrot.slane %v4223, %v4280
        %v4282 = vlaneseq
        %v4283 = vshrl.u32 %v4282, 7
        %v4284 = vsub.s32 0, %v4283
        %v4285 = vrot.slane %v4224, %v4284
        %v4286 = vlaneseq
        %v4287 = vshrl.u32 %v4286, 7
        %v4288 = vsub.s32 1, %v4287
        %v4289 = vrot.slane %v4224, %v4288
        %v4290 = vlaneseq
        %v4291 = vshrl.u32 %v4290, 7
        %v4292 = vsub.s32 0, %v4291
        %v4293 = vrot.slane %v4225, %v4292
        %v4294 = vlaneseq
        %v4295 = vshrl.u32 %v4294, 7
        %v4296 = vsub.s32 1, %v4295
        %v4297 = vrot.slane %v4225, %v4296
        %v4298 = vlaneseq
        %v4299 = vshrl.u32 %v4298, 7
        %v4300 = vsub.s32 0, %v4299
        %v4301 = vrot.slane %v4226, %v4300
        %v4302 = vlaneseq
        %v4303 = vshrl.u32 %v4302, 7
        %v4304 = vsub.s32 1, %v4303
        %v4305 = vrot.slane %v4226, %v4304
        %v4306 = vlaneseq
        %v4307 = vshrl.u32 %v4306, 7
        %v4308 = vsub.s32 0, %v4307
        %v4309 = vrot.slane %v4227, %v4308
        %v4310 = vlaneseq
        %v4311 = vshrl.u32 %v4310, 7
        %v4312 = vsub.s32 1, %v4311
        %v4313 = vrot.slane %v4227, %v4312
        %v4314 = vlaneseq
        %v4315 = vshrl.u32 %v4314, 7
        %v4316 = vsub.s32 0, %v4315
        %v4317 = vrot.slane %v4228, %v4316
        %v4318 = vlaneseq
        %v4319 = vshrl.u32 %v4318, 7
        %v4320 = vsub.s32 1, %v4319
        %v4321 = vrot.slane %v4228, %v4320
        %v4322 = vlaneseq
        %v4323 = vshrl.u32 %v4322, 7
        %v4324 = vsub.s32 0, %v4323
        %v4325 = vrot.slane %v4229, %v4324
        %v4326 = vlaneseq
        %v4327 = vshrl.u32 %v4326, 7
        %v4328 = vsub.s32 1, %v4327
        %v4329 = vrot.slane %v4229, %v4328
        %v4330 = vlaneseq
        %v4331 = vshrl.u32 %v4330, 7
        %v4332 = vsub.s32 0, %v4331
        %v4333 = vrot.slane %v4230, %v4332
        %v4334 = vlaneseq
        %v4335 = vshrl.u32 %v4334, 7
        %v4336 = vsub.s32 1, %v4335
        %v4337 = vrot.slane %v4230, %v4336
        %v4338 = vlaneseq
        %v4339 = vshrl.u32 %v4338, 7
        %v4340 = vsub.s32 0, %v4339
        %v4341 = vrot.slane %v4231, %v4340
        %v4342 = vlaneseq
        %v4343 = vshrl.u32 %v4342, 7
        %v4344 = vsub.s32 1, %v4343
        %v4345 = vrot.slane %v4231, %v4344
        %v4346 = vlaneseq
        %v4347 = vshrl.u32 %v4346, 7
        %v4348 = vsub.s32 0, %v4347
        %v4349 = vrot.slane %v4232, %v4348
        %v4350 = vlaneseq
        %v4351 = vshrl.u32 %v4350, 7
        %v4352 = vsub.s32 1, %v4351
        %v4353 = vrot.slane %v4232, %v4352
        %v4354 = vlaneseq
        %v4355 = vshrl.u32 %v4354, 7
        %v4356 = vsub.s32 0, %v4355
        %v4357 = vrot.slane %v4233, %v4356
        %v4358 = vlaneseq
        %v4359 = vshrl.u32 %v4358, 7
        %v4360 = vsub.s32 1, %v4359
        %v4361 = vrot.slane %v4233, %v4360
        %v4363 = vpack.i.b16 %v4237, %v4237
        %v4365 = vlaneseq
        %v4366 = vshrl.u32 %v4365, 7
        %v4367 = vsub.s32 0, %v4366
        %v4368 = vrot.slane %v4363, %v4367
        %v4370 = vpack.i.b16 %v4241, %v4241
        %v4372 = vlaneseq
        %v4373 = vshrl.u32 %v4372, 7
        %v4374 = vsub.s32 0, %v4373
        %v4375 = vrot.slane %v4370, %v4374
        %v4377 = vpack.i.b16 %v4245, %v4245
        %v4379 = vlaneseq
        %v4380 = vshrl.u32 %v4379, 7
        %v4381 = vsub.s32 0, %v4380
        %v4382 = vrot.slane %v4377, %v4381
        %v4384 = vpack.i.b16 %v4249, %v4249
        %v4386 = vlaneseq
        %v4387 = vshrl.u32 %v4386, 7
        %v4388 = vsub.s32 0, %v4387
        %v4389 = vrot.slane %v4384, %v4388
        %v4391 = vpack.i.b16 %v4253, %v4253
        %v4393 = vlaneseq
        %v4394 = vshrl.u32 %v4393, 7
        %v4395 = vsub.s32 0, %v4394
        %v4396 = vrot.slane %v4391, %v4395
        %v4398 = vpack.i.b16 %v4257, %v4257
        %v4400 = vlaneseq
        %v4401 = vshrl.u32 %v4400, 7
        %v4402 = vsub.s32 0, %v4401
        %v4403 = vrot.slane %v4398, %v4402
        %v4405 = vpack.i.b16 %v4261, %v4261
        %v4407 = vlaneseq
        %v4408 = vshrl.u32 %v4407, 7
        %v4409 = vsub.s32 0, %v4408
        %v4410 = vrot.slane %v4405, %v4409
        %v4412 = vpack.i.b16 %v4265, %v4265
        %v4414 = vlaneseq
        %v4415 = vshrl.u32 %v4414, 7
        %v4416 = vsub.s32 0, %v4415
        %v4417 = vrot.slane %v4412, %v4416
        %v4419 = vpack.i.b16 %v4269, %v4269
        %v4421 = vlaneseq
        %v4422 = vshrl.u32 %v4421, 7
        %v4423 = vsub.s32 0, %v4422
        %v4424 = vrot.slane %v4419, %v4423
        %v4426 = vpack.i.b16 %v4273, %v4273
        %v4428 = vlaneseq
        %v4429 = vshrl.u32 %v4428, 7
        %v4430 = vsub.s32 0, %v4429
        %v4431 = vrot.slane %v4426, %v4430
        %v4433 = vpack.i.b16 %v4277, %v4277
        %v4435 = vlaneseq
        %v4436 = vshrl.u32 %v4435, 7
        %v4437 = vsub.s32 0, %v4436
        %v4438 = vrot.slane %v4433, %v4437
        %v4440 = vpack.i.b16 %v4281, %v4281
        %v4442 = vlaneseq
        %v4443 = vshrl.u32 %v4442, 7
        %v4444 = vsub.s32 0, %v4443
        %v4445 = vrot.slane %v4440, %v4444
        %v4447 = vpack.i.b16 %v4285, %v4285
        %v4449 = vlaneseq
        %v4450 = vshrl.u32 %v4449, 7
        %v4451 = vsub.s32 0, %v4450
        %v4452 = vrot.slane %v4447, %v4451
        %v4454 = vpack.i.b16 %v4289, %v4289
        %v4456 = vlaneseq
        %v4457 = vshrl.u32 %v4456, 7
        %v4458 = vsub.s32 0, %v4457
        %v4459 = vrot.slane %v4454, %v4458
        %v4461 = vpack.i.b16 %v4293, %v4293
        %v4463 = vlaneseq
        %v4464 = vshrl.u32 %v4463, 7
        %v4465 = vsub.s32 0, %v4464
        %v4466 = vrot.slane %v4461, %v4465
        %v4468 = vpack.i.b16 %v4297, %v4297
        %v4470 = vlaneseq
        %v4471 = vshrl.u32 %v4470, 7
        %v4472 = vsub.s32 0, %v4471
        %v4473 = vrot.slane %v4468, %v4472
        %v4475 = vpack.i.b16 %v4301, %v4301
        %v4477 = vlaneseq
        %v4478 = vshrl.u32 %v4477, 7
        %v4479 = vsub.s32 0, %v4478
        %v4480 = vrot.slane %v4475, %v4479
        %v4482 = vpack.i.b16 %v4305, %v4305
        %v4484 = vlaneseq
        %v4485 = vshrl.u32 %v4484, 7
        %v4486 = vsub.s32 0, %v4485
        %v4487 = vrot.slane %v4482, %v4486
        %v4489 = vpack.i.b16 %v4309, %v4309
        %v4491 = vlaneseq
        %v4492 = vshrl.u32 %v4491, 7
        %v4493 = vsub.s32 0, %v4492
        %v4494 = vrot.slane %v4489, %v4493
        %v4496 = vpack.i.b16 %v4313, %v4313
        %v4498 = vlaneseq
        %v4499 = vshrl.u32 %v4498, 7
        %v4500 = vsub.s32 0, %v4499
        %v4501 = vrot.slane %v4496, %v4500
        %v4503 = vpack.i.b16 %v4317, %v4317
        %v4505 = vlaneseq
        %v4506 = vshrl.u32 %v4505, 7
        %v4507 = vsub.s32 0, %v4506
        %v4508 = vrot.slane %v4503, %v4507
        %v4510 = vpack.i.b16 %v4321, %v4321
        %v4512 = vlaneseq
        %v4513 = vshrl.u32 %v4512, 7
        %v4514 = vsub.s32 0, %v4513
        %v4515 = vrot.slane %v4510, %v4514
        %v4517 = vpack.i.b16 %v4325, %v4325
        %v4519 = vlaneseq
        %v4520 = vshrl.u32 %v4519, 7
        %v4521 = vsub.s32 0, %v4520
        %v4522 = vrot.slane %v4517, %v4521
        %v4524 = vpack.i.b16 %v4329, %v4329
        %v4526 = vlaneseq
        %v4527 = vshrl.u32 %v4526, 7
        %v4528 = vsub.s32 0, %v4527
        %v4529 = vrot.slane %v4524, %v4528
        %v4531 = vpack.i.b16 %v4333, %v4333
        %v4533 = vlaneseq
        %v4534 = vshrl.u32 %v4533, 7
        %v4535 = vsub.s32 0, %v4534
        %v4536 = vrot.slane %v4531, %v4535
        %v4538 = vpack.i.b16 %v4337, %v4337
        %v4540 = vlaneseq
        %v4541 = vshrl.u32 %v4540, 7
        %v4542 = vsub.s32 0, %v4541
        %v4543 = vrot.slane %v4538, %v4542
        %v4545 = vpack.i.b16 %v4341, %v4341
        %v4547 = vlaneseq
        %v4548 = vshrl.u32 %v4547, 7
        %v4549 = vsub.s32 0, %v4548
        %v4550 = vrot.slane %v4545, %v4549
        %v4552 = vpack.i.b16 %v4345, %v4345
        %v4554 = vlaneseq
        %v4555 = vshrl.u32 %v4554, 7
        %v4556 = vsub.s32 0, %v4555
        %v4557 = vrot.slane %v4552, %v4556
        %v4559 = vpack.i.b16 %v4349, %v4349
        %v4561 = vlaneseq
        %v4562 = vshrl.u32 %v4561, 7
        %v4563 = vsub.s32 0, %v4562
        %v4564 = vrot.slane %v4559, %v4563
        %v4566 = vpack.i.b16 %v4353, %v4353
        %v4568 = vlaneseq
        %v4569 = vshrl.u32 %v4568, 7
        %v4570 = vsub.s32 0, %v4569
        %v4571 = vrot.slane %v4566, %v4570
        %v4573 = vpack.i.b16 %v4357, %v4357
        %v4575 = vlaneseq
        %v4576 = vshrl.u32 %v4575, 7
        %v4577 = vsub.s32 0, %v4576
        %v4578 = vrot.slane %v4573, %v4577
        %v4580 = vpack.i.b16 %v4361, %v4361
        %v4582 = vlaneseq
        %v4583 = vshrl.u32 %v4582, 7
        %v4584 = vsub.s32 0, %v4583
        %v4585 = vrot.slane %v4580, %v4584
        %v4586 = vmul.bf16 %v4368, %v4148
        %v4587 = vmul.bf16 %v4375, %v4149
        %v4588 = vmul.bf16 %v4382, %v4148
        %v4589 = vmul.bf16 %v4389, %v4149
        %v4590 = vmul.bf16 %v4396, %v4148
        %v4591 = vmul.bf16 %v4403, %v4149
        %v4592 = vmul.bf16 %v4410, %v4148
        %v4593 = vmul.bf16 %v4417, %v4149
        %v4594 = vmul.bf16 %v4424, %v4148
        %v4595 = vmul.bf16 %v4431, %v4149
        %v4596 = vmul.bf16 %v4438, %v4148
        %v4597 = vmul.bf16 %v4445, %v4149
        %v4598 = vmul.bf16 %v4452, %v4148
        %v4599 = vmul.bf16 %v4459, %v4149
        %v4600 = vmul.bf16 %v4466, %v4148
        %v4601 = vmul.bf16 %v4473, %v4149
        %v4602 = vmul.bf16 %v4480, %v4148
        %v4603 = vmul.bf16 %v4487, %v4149
        %v4604 = vmul.bf16 %v4494, %v4148
        %v4605 = vmul.bf16 %v4501, %v4149
        %v4606 = vmul.bf16 %v4508, %v4148
        %v4607 = vmul.bf16 %v4515, %v4149
        %v4608 = vmul.bf16 %v4522, %v4148
        %v4609 = vmul.bf16 %v4529, %v4149
        %v4610 = vmul.bf16 %v4536, %v4148
        %v4611 = vmul.bf16 %v4543, %v4149
        %v4612 = vmul.bf16 %v4550, %v4148
        %v4613 = vmul.bf16 %v4557, %v4149
        %v4614 = vmul.bf16 %v4564, %v4148
        %v4615 = vmul.bf16 %v4571, %v4149
        %v4616 = vmul.bf16 %v4578, %v4148
        %v4617 = vmul.bf16 %v4585, %v4149
        %4618 = vmatprep.subr.bf16.mxu0 %v4587
        %4619 = vmatpush1.bf16.msra.mxu0 %v4586
        %4620 = vmatprep.subr.bf16.mxu0 %v4589
        %4621 = vmatpush1.bf16.msra.mxu0 %v4588
        %4622 = vmatprep.subr.bf16.mxu0 %v4591
        %4623 = vmatpush1.bf16.msra.mxu0 %v4590
        %4624 = vmatprep.subr.bf16.mxu0 %v4593
        %4625 = vmatpush1.bf16.msra.mxu0 %v4592
        %4626 = vmatprep.subr.bf16.mxu0 %v4595
        %4627 = vmatpush1.bf16.msra.mxu0 %v4594
        %4628 = vmatprep.subr.bf16.mxu0 %v4597
        %4629 = vmatpush1.bf16.msra.mxu0 %v4596
        %4630 = vmatprep.subr.bf16.mxu0 %v4599
        %4631 = vmatpush1.bf16.msra.mxu0 %v4598
        %4632 = vmatprep.subr.bf16.mxu0 %v4601
        %4633 = vmatpush1.bf16.msra.mxu0 %v4600
        %4634 = vmatprep.subr.bf16.mxu0 %v4603
        %4635 = vmatpush1.bf16.msra.mxu0 %v4602
        %4636 = vmatprep.subr.bf16.mxu0 %v4605
        %4637 = vmatpush1.bf16.msra.mxu0 %v4604
        %4638 = vmatprep.subr.bf16.mxu0 %v4607
        %4639 = vmatpush1.bf16.msra.mxu0 %v4606
        %4640 = vmatprep.subr.bf16.mxu0 %v4609
        %4641 = vmatpush1.bf16.msra.mxu0 %v4608
        %4642 = vmatprep.subr.bf16.mxu0 %v4611
        %4643 = vmatpush1.bf16.msra.mxu0 %v4610
        %4644 = vmatprep.subr.bf16.mxu0 %v4613
        %4645 = vmatpush1.bf16.msra.mxu0 %v4612
        %4646 = vmatprep.subr.bf16.mxu0 %v4615
        %4647 = vmatpush1.bf16.msra.mxu0 %v4614
        %4648 = vmatprep.subr.bf16.mxu0 %v4617
        %4649 = vmatpush1.bf16.msra.mxu0 %v4616
        %4650 = vmatprep.mubr.bf16.mxu0 %v1846
        %4651 = vmatmul.mubr.bf16.gmra.mrb[0].mxu0 %v1845
        %v4652 = vpop.f32.mrb[0].mxu0
        %v4653 = vadd.f32 0.0, %v4652
        %v4654 = vpop.f32.mrb[0].mxu0
        %v4655 = vadd.f32 0.0, %v4654
        %v4656 = vpop.f32.mrb[0].mxu0
        %v4657 = vpop.f32.mrb[0].mxu0
        %4658 = vdwg.mxu0
        %v4659 = vcombine.high %v3973, %v3973
        %v4661 = vunpack.c.l.s4 1966171168
        %v4662 = vunpack.c.0.s8 %v4661
        %v4663 = vlaneseq
        %v4664 = vshrl.u32 %v4663, 7
        %v4665 = vsub.s32 %v4662, %v4664
        %v4666 = vrot.slane %v4659, %v4665
        %v4668 = vadd.f32 %v3272, %v4666
        %v4669 = vcombine.high %v3290, %v3290
        %v4671 = vadd.f32 %v2588, %v4669
        %vm4672 = vcmp.gt.f32.partialorder %v4668, -1.0
        %vm4673 = vcmp.lt.f32.partialorder %v4668, 16.0
        %vm4674 = vmand %vm4672, %vm4673
        %vm4675 = vcmp.gt.f32.partialorder %v4671, -1.0
        %vm4676 = vmand %vm4674, %vm4675
        %vm4677 = vcmp.lt.f32.partialorder %v4671, 16.0
        %vm4678 = vmand %vm4676, %vm4677
        %v4679 = vsel %vm4678, 1, 0
        %v4680 = vcvt.s32.f32 %v4679
        %v4681 = vfloor.f32 %v4668
        %v4682 = vfloor.f32 %v4671
        %v4683 = vsub.f32 %v4668, %v4681
        %v4684 = vsub.f32 %v4671, %v4682
        %v4685 = vsub.f32 1.0, %v4683
        %v4686 = vsub.f32 1.0, %v4684
        %v4687 = vcvt.f32.s32.to.zero.pseudo %v4681
        %v4688 = vcvt.f32.s32.to.zero.pseudo %v4682
        %v4689 = vlaneseq
        %v4690 = vshrl.u32 %v4689, 7
        %v4691 = vsub.s32 0, %v4690
        %v4692 = vrot.slane %v4687, %v4691
        %v4693 = vlaneseq
        %v4694 = vshrl.u32 %v4693, 7
        %v4695 = vsub.s32 1, %v4694
        %v4696 = vrot.slane %v4687, %v4695
        %vm4697 = vcmp.eq.s32.totalorder %v1152, %v4692
        %vm4698 = vcmp.eq.s32.totalorder %v1152, %v4696
        %vm4699 = vcmp.eq.s32.totalorder %v1153, %v4692
        %vm4700 = vcmp.eq.s32.totalorder %v1153, %v4696
        %v4702 = vlaneseq
        %v4703 = vshrl.u32 %v4702, 7
        %v4704 = vsub.s32 0, %v4703
        %v4705 = vrot.slane %v4685, %v4704
        %v4706 = vlaneseq
        %v4707 = vshrl.u32 %v4706, 7
        %v4708 = vsub.s32 1, %v4707
        %v4709 = vrot.slane %v4685, %v4708
        %v4712 = vsel %vm4697, %v4705, 0.0
        %v4713 = vsel %vm4698, %v4709, 0.0
        %v4714 = vsel %vm4699, %v4705, 0.0
        %v4715 = vsel %vm4700, %v4709, 0.0
        %v4716 = vadd.s32 %v4687, 1
        %v4717 = vlaneseq
        %v4718 = vshrl.u32 %v4717, 7
        %v4719 = vsub.s32 0, %v4718
        %v4720 = vrot.slane %v4716, %v4719
        %v4721 = vlaneseq
        %v4722 = vshrl.u32 %v4721, 7
        %v4723 = vsub.s32 1, %v4722
        %v4724 = vrot.slane %v4716, %v4723
        %vm4725 = vcmp.eq.s32.totalorder %v1152, %v4720
        %vm4726 = vcmp.eq.s32.totalorder %v1152, %v4724
        %vm4727 = vcmp.eq.s32.totalorder %v1153, %v4720
        %vm4728 = vcmp.eq.s32.totalorder %v1153, %v4724
        %v4730 = vlaneseq
        %v4731 = vshrl.u32 %v4730, 7
        %v4732 = vsub.s32 0, %v4731
        %v4733 = vrot.slane %v4683, %v4732
        %v4734 = vlaneseq
        %v4735 = vshrl.u32 %v4734, 7
        %v4736 = vsub.s32 1, %v4735
        %v4737 = vrot.slane %v4683, %v4736
        %v4740 = vsel %vm4725, %v4733, 0.0
        %v4741 = vsel %vm4726, %v4737, 0.0
        %v4742 = vsel %vm4727, %v4733, 0.0
        %v4743 = vsel %vm4728, %v4737, 0.0
        %v4744 = vadd.f32 %v4712, %v4740
        %v4745 = vadd.f32 %v4713, %v4741
        %v4746 = vadd.f32 %v4714, %v4742
        %v4747 = vadd.f32 %v4715, %v4743
        %v4748 = vcombine.high %v3376, %v3376
        %v4750 = vmul.f32 %v4680, %v4748
        %v4752 = vlaneseq
        %v4753 = vshrl.u32 %v4752, 7
        %v4754 = vsub.s32 0, %v4753
        %v4755 = vrot.slane %v4750, %v4754
        %v4756 = vlaneseq
        %v4757 = vshrl.u32 %v4756, 7
        %v4758 = vsub.s32 1, %v4757
        %v4759 = vrot.slane %v4750, %v4758
        %v4762 = vmul.f32 %v4744, %v4755
        %v4763 = vmul.f32 %v4745, %v4759
        %v4764 = vmul.f32 %v4746, %v4755
        %v4765 = vmul.f32 %v4747, %v4759
        %v4766 = vpack.c.bf16 %v4764, %v4762
        %v4767 = vpack.c.bf16 %v4765, %v4763
        %v4768 = vlaneseq
        %v4769 = vshrl.u32 %v4768, 7
        %v4770 = vsub.s32 0, %v4769
        %v4771 = vrot.slane %v4688, %v4770
        %v4772 = vlaneseq
        %v4773 = vshrl.u32 %v4772, 7
        %v4774 = vsub.s32 1, %v4773
        %v4775 = vrot.slane %v4688, %v4774
        %vm4776 = vcmp.eq.s32.totalorder %v1152, %v4771
        %vm4777 = vcmp.eq.s32.totalorder %v1152, %v4775
        %vm4778 = vcmp.eq.s32.totalorder %v1153, %v4771
        %vm4779 = vcmp.eq.s32.totalorder %v1153, %v4775
        %v4781 = vlaneseq
        %v4782 = vshrl.u32 %v4781, 7
        %v4783 = vsub.s32 0, %v4782
        %v4784 = vrot.slane %v4686, %v4783
        %v4785 = vlaneseq
        %v4786 = vshrl.u32 %v4785, 7
        %v4787 = vsub.s32 1, %v4786
        %v4788 = vrot.slane %v4686, %v4787
        %v4791 = vsel %vm4776, %v4784, 0.0
        %v4792 = vsel %vm4777, %v4788, 0.0
        %v4793 = vsel %vm4778, %v4784, 0.0
        %v4794 = vsel %vm4779, %v4788, 0.0
        %v4795 = vadd.s32 %v4688, 1
        %v4796 = vlaneseq
        %v4797 = vshrl.u32 %v4796, 7
        %v4798 = vsub.s32 0, %v4797
        %v4799 = vrot.slane %v4795, %v4798
        %v4800 = vlaneseq
        %v4801 = vshrl.u32 %v4800, 7
        %v4802 = vsub.s32 1, %v4801
        %v4803 = vrot.slane %v4795, %v4802
        %vm4804 = vcmp.eq.s32.totalorder %v1152, %v4799
        %vm4805 = vcmp.eq.s32.totalorder %v1152, %v4803
        %vm4806 = vcmp.eq.s32.totalorder %v1153, %v4799
        %vm4807 = vcmp.eq.s32.totalorder %v1153, %v4803
        %v4809 = vlaneseq
        %v4810 = vshrl.u32 %v4809, 7
        %v4811 = vsub.s32 0, %v4810
        %v4812 = vrot.slane %v4684, %v4811
        %v4813 = vlaneseq
        %v4814 = vshrl.u32 %v4813, 7
        %v4815 = vsub.s32 1, %v4814
        %v4816 = vrot.slane %v4684, %v4815
        %v4819 = vsel %vm4804, %v4812, 0.0
        %v4820 = vsel %vm4805, %v4816, 0.0
        %v4821 = vsel %vm4806, %v4812, 0.0
        %v4822 = vsel %vm4807, %v4816, 0.0
        %v4823 = vadd.f32 %v4791, %v4819
        %v4824 = vadd.f32 %v4792, %v4820
        %v4825 = vadd.f32 %v4793, %v4821
        %v4826 = vadd.f32 %v4794, %v4822
        %v4827 = vpack.c.bf16 %v4825, %v4823
        %v4828 = vpack.c.bf16 %v4826, %v4824
        %v4831 = vcombine.low %v4766, %v4767
        %v4832 = vcombine.high %v4766, %v4767
        %v4834 = vunpack.c.l.s4 1966171168
        %v4835 = vunpack.c.0.s8 %v4834
        %v4836 = vlaneseq
        %v4837 = vshrl.u32 %v4836, 7
        %v4838 = vsub.s32 %v4835, %v4837
        %v4839 = vrot.slane %v4831, %v4838
        %v4841 = vunpack.c.l.s4 1966171168
        %v4842 = vunpack.c.0.s8 %v4841
        %v4843 = vlaneseq
        %v4844 = vshrl.u32 %v4843, 7
        %v4845 = vsub.s32 %v4842, %v4844
        %v4846 = vrot.slane %v4832, %v4845
        %v4847 = vcombine.high %v4839, %v4839
        %v4848 = vcombine.high %v4846, %v4846
        %v4850 = vunpack.c.l.s4 1966171168
        %v4851 = vunpack.c.0.s8 %v4850
        %v4852 = vlaneseq
        %v4853 = vshrl.u32 %v4852, 7
        %v4854 = vsub.s32 %v4851, %v4853
        %v4855 = vrot.slane %v4839, %v4854
        %v4857 = vunpack.c.l.s4 1966171168
        %v4858 = vunpack.c.0.s8 %v4857
        %v4859 = vlaneseq
        %v4860 = vshrl.u32 %v4859, 7
        %v4861 = vsub.s32 %v4858, %v4860
        %v4862 = vrot.slane %v4846, %v4861
        %v4864 = vunpack.c.l.s4 1966171168
        %v4865 = vunpack.c.0.s8 %v4864
        %v4866 = vlaneseq
        %v4867 = vshrl.u32 %v4866, 7
        %v4868 = vsub.s32 %v4865, %v4867
        %v4869 = vrot.slane %v4847, %v4868
        %v4871 = vunpack.c.l.s4 1966171168
        %v4872 = vunpack.c.0.s8 %v4871
        %v4873 = vlaneseq
        %v4874 = vshrl.u32 %v4873, 7
        %v4875 = vsub.s32 %v4872, %v4874
        %v4876 = vrot.slane %v4848, %v4875
        %v4877 = vcombine.high %v4855, %v4855
        %v4878 = vcombine.high %v4862, %v4862
        %v4879 = vcombine.high %v4869, %v4869
        %v4880 = vcombine.high %v4876, %v4876
        %v4881 = vunpack.i.l.s16 %v4855
        %v4882 = vunpack.i.h.s16 %v4855
        %v4883 = vunpack.i.l.s16 %v4869
        %v4884 = vunpack.i.h.s16 %v4869
        %v4885 = vunpack.i.l.s16 %v4877
        %v4886 = vunpack.i.h.s16 %v4877
        %v4887 = vunpack.i.l.s16 %v4879
        %v4888 = vunpack.i.h.s16 %v4879
        %v4889 = vunpack.i.l.s16 %v4862
        %v4890 = vunpack.i.h.s16 %v4862
        %v4891 = vunpack.i.l.s16 %v4876
        %v4892 = vunpack.i.h.s16 %v4876
        %v4893 = vunpack.i.l.s16 %v4878
        %v4894 = vunpack.i.h.s16 %v4878
        %v4895 = vunpack.i.l.s16 %v4880
        %v4896 = vunpack.i.h.s16 %v4880
        %v4897 = vpack.i.b16 %v4881, %v4881
        %v4898 = vpack.i.b16 %v4882, %v4882
        %v4899 = vpack.i.b16 %v4883, %v4883
        %v4900 = vpack.i.b16 %v4884, %v4884
        %v4901 = vpack.i.b16 %v4885, %v4885
        %v4902 = vpack.i.b16 %v4886, %v4886
        %v4903 = vpack.i.b16 %v4887, %v4887
        %v4904 = vpack.i.b16 %v4888, %v4888
        %v4905 = vpack.i.b16 %v4889, %v4889
        %v4906 = vpack.i.b16 %v4890, %v4890
        %v4907 = vpack.i.b16 %v4891, %v4891
        %v4908 = vpack.i.b16 %v4892, %v4892
        %v4909 = vpack.i.b16 %v4893, %v4893
        %v4910 = vpack.i.b16 %v4894, %v4894
        %v4911 = vpack.i.b16 %v4895, %v4895
        %v4912 = vpack.i.b16 %v4896, %v4896
        %v4913 = vlaneseq
        %v4914 = vshrl.u32 %v4913, 7
        %v4915 = vsub.s32 0, %v4914
        %v4916 = vrot.slane %v4897, %v4915
        %v4917 = vlaneseq
        %v4918 = vshrl.u32 %v4917, 7
        %v4919 = vsub.s32 1, %v4918
        %v4920 = vrot.slane %v4897, %v4919
        %v4921 = vlaneseq
        %v4922 = vshrl.u32 %v4921, 7
        %v4923 = vsub.s32 0, %v4922
        %v4924 = vrot.slane %v4898, %v4923
        %v4925 = vlaneseq
        %v4926 = vshrl.u32 %v4925, 7
        %v4927 = vsub.s32 1, %v4926
        %v4928 = vrot.slane %v4898, %v4927
        %v4929 = vlaneseq
        %v4930 = vshrl.u32 %v4929, 7
        %v4931 = vsub.s32 0, %v4930
        %v4932 = vrot.slane %v4899, %v4931
        %v4933 = vlaneseq
        %v4934 = vshrl.u32 %v4933, 7
        %v4935 = vsub.s32 1, %v4934
        %v4936 = vrot.slane %v4899, %v4935
        %v4937 = vlaneseq
        %v4938 = vshrl.u32 %v4937, 7
        %v4939 = vsub.s32 0, %v4938
        %v4940 = vrot.slane %v4900, %v4939
        %v4941 = vlaneseq
        %v4942 = vshrl.u32 %v4941, 7
        %v4943 = vsub.s32 1, %v4942
        %v4944 = vrot.slane %v4900, %v4943
        %v4945 = vlaneseq
        %v4946 = vshrl.u32 %v4945, 7
        %v4947 = vsub.s32 0, %v4946
        %v4948 = vrot.slane %v4901, %v4947
        %v4949 = vlaneseq
        %v4950 = vshrl.u32 %v4949, 7
        %v4951 = vsub.s32 1, %v4950
        %v4952 = vrot.slane %v4901, %v4951
        %v4953 = vlaneseq
        %v4954 = vshrl.u32 %v4953, 7
        %v4955 = vsub.s32 0, %v4954
        %v4956 = vrot.slane %v4902, %v4955
        %v4957 = vlaneseq
        %v4958 = vshrl.u32 %v4957, 7
        %v4959 = vsub.s32 1, %v4958
        %v4960 = vrot.slane %v4902, %v4959
        %v4961 = vlaneseq
        %v4962 = vshrl.u32 %v4961, 7
        %v4963 = vsub.s32 0, %v4962
        %v4964 = vrot.slane %v4903, %v4963
        %v4965 = vlaneseq
        %v4966 = vshrl.u32 %v4965, 7
        %v4967 = vsub.s32 1, %v4966
        %v4968 = vrot.slane %v4903, %v4967
        %v4969 = vlaneseq
        %v4970 = vshrl.u32 %v4969, 7
        %v4971 = vsub.s32 0, %v4970
        %v4972 = vrot.slane %v4904, %v4971
        %v4973 = vlaneseq
        %v4974 = vshrl.u32 %v4973, 7
        %v4975 = vsub.s32 1, %v4974
        %v4976 = vrot.slane %v4904, %v4975
        %v4977 = vlaneseq
        %v4978 = vshrl.u32 %v4977, 7
        %v4979 = vsub.s32 0, %v4978
        %v4980 = vrot.slane %v4905, %v4979
        %v4981 = vlaneseq
        %v4982 = vshrl.u32 %v4981, 7
        %v4983 = vsub.s32 1, %v4982
        %v4984 = vrot.slane %v4905, %v4983
        %v4985 = vlaneseq
        %v4986 = vshrl.u32 %v4985, 7
        %v4987 = vsub.s32 0, %v4986
        %v4988 = vrot.slane %v4906, %v4987
        %v4989 = vlaneseq
        %v4990 = vshrl.u32 %v4989, 7
        %v4991 = vsub.s32 1, %v4990
        %v4992 = vrot.slane %v4906, %v4991
        %v4993 = vlaneseq
        %v4994 = vshrl.u32 %v4993, 7
        %v4995 = vsub.s32 0, %v4994
        %v4996 = vrot.slane %v4907, %v4995
        %v4997 = vlaneseq
        %v4998 = vshrl.u32 %v4997, 7
        %v4999 = vsub.s32 1, %v4998
        %v5000 = vrot.slane %v4907, %v4999
        %v5001 = vlaneseq
        %v5002 = vshrl.u32 %v5001, 7
        %v5003 = vsub.s32 0, %v5002
        %v5004 = vrot.slane %v4908, %v5003
        %v5005 = vlaneseq
        %v5006 = vshrl.u32 %v5005, 7
        %v5007 = vsub.s32 1, %v5006
        %v5008 = vrot.slane %v4908, %v5007
        %v5009 = vlaneseq
        %v5010 = vshrl.u32 %v5009, 7
        %v5011 = vsub.s32 0, %v5010
        %v5012 = vrot.slane %v4909, %v5011
        %v5013 = vlaneseq
        %v5014 = vshrl.u32 %v5013, 7
        %v5015 = vsub.s32 1, %v5014
        %v5016 = vrot.slane %v4909, %v5015
        %v5017 = vlaneseq
        %v5018 = vshrl.u32 %v5017, 7
        %v5019 = vsub.s32 0, %v5018
        %v5020 = vrot.slane %v4910, %v5019
        %v5021 = vlaneseq
        %v5022 = vshrl.u32 %v5021, 7
        %v5023 = vsub.s32 1, %v5022
        %v5024 = vrot.slane %v4910, %v5023
        %v5025 = vlaneseq
        %v5026 = vshrl.u32 %v5025, 7
        %v5027 = vsub.s32 0, %v5026
        %v5028 = vrot.slane %v4911, %v5027
        %v5029 = vlaneseq
        %v5030 = vshrl.u32 %v5029, 7
        %v5031 = vsub.s32 1, %v5030
        %v5032 = vrot.slane %v4911, %v5031
        %v5033 = vlaneseq
        %v5034 = vshrl.u32 %v5033, 7
        %v5035 = vsub.s32 0, %v5034
        %v5036 = vrot.slane %v4912, %v5035
        %v5037 = vlaneseq
        %v5038 = vshrl.u32 %v5037, 7
        %v5039 = vsub.s32 1, %v5038
        %v5040 = vrot.slane %v4912, %v5039
        %v5042 = vpack.i.b16 %v4916, %v4916
        %v5044 = vlaneseq
        %v5045 = vshrl.u32 %v5044, 7
        %v5046 = vsub.s32 0, %v5045
        %v5047 = vrot.slane %v5042, %v5046
        %v5049 = vpack.i.b16 %v4920, %v4920
        %v5051 = vlaneseq
        %v5052 = vshrl.u32 %v5051, 7
        %v5053 = vsub.s32 0, %v5052
        %v5054 = vrot.slane %v5049, %v5053
        %v5056 = vpack.i.b16 %v4924, %v4924
        %v5058 = vlaneseq
        %v5059 = vshrl.u32 %v5058, 7
        %v5060 = vsub.s32 0, %v5059
        %v5061 = vrot.slane %v5056, %v5060
        %v5063 = vpack.i.b16 %v4928, %v4928
        %v5065 = vlaneseq
        %v5066 = vshrl.u32 %v5065, 7
        %v5067 = vsub.s32 0, %v5066
        %v5068 = vrot.slane %v5063, %v5067
        %v5070 = vpack.i.b16 %v4932, %v4932
        %v5072 = vlaneseq
        %v5073 = vshrl.u32 %v5072, 7
        %v5074 = vsub.s32 0, %v5073
        %v5075 = vrot.slane %v5070, %v5074
        %v5077 = vpack.i.b16 %v4936, %v4936
        %v5079 = vlaneseq
        %v5080 = vshrl.u32 %v5079, 7
        %v5081 = vsub.s32 0, %v5080
        %v5082 = vrot.slane %v5077, %v5081
        %v5084 = vpack.i.b16 %v4940, %v4940
        %v5086 = vlaneseq
        %v5087 = vshrl.u32 %v5086, 7
        %v5088 = vsub.s32 0, %v5087
        %v5089 = vrot.slane %v5084, %v5088
        %v5091 = vpack.i.b16 %v4944, %v4944
        %v5093 = vlaneseq
        %v5094 = vshrl.u32 %v5093, 7
        %v5095 = vsub.s32 0, %v5094
        %v5096 = vrot.slane %v5091, %v5095
        %v5098 = vpack.i.b16 %v4948, %v4948
        %v5100 = vlaneseq
        %v5101 = vshrl.u32 %v5100, 7
        %v5102 = vsub.s32 0, %v5101
        %v5103 = vrot.slane %v5098, %v5102
        %v5105 = vpack.i.b16 %v4952, %v4952
        %v5107 = vlaneseq
        %v5108 = vshrl.u32 %v5107, 7
        %v5109 = vsub.s32 0, %v5108
        %v5110 = vrot.slane %v5105, %v5109
        %v5112 = vpack.i.b16 %v4956, %v4956
        %v5114 = vlaneseq
        %v5115 = vshrl.u32 %v5114, 7
        %v5116 = vsub.s32 0, %v5115
        %v5117 = vrot.slane %v5112, %v5116
        %v5119 = vpack.i.b16 %v4960, %v4960
        %v5121 = vlaneseq
        %v5122 = vshrl.u32 %v5121, 7
        %v5123 = vsub.s32 0, %v5122
        %v5124 = vrot.slane %v5119, %v5123
        %v5126 = vpack.i.b16 %v4964, %v4964
        %v5128 = vlaneseq
        %v5129 = vshrl.u32 %v5128, 7
        %v5130 = vsub.s32 0, %v5129
        %v5131 = vrot.slane %v5126, %v5130
        %v5133 = vpack.i.b16 %v4968, %v4968
        %v5135 = vlaneseq
        %v5136 = vshrl.u32 %v5135, 7
        %v5137 = vsub.s32 0, %v5136
        %v5138 = vrot.slane %v5133, %v5137
        %v5140 = vpack.i.b16 %v4972, %v4972
        %v5142 = vlaneseq
        %v5143 = vshrl.u32 %v5142, 7
        %v5144 = vsub.s32 0, %v5143
        %v5145 = vrot.slane %v5140, %v5144
        %v5147 = vpack.i.b16 %v4976, %v4976
        %v5149 = vlaneseq
        %v5150 = vshrl.u32 %v5149, 7
        %v5151 = vsub.s32 0, %v5150
        %v5152 = vrot.slane %v5147, %v5151
        %v5154 = vpack.i.b16 %v4980, %v4980
        %v5156 = vlaneseq
        %v5157 = vshrl.u32 %v5156, 7
        %v5158 = vsub.s32 0, %v5157
        %v5159 = vrot.slane %v5154, %v5158
        %v5161 = vpack.i.b16 %v4984, %v4984
        %v5163 = vlaneseq
        %v5164 = vshrl.u32 %v5163, 7
        %v5165 = vsub.s32 0, %v5164
        %v5166 = vrot.slane %v5161, %v5165
        %v5168 = vpack.i.b16 %v4988, %v4988
        %v5170 = vlaneseq
        %v5171 = vshrl.u32 %v5170, 7
        %v5172 = vsub.s32 0, %v5171
        %v5173 = vrot.slane %v5168, %v5172
        %v5175 = vpack.i.b16 %v4992, %v4992
        %v5177 = vlaneseq
        %v5178 = vshrl.u32 %v5177, 7
        %v5179 = vsub.s32 0, %v5178
        %v5180 = vrot.slane %v5175, %v5179
        %v5182 = vpack.i.b16 %v4996, %v4996
        %v5184 = vlaneseq
        %v5185 = vshrl.u32 %v5184, 7
        %v5186 = vsub.s32 0, %v5185
        %v5187 = vrot.slane %v5182, %v5186
        %v5189 = vpack.i.b16 %v5000, %v5000
        %v5191 = vlaneseq
        %v5192 = vshrl.u32 %v5191, 7
        %v5193 = vsub.s32 0, %v5192
        %v5194 = vrot.slane %v5189, %v5193
        %v5196 = vpack.i.b16 %v5004, %v5004
        %v5198 = vlaneseq
        %v5199 = vshrl.u32 %v5198, 7
        %v5200 = vsub.s32 0, %v5199
        %v5201 = vrot.slane %v5196, %v5200
        %v5203 = vpack.i.b16 %v5008, %v5008
        %v5205 = vlaneseq
        %v5206 = vshrl.u32 %v5205, 7
        %v5207 = vsub.s32 0, %v5206
        %v5208 = vrot.slane %v5203, %v5207
        %v5210 = vpack.i.b16 %v5012, %v5012
        %v5212 = vlaneseq
        %v5213 = vshrl.u32 %v5212, 7
        %v5214 = vsub.s32 0, %v5213
        %v5215 = vrot.slane %v5210, %v5214
        %v5217 = vpack.i.b16 %v5016, %v5016
        %v5219 = vlaneseq
        %v5220 = vshrl.u32 %v5219, 7
        %v5221 = vsub.s32 0, %v5220
        %v5222 = vrot.slane %v5217, %v5221
        %v5224 = vpack.i.b16 %v5020, %v5020
        %v5226 = vlaneseq
        %v5227 = vshrl.u32 %v5226, 7
        %v5228 = vsub.s32 0, %v5227
        %v5229 = vrot.slane %v5224, %v5228
        %v5231 = vpack.i.b16 %v5024, %v5024
        %v5233 = vlaneseq
        %v5234 = vshrl.u32 %v5233, 7
        %v5235 = vsub.s32 0, %v5234
        %v5236 = vrot.slane %v5231, %v5235
        %v5238 = vpack.i.b16 %v5028, %v5028
        %v5240 = vlaneseq
        %v5241 = vshrl.u32 %v5240, 7
        %v5242 = vsub.s32 0, %v5241
        %v5243 = vrot.slane %v5238, %v5242
        %v5245 = vpack.i.b16 %v5032, %v5032
        %v5247 = vlaneseq
        %v5248 = vshrl.u32 %v5247, 7
        %v5249 = vsub.s32 0, %v5248
        %v5250 = vrot.slane %v5245, %v5249
        %v5252 = vpack.i.b16 %v5036, %v5036
        %v5254 = vlaneseq
        %v5255 = vshrl.u32 %v5254, 7
        %v5256 = vsub.s32 0, %v5255
        %v5257 = vrot.slane %v5252, %v5256
        %v5259 = vpack.i.b16 %v5040, %v5040
        %v5261 = vlaneseq
        %v5262 = vshrl.u32 %v5261, 7
        %v5263 = vsub.s32 0, %v5262
        %v5264 = vrot.slane %v5259, %v5263
        %v5265 = vmul.bf16 %v5047, %v4827
        %v5266 = vmul.bf16 %v5054, %v4828
        %v5267 = vmul.bf16 %v5061, %v4827
        %v5268 = vmul.bf16 %v5068, %v4828
        %v5269 = vmul.bf16 %v5075, %v4827
        %v5270 = vmul.bf16 %v5082, %v4828
        %v5271 = vmul.bf16 %v5089, %v4827
        %v5272 = vmul.bf16 %v5096, %v4828
        %v5273 = vmul.bf16 %v5103, %v4827
        %v5274 = vmul.bf16 %v5110, %v4828
        %v5275 = vmul.bf16 %v5117, %v4827
        %v5276 = vmul.bf16 %v5124, %v4828
        %v5277 = vmul.bf16 %v5131, %v4827
        %v5278 = vmul.bf16 %v5138, %v4828
        %v5279 = vmul.bf16 %v5145, %v4827
        %v5280 = vmul.bf16 %v5152, %v4828
        %v5281 = vmul.bf16 %v5159, %v4827
        %v5282 = vmul.bf16 %v5166, %v4828
        %v5283 = vmul.bf16 %v5173, %v4827
        %v5284 = vmul.bf16 %v5180, %v4828
        %v5285 = vmul.bf16 %v5187, %v4827
        %v5286 = vmul.bf16 %v5194, %v4828
        %v5287 = vmul.bf16 %v5201, %v4827
        %v5288 = vmul.bf16 %v5208, %v4828
        %v5289 = vmul.bf16 %v5215, %v4827
        %v5290 = vmul.bf16 %v5222, %v4828
        %v5291 = vmul.bf16 %v5229, %v4827
        %v5292 = vmul.bf16 %v5236, %v4828
        %v5293 = vmul.bf16 %v5243, %v4827
        %v5294 = vmul.bf16 %v5250, %v4828
        %v5295 = vmul.bf16 %v5257, %v4827
        %v5296 = vmul.bf16 %v5264, %v4828
        %5297 = vmatprep.subr.bf16.mxu0 %v5266
        %5298 = vmatpush1.bf16.msra.mxu0 %v5265
        %5299 = vmatprep.subr.bf16.mxu0 %v5268
        %5300 = vmatpush1.bf16.msra.mxu0 %v5267
        %5301 = vmatprep.subr.bf16.mxu0 %v5270
        %5302 = vmatpush1.bf16.msra.mxu0 %v5269
        %5303 = vmatprep.subr.bf16.mxu0 %v5272
        %5304 = vmatpush1.bf16.msra.mxu0 %v5271
        %5305 = vmatprep.subr.bf16.mxu0 %v5274
        %5306 = vmatpush1.bf16.msra.mxu0 %v5273
        %5307 = vmatprep.subr.bf16.mxu0 %v5276
        %5308 = vmatpush1.bf16.msra.mxu0 %v5275
        %5309 = vmatprep.subr.bf16.mxu0 %v5278
        %5310 = vmatpush1.bf16.msra.mxu0 %v5277
        %5311 = vmatprep.subr.bf16.mxu0 %v5280
        %5312 = vmatpush1.bf16.msra.mxu0 %v5279
        %5313 = vmatprep.subr.bf16.mxu0 %v5282
        %5314 = vmatpush1.bf16.msra.mxu0 %v5281
        %5315 = vmatprep.subr.bf16.mxu0 %v5284
        %5316 = vmatpush1.bf16.msra.mxu0 %v5283
        %5317 = vmatprep.subr.bf16.mxu0 %v5286
        %5318 = vmatpush1.bf16.msra.mxu0 %v5285
        %5319 = vmatprep.subr.bf16.mxu0 %v5288
        %5320 = vmatpush1.bf16.msra.mxu0 %v5287
        %5321 = vmatprep.subr.bf16.mxu0 %v5290
        %5322 = vmatpush1.bf16.msra.mxu0 %v5289
        %5323 = vmatprep.subr.bf16.mxu0 %v5292
        %5324 = vmatpush1.bf16.msra.mxu0 %v5291
        %5325 = vmatprep.subr.bf16.mxu0 %v5294
        %5326 = vmatpush1.bf16.msra.mxu0 %v5293
        %5327 = vmatprep.subr.bf16.mxu0 %v5296
        %5328 = vmatpush1.bf16.msra.mxu0 %v5295
        %5329 = vmatprep.mubr.bf16.mxu0 %v1846
        %5330 = vmatmul.mubr.bf16.gmra.mrb[0].mxu0 %v1845
        %v5331 = vpop.f32.mrb[0].mxu0
        %v5332 = vadd.f32 0.0, %v5331
        %v5333 = vpop.f32.mrb[0].mxu0
        %v5334 = vadd.f32 0.0, %v5333
        %v5335 = vpop.f32.mrb[0].mxu0
        %v5336 = vpop.f32.mrb[0].mxu0
        %5337 = vdwg.mxu0
        %v5338 = vadd.f32 %v1148, 1.0
        %v5339 = vcombine.high %v3980, %v3980
        %v5341 = vadd.f32 %v5338, %v5339
        %v5342 = vcombine.high %v3990, %v3990
        %v5344 = vadd.f32 %v1174, %v5342
        %vm5345 = vcmp.gt.f32.partialorder %v5341, -1.0
        %vm5346 = vcmp.lt.f32.partialorder %v5341, 16.0
        %vm5347 = vmand %vm5345, %vm5346
        %vm5348 = vcmp.gt.f32.partialorder %v5344, -1.0
        %vm5349 = vmand %vm5347, %vm5348
        %vm5350 = vcmp.lt.f32.partialorder %v5344, 16.0
        %vm5351 = vmand %vm5349, %vm5350
        %v5352 = vsel %vm5351, 1, 0
        %v5353 = vcvt.s32.f32 %v5352
        %v5354 = vfloor.f32 %v5341
        %v5355 = vfloor.f32 %v5344
        %v5356 = vsub.f32 %v5341, %v5354
        %v5357 = vsub.f32 %v5344, %v5355
        %v5358 = vsub.f32 1.0, %v5356
        %v5359 = vsub.f32 1.0, %v5357
        %v5360 = vcvt.f32.s32.to.zero.pseudo %v5354
        %v5361 = vcvt.f32.s32.to.zero.pseudo %v5355
        %v5362 = vlaneseq
        %v5363 = vshrl.u32 %v5362, 7
        %v5364 = vsub.s32 0, %v5363
        %v5365 = vrot.slane %v5360, %v5364
        %v5366 = vlaneseq
        %v5367 = vshrl.u32 %v5366, 7
        %v5368 = vsub.s32 1, %v5367
        %v5369 = vrot.slane %v5360, %v5368
        %vm5370 = vcmp.eq.s32.totalorder %v1152, %v5365
        %vm5371 = vcmp.eq.s32.totalorder %v1152, %v5369
        %vm5372 = vcmp.eq.s32.totalorder %v1153, %v5365
        %vm5373 = vcmp.eq.s32.totalorder %v1153, %v5369
        %v5375 = vlaneseq
        %v5376 = vshrl.u32 %v5375, 7
        %v5377 = vsub.s32 0, %v5376
        %v5378 = vrot.slane %v5358, %v5377
        %v5379 = vlaneseq
        %v5380 = vshrl.u32 %v5379, 7
        %v5381 = vsub.s32 1, %v5380
        %v5382 = vrot.slane %v5358, %v5381
        %v5385 = vsel %vm5370, %v5378, 0.0
        %v5386 = vsel %vm5371, %v5382, 0.0
        %v5387 = vsel %vm5372, %v5378, 0.0
        %v5388 = vsel %vm5373, %v5382, 0.0
        %v5389 = vadd.s32 %v5360, 1
        %v5390 = vlaneseq
        %v5391 = vshrl.u32 %v5390, 7
        %v5392 = vsub.s32 0, %v5391
        %v5393 = vrot.slane %v5389, %v5392
        %v5394 = vlaneseq
        %v5395 = vshrl.u32 %v5394, 7
        %v5396 = vsub.s32 1, %v5395
        %v5397 = vrot.slane %v5389, %v5396
        %vm5398 = vcmp.eq.s32.totalorder %v1152, %v5393
        %vm5399 = vcmp.eq.s32.totalorder %v1152, %v5397
        %vm5400 = vcmp.eq.s32.totalorder %v1153, %v5393
        %vm5401 = vcmp.eq.s32.totalorder %v1153, %v5397
        %v5403 = vlaneseq
        %v5404 = vshrl.u32 %v5403, 7
        %v5405 = vsub.s32 0, %v5404
        %v5406 = vrot.slane %v5356, %v5405
        %v5407 = vlaneseq
        %v5408 = vshrl.u32 %v5407, 7
        %v5409 = vsub.s32 1, %v5408
        %v5410 = vrot.slane %v5356, %v5409
        %v5413 = vsel %vm5398, %v5406, 0.0
        %v5414 = vsel %vm5399, %v5410, 0.0
        %v5415 = vsel %vm5400, %v5406, 0.0
        %v5416 = vsel %vm5401, %v5410, 0.0
        %v5417 = vadd.f32 %v5385, %v5413
        %v5418 = vadd.f32 %v5386, %v5414
        %v5419 = vadd.f32 %v5387, %v5415
        %v5420 = vadd.f32 %v5388, %v5416
        %v5423 = vcombine.low %v1145, %v1147
        %v5425 = vunpack.c.l.s4 1966171168
        %v5426 = vunpack.c.0.s8 %v5425
        %v5427 = vlaneseq
        %v5428 = vshrl.u32 %v5427, 7
        %v5429 = vsub.s32 %v5426, %v5428
        %v5430 = vrot.slane %v5423, %v5429
        %v5432 = vunpack.c.l.s4 1966171168
        %v5433 = vunpack.c.0.s8 %v5432
        %v5434 = vlaneseq
        %v5435 = vshrl.u32 %v5434, 7
        %v5436 = vsub.s32 %v5433, %v5435
        %v5437 = vrot.slane %v5430, %v5436
        %v5439 = vmul.f32 %v5353, %v5437
        %v5441 = vlaneseq
        %v5442 = vshrl.u32 %v5441, 7
        %v5443 = vsub.s32 0, %v5442
        %v5444 = vrot.slane %v5439, %v5443
        %v5445 = vlaneseq
        %v5446 = vshrl.u32 %v5445, 7
        %v5447 = vsub.s32 1, %v5446
        %v5448 = vrot.slane %v5439, %v5447
        %v5451 = vmul.f32 %v5417, %v5444
        %v5452 = vmul.f32 %v5418, %v5448
        %v5453 = vmul.f32 %v5419, %v5444
        %v5454 = vmul.f32 %v5420, %v5448
        %v5455 = vpack.c.bf16 %v5453, %v5451
        %v5456 = vpack.c.bf16 %v5454, %v5452
        %v5457 = vlaneseq
        %v5458 = vshrl.u32 %v5457, 7
        %v5459 = vsub.s32 0, %v5458
        %v5460 = vrot.slane %v5361, %v5459
        %v5461 = vlaneseq
        %v5462 = vshrl.u32 %v5461, 7
        %v5463 = vsub.s32 1, %v5462
        %v5464 = vrot.slane %v5361, %v5463
        %vm5465 = vcmp.eq.s32.totalorder %v1152, %v5460
        %vm5466 = vcmp.eq.s32.totalorder %v1152, %v5464
        %vm5467 = vcmp.eq.s32.totalorder %v1153, %v5460
        %vm5468 = vcmp.eq.s32.totalorder %v1153, %v5464
        %v5470 = vlaneseq
        %v5471 = vshrl.u32 %v5470, 7
        %v5472 = vsub.s32 0, %v5471
        %v5473 = vrot.slane %v5359, %v5472
        %v5474 = vlaneseq
        %v5475 = vshrl.u32 %v5474, 7
        %v5476 = vsub.s32 1, %v5475
        %v5477 = vrot.slane %v5359, %v5476
        %v5480 = vsel %vm5465, %v5473, 0.0
        %v5481 = vsel %vm5466, %v5477, 0.0
        %v5482 = vsel %vm5467, %v5473, 0.0
        %v5483 = vsel %vm5468, %v5477, 0.0
        %v5484 = vadd.s32 %v5361, 1
        %v5485 = vlaneseq
        %v5486 = vshrl.u32 %v5485, 7
        %v5487 = vsub.s32 0, %v5486
        %v5488 = vrot.slane %v5484, %v5487
        %v5489 = vlaneseq
        %v5490 = vshrl.u32 %v5489, 7
        %v5491 = vsub.s32 1, %v5490
        %v5492 = vrot.slane %v5484, %v5491
        %vm5493 = vcmp.eq.s32.totalorder %v1152, %v5488
        %vm5494 = vcmp.eq.s32.totalorder %v1152, %v5492
        %vm5495 = vcmp.eq.s32.totalorder %v1153, %v5488
        %vm5496 = vcmp.eq.s32.totalorder %v1153, %v5492
        %v5498 = vlaneseq
        %v5499 = vshrl.u32 %v5498, 7
        %v5500 = vsub.s32 0, %v5499
        %v5501 = vrot.slane %v5357, %v5500
        %v5502 = vlaneseq
        %v5503 = vshrl.u32 %v5502, 7
        %v5504 = vsub.s32 1, %v5503
        %v5505 = vrot.slane %v5357, %v5504
        %v5508 = vsel %vm5493, %v5501, 0.0
        %v5509 = vsel %vm5494, %v5505, 0.0
        %v5510 = vsel %vm5495, %v5501, 0.0
        %v5511 = vsel %vm5496, %v5505, 0.0
        %v5512 = vadd.f32 %v5480, %v5508
        %v5513 = vadd.f32 %v5481, %v5509
        %v5514 = vadd.f32 %v5482, %v5510
        %v5515 = vadd.f32 %v5483, %v5511
        %v5516 = vpack.c.bf16 %v5514, %v5512
        %v5517 = vpack.c.bf16 %v5515, %v5513
        %v5520 = vcombine.low %v5455, %v5456
        %v5521 = vcombine.high %v5455, %v5456
        %v5523 = vunpack.c.l.s4 1966171168
        %v5524 = vunpack.c.0.s8 %v5523
        %v5525 = vlaneseq
        %v5526 = vshrl.u32 %v5525, 7
        %v5527 = vsub.s32 %v5524, %v5526
        %v5528 = vrot.slane %v5520, %v5527
        %v5530 = vunpack.c.l.s4 1966171168
        %v5531 = vunpack.c.0.s8 %v5530
        %v5532 = vlaneseq
        %v5533 = vshrl.u32 %v5532, 7
        %v5534 = vsub.s32 %v5531, %v5533
        %v5535 = vrot.slane %v5521, %v5534
        %v5536 = vcombine.high %v5528, %v5528
        %v5537 = vcombine.high %v5535, %v5535
        %v5539 = vunpack.c.l.s4 1966171168
        %v5540 = vunpack.c.0.s8 %v5539
        %v5541 = vlaneseq
        %v5542 = vshrl.u32 %v5541, 7
        %v5543 = vsub.s32 %v5540, %v5542
        %v5544 = vrot.slane %v5528, %v5543
        %v5546 = vunpack.c.l.s4 1966171168
        %v5547 = vunpack.c.0.s8 %v5546
        %v5548 = vlaneseq
        %v5549 = vshrl.u32 %v5548, 7
        %v5550 = vsub.s32 %v5547, %v5549
        %v5551 = vrot.slane %v5535, %v5550
        %v5553 = vunpack.c.l.s4 1966171168
        %v5554 = vunpack.c.0.s8 %v5553
        %v5555 = vlaneseq
        %v5556 = vshrl.u32 %v5555, 7
        %v5557 = vsub.s32 %v5554, %v5556
        %v5558 = vrot.slane %v5536, %v5557
        %v5560 = vunpack.c.l.s4 1966171168
        %v5561 = vunpack.c.0.s8 %v5560
        %v5562 = vlaneseq
        %v5563 = vshrl.u32 %v5562, 7
        %v5564 = vsub.s32 %v5561, %v5563
        %v5565 = vrot.slane %v5537, %v5564
        %v5566 = vcombine.high %v5544, %v5544
        %v5567 = vcombine.high %v5551, %v5551
        %v5568 = vcombine.high %v5558, %v5558
        %v5569 = vcombine.high %v5565, %v5565
        %v5570 = vunpack.i.l.s16 %v5544
        %v5571 = vunpack.i.h.s16 %v5544
        %v5572 = vunpack.i.l.s16 %v5558
        %v5573 = vunpack.i.h.s16 %v5558
        %v5574 = vunpack.i.l.s16 %v5566
        %v5575 = vunpack.i.h.s16 %v5566
        %v5576 = vunpack.i.l.s16 %v5568
        %v5577 = vunpack.i.h.s16 %v5568
        %v5578 = vunpack.i.l.s16 %v5551
        %v5579 = vunpack.i.h.s16 %v5551
        %v5580 = vunpack.i.l.s16 %v5565
        %v5581 = vunpack.i.h.s16 %v5565
        %v5582 = vunpack.i.l.s16 %v5567
        %v5583 = vunpack.i.h.s16 %v5567
        %v5584 = vunpack.i.l.s16 %v5569
        %v5585 = vunpack.i.h.s16 %v5569
        %v5586 = vpack.i.b16 %v5570, %v5570
        %v5587 = vpack.i.b16 %v5571, %v5571
        %v5588 = vpack.i.b16 %v5572, %v5572
        %v5589 = vpack.i.b16 %v5573, %v5573
        %v5590 = vpack.i.b16 %v5574, %v5574
        %v5591 = vpack.i.b16 %v5575, %v5575
        %v5592 = vpack.i.b16 %v5576, %v5576
        %v5593 = vpack.i.b16 %v5577, %v5577
        %v5594 = vpack.i.b16 %v5578, %v5578
        %v5595 = vpack.i.b16 %v5579, %v5579
        %v5596 = vpack.i.b16 %v5580, %v5580
        %v5597 = vpack.i.b16 %v5581, %v5581
        %v5598 = vpack.i.b16 %v5582, %v5582
        %v5599 = vpack.i.b16 %v5583, %v5583
        %v5600 = vpack.i.b16 %v5584, %v5584
        %v5601 = vpack.i.b16 %v5585, %v5585
        %v5602 = vlaneseq
        %v5603 = vshrl.u32 %v5602, 7
        %v5604 = vsub.s32 0, %v5603
        %v5605 = vrot.slane %v5586, %v5604
        %v5606 = vlaneseq
        %v5607 = vshrl.u32 %v5606, 7
        %v5608 = vsub.s32 1, %v5607
        %v5609 = vrot.slane %v5586, %v5608
        %v5610 = vlaneseq
        %v5611 = vshrl.u32 %v5610, 7
        %v5612 = vsub.s32 0, %v5611
        %v5613 = vrot.slane %v5587, %v5612
        %v5614 = vlaneseq
        %v5615 = vshrl.u32 %v5614, 7
        %v5616 = vsub.s32 1, %v5615
        %v5617 = vrot.slane %v5587, %v5616
        %v5618 = vlaneseq
        %v5619 = vshrl.u32 %v5618, 7
        %v5620 = vsub.s32 0, %v5619
        %v5621 = vrot.slane %v5588, %v5620
        %v5622 = vlaneseq
        %v5623 = vshrl.u32 %v5622, 7
        %v5624 = vsub.s32 1, %v5623
        %v5625 = vrot.slane %v5588, %v5624
        %v5626 = vlaneseq
        %v5627 = vshrl.u32 %v5626, 7
        %v5628 = vsub.s32 0, %v5627
        %v5629 = vrot.slane %v5589, %v5628
        %v5630 = vlaneseq
        %v5631 = vshrl.u32 %v5630, 7
        %v5632 = vsub.s32 1, %v5631
        %v5633 = vrot.slane %v5589, %v5632
        %v5634 = vlaneseq
        %v5635 = vshrl.u32 %v5634, 7
        %v5636 = vsub.s32 0, %v5635
        %v5637 = vrot.slane %v5590, %v5636
        %v5638 = vlaneseq
        %v5639 = vshrl.u32 %v5638, 7
        %v5640 = vsub.s32 1, %v5639
        %v5641 = vrot.slane %v5590, %v5640
        %v5642 = vlaneseq
        %v5643 = vshrl.u32 %v5642, 7
        %v5644 = vsub.s32 0, %v5643
        %v5645 = vrot.slane %v5591, %v5644
        %v5646 = vlaneseq
        %v5647 = vshrl.u32 %v5646, 7
        %v5648 = vsub.s32 1, %v5647
        %v5649 = vrot.slane %v5591, %v5648
        %v5650 = vlaneseq
        %v5651 = vshrl.u32 %v5650, 7
        %v5652 = vsub.s32 0, %v5651
        %v5653 = vrot.slane %v5592, %v5652
        %v5654 = vlaneseq
        %v5655 = vshrl.u32 %v5654, 7
        %v5656 = vsub.s32 1, %v5655
        %v5657 = vrot.slane %v5592, %v5656
        %v5658 = vlaneseq
        %v5659 = vshrl.u32 %v5658, 7
        %v5660 = vsub.s32 0, %v5659
        %v5661 = vrot.slane %v5593, %v5660
        %v5662 = vlaneseq
        %v5663 = vshrl.u32 %v5662, 7
        %v5664 = vsub.s32 1, %v5663
        %v5665 = vrot.slane %v5593, %v5664
        %v5666 = vlaneseq
        %v5667 = vshrl.u32 %v5666, 7
        %v5668 = vsub.s32 0, %v5667
        %v5669 = vrot.slane %v5594, %v5668
        %v5670 = vlaneseq
        %v5671 = vshrl.u32 %v5670, 7
        %v5672 = vsub.s32 1, %v5671
        %v5673 = vrot.slane %v5594, %v5672
        %v5674 = vlaneseq
        %v5675 = vshrl.u32 %v5674, 7
        %v5676 = vsub.s32 0, %v5675
        %v5677 = vrot.slane %v5595, %v5676
        %v5678 = vlaneseq
        %v5679 = vshrl.u32 %v5678, 7
        %v5680 = vsub.s32 1, %v5679
        %v5681 = vrot.slane %v5595, %v5680
        %v5682 = vlaneseq
        %v5683 = vshrl.u32 %v5682, 7
        %v5684 = vsub.s32 0, %v5683
        %v5685 = vrot.slane %v5596, %v5684
        %v5686 = vlaneseq
        %v5687 = vshrl.u32 %v5686, 7
        %v5688 = vsub.s32 1, %v5687
        %v5689 = vrot.slane %v5596, %v5688
        %v5690 = vlaneseq
        %v5691 = vshrl.u32 %v5690, 7
        %v5692 = vsub.s32 0, %v5691
        %v5693 = vrot.slane %v5597, %v5692
        %v5694 = vlaneseq
        %v5695 = vshrl.u32 %v5694, 7
        %v5696 = vsub.s32 1, %v5695
        %v5697 = vrot.slane %v5597, %v5696
        %v5698 = vlaneseq
        %v5699 = vshrl.u32 %v5698, 7
        %v5700 = vsub.s32 0, %v5699
        %v5701 = vrot.slane %v5598, %v5700
        %v5702 = vlaneseq
        %v5703 = vshrl.u32 %v5702, 7
        %v5704 = vsub.s32 1, %v5703
        %v5705 = vrot.slane %v5598, %v5704
        %v5706 = vlaneseq
        %v5707 = vshrl.u32 %v5706, 7
        %v5708 = vsub.s32 0, %v5707
        %v5709 = vrot.slane %v5599, %v5708
        %v5710 = vlaneseq
        %v5711 = vshrl.u32 %v5710, 7
        %v5712 = vsub.s32 1, %v5711
        %v5713 = vrot.slane %v5599, %v5712
        %v5714 = vlaneseq
        %v5715 = vshrl.u32 %v5714, 7
        %v5716 = vsub.s32 0, %v5715
        %v5717 = vrot.slane %v5600, %v5716
        %v5718 = vlaneseq
        %v5719 = vshrl.u32 %v5718, 7
        %v5720 = vsub.s32 1, %v5719
        %v5721 = vrot.slane %v5600, %v5720
        %v5722 = vlaneseq
        %v5723 = vshrl.u32 %v5722, 7
        %v5724 = vsub.s32 0, %v5723
        %v5725 = vrot.slane %v5601, %v5724
        %v5726 = vlaneseq
        %v5727 = vshrl.u32 %v5726, 7
        %v5728 = vsub.s32 1, %v5727
        %v5729 = vrot.slane %v5601, %v5728
        %v5731 = vpack.i.b16 %v5605, %v5605
        %v5733 = vlaneseq
        %v5734 = vshrl.u32 %v5733, 7
        %v5735 = vsub.s32 0, %v5734
        %v5736 = vrot.slane %v5731, %v5735
        %v5738 = vpack.i.b16 %v5609, %v5609
        %v5740 = vlaneseq
        %v5741 = vshrl.u32 %v5740, 7
        %v5742 = vsub.s32 0, %v5741
        %v5743 = vrot.slane %v5738, %v5742
        %v5745 = vpack.i.b16 %v5613, %v5613
        %v5747 = vlaneseq
        %v5748 = vshrl.u32 %v5747, 7
        %v5749 = vsub.s32 0, %v5748
        %v5750 = vrot.slane %v5745, %v5749
        %v5752 = vpack.i.b16 %v5617, %v5617
        %v5754 = vlaneseq
        %v5755 = vshrl.u32 %v5754, 7
        %v5756 = vsub.s32 0, %v5755
        %v5757 = vrot.slane %v5752, %v5756
        %v5759 = vpack.i.b16 %v5621, %v5621
        %v5761 = vlaneseq
        %v5762 = vshrl.u32 %v5761, 7
        %v5763 = vsub.s32 0, %v5762
        %v5764 = vrot.slane %v5759, %v5763
        %v5766 = vpack.i.b16 %v5625, %v5625
        %v5768 = vlaneseq
        %v5769 = vshrl.u32 %v5768, 7
        %v5770 = vsub.s32 0, %v5769
        %v5771 = vrot.slane %v5766, %v5770
        %v5773 = vpack.i.b16 %v5629, %v5629
        %v5775 = vlaneseq
        %v5776 = vshrl.u32 %v5775, 7
        %v5777 = vsub.s32 0, %v5776
        %v5778 = vrot.slane %v5773, %v5777
        %v5780 = vpack.i.b16 %v5633, %v5633
        %v5782 = vlaneseq
        %v5783 = vshrl.u32 %v5782, 7
        %v5784 = vsub.s32 0, %v5783
        %v5785 = vrot.slane %v5780, %v5784
        %v5787 = vpack.i.b16 %v5637, %v5637
        %v5789 = vlaneseq
        %v5790 = vshrl.u32 %v5789, 7
        %v5791 = vsub.s32 0, %v5790
        %v5792 = vrot.slane %v5787, %v5791
        %v5794 = vpack.i.b16 %v5641, %v5641
        %v5796 = vlaneseq
        %v5797 = vshrl.u32 %v5796, 7
        %v5798 = vsub.s32 0, %v5797
        %v5799 = vrot.slane %v5794, %v5798
        %v5801 = vpack.i.b16 %v5645, %v5645
        %v5803 = vlaneseq
        %v5804 = vshrl.u32 %v5803, 7
        %v5805 = vsub.s32 0, %v5804
        %v5806 = vrot.slane %v5801, %v5805
        %v5808 = vpack.i.b16 %v5649, %v5649
        %v5810 = vlaneseq
        %v5811 = vshrl.u32 %v5810, 7
        %v5812 = vsub.s32 0, %v5811
        %v5813 = vrot.slane %v5808, %v5812
        %v5815 = vpack.i.b16 %v5653, %v5653
        %v5817 = vlaneseq
        %v5818 = vshrl.u32 %v5817, 7
        %v5819 = vsub.s32 0, %v5818
        %v5820 = vrot.slane %v5815, %v5819
        %v5822 = vpack.i.b16 %v5657, %v5657
        %v5824 = vlaneseq
        %v5825 = vshrl.u32 %v5824, 7
        %v5826 = vsub.s32 0, %v5825
        %v5827 = vrot.slane %v5822, %v5826
        %v5829 = vpack.i.b16 %v5661, %v5661
        %v5831 = vlaneseq
        %v5832 = vshrl.u32 %v5831, 7
        %v5833 = vsub.s32 0, %v5832
        %v5834 = vrot.slane %v5829, %v5833
        %v5836 = vpack.i.b16 %v5665, %v5665
        %v5838 = vlaneseq
        %v5839 = vshrl.u32 %v5838, 7
        %v5840 = vsub.s32 0, %v5839
        %v5841 = vrot.slane %v5836, %v5840
        %v5843 = vpack.i.b16 %v5669, %v5669
        %v5845 = vlaneseq
        %v5846 = vshrl.u32 %v5845, 7
        %v5847 = vsub.s32 0, %v5846
        %v5848 = vrot.slane %v5843, %v5847
        %v5850 = vpack.i.b16 %v5673, %v5673
        %v5852 = vlaneseq
        %v5853 = vshrl.u32 %v5852, 7
        %v5854 = vsub.s32 0, %v5853
        %v5855 = vrot.slane %v5850, %v5854
        %v5857 = vpack.i.b16 %v5677, %v5677
        %v5859 = vlaneseq
        %v5860 = vshrl.u32 %v5859, 7
        %v5861 = vsub.s32 0, %v5860
        %v5862 = vrot.slane %v5857, %v5861
        %v5864 = vpack.i.b16 %v5681, %v5681
        %v5866 = vlaneseq
        %v5867 = vshrl.u32 %v5866, 7
        %v5868 = vsub.s32 0, %v5867
        %v5869 = vrot.slane %v5864, %v5868
        %v5871 = vpack.i.b16 %v5685, %v5685
        %v5873 = vlaneseq
        %v5874 = vshrl.u32 %v5873, 7
        %v5875 = vsub.s32 0, %v5874
        %v5876 = vrot.slane %v5871, %v5875
        %v5878 = vpack.i.b16 %v5689, %v5689
        %v5880 = vlaneseq
        %v5881 = vshrl.u32 %v5880, 7
        %v5882 = vsub.s32 0, %v5881
        %v5883 = vrot.slane %v5878, %v5882
        %v5885 = vpack.i.b16 %v5693, %v5693
        %v5887 = vlaneseq
        %v5888 = vshrl.u32 %v5887, 7
        %v5889 = vsub.s32 0, %v5888
        %v5890 = vrot.slane %v5885, %v5889
        %v5892 = vpack.i.b16 %v5697, %v5697
        %v5894 = vlaneseq
        %v5895 = vshrl.u32 %v5894, 7
        %v5896 = vsub.s32 0, %v5895
        %v5897 = vrot.slane %v5892, %v5896
        %v5899 = vpack.i.b16 %v5701, %v5701
        %v5901 = vlaneseq
        %v5902 = vshrl.u32 %v5901, 7
        %v5903 = vsub.s32 0, %v5902
        %v5904 = vrot.slane %v5899, %v5903
        %v5906 = vpack.i.b16 %v5705, %v5705
        %v5908 = vlaneseq
        %v5909 = vshrl.u32 %v5908, 7
        %v5910 = vsub.s32 0, %v5909
        %v5911 = vrot.slane %v5906, %v5910
        %v5913 = vpack.i.b16 %v5709, %v5709
        %v5915 = vlaneseq
        %v5916 = vshrl.u32 %v5915, 7
        %v5917 = vsub.s32 0, %v5916
        %v5918 = vrot.slane %v5913, %v5917
        %v5920 = vpack.i.b16 %v5713, %v5713
        %v5922 = vlaneseq
        %v5923 = vshrl.u32 %v5922, 7
        %v5924 = vsub.s32 0, %v5923
        %v5925 = vrot.slane %v5920, %v5924
        %v5927 = vpack.i.b16 %v5717, %v5717
        %v5929 = vlaneseq
        %v5930 = vshrl.u32 %v5929, 7
        %v5931 = vsub.s32 0, %v5930
        %v5932 = vrot.slane %v5927, %v5931
        %v5934 = vpack.i.b16 %v5721, %v5721
        %v5936 = vlaneseq
        %v5937 = vshrl.u32 %v5936, 7
        %v5938 = vsub.s32 0, %v5937
        %v5939 = vrot.slane %v5934, %v5938
        %v5941 = vpack.i.b16 %v5725, %v5725
        %v5943 = vlaneseq
        %v5944 = vshrl.u32 %v5943, 7
        %v5945 = vsub.s32 0, %v5944
        %v5946 = vrot.slane %v5941, %v5945
        %v5948 = vpack.i.b16 %v5729, %v5729
        %v5950 = vlaneseq
        %v5951 = vshrl.u32 %v5950, 7
        %v5952 = vsub.s32 0, %v5951
        %v5953 = vrot.slane %v5948, %v5952
        %v5954 = vmul.bf16 %v5736, %v5516
        %v5955 = vmul.bf16 %v5743, %v5517
        %v5956 = vmul.bf16 %v5750, %v5516
        %v5957 = vmul.bf16 %v5757, %v5517
        %v5958 = vmul.bf16 %v5764, %v5516
        %v5959 = vmul.bf16 %v5771, %v5517
        %v5960 = vmul.bf16 %v5778, %v5516
        %v5961 = vmul.bf16 %v5785, %v5517
        %v5962 = vmul.bf16 %v5792, %v5516
        %v5963 = vmul.bf16 %v5799, %v5517
        %v5964 = vmul.bf16 %v5806, %v5516
        %v5965 = vmul.bf16 %v5813, %v5517
        %v5966 = vmul.bf16 %v5820, %v5516
        %v5967 = vmul.bf16 %v5827, %v5517
        %v5968 = vmul.bf16 %v5834, %v5516
        %v5969 = vmul.bf16 %v5841, %v5517
        %v5970 = vmul.bf16 %v5848, %v5516
        %v5971 = vmul.bf16 %v5855, %v5517
        %v5972 = vmul.bf16 %v5862, %v5516
        %v5973 = vmul.bf16 %v5869, %v5517
        %v5974 = vmul.bf16 %v5876, %v5516
        %v5975 = vmul.bf16 %v5883, %v5517
        %v5976 = vmul.bf16 %v5890, %v5516
        %v5977 = vmul.bf16 %v5897, %v5517
        %v5978 = vmul.bf16 %v5904, %v5516
        %v5979 = vmul.bf16 %v5911, %v5517
        %v5980 = vmul.bf16 %v5918, %v5516
        %v5981 = vmul.bf16 %v5925, %v5517
        %v5982 = vmul.bf16 %v5932, %v5516
        %v5983 = vmul.bf16 %v5939, %v5517
        %v5984 = vmul.bf16 %v5946, %v5516
        %v5985 = vmul.bf16 %v5953, %v5517
        %5986 = vmatprep.subr.bf16.mxu0 %v5955
        %5987 = vmatpush1.bf16.msra.mxu0 %v5954
        %5988 = vmatprep.subr.bf16.mxu0 %v5957
        %5989 = vmatpush1.bf16.msra.mxu0 %v5956
        %5990 = vmatprep.subr.bf16.mxu0 %v5959
        %5991 = vmatpush1.bf16.msra.mxu0 %v5958
        %5992 = vmatprep.subr.bf16.mxu0 %v5961
        %5993 = vmatpush1.bf16.msra.mxu0 %v5960
        %5994 = vmatprep.subr.bf16.mxu0 %v5963
        %5995 = vmatpush1.bf16.msra.mxu0 %v5962
        %5996 = vmatprep.subr.bf16.mxu0 %v5965
        %5997 = vmatpush1.bf16.msra.mxu0 %v5964
        %5998 = vmatprep.subr.bf16.mxu0 %v5967
        %5999 = vmatpush1.bf16.msra.mxu0 %v5966
        %6000 = vmatprep.subr.bf16.mxu0 %v5969
        %6001 = vmatpush1.bf16.msra.mxu0 %v5968
        %6002 = vmatprep.subr.bf16.mxu0 %v5971
        %6003 = vmatpush1.bf16.msra.mxu0 %v5970
        %6004 = vmatprep.subr.bf16.mxu0 %v5973
        %6005 = vmatpush1.bf16.msra.mxu0 %v5972
        %6006 = vmatprep.subr.bf16.mxu0 %v5975
        %6007 = vmatpush1.bf16.msra.mxu0 %v5974
        %6008 = vmatprep.subr.bf16.mxu0 %v5977
        %6009 = vmatpush1.bf16.msra.mxu0 %v5976
        %6010 = vmatprep.subr.bf16.mxu0 %v5979
        %6011 = vmatpush1.bf16.msra.mxu0 %v5978
        %6012 = vmatprep.subr.bf16.mxu0 %v5981
        %6013 = vmatpush1.bf16.msra.mxu0 %v5980
        %6014 = vmatprep.subr.bf16.mxu0 %v5983
        %6015 = vmatpush1.bf16.msra.mxu0 %v5982
        %6016 = vmatprep.subr.bf16.mxu0 %v5985
        %6017 = vmatpush1.bf16.msra.mxu0 %v5984
        %6018 = vmatprep.mubr.bf16.mxu0 %v1846
        %6019 = vmatmul.mubr.bf16.gmra.mrb[0].mxu0 %v1845
        %v6020 = vpop.f32.mrb[0].mxu0
        %v6021 = vadd.f32 0.0, %v6020
        %v6022 = vpop.f32.mrb[0].mxu0
        %v6023 = vadd.f32 0.0, %v6022
        %v6024 = vpop.f32.mrb[0].mxu0
        %v6025 = vpop.f32.mrb[0].mxu0
        %6026 = vdwg.mxu0
        %v6027 = vcombine.high %v4666, %v4666
        %v6029 = vadd.f32 %v5338, %v6027
        %v6032 = vcombine.low %v1113, %v1115
        %v6034 = vunpack.c.l.s4 1966171168
        %v6035 = vunpack.c.0.s8 %v6034
        %v6036 = vlaneseq
        %v6037 = vshrl.u32 %v6036, 7
        %v6038 = vsub.s32 %v6035, %v6037
        %v6039 = vrot.slane %v6032, %v6038
        %v6041 = vunpack.c.l.s4 1966171168
        %v6042 = vunpack.c.0.s8 %v6041
        %v6043 = vlaneseq
        %v6044 = vshrl.u32 %v6043, 7
        %v6045 = vsub.s32 %v6042, %v6044
        %v6046 = vrot.slane %v6039, %v6045
        %v6048 = vadd.f32 %v1900, %v6046
        %vm6049 = vcmp.gt.f32.partialorder %v6029, -1.0
        %vm6050 = vcmp.lt.f32.partialorder %v6029, 16.0
        %vm6051 = vmand %vm6049, %vm6050
        %vm6052 = vcmp.gt.f32.partialorder %v6048, -1.0
        %vm6053 = vmand %vm6051, %vm6052
        %vm6054 = vcmp.lt.f32.partialorder %v6048, 16.0
        %vm6055 = vmand %vm6053, %vm6054
        %v6056 = vsel %vm6055, 1, 0
        %v6057 = vcvt.s32.f32 %v6056
        %v6058 = vfloor.f32 %v6029
        %v6059 = vfloor.f32 %v6048
        %v6060 = vsub.f32 %v6029, %v6058
        %v6061 = vsub.f32 %v6048, %v6059
        %v6062 = vsub.f32 1.0, %v6060
        %v6063 = vsub.f32 1.0, %v6061
        %v6064 = vcvt.f32.s32.to.zero.pseudo %v6058
        %v6065 = vcvt.f32.s32.to.zero.pseudo %v6059
        %v6066 = vlaneseq
        %v6067 = vshrl.u32 %v6066, 7
        %v6068 = vsub.s32 0, %v6067
        %v6069 = vrot.slane %v6064, %v6068
        %v6070 = vlaneseq
        %v6071 = vshrl.u32 %v6070, 7
        %v6072 = vsub.s32 1, %v6071
        %v6073 = vrot.slane %v6064, %v6072
        %vm6074 = vcmp.eq.s32.totalorder %v1152, %v6069
        %vm6075 = vcmp.eq.s32.totalorder %v1152, %v6073
        %vm6076 = vcmp.eq.s32.totalorder %v1153, %v6069
        %vm6077 = vcmp.eq.s32.totalorder %v1153, %v6073
        %v6079 = vlaneseq
        %v6080 = vshrl.u32 %v6079, 7
        %v6081 = vsub.s32 0, %v6080
        %v6082 = vrot.slane %v6062, %v6081
        %v6083 = vlaneseq
        %v6084 = vshrl.u32 %v6083, 7
        %v6085 = vsub.s32 1, %v6084
        %v6086 = vrot.slane %v6062, %v6085
        %v6089 = vsel %vm6074, %v6082, 0.0
        %v6090 = vsel %vm6075, %v6086, 0.0
        %v6091 = vsel %vm6076, %v6082, 0.0
        %v6092 = vsel %vm6077, %v6086, 0.0
        %v6093 = vadd.s32 %v6064, 1
        %v6094 = vlaneseq
        %v6095 = vshrl.u32 %v6094, 7
        %v6096 = vsub.s32 0, %v6095
        %v6097 = vrot.slane %v6093, %v6096
        %v6098 = vlaneseq
        %v6099 = vshrl.u32 %v6098, 7
        %v6100 = vsub.s32 1, %v6099
        %v6101 = vrot.slane %v6093, %v6100
        %vm6102 = vcmp.eq.s32.totalorder %v1152, %v6097
        %vm6103 = vcmp.eq.s32.totalorder %v1152, %v6101
        %vm6104 = vcmp.eq.s32.totalorder %v1153, %v6097
        %vm6105 = vcmp.eq.s32.totalorder %v1153, %v6101
        %v6107 = vlaneseq
        %v6108 = vshrl.u32 %v6107, 7
        %v6109 = vsub.s32 0, %v6108
        %v6110 = vrot.slane %v6060, %v6109
        %v6111 = vlaneseq
        %v6112 = vshrl.u32 %v6111, 7
        %v6113 = vsub.s32 1, %v6112
        %v6114 = vrot.slane %v6060, %v6113
        %v6117 = vsel %vm6102, %v6110, 0.0
        %v6118 = vsel %vm6103, %v6114, 0.0
        %v6119 = vsel %vm6104, %v6110, 0.0
        %v6120 = vsel %vm6105, %v6114, 0.0
        %v6121 = vadd.f32 %v6089, %v6117
        %v6122 = vadd.f32 %v6090, %v6118
        %v6123 = vadd.f32 %v6091, %v6119
        %v6124 = vadd.f32 %v6092, %v6120
        %v6125 = vcombine.high %v5430, %v5430
        %v6127 = vunpack.c.l.s4 1966171168
        %v6128 = vunpack.c.0.s8 %v6127
        %v6129 = vlaneseq
        %v6130 = vshrl.u32 %v6129, 7
        %v6131 = vsub.s32 %v6128, %v6130
        %v6132 = vrot.slane %v6125, %v6131
        %v6134 = vmul.f32 %v6057, %v6132
        %v6136 = vlaneseq
        %v6137 = vshrl.u32 %v6136, 7
        %v6138 = vsub.s32 0, %v6137
        %v6139 = vrot.slane %v6134, %v6138
        %v6140 = vlaneseq
        %v6141 = vshrl.u32 %v6140, 7
        %v6142 = vsub.s32 1, %v6141
        %v6143 = vrot.slane %v6134, %v6142
        %v6146 = vmul.f32 %v6121, %v6139
        %v6147 = vmul.f32 %v6122, %v6143
        %v6148 = vmul.f32 %v6123, %v6139
        %v6149 = vmul.f32 %v6124, %v6143
        %v6150 = vpack.c.bf16 %v6148, %v6146
        %v6151 = vpack.c.bf16 %v6149, %v6147
        %v6152 = vlaneseq
        %v6153 = vshrl.u32 %v6152, 7
        %v6154 = vsub.s32 0, %v6153
        %v6155 = vrot.slane %v6065, %v6154
        %v6156 = vlaneseq
        %v6157 = vshrl.u32 %v6156, 7
        %v6158 = vsub.s32 1, %v6157
        %v6159 = vrot.slane %v6065, %v6158
        %vm6160 = vcmp.eq.s32.totalorder %v1152, %v6155
        %vm6161 = vcmp.eq.s32.totalorder %v1152, %v6159
        %vm6162 = vcmp.eq.s32.totalorder %v1153, %v6155
        %vm6163 = vcmp.eq.s32.totalorder %v1153, %v6159
        %v6165 = vlaneseq
        %v6166 = vshrl.u32 %v6165, 7
        %v6167 = vsub.s32 0, %v6166
        %v6168 = vrot.slane %v6063, %v6167
        %v6169 = vlaneseq
        %v6170 = vshrl.u32 %v6169, 7
        %v6171 = vsub.s32 1, %v6170
        %v6172 = vrot.slane %v6063, %v6171
        %v6175 = vsel %vm6160, %v6168, 0.0
        %v6176 = vsel %vm6161, %v6172, 0.0
        %v6177 = vsel %vm6162, %v6168, 0.0
        %v6178 = vsel %vm6163, %v6172, 0.0
        %v6179 = vadd.s32 %v6065, 1
        %v6180 = vlaneseq
        %v6181 = vshrl.u32 %v6180, 7
        %v6182 = vsub.s32 0, %v6181
        %v6183 = vrot.slane %v6179, %v6182
        %v6184 = vlaneseq
        %v6185 = vshrl.u32 %v6184, 7
        %v6186 = vsub.s32 1, %v6185
        %v6187 = vrot.slane %v6179, %v6186
        %vm6188 = vcmp.eq.s32.totalorder %v1152, %v6183
        %vm6189 = vcmp.eq.s32.totalorder %v1152, %v6187
        %vm6190 = vcmp.eq.s32.totalorder %v1153, %v6183
        %vm6191 = vcmp.eq.s32.totalorder %v1153, %v6187
        %v6193 = vlaneseq
        %v6194 = vshrl.u32 %v6193, 7
        %v6195 = vsub.s32 0, %v6194
        %v6196 = vrot.slane %v6061, %v6195
        %v6197 = vlaneseq
        %v6198 = vshrl.u32 %v6197, 7
        %v6199 = vsub.s32 1, %v6198
        %v6200 = vrot.slane %v6061, %v6199
        %v6203 = vsel %vm6188, %v6196, 0.0
        %v6204 = vsel %vm6189, %v6200, 0.0
        %v6205 = vsel %vm6190, %v6196, 0.0
        %v6206 = vsel %vm6191, %v6200, 0.0
        %v6207 = vadd.f32 %v6175, %v6203
        %v6208 = vadd.f32 %v6176, %v6204
        %v6209 = vadd.f32 %v6177, %v6205
        %v6210 = vadd.f32 %v6178, %v6206
        %v6211 = vpack.c.bf16 %v6209, %v6207
        %v6212 = vpack.c.bf16 %v6210, %v6208
        %v6215 = vcombine.low %v6150, %v6151
        %v6216 = vcombine.high %v6150, %v6151
        %v6218 = vunpack.c.l.s4 1966171168
        %v6219 = vunpack.c.0.s8 %v6218
        %v6220 = vlaneseq
        %v6221 = vshrl.u32 %v6220, 7
        %v6222 = vsub.s32 %v6219, %v6221
        %v6223 = vrot.slane %v6215, %v6222
        %v6225 = vunpack.c.l.s4 1966171168
        %v6226 = vunpack.c.0.s8 %v6225
        %v6227 = vlaneseq
        %v6228 = vshrl.u32 %v6227, 7
        %v6229 = vsub.s32 %v6226, %v6228
        %v6230 = vrot.slane %v6216, %v6229
        %v6231 = vcombine.high %v6223, %v6223
        %v6232 = vcombine.high %v6230, %v6230
        %v6234 = vunpack.c.l.s4 1966171168
        %v6235 = vunpack.c.0.s8 %v6234
        %v6236 = vlaneseq
        %v6237 = vshrl.u32 %v6236, 7
        %v6238 = vsub.s32 %v6235, %v6237
        %v6239 = vrot.slane %v6223, %v6238
        %v6241 = vunpack.c.l.s4 1966171168
        %v6242 = vunpack.c.0.s8 %v6241
        %v6243 = vlaneseq
        %v6244 = vshrl.u32 %v6243, 7
        %v6245 = vsub.s32 %v6242, %v6244
        %v6246 = vrot.slane %v6230, %v6245
        %v6248 = vunpack.c.l.s4 1966171168
        %v6249 = vunpack.c.0.s8 %v6248
        %v6250 = vlaneseq
        %v6251 = vshrl.u32 %v6250, 7
        %v6252 = vsub.s32 %v6249, %v6251
        %v6253 = vrot.slane %v6231, %v6252
        %v6255 = vunpack.c.l.s4 1966171168
        %v6256 = vunpack.c.0.s8 %v6255
        %v6257 = vlaneseq
        %v6258 = vshrl.u32 %v6257, 7
        %v6259 = vsub.s32 %v6256, %v6258
        %v6260 = vrot.slane %v6232, %v6259
        %v6261 = vcombine.high %v6239, %v6239
        %v6262 = vcombine.high %v6246, %v6246
        %v6263 = vcombine.high %v6253, %v6253
        %v6264 = vcombine.high %v6260, %v6260
        %v6265 = vunpack.i.l.s16 %v6239
        %v6266 = vunpack.i.h.s16 %v6239
        %v6267 = vunpack.i.l.s16 %v6253
        %v6268 = vunpack.i.h.s16 %v6253
        %v6269 = vunpack.i.l.s16 %v6261
        %v6270 = vunpack.i.h.s16 %v6261
        %v6271 = vunpack.i.l.s16 %v6263
        %v6272 = vunpack.i.h.s16 %v6263
        %v6273 = vunpack.i.l.s16 %v6246
        %v6274 = vunpack.i.h.s16 %v6246
        %v6275 = vunpack.i.l.s16 %v6260
        %v6276 = vunpack.i.h.s16 %v6260
        %v6277 = vunpack.i.l.s16 %v6262
        %v6278 = vunpack.i.h.s16 %v6262
        %v6279 = vunpack.i.l.s16 %v6264
        %v6280 = vunpack.i.h.s16 %v6264
        %v6281 = vpack.i.b16 %v6265, %v6265
        %v6282 = vpack.i.b16 %v6266, %v6266
        %v6283 = vpack.i.b16 %v6267, %v6267
        %v6284 = vpack.i.b16 %v6268, %v6268
        %v6285 = vpack.i.b16 %v6269, %v6269
        %v6286 = vpack.i.b16 %v6270, %v6270
        %v6287 = vpack.i.b16 %v6271, %v6271
        %v6288 = vpack.i.b16 %v6272, %v6272
        %v6289 = vpack.i.b16 %v6273, %v6273
        %v6290 = vpack.i.b16 %v6274, %v6274
        %v6291 = vpack.i.b16 %v6275, %v6275
        %v6292 = vpack.i.b16 %v6276, %v6276
        %v6293 = vpack.i.b16 %v6277, %v6277
        %v6294 = vpack.i.b16 %v6278, %v6278
        %v6295 = vpack.i.b16 %v6279, %v6279
        %v6296 = vpack.i.b16 %v6280, %v6280
        %v6297 = vlaneseq
        %v6298 = vshrl.u32 %v6297, 7
        %v6299 = vsub.s32 0, %v6298
        %v6300 = vrot.slane %v6281, %v6299
        %v6301 = vlaneseq
        %v6302 = vshrl.u32 %v6301, 7
        %v6303 = vsub.s32 1, %v6302
        %v6304 = vrot.slane %v6281, %v6303
        %v6305 = vlaneseq
        %v6306 = vshrl.u32 %v6305, 7
        %v6307 = vsub.s32 0, %v6306
        %v6308 = vrot.slane %v6282, %v6307
        %v6309 = vlaneseq
        %v6310 = vshrl.u32 %v6309, 7
        %v6311 = vsub.s32 1, %v6310
        %v6312 = vrot.slane %v6282, %v6311
        %v6313 = vlaneseq
        %v6314 = vshrl.u32 %v6313, 7
        %v6315 = vsub.s32 0, %v6314
        %v6316 = vrot.slane %v6283, %v6315
        %v6317 = vlaneseq
        %v6318 = vshrl.u32 %v6317, 7
        %v6319 = vsub.s32 1, %v6318
        %v6320 = vrot.slane %v6283, %v6319
        %v6321 = vlaneseq
        %v6322 = vshrl.u32 %v6321, 7
        %v6323 = vsub.s32 0, %v6322
        %v6324 = vrot.slane %v6284, %v6323
        %v6325 = vlaneseq
        %v6326 = vshrl.u32 %v6325, 7
        %v6327 = vsub.s32 1, %v6326
        %v6328 = vrot.slane %v6284, %v6327
        %v6329 = vlaneseq
        %v6330 = vshrl.u32 %v6329, 7
        %v6331 = vsub.s32 0, %v6330
        %v6332 = vrot.slane %v6285, %v6331
        %v6333 = vlaneseq
        %v6334 = vshrl.u32 %v6333, 7
        %v6335 = vsub.s32 1, %v6334
        %v6336 = vrot.slane %v6285, %v6335
        %v6337 = vlaneseq
        %v6338 = vshrl.u32 %v6337, 7
        %v6339 = vsub.s32 0, %v6338
        %v6340 = vrot.slane %v6286, %v6339
        %v6341 = vlaneseq
        %v6342 = vshrl.u32 %v6341, 7
        %v6343 = vsub.s32 1, %v6342
        %v6344 = vrot.slane %v6286, %v6343
        %v6345 = vlaneseq
        %v6346 = vshrl.u32 %v6345, 7
        %v6347 = vsub.s32 0, %v6346
        %v6348 = vrot.slane %v6287, %v6347
        %v6349 = vlaneseq
        %v6350 = vshrl.u32 %v6349, 7
        %v6351 = vsub.s32 1, %v6350
        %v6352 = vrot.slane %v6287, %v6351
        %v6353 = vlaneseq
        %v6354 = vshrl.u32 %v6353, 7
        %v6355 = vsub.s32 0, %v6354
        %v6356 = vrot.slane %v6288, %v6355
        %v6357 = vlaneseq
        %v6358 = vshrl.u32 %v6357, 7
        %v6359 = vsub.s32 1, %v6358
        %v6360 = vrot.slane %v6288, %v6359
        %v6361 = vlaneseq
        %v6362 = vshrl.u32 %v6361, 7
        %v6363 = vsub.s32 0, %v6362
        %v6364 = vrot.slane %v6289, %v6363
        %v6365 = vlaneseq
        %v6366 = vshrl.u32 %v6365, 7
        %v6367 = vsub.s32 1, %v6366
        %v6368 = vrot.slane %v6289, %v6367
        %v6369 = vlaneseq
        %v6370 = vshrl.u32 %v6369, 7
        %v6371 = vsub.s32 0, %v6370
        %v6372 = vrot.slane %v6290, %v6371
        %v6373 = vlaneseq
        %v6374 = vshrl.u32 %v6373, 7
        %v6375 = vsub.s32 1, %v6374
        %v6376 = vrot.slane %v6290, %v6375
        %v6377 = vlaneseq
        %v6378 = vshrl.u32 %v6377, 7
        %v6379 = vsub.s32 0, %v6378
        %v6380 = vrot.slane %v6291, %v6379
        %v6381 = vlaneseq
        %v6382 = vshrl.u32 %v6381, 7
        %v6383 = vsub.s32 1, %v6382
        %v6384 = vrot.slane %v6291, %v6383
        %v6385 = vlaneseq
        %v6386 = vshrl.u32 %v6385, 7
        %v6387 = vsub.s32 0, %v6386
        %v6388 = vrot.slane %v6292, %v6387
        %v6389 = vlaneseq
        %v6390 = vshrl.u32 %v6389, 7
        %v6391 = vsub.s32 1, %v6390
        %v6392 = vrot.slane %v6292, %v6391
        %v6393 = vlaneseq
        %v6394 = vshrl.u32 %v6393, 7
        %v6395 = vsub.s32 0, %v6394
        %v6396 = vrot.slane %v6293, %v6395
        %v6397 = vlaneseq
        %v6398 = vshrl.u32 %v6397, 7
        %v6399 = vsub.s32 1, %v6398
        %v6400 = vrot.slane %v6293, %v6399
        %v6401 = vlaneseq
        %v6402 = vshrl.u32 %v6401, 7
        %v6403 = vsub.s32 0, %v6402
        %v6404 = vrot.slane %v6294, %v6403
        %v6405 = vlaneseq
        %v6406 = vshrl.u32 %v6405, 7
        %v6407 = vsub.s32 1, %v6406
        %v6408 = vrot.slane %v6294, %v6407
        %v6409 = vlaneseq
        %v6410 = vshrl.u32 %v6409, 7
        %v6411 = vsub.s32 0, %v6410
        %v6412 = vrot.slane %v6295, %v6411
        %v6413 = vlaneseq
        %v6414 = vshrl.u32 %v6413, 7
        %v6415 = vsub.s32 1, %v6414
        %v6416 = vrot.slane %v6295, %v6415
        %v6417 = vlaneseq
        %v6418 = vshrl.u32 %v6417, 7
        %v6419 = vsub.s32 0, %v6418
        %v6420 = vrot.slane %v6296, %v6419
        %v6421 = vlaneseq
        %v6422 = vshrl.u32 %v6421, 7
        %v6423 = vsub.s32 1, %v6422
        %v6424 = vrot.slane %v6296, %v6423
        %v6426 = vpack.i.b16 %v6300, %v6300
        %v6428 = vlaneseq
        %v6429 = vshrl.u32 %v6428, 7
        %v6430 = vsub.s32 0, %v6429
        %v6431 = vrot.slane %v6426, %v6430
        %v6433 = vpack.i.b16 %v6304, %v6304
        %v6435 = vlaneseq
        %v6436 = vshrl.u32 %v6435, 7
        %v6437 = vsub.s32 0, %v6436
        %v6438 = vrot.slane %v6433, %v6437
        %v6440 = vpack.i.b16 %v6308, %v6308
        %v6442 = vlaneseq
        %v6443 = vshrl.u32 %v6442, 7
        %v6444 = vsub.s32 0, %v6443
        %v6445 = vrot.slane %v6440, %v6444
        %v6447 = vpack.i.b16 %v6312, %v6312
        %v6449 = vlaneseq
        %v6450 = vshrl.u32 %v6449, 7
        %v6451 = vsub.s32 0, %v6450
        %v6452 = vrot.slane %v6447, %v6451
        %v6454 = vpack.i.b16 %v6316, %v6316
        %v6456 = vlaneseq
        %v6457 = vshrl.u32 %v6456, 7
        %v6458 = vsub.s32 0, %v6457
        %v6459 = vrot.slane %v6454, %v6458
        %v6461 = vpack.i.b16 %v6320, %v6320
        %v6463 = vlaneseq
        %v6464 = vshrl.u32 %v6463, 7
        %v6465 = vsub.s32 0, %v6464
        %v6466 = vrot.slane %v6461, %v6465
        %v6468 = vpack.i.b16 %v6324, %v6324
        %v6470 = vlaneseq
        %v6471 = vshrl.u32 %v6470, 7
        %v6472 = vsub.s32 0, %v6471
        %v6473 = vrot.slane %v6468, %v6472
        %v6475 = vpack.i.b16 %v6328, %v6328
        %v6477 = vlaneseq
        %v6478 = vshrl.u32 %v6477, 7
        %v6479 = vsub.s32 0, %v6478
        %v6480 = vrot.slane %v6475, %v6479
        %v6482 = vpack.i.b16 %v6332, %v6332
        %v6484 = vlaneseq
        %v6485 = vshrl.u32 %v6484, 7
        %v6486 = vsub.s32 0, %v6485
        %v6487 = vrot.slane %v6482, %v6486
        %v6489 = vpack.i.b16 %v6336, %v6336
        %v6491 = vlaneseq
        %v6492 = vshrl.u32 %v6491, 7
        %v6493 = vsub.s32 0, %v6492
        %v6494 = vrot.slane %v6489, %v6493
        %v6496 = vpack.i.b16 %v6340, %v6340
        %v6498 = vlaneseq
        %v6499 = vshrl.u32 %v6498, 7
        %v6500 = vsub.s32 0, %v6499
        %v6501 = vrot.slane %v6496, %v6500
        %v6503 = vpack.i.b16 %v6344, %v6344
        %v6505 = vlaneseq
        %v6506 = vshrl.u32 %v6505, 7
        %v6507 = vsub.s32 0, %v6506
        %v6508 = vrot.slane %v6503, %v6507
        %v6510 = vpack.i.b16 %v6348, %v6348
        %v6512 = vlaneseq
        %v6513 = vshrl.u32 %v6512, 7
        %v6514 = vsub.s32 0, %v6513
        %v6515 = vrot.slane %v6510, %v6514
        %v6517 = vpack.i.b16 %v6352, %v6352
        %v6519 = vlaneseq
        %v6520 = vshrl.u32 %v6519, 7
        %v6521 = vsub.s32 0, %v6520
        %v6522 = vrot.slane %v6517, %v6521
        %v6524 = vpack.i.b16 %v6356, %v6356
        %v6526 = vlaneseq
        %v6527 = vshrl.u32 %v6526, 7
        %v6528 = vsub.s32 0, %v6527
        %v6529 = vrot.slane %v6524, %v6528
        %v6531 = vpack.i.b16 %v6360, %v6360
        %v6533 = vlaneseq
        %v6534 = vshrl.u32 %v6533, 7
        %v6535 = vsub.s32 0, %v6534
        %v6536 = vrot.slane %v6531, %v6535
        %v6538 = vpack.i.b16 %v6364, %v6364
        %v6540 = vlaneseq
        %v6541 = vshrl.u32 %v6540, 7
        %v6542 = vsub.s32 0, %v6541
        %v6543 = vrot.slane %v6538, %v6542
        %v6545 = vpack.i.b16 %v6368, %v6368
        %v6547 = vlaneseq
        %v6548 = vshrl.u32 %v6547, 7
        %v6549 = vsub.s32 0, %v6548
        %v6550 = vrot.slane %v6545, %v6549
        %v6552 = vpack.i.b16 %v6372, %v6372
        %v6554 = vlaneseq
        %v6555 = vshrl.u32 %v6554, 7
        %v6556 = vsub.s32 0, %v6555
        %v6557 = vrot.slane %v6552, %v6556
        %v6559 = vpack.i.b16 %v6376, %v6376
        %v6561 = vlaneseq
        %v6562 = vshrl.u32 %v6561, 7
        %v6563 = vsub.s32 0, %v6562
        %v6564 = vrot.slane %v6559, %v6563
        %v6566 = vpack.i.b16 %v6380, %v6380
        %v6568 = vlaneseq
        %v6569 = vshrl.u32 %v6568, 7
        %v6570 = vsub.s32 0, %v6569
        %v6571 = vrot.slane %v6566, %v6570
        %v6573 = vpack.i.b16 %v6384, %v6384
        %v6575 = vlaneseq
        %v6576 = vshrl.u32 %v6575, 7
        %v6577 = vsub.s32 0, %v6576
        %v6578 = vrot.slane %v6573, %v6577
        %v6580 = vpack.i.b16 %v6388, %v6388
        %v6582 = vlaneseq
        %v6583 = vshrl.u32 %v6582, 7
        %v6584 = vsub.s32 0, %v6583
        %v6585 = vrot.slane %v6580, %v6584
        %v6587 = vpack.i.b16 %v6392, %v6392
        %v6589 = vlaneseq
        %v6590 = vshrl.u32 %v6589, 7
        %v6591 = vsub.s32 0, %v6590
        %v6592 = vrot.slane %v6587, %v6591
        %v6594 = vpack.i.b16 %v6396, %v6396
        %v6596 = vlaneseq
        %v6597 = vshrl.u32 %v6596, 7
        %v6598 = vsub.s32 0, %v6597
        %v6599 = vrot.slane %v6594, %v6598
        %v6601 = vpack.i.b16 %v6400, %v6400
        %v6603 = vlaneseq
        %v6604 = vshrl.u32 %v6603, 7
        %v6605 = vsub.s32 0, %v6604
        %v6606 = vrot.slane %v6601, %v6605
        %v6608 = vpack.i.b16 %v6404, %v6404
        %v6610 = vlaneseq
        %v6611 = vshrl.u32 %v6610, 7
        %v6612 = vsub.s32 0, %v6611
        %v6613 = vrot.slane %v6608, %v6612
        %v6615 = vpack.i.b16 %v6408, %v6408
        %v6617 = vlaneseq
        %v6618 = vshrl.u32 %v6617, 7
        %v6619 = vsub.s32 0, %v6618
        %v6620 = vrot.slane %v6615, %v6619
        %v6622 = vpack.i.b16 %v6412, %v6412
        %v6624 = vlaneseq
        %v6625 = vshrl.u32 %v6624, 7
        %v6626 = vsub.s32 0, %v6625
        %v6627 = vrot.slane %v6622, %v6626
        %v6629 = vpack.i.b16 %v6416, %v6416
        %v6631 = vlaneseq
        %v6632 = vshrl.u32 %v6631, 7
        %v6633 = vsub.s32 0, %v6632
        %v6634 = vrot.slane %v6629, %v6633
        %v6636 = vpack.i.b16 %v6420, %v6420
        %v6638 = vlaneseq
        %v6639 = vshrl.u32 %v6638, 7
        %v6640 = vsub.s32 0, %v6639
        %v6641 = vrot.slane %v6636, %v6640
        %v6643 = vpack.i.b16 %v6424, %v6424
        %v6645 = vlaneseq
        %v6646 = vshrl.u32 %v6645, 7
        %v6647 = vsub.s32 0, %v6646
        %v6648 = vrot.slane %v6643, %v6647
        %v6649 = vmul.bf16 %v6431, %v6211
        %v6650 = vmul.bf16 %v6438, %v6212
        %v6651 = vmul.bf16 %v6445, %v6211
        %v6652 = vmul.bf16 %v6452, %v6212
        %v6653 = vmul.bf16 %v6459, %v6211
        %v6654 = vmul.bf16 %v6466, %v6212
        %v6655 = vmul.bf16 %v6473, %v6211
        %v6656 = vmul.bf16 %v6480, %v6212
        %v6657 = vmul.bf16 %v6487, %v6211
        %v6658 = vmul.bf16 %v6494, %v6212
        %v6659 = vmul.bf16 %v6501, %v6211
        %v6660 = vmul.bf16 %v6508, %v6212
        %v6661 = vmul.bf16 %v6515, %v6211
        %v6662 = vmul.bf16 %v6522, %v6212
        %v6663 = vmul.bf16 %v6529, %v6211
        %v6664 = vmul.bf16 %v6536, %v6212
        %v6665 = vmul.bf16 %v6543, %v6211
        %v6666 = vmul.bf16 %v6550, %v6212
        %v6667 = vmul.bf16 %v6557, %v6211
        %v6668 = vmul.bf16 %v6564, %v6212
        %v6669 = vmul.bf16 %v6571, %v6211
        %v6670 = vmul.bf16 %v6578, %v6212
        %v6671 = vmul.bf16 %v6585, %v6211
        %v6672 = vmul.bf16 %v6592, %v6212
        %v6673 = vmul.bf16 %v6599, %v6211
        %v6674 = vmul.bf16 %v6606, %v6212
        %v6675 = vmul.bf16 %v6613, %v6211
        %v6676 = vmul.bf16 %v6620, %v6212
        %v6677 = vmul.bf16 %v6627, %v6211
        %v6678 = vmul.bf16 %v6634, %v6212
        %v6679 = vmul.bf16 %v6641, %v6211
        %v6680 = vmul.bf16 %v6648, %v6212
        %6681 = vmatprep.subr.bf16.mxu0 %v6650
        %6682 = vmatpush1.bf16.msra.mxu0 %v6649
        %6683 = vmatprep.subr.bf16.mxu0 %v6652
        %6684 = vmatpush1.bf16.msra.mxu0 %v6651
        %6685 = vmatprep.subr.bf16.mxu0 %v6654
        %6686 = vmatpush1.bf16.msra.mxu0 %v6653
        %6687 = vmatprep.subr.bf16.mxu0 %v6656
        %6688 = vmatpush1.bf16.msra.mxu0 %v6655
        %6689 = vmatprep.subr.bf16.mxu0 %v6658
        %6690 = vmatpush1.bf16.msra.mxu0 %v6657
        %6691 = vmatprep.subr.bf16.mxu0 %v6660
        %6692 = vmatpush1.bf16.msra.mxu0 %v6659
        %6693 = vmatprep.subr.bf16.mxu0 %v6662
        %6694 = vmatpush1.bf16.msra.mxu0 %v6661
        %6695 = vmatprep.subr.bf16.mxu0 %v6664
        %6696 = vmatpush1.bf16.msra.mxu0 %v6663
        %6697 = vmatprep.subr.bf16.mxu0 %v6666
        %6698 = vmatpush1.bf16.msra.mxu0 %v6665
        %6699 = vmatprep.subr.bf16.mxu0 %v6668
        %6700 = vmatpush1.bf16.msra.mxu0 %v6667
        %6701 = vmatprep.subr.bf16.mxu0 %v6670
        %6702 = vmatpush1.bf16.msra.mxu0 %v6669
        %6703 = vmatprep.subr.bf16.mxu0 %v6672
        %6704 = vmatpush1.bf16.msra.mxu0 %v6671
        %6705 = vmatprep.subr.bf16.mxu0 %v6674
        %6706 = vmatpush1.bf16.msra.mxu0 %v6673
        %6707 = vmatprep.subr.bf16.mxu0 %v6676
        %6708 = vmatpush1.bf16.msra.mxu0 %v6675
        %6709 = vmatprep.subr.bf16.mxu0 %v6678
        %6710 = vmatpush1.bf16.msra.mxu0 %v6677
        %6711 = vmatprep.subr.bf16.mxu0 %v6680
        %6712 = vmatpush1.bf16.msra.mxu0 %v6679
        %6713 = vmatprep.mubr.bf16.mxu0 %v1846
        %6714 = vmatmul.mubr.bf16.gmra.mrb[0].mxu0 %v1845
        %v6715 = vpop.f32.mrb[0].mxu0
        %v6716 = vadd.f32 0.0, %v6715
        %v6717 = vpop.f32.mrb[0].mxu0
        %v6718 = vadd.f32 0.0, %v6717
        %v6719 = vpop.f32.mrb[0].mxu0
        %v6720 = vpop.f32.mrb[0].mxu0
        %6721 = vdwg.mxu0
        %v6723 = vadd.f32 %v5338, %v1907
        %v6724 = vcombine.high %v6039, %v6039
        %v6726 = vunpack.c.l.s4 1966171168
        %v6727 = vunpack.c.0.s8 %v6726
        %v6728 = vlaneseq
        %v6729 = vshrl.u32 %v6728, 7
        %v6730 = vsub.s32 %v6727, %v6729
        %v6731 = vrot.slane %v6724, %v6730
        %v6733 = vadd.f32 %v2588, %v6731
        %vm6734 = vcmp.gt.f32.partialorder %v6723, -1.0
        %vm6735 = vcmp.lt.f32.partialorder %v6723, 16.0
        %vm6736 = vmand %vm6734, %vm6735
        %vm6737 = vcmp.gt.f32.partialorder %v6733, -1.0
        %vm6738 = vmand %vm6736, %vm6737
        %vm6739 = vcmp.lt.f32.partialorder %v6733, 16.0
        %vm6740 = vmand %vm6738, %vm6739
        %v6741 = vsel %vm6740, 1, 0
        %v6742 = vcvt.s32.f32 %v6741
        %v6743 = vfloor.f32 %v6723
        %v6744 = vfloor.f32 %v6733
        %v6745 = vsub.f32 %v6723, %v6743
        %v6746 = vsub.f32 %v6733, %v6744
        %v6747 = vsub.f32 1.0, %v6745
        %v6748 = vsub.f32 1.0, %v6746
        %v6749 = vcvt.f32.s32.to.zero.pseudo %v6743
        %v6750 = vcvt.f32.s32.to.zero.pseudo %v6744
        %v6751 = vlaneseq
        %v6752 = vshrl.u32 %v6751, 7
        %v6753 = vsub.s32 0, %v6752
        %v6754 = vrot.slane %v6749, %v6753
        %v6755 = vlaneseq
        %v6756 = vshrl.u32 %v6755, 7
        %v6757 = vsub.s32 1, %v6756
        %v6758 = vrot.slane %v6749, %v6757
        %vm6759 = vcmp.eq.s32.totalorder %v1152, %v6754
        %vm6760 = vcmp.eq.s32.totalorder %v1152, %v6758
        %vm6761 = vcmp.eq.s32.totalorder %v1153, %v6754
        %vm6762 = vcmp.eq.s32.totalorder %v1153, %v6758
        %v6764 = vlaneseq
        %v6765 = vshrl.u32 %v6764, 7
        %v6766 = vsub.s32 0, %v6765
        %v6767 = vrot.slane %v6747, %v6766
        %v6768 = vlaneseq
        %v6769 = vshrl.u32 %v6768, 7
        %v6770 = vsub.s32 1, %v6769
        %v6771 = vrot.slane %v6747, %v6770
        %v6774 = vsel %vm6759, %v6767, 0.0
        %v6775 = vsel %vm6760, %v6771, 0.0
        %v6776 = vsel %vm6761, %v6767, 0.0
        %v6777 = vsel %vm6762, %v6771, 0.0
        %v6778 = vadd.s32 %v6749, 1
        %v6779 = vlaneseq
        %v6780 = vshrl.u32 %v6779, 7
        %v6781 = vsub.s32 0, %v6780
        %v6782 = vrot.slane %v6778, %v6781
        %v6783 = vlaneseq
        %v6784 = vshrl.u32 %v6783, 7
        %v6785 = vsub.s32 1, %v6784
        %v6786 = vrot.slane %v6778, %v6785
        %vm6787 = vcmp.eq.s32.totalorder %v1152, %v6782
        %vm6788 = vcmp.eq.s32.totalorder %v1152, %v6786
        %vm6789 = vcmp.eq.s32.totalorder %v1153, %v6782
        %vm6790 = vcmp.eq.s32.totalorder %v1153, %v6786
        %v6792 = vlaneseq
        %v6793 = vshrl.u32 %v6792, 7
        %v6794 = vsub.s32 0, %v6793
        %v6795 = vrot.slane %v6745, %v6794
        %v6796 = vlaneseq
        %v6797 = vshrl.u32 %v6796, 7
        %v6798 = vsub.s32 1, %v6797
        %v6799 = vrot.slane %v6745, %v6798
        %v6802 = vsel %vm6787, %v6795, 0.0
        %v6803 = vsel %vm6788, %v6799, 0.0
        %v6804 = vsel %vm6789, %v6795, 0.0
        %v6805 = vsel %vm6790, %v6799, 0.0
        %v6806 = vadd.f32 %v6774, %v6802
        %v6807 = vadd.f32 %v6775, %v6803
        %v6808 = vadd.f32 %v6776, %v6804
        %v6809 = vadd.f32 %v6777, %v6805
        %v6810 = vcombine.high %v5437, %v5437
        %v6812 = vmul.f32 %v6742, %v6810
        %v6814 = vlaneseq
        %v6815 = vshrl.u32 %v6814, 7
        %v6816 = vsub.s32 0, %v6815
        %v6817 = vrot.slane %v6812, %v6816
        %v6818 = vlaneseq
        %v6819 = vshrl.u32 %v6818, 7
        %v6820 = vsub.s32 1, %v6819
        %v6821 = vrot.slane %v6812, %v6820
        %v6824 = vmul.f32 %v6806, %v6817
        %v6825 = vmul.f32 %v6807, %v6821
        %v6826 = vmul.f32 %v6808, %v6817
        %v6827 = vmul.f32 %v6809, %v6821
        %v6828 = vpack.c.bf16 %v6826, %v6824
        %v6829 = vpack.c.bf16 %v6827, %v6825
        %v6830 = vlaneseq
        %v6831 = vshrl.u32 %v6830, 7
        %v6832 = vsub.s32 0, %v6831
        %v6833 = vrot.slane %v6750, %v6832
        %v6834 = vlaneseq
        %v6835 = vshrl.u32 %v6834, 7
        %v6836 = vsub.s32 1, %v6835
        %v6837 = vrot.slane %v6750, %v6836
        %vm6838 = vcmp.eq.s32.totalorder %v1152, %v6833
        %vm6839 = vcmp.eq.s32.totalorder %v1152, %v6837
        %vm6840 = vcmp.eq.s32.totalorder %v1153, %v6833
        %vm6841 = vcmp.eq.s32.totalorder %v1153, %v6837
        %v6843 = vlaneseq
        %v6844 = vshrl.u32 %v6843, 7
        %v6845 = vsub.s32 0, %v6844
        %v6846 = vrot.slane %v6748, %v6845
        %v6847 = vlaneseq
        %v6848 = vshrl.u32 %v6847, 7
        %v6849 = vsub.s32 1, %v6848
        %v6850 = vrot.slane %v6748, %v6849
        %v6853 = vsel %vm6838, %v6846, 0.0
        %v6854 = vsel %vm6839, %v6850, 0.0
        %v6855 = vsel %vm6840, %v6846, 0.0
        %v6856 = vsel %vm6841, %v6850, 0.0
        %v6857 = vadd.s32 %v6750, 1
        %v6858 = vlaneseq
        %v6859 = vshrl.u32 %v6858, 7
        %v6860 = vsub.s32 0, %v6859
        %v6861 = vrot.slane %v6857, %v6860
        %v6862 = vlaneseq
        %v6863 = vshrl.u32 %v6862, 7
        %v6864 = vsub.s32 1, %v6863
        %v6865 = vrot.slane %v6857, %v6864
        %vm6866 = vcmp.eq.s32.totalorder %v1152, %v6861
        %vm6867 = vcmp.eq.s32.totalorder %v1152, %v6865
        %vm6868 = vcmp.eq.s32.totalorder %v1153, %v6861
        %vm6869 = vcmp.eq.s32.totalorder %v1153, %v6865
        %v6871 = vlaneseq
        %v6872 = vshrl.u32 %v6871, 7
        %v6873 = vsub.s32 0, %v6872
        %v6874 = vrot.slane %v6746, %v6873
        %v6875 = vlaneseq
        %v6876 = vshrl.u32 %v6875, 7
        %v6877 = vsub.s32 1, %v6876
        %v6878 = vrot.slane %v6746, %v6877
        %v6881 = vsel %vm6866, %v6874, 0.0
        %v6882 = vsel %vm6867, %v6878, 0.0
        %v6883 = vsel %vm6868, %v6874, 0.0
        %v6884 = vsel %vm6869, %v6878, 0.0
        %v6885 = vadd.f32 %v6853, %v6881
        %v6886 = vadd.f32 %v6854, %v6882
        %v6887 = vadd.f32 %v6855, %v6883
        %v6888 = vadd.f32 %v6856, %v6884
        %v6889 = vpack.c.bf16 %v6887, %v6885
        %v6890 = vpack.c.bf16 %v6888, %v6886
        %v6893 = vcombine.low %v6828, %v6829
        %v6894 = vcombine.high %v6828, %v6829
        %v6896 = vunpack.c.l.s4 1966171168
        %v6897 = vunpack.c.0.s8 %v6896
        %v6898 = vlaneseq
        %v6899 = vshrl.u32 %v6898, 7
        %v6900 = vsub.s32 %v6897, %v6899
        %v6901 = vrot.slane %v6893, %v6900
        %v6903 = vunpack.c.l.s4 1966171168
        %v6904 = vunpack.c.0.s8 %v6903
        %v6905 = vlaneseq
        %v6906 = vshrl.u32 %v6905, 7
        %v6907 = vsub.s32 %v6904, %v6906
        %v6908 = vrot.slane %v6894, %v6907
        %v6909 = vcombine.high %v6901, %v6901
        %v6910 = vcombine.high %v6908, %v6908
        %v6912 = vunpack.c.l.s4 1966171168
        %v6913 = vunpack.c.0.s8 %v6912
        %v6914 = vlaneseq
        %v6915 = vshrl.u32 %v6914, 7
        %v6916 = vsub.s32 %v6913, %v6915
        %v6917 = vrot.slane %v6901, %v6916
        %v6919 = vunpack.c.l.s4 1966171168
        %v6920 = vunpack.c.0.s8 %v6919
        %v6921 = vlaneseq
        %v6922 = vshrl.u32 %v6921, 7
        %v6923 = vsub.s32 %v6920, %v6922
        %v6924 = vrot.slane %v6908, %v6923
        %v6926 = vunpack.c.l.s4 1966171168
        %v6927 = vunpack.c.0.s8 %v6926
        %v6928 = vlaneseq
        %v6929 = vshrl.u32 %v6928, 7
        %v6930 = vsub.s32 %v6927, %v6929
        %v6931 = vrot.slane %v6909, %v6930
        %v6933 = vunpack.c.l.s4 1966171168
        %v6934 = vunpack.c.0.s8 %v6933
        %v6935 = vlaneseq
        %v6936 = vshrl.u32 %v6935, 7
        %v6937 = vsub.s32 %v6934, %v6936
        %v6938 = vrot.slane %v6910, %v6937
        %v6939 = vcombine.high %v6917, %v6917
        %v6940 = vcombine.high %v6924, %v6924
        %v6941 = vcombine.high %v6931, %v6931
        %v6942 = vcombine.high %v6938, %v6938
        %v6943 = vunpack.i.l.s16 %v6917
        %v6944 = vunpack.i.h.s16 %v6917
        %v6945 = vunpack.i.l.s16 %v6931
        %v6946 = vunpack.i.h.s16 %v6931
        %v6947 = vunpack.i.l.s16 %v6939
        %v6948 = vunpack.i.h.s16 %v6939
        %v6949 = vunpack.i.l.s16 %v6941
        %v6950 = vunpack.i.h.s16 %v6941
        %v6951 = vunpack.i.l.s16 %v6924
        %v6952 = vunpack.i.h.s16 %v6924
        %v6953 = vunpack.i.l.s16 %v6938
        %v6954 = vunpack.i.h.s16 %v6938
        %v6955 = vunpack.i.l.s16 %v6940
        %v6956 = vunpack.i.h.s16 %v6940
        %v6957 = vunpack.i.l.s16 %v6942
        %v6958 = vunpack.i.h.s16 %v6942
        %v6959 = vpack.i.b16 %v6943, %v6943
        %v6960 = vpack.i.b16 %v6944, %v6944
        %v6961 = vpack.i.b16 %v6945, %v6945
        %v6962 = vpack.i.b16 %v6946, %v6946
        %v6963 = vpack.i.b16 %v6947, %v6947
        %v6964 = vpack.i.b16 %v6948, %v6948
        %v6965 = vpack.i.b16 %v6949, %v6949
        %v6966 = vpack.i.b16 %v6950, %v6950
        %v6967 = vpack.i.b16 %v6951, %v6951
        %v6968 = vpack.i.b16 %v6952, %v6952
        %v6969 = vpack.i.b16 %v6953, %v6953
        %v6970 = vpack.i.b16 %v6954, %v6954
        %v6971 = vpack.i.b16 %v6955, %v6955
        %v6972 = vpack.i.b16 %v6956, %v6956
        %v6973 = vpack.i.b16 %v6957, %v6957
        %v6974 = vpack.i.b16 %v6958, %v6958
        %v6975 = vlaneseq
        %v6976 = vshrl.u32 %v6975, 7
        %v6977 = vsub.s32 0, %v6976
        %v6978 = vrot.slane %v6959, %v6977
        %v6979 = vlaneseq
        %v6980 = vshrl.u32 %v6979, 7
        %v6981 = vsub.s32 1, %v6980
        %v6982 = vrot.slane %v6959, %v6981
        %v6983 = vlaneseq
        %v6984 = vshrl.u32 %v6983, 7
        %v6985 = vsub.s32 0, %v6984
        %v6986 = vrot.slane %v6960, %v6985
        %v6987 = vlaneseq
        %v6988 = vshrl.u32 %v6987, 7
        %v6989 = vsub.s32 1, %v6988
        %v6990 = vrot.slane %v6960, %v6989
        %v6991 = vlaneseq
        %v6992 = vshrl.u32 %v6991, 7
        %v6993 = vsub.s32 0, %v6992
        %v6994 = vrot.slane %v6961, %v6993
        %v6995 = vlaneseq
        %v6996 = vshrl.u32 %v6995, 7
        %v6997 = vsub.s32 1, %v6996
        %v6998 = vrot.slane %v6961, %v6997
        %v6999 = vlaneseq
        %v7000 = vshrl.u32 %v6999, 7
        %v7001 = vsub.s32 0, %v7000
        %v7002 = vrot.slane %v6962, %v7001
        %v7003 = vlaneseq
        %v7004 = vshrl.u32 %v7003, 7
        %v7005 = vsub.s32 1, %v7004
        %v7006 = vrot.slane %v6962, %v7005
        %v7007 = vlaneseq
        %v7008 = vshrl.u32 %v7007, 7
        %v7009 = vsub.s32 0, %v7008
        %v7010 = vrot.slane %v6963, %v7009
        %v7011 = vlaneseq
        %v7012 = vshrl.u32 %v7011, 7
        %v7013 = vsub.s32 1, %v7012
        %v7014 = vrot.slane %v6963, %v7013
        %v7015 = vlaneseq
        %v7016 = vshrl.u32 %v7015, 7
        %v7017 = vsub.s32 0, %v7016
        %v7018 = vrot.slane %v6964, %v7017
        %v7019 = vlaneseq
        %v7020 = vshrl.u32 %v7019, 7
        %v7021 = vsub.s32 1, %v7020
        %v7022 = vrot.slane %v6964, %v7021
        %v7023 = vlaneseq
        %v7024 = vshrl.u32 %v7023, 7
        %v7025 = vsub.s32 0, %v7024
        %v7026 = vrot.slane %v6965, %v7025
        %v7027 = vlaneseq
        %v7028 = vshrl.u32 %v7027, 7
        %v7029 = vsub.s32 1, %v7028
        %v7030 = vrot.slane %v6965, %v7029
        %v7031 = vlaneseq
        %v7032 = vshrl.u32 %v7031, 7
        %v7033 = vsub.s32 0, %v7032
        %v7034 = vrot.slane %v6966, %v7033
        %v7035 = vlaneseq
        %v7036 = vshrl.u32 %v7035, 7
        %v7037 = vsub.s32 1, %v7036
        %v7038 = vrot.slane %v6966, %v7037
        %v7039 = vlaneseq
        %v7040 = vshrl.u32 %v7039, 7
        %v7041 = vsub.s32 0, %v7040
        %v7042 = vrot.slane %v6967, %v7041
        %v7043 = vlaneseq
        %v7044 = vshrl.u32 %v7043, 7
        %v7045 = vsub.s32 1, %v7044
        %v7046 = vrot.slane %v6967, %v7045
        %v7047 = vlaneseq
        %v7048 = vshrl.u32 %v7047, 7
        %v7049 = vsub.s32 0, %v7048
        %v7050 = vrot.slane %v6968, %v7049
        %v7051 = vlaneseq
        %v7052 = vshrl.u32 %v7051, 7
        %v7053 = vsub.s32 1, %v7052
        %v7054 = vrot.slane %v6968, %v7053
        %v7055 = vlaneseq
        %v7056 = vshrl.u32 %v7055, 7
        %v7057 = vsub.s32 0, %v7056
        %v7058 = vrot.slane %v6969, %v7057
        %v7059 = vlaneseq
        %v7060 = vshrl.u32 %v7059, 7
        %v7061 = vsub.s32 1, %v7060
        %v7062 = vrot.slane %v6969, %v7061
        %v7063 = vlaneseq
        %v7064 = vshrl.u32 %v7063, 7
        %v7065 = vsub.s32 0, %v7064
        %v7066 = vrot.slane %v6970, %v7065
        %v7067 = vlaneseq
        %v7068 = vshrl.u32 %v7067, 7
        %v7069 = vsub.s32 1, %v7068
        %v7070 = vrot.slane %v6970, %v7069
        %v7071 = vlaneseq
        %v7072 = vshrl.u32 %v7071, 7
        %v7073 = vsub.s32 0, %v7072
        %v7074 = vrot.slane %v6971, %v7073
        %v7075 = vlaneseq
        %v7076 = vshrl.u32 %v7075, 7
        %v7077 = vsub.s32 1, %v7076
        %v7078 = vrot.slane %v6971, %v7077
        %v7079 = vlaneseq
        %v7080 = vshrl.u32 %v7079, 7
        %v7081 = vsub.s32 0, %v7080
        %v7082 = vrot.slane %v6972, %v7081
        %v7083 = vlaneseq
        %v7084 = vshrl.u32 %v7083, 7
        %v7085 = vsub.s32 1, %v7084
        %v7086 = vrot.slane %v6972, %v7085
        %v7087 = vlaneseq
        %v7088 = vshrl.u32 %v7087, 7
        %v7089 = vsub.s32 0, %v7088
        %v7090 = vrot.slane %v6973, %v7089
        %v7091 = vlaneseq
        %v7092 = vshrl.u32 %v7091, 7
        %v7093 = vsub.s32 1, %v7092
        %v7094 = vrot.slane %v6973, %v7093
        %v7095 = vlaneseq
        %v7096 = vshrl.u32 %v7095, 7
        %v7097 = vsub.s32 0, %v7096
        %v7098 = vrot.slane %v6974, %v7097
        %v7099 = vlaneseq
        %v7100 = vshrl.u32 %v7099, 7
        %v7101 = vsub.s32 1, %v7100
        %v7102 = vrot.slane %v6974, %v7101
        %v7104 = vpack.i.b16 %v6978, %v6978
        %v7106 = vlaneseq
        %v7107 = vshrl.u32 %v7106, 7
        %v7108 = vsub.s32 0, %v7107
        %v7109 = vrot.slane %v7104, %v7108
        %v7111 = vpack.i.b16 %v6982, %v6982
        %v7113 = vlaneseq
        %v7114 = vshrl.u32 %v7113, 7
        %v7115 = vsub.s32 0, %v7114
        %v7116 = vrot.slane %v7111, %v7115
        %v7118 = vpack.i.b16 %v6986, %v6986
        %v7120 = vlaneseq
        %v7121 = vshrl.u32 %v7120, 7
        %v7122 = vsub.s32 0, %v7121
        %v7123 = vrot.slane %v7118, %v7122
        %v7125 = vpack.i.b16 %v6990, %v6990
        %v7127 = vlaneseq
        %v7128 = vshrl.u32 %v7127, 7
        %v7129 = vsub.s32 0, %v7128
        %v7130 = vrot.slane %v7125, %v7129
        %v7132 = vpack.i.b16 %v6994, %v6994
        %v7134 = vlaneseq
        %v7135 = vshrl.u32 %v7134, 7
        %v7136 = vsub.s32 0, %v7135
        %v7137 = vrot.slane %v7132, %v7136
        %v7139 = vpack.i.b16 %v6998, %v6998
        %v7141 = vlaneseq
        %v7142 = vshrl.u32 %v7141, 7
        %v7143 = vsub.s32 0, %v7142
        %v7144 = vrot.slane %v7139, %v7143
        %v7146 = vpack.i.b16 %v7002, %v7002
        %v7148 = vlaneseq
        %v7149 = vshrl.u32 %v7148, 7
        %v7150 = vsub.s32 0, %v7149
        %v7151 = vrot.slane %v7146, %v7150
        %v7153 = vpack.i.b16 %v7006, %v7006
        %v7155 = vlaneseq
        %v7156 = vshrl.u32 %v7155, 7
        %v7157 = vsub.s32 0, %v7156
        %v7158 = vrot.slane %v7153, %v7157
        %v7160 = vpack.i.b16 %v7010, %v7010
        %v7162 = vlaneseq
        %v7163 = vshrl.u32 %v7162, 7
        %v7164 = vsub.s32 0, %v7163
        %v7165 = vrot.slane %v7160, %v7164
        %v7167 = vpack.i.b16 %v7014, %v7014
        %v7169 = vlaneseq
        %v7170 = vshrl.u32 %v7169, 7
        %v7171 = vsub.s32 0, %v7170
        %v7172 = vrot.slane %v7167, %v7171
        %v7174 = vpack.i.b16 %v7018, %v7018
        %v7176 = vlaneseq
        %v7177 = vshrl.u32 %v7176, 7
        %v7178 = vsub.s32 0, %v7177
        %v7179 = vrot.slane %v7174, %v7178
        %v7181 = vpack.i.b16 %v7022, %v7022
        %v7183 = vlaneseq
        %v7184 = vshrl.u32 %v7183, 7
        %v7185 = vsub.s32 0, %v7184
        %v7186 = vrot.slane %v7181, %v7185
        %v7188 = vpack.i.b16 %v7026, %v7026
        %v7190 = vlaneseq
        %v7191 = vshrl.u32 %v7190, 7
        %v7192 = vsub.s32 0, %v7191
        %v7193 = vrot.slane %v7188, %v7192
        %v7195 = vpack.i.b16 %v7030, %v7030
        %v7197 = vlaneseq
        %v7198 = vshrl.u32 %v7197, 7
        %v7199 = vsub.s32 0, %v7198
        %v7200 = vrot.slane %v7195, %v7199
        %v7202 = vpack.i.b16 %v7034, %v7034
        %v7204 = vlaneseq
        %v7205 = vshrl.u32 %v7204, 7
        %v7206 = vsub.s32 0, %v7205
        %v7207 = vrot.slane %v7202, %v7206
        %v7209 = vpack.i.b16 %v7038, %v7038
        %v7211 = vlaneseq
        %v7212 = vshrl.u32 %v7211, 7
        %v7213 = vsub.s32 0, %v7212
        %v7214 = vrot.slane %v7209, %v7213
        %v7216 = vpack.i.b16 %v7042, %v7042
        %v7218 = vlaneseq
        %v7219 = vshrl.u32 %v7218, 7
        %v7220 = vsub.s32 0, %v7219
        %v7221 = vrot.slane %v7216, %v7220
        %v7223 = vpack.i.b16 %v7046, %v7046
        %v7225 = vlaneseq
        %v7226 = vshrl.u32 %v7225, 7
        %v7227 = vsub.s32 0, %v7226
        %v7228 = vrot.slane %v7223, %v7227
        %v7230 = vpack.i.b16 %v7050, %v7050
        %v7232 = vlaneseq
        %v7233 = vshrl.u32 %v7232, 7
        %v7234 = vsub.s32 0, %v7233
        %v7235 = vrot.slane %v7230, %v7234
        %v7237 = vpack.i.b16 %v7054, %v7054
        %v7239 = vlaneseq
        %v7240 = vshrl.u32 %v7239, 7
        %v7241 = vsub.s32 0, %v7240
        %v7242 = vrot.slane %v7237, %v7241
        %v7244 = vpack.i.b16 %v7058, %v7058
        %v7246 = vlaneseq
        %v7247 = vshrl.u32 %v7246, 7
        %v7248 = vsub.s32 0, %v7247
        %v7249 = vrot.slane %v7244, %v7248
        %v7251 = vpack.i.b16 %v7062, %v7062
        %v7253 = vlaneseq
        %v7254 = vshrl.u32 %v7253, 7
        %v7255 = vsub.s32 0, %v7254
        %v7256 = vrot.slane %v7251, %v7255
        %v7258 = vpack.i.b16 %v7066, %v7066
        %v7260 = vlaneseq
        %v7261 = vshrl.u32 %v7260, 7
        %v7262 = vsub.s32 0, %v7261
        %v7263 = vrot.slane %v7258, %v7262
        %v7265 = vpack.i.b16 %v7070, %v7070
        %v7267 = vlaneseq
        %v7268 = vshrl.u32 %v7267, 7
        %v7269 = vsub.s32 0, %v7268
        %v7270 = vrot.slane %v7265, %v7269
        %v7272 = vpack.i.b16 %v7074, %v7074
        %v7274 = vlaneseq
        %v7275 = vshrl.u32 %v7274, 7
        %v7276 = vsub.s32 0, %v7275
        %v7277 = vrot.slane %v7272, %v7276
        %v7279 = vpack.i.b16 %v7078, %v7078
        %v7281 = vlaneseq
        %v7282 = vshrl.u32 %v7281, 7
        %v7283 = vsub.s32 0, %v7282
        %v7284 = vrot.slane %v7279, %v7283
        %v7286 = vpack.i.b16 %v7082, %v7082
        %v7288 = vlaneseq
        %v7289 = vshrl.u32 %v7288, 7
        %v7290 = vsub.s32 0, %v7289
        %v7291 = vrot.slane %v7286, %v7290
        %v7293 = vpack.i.b16 %v7086, %v7086
        %v7295 = vlaneseq
        %v7296 = vshrl.u32 %v7295, 7
        %v7297 = vsub.s32 0, %v7296
        %v7298 = vrot.slane %v7293, %v7297
        %v7300 = vpack.i.b16 %v7090, %v7090
        %v7302 = vlaneseq
        %v7303 = vshrl.u32 %v7302, 7
        %v7304 = vsub.s32 0, %v7303
        %v7305 = vrot.slane %v7300, %v7304
        %v7307 = vpack.i.b16 %v7094, %v7094
        %v7309 = vlaneseq
        %v7310 = vshrl.u32 %v7309, 7
        %v7311 = vsub.s32 0, %v7310
        %v7312 = vrot.slane %v7307, %v7311
        %v7314 = vpack.i.b16 %v7098, %v7098
        %v7316 = vlaneseq
        %v7317 = vshrl.u32 %v7316, 7
        %v7318 = vsub.s32 0, %v7317
        %v7319 = vrot.slane %v7314, %v7318
        %v7321 = vpack.i.b16 %v7102, %v7102
        %v7323 = vlaneseq
        %v7324 = vshrl.u32 %v7323, 7
        %v7325 = vsub.s32 0, %v7324
        %v7326 = vrot.slane %v7321, %v7325
        %v7327 = vmul.bf16 %v7109, %v6889
        %v7328 = vmul.bf16 %v7116, %v6890
        %v7329 = vmul.bf16 %v7123, %v6889
        %v7330 = vmul.bf16 %v7130, %v6890
        %v7331 = vmul.bf16 %v7137, %v6889
        %v7332 = vmul.bf16 %v7144, %v6890
        %v7333 = vmul.bf16 %v7151, %v6889
        %v7334 = vmul.bf16 %v7158, %v6890
        %v7335 = vmul.bf16 %v7165, %v6889
        %v7336 = vmul.bf16 %v7172, %v6890
        %v7337 = vmul.bf16 %v7179, %v6889
        %v7338 = vmul.bf16 %v7186, %v6890
        %v7339 = vmul.bf16 %v7193, %v6889
        %v7340 = vmul.bf16 %v7200, %v6890
        %v7341 = vmul.bf16 %v7207, %v6889
        %v7342 = vmul.bf16 %v7214, %v6890
        %v7343 = vmul.bf16 %v7221, %v6889
        %v7344 = vmul.bf16 %v7228, %v6890
        %v7345 = vmul.bf16 %v7235, %v6889
        %v7346 = vmul.bf16 %v7242, %v6890
        %v7347 = vmul.bf16 %v7249, %v6889
        %v7348 = vmul.bf16 %v7256, %v6890
        %v7349 = vmul.bf16 %v7263, %v6889
        %v7350 = vmul.bf16 %v7270, %v6890
        %v7351 = vmul.bf16 %v7277, %v6889
        %v7352 = vmul.bf16 %v7284, %v6890
        %v7353 = vmul.bf16 %v7291, %v6889
        %v7354 = vmul.bf16 %v7298, %v6890
        %v7355 = vmul.bf16 %v7305, %v6889
        %v7356 = vmul.bf16 %v7312, %v6890
        %v7357 = vmul.bf16 %v7319, %v6889
        %v7358 = vmul.bf16 %v7326, %v6890
        %7359 = vmatprep.subr.bf16.mxu0 %v7328
        %7360 = vmatpush1.bf16.msra.mxu0 %v7327
        %7361 = vmatprep.subr.bf16.mxu0 %v7330
        %7362 = vmatpush1.bf16.msra.mxu0 %v7329
        %7363 = vmatprep.subr.bf16.mxu0 %v7332
        %7364 = vmatpush1.bf16.msra.mxu0 %v7331
        %7365 = vmatprep.subr.bf16.mxu0 %v7334
        %7366 = vmatpush1.bf16.msra.mxu0 %v7333
        %7367 = vmatprep.subr.bf16.mxu0 %v7336
        %7368 = vmatpush1.bf16.msra.mxu0 %v7335
        %7369 = vmatprep.subr.bf16.mxu0 %v7338
        %7370 = vmatpush1.bf16.msra.mxu0 %v7337
        %7371 = vmatprep.subr.bf16.mxu0 %v7340
        %7372 = vmatpush1.bf16.msra.mxu0 %v7339
        %7373 = vmatprep.subr.bf16.mxu0 %v7342
        %7374 = vmatpush1.bf16.msra.mxu0 %v7341
        %7375 = vmatprep.subr.bf16.mxu0 %v7344
        %7376 = vmatpush1.bf16.msra.mxu0 %v7343
        %7377 = vmatprep.subr.bf16.mxu0 %v7346
        %7378 = vmatpush1.bf16.msra.mxu0 %v7345
        %7379 = vmatprep.subr.bf16.mxu0 %v7348
        %7380 = vmatpush1.bf16.msra.mxu0 %v7347
        %7381 = vmatprep.subr.bf16.mxu0 %v7350
        %7382 = vmatpush1.bf16.msra.mxu0 %v7349
        %7383 = vmatprep.subr.bf16.mxu0 %v7352
        %7384 = vmatpush1.bf16.msra.mxu0 %v7351
        %7385 = vmatprep.subr.bf16.mxu0 %v7354
        %7386 = vmatpush1.bf16.msra.mxu0 %v7353
        %7387 = vmatprep.subr.bf16.mxu0 %v7356
        %7388 = vmatpush1.bf16.msra.mxu0 %v7355
        %7389 = vmatprep.subr.bf16.mxu0 %v7358
        %7390 = vmatpush1.bf16.msra.mxu0 %v7357
        %7391 = vmatprep.mubr.bf16.mxu0 %v1846
        %7392 = vmatmul.mubr.bf16.gmra.mrb[0].mxu0 %v1845
        %v7393 = vpop.f32.mrb[0].mxu0
        %v7394 = vadd.f32 0.0, %v7393
        %v7395 = vpop.f32.mrb[0].mxu0
        %v7396 = vadd.f32 0.0, %v7395
        %v7397 = vpop.f32.mrb[0].mxu0
        %v7398 = vpop.f32.mrb[0].mxu0
        %7399 = vdwg.mxu0
        %v7402 = vrot.slane %v2579, 4
        %v7403 = vrot.slane %v2581, 4
        %v7408 = vrot.slane %v3960, 4
        %v7409 = vrot.slane %v3962, 4
        %v7414 = vrot.slane %v5332, 4
        %v7415 = vrot.slane %v5334, 4
        %v7420 = vrot.slane %v6716, 4
        %v7421 = vrot.slane %v6718, 4
        %v7424 = vsel %vm401, %v1884, %v7402
        %v7425 = vsel %vm401, %v1886, %v7403
        %v7426 = vsel %vm401, %v3266, %v7408
        %v7427 = vsel %vm401, %v3268, %v7409
        %v7428 = vsel %vm401, %v4653, %v7414
        %v7429 = vsel %vm401, %v4655, %v7415
        %v7430 = vsel %vm401, %v6021, %v7420
        %v7431 = vsel %vm401, %v6023, %v7421
        %v7432 = vld [vmem:[%s5] sm:$0xff]
        %v7433 = vld [vmem:[%s6] sm:$0xff]
        %7435 = vset.pattern.permute.xlu0 0
        %7436 = vperm.xlu0 %7435, %v7433
        %v7437 = vpop.permute.xlu0 %7436
        %v7440 = vsel %vm388, %v7432, 0
        %v7443 = vsel %vm401, %v7394, 0
        %v7446 = vsel %vm401, %v7396, 0
        %7448 = vmatprep.subr.mxu0 %v7425
        %7449 = vmatpush1.msra.mxu0 %v7424
        %7450 = vmatprep.subr.mxu0 %v7427
        %7451 = vmatpush1.msra.mxu0 %v7426
        %7452 = vmatprep.subr.mxu0 %v7429
        %7453 = vmatpush1.msra.mxu0 %v7428
        %7454 = vmatprep.subr.mxu0 %v7431
        %7455 = vmatpush1.msra.mxu0 %v7430
        %7456 = vmatprep.subr.mxu0 %v7446
        %7457 = vmatpush1.msra.mxu0 %v7443
        %7458 = vmatprep.subr.mxu0 0.0
        %7459 = vmatpush1.msra.mxu0 0.0
        %7460 = vmatprep.subr.mxu0 0.0
        %7461 = vmatpush1.msra.mxu0 0.0
        %7462 = vmatprep.subr.mxu0 0.0
        %7463 = vmatpush1.msra.mxu0 0.0
        %7464 = vmatprep.subr.mxu0 0.0
        %7465 = vmatpush1.msra.mxu0 0.0
        %7466 = vmatprep.subr.mxu0 0.0
        %7467 = vmatpush1.msra.mxu0 0.0
        %7468 = vmatprep.subr.mxu0 0.0
        %7469 = vmatpush1.msra.mxu0 0.0
        %7470 = vmatprep.subr.mxu0 0.0
        %7471 = vmatpush1.msra.mxu0 0.0
        %7472 = vmatprep.subr.mxu0 0.0
        %7473 = vmatpush1.msra.mxu0 0.0
        %7474 = vmatprep.subr.mxu0 0.0
        %7475 = vmatpush1.msra.mxu0 0.0
        %7476 = vmatprep.subr.mxu0 0.0
        %7477 = vmatpush1.msra.mxu0 0.0
        %7478 = vmatprep.subr.mxu0 0.0
        %7479 = vmatpush1.msra.mxu0 0.0
        %7480 = vmatprep.subr.mxu0 0.0
        %7481 = vmatpush1.msra.mxu0 0.0
        %7482 = vmatprep.subr.mxu0 0.0
        %7483 = vmatpush1.msra.mxu0 0.0
        %7484 = vmatprep.subr.mxu0 0.0
        %7485 = vmatpush1.msra.mxu0 0.0
        %7486 = vmatprep.subr.mxu0 0.0
        %7487 = vmatpush1.msra.mxu0 0.0
        %7488 = vmatprep.subr.mxu0 0.0
        %7489 = vmatpush1.msra.mxu0 0.0
        %7490 = vmatprep.subr.mxu0 0.0
        %7491 = vmatpush1.msra.mxu0 0.0
        %7492 = vmatprep.subr.mxu0 0.0
        %7493 = vmatpush1.msra.mxu0 0.0
        %7494 = vmatprep.subr.mxu0 0.0
        %7495 = vmatpush1.msra.mxu0 0.0
        %7496 = vmatprep.subr.mxu0 0.0
        %7497 = vmatpush1.msra.mxu0 0.0
        %7498 = vmatprep.subr.mxu0 0.0
        %7499 = vmatpush1.msra.mxu0 0.0
        %7500 = vmatprep.subr.mxu0 0.0
        %7501 = vmatpush1.msra.mxu0 0.0
        %7502 = vmatprep.subr.mxu0 0.0
        %7503 = vmatpush1.msra.mxu0 0.0
        %7504 = vmatprep.subr.mxu0 0.0
        %7505 = vmatpush1.msra.mxu0 0.0
        %7506 = vmatprep.subr.mxu0 0.0
        %7507 = vmatpush1.msra.mxu0 0.0
        %7508 = vmatprep.subr.mxu0 0.0
        %7509 = vmatpush1.msra.mxu0 0.0
        %7510 = vmatprep.subr.mxu0 0.0
        %7511 = vmatpush1.msra.mxu0 0.0
        %7512 = vmatprep.mubr.f32.mxu0 0.0
        %7513 = vmatmul.mubr.f32.gmra.mrb[0].mxu0 %v7440
        %v7514 = vpop.f32.mrb[0].mxu0
        %v7515 = vadd.f32 %v7437, %v7514
        %v7516 = vpop.f32.mrb[0].mxu0
        %v7517 = vadd.f32 %v7437, %v7516
        %7518 = vdwg.mxu0
        %7519 = vst [vmem:[%s327] sm:$0xff] %v7515
        %7520 = vst [vmem:[%s327 + $0x8] sm:$0xff] %v7517
        %s7521 = sand.u32 %s207, 1
        %s7522 = scalar_lea.sflag [#allocation3], %s7521
        %s7523 = sand.u32 %s207, 1
        %s7524 = smul.addr %s7523, 16
        %s7525 = scalar_lea.vmem [#allocation2], %s7524
        // Predicated region
        $region49: #{tpu_custom_call.1} parent=47 // pred_check
          %p7526 = pneg %p217
        $region50: #{tpu_custom_call.1} parent=47 // pred_check_branch
          %7528 = sbr.rel (%p7526) target = $region52
        $region51: #{tpu_custom_call.1} parent=47 // pred_region
          %s7529 = smul.u32 2, %s26
          %s7531 = ssub.s32 256, 256
          %7532 = vsyncadd %s7522, %s7531
          %s7533 = smul.addr %s25, 2
          %s7534 = sadd.s32 %s7529, %s7533
          %s7535 = smul.addr %s7534, 128
          %s7536 = scalar_lea.hbm %s7, %s7535
          %s7538 = sshll.u32 %s7525, 4
          %s7539 = int_to_ptr.vmem [resolvable:$true] %s7538
          %7541 = dma.vmem_to_hbm [thread:$0]  %s7539, 256, %s7536, %s7522
        $region52: #{tpu_custom_call.1} parent=47 // pred_fallthru
          _
      $region48: #{tpu_custom_call.1} parent=5 // pred_fallthru
        _
      %p7542 = scmp.le.s32.totalorder 2, %s16
      // Predicated region
      $region53: #{tpu_custom_call.1} parent=5 // pred_check
        %p7543 = pneg %p7542
      $region54: #{tpu_custom_call.1} parent=5 // pred_check_branch
        %7545 = sbr.rel (%p7543) target = $region56
      $region55: #{tpu_custom_call.1} parent=5 // pred_region
        %s7546 = ssub.s32 %s16, 2
        // Predicated region
        $region57: #{tpu_custom_call.1} parent=55 // pred_check
          %p7547 = pneg %p223
        $region58: #{tpu_custom_call.1} parent=55 // pred_check_branch
          %7549 = sbr.rel (%p7547) target = $region60
        $region59: #{tpu_custom_call.1} parent=55 // pred_region
          %s7550 = sand.u32 %s208, 1
          %s7551 = scalar_lea.sflag [#allocation3], %s7550
          %s7552 = sand.u32 %s208, 1
          %s7553 = smul.addr %s7552, 16
          %s7554 = scalar_lea.vmem [#allocation2], %s7553
          %7555 = dma.done %s7551, 256
        $region60: #{tpu_custom_call.1} parent=55 // pred_fallthru
          _
      $region56: #{tpu_custom_call.1} parent=5 // pred_fallthru
        _
    $region6: #{tpu_custom_call.1} parent=1 // loop_footer
      %s20 = sadd.s32 1, %s16
    $region7: #{tpu_custom_call.1} parent=1 // loop_footer_branch
      %15 = sbr.rel target = $region3
    $region8: #{tpu_custom_call.1} parent=1 // loop_exit
      _
    %7556 = vsyncpa [#allocation3], 1
    %s7557 = scalar_lea.sflag [#allocation3], 1
    %7558 = vsyncpa %s7557, 1

</llo_original>
